<compile_context>
chip_gen: v5e
topology: v5e:2x2
jax: 0.10.0
libtpu: 0.0.40
codegen_flags: <defaults>
</compile_context>

<pallas_src>
import functools

import jax
import jax.numpy as jnp
from jax.experimental import pallas as pl
from jax.experimental.pallas import tpu as pltpu


LANE = 128                      # output channels padded to a full lane width
_MB = 1024 * 1024


def _round_up(x, m):
    return (x + m - 1) // m * m


def _cdiv(a, b):
    return (a + b - 1) // b


def _tpu_vmem_capacity():
    """Best-effort VMEM capacity query; 0 means 'unknown'."""
    try:
        return int(pltpu.get_tpu_info().vmem_capacity_bytes)
    except Exception:
        return 0


# ----------------------------------------------------------------------------
# Pallas kernels
# ----------------------------------------------------------------------------
def _conv_group_kernel(x_ref, w_ref, b_ref, o_ref, *, s2d_w, rows):
    """Space-to-depth conv tile: 4 accumulated matmuls + bias + LeakyReLU(0.2).

    x_ref: (1, Lp, 4C)  bf16 activation tile (s2d rows, zero tail padding)
    w_ref: (4, 4C, N)   bf16 per-group weight matrices (resident in VMEM)
    b_ref: (1, N)       f32 bias
    o_ref: (1, rows, N) output tile
    """
    x_all = x_ref[0]                                   # aligned full-block load
    acc = None
    for a in range(2):
        for b in range(2):
            prod = jnp.dot(x_all, w_ref[2 * a + b],
                           preferred_element_type=jnp.float32)    # (Lp, N) f32
            off = a * s2d_w + b                        # static row shift of tap
            part = prod[off:off + rows, :]             # f32 static slice
            acc = part if acc is None else acc + part
    acc = acc + b_ref[...]                             # (1, N) broadcasts
    acc = jnp.where(acc >= 0.0, acc, 0.2 * acc)        # LeakyReLU in f32
    o_ref[0] = acc.astype(o_ref.dtype)


def _conv_group_adv_kernel(x_ref, w_ref, b_ref, adv_ref, o_ref, *, s2d_w, rows):
    """Same as above plus the fused adv_layer: elementwise w*x + b, sigmoid."""
    x_all = x_ref[0]
    acc = None
    for a in range(2):
        for b in range(2):
            prod = jnp.dot(x_all, w_ref[2 * a + b],
                           preferred_element_type=jnp.float32)
            off = a * s2d_w + b
            part = prod[off:off + rows, :]
            acc = part if acc is None else acc + part
    acc = acc + b_ref[...]
    acc = jnp.where(acc >= 0.0, acc, 0.2 * acc)
    z = acc * adv_ref[0] + adv_ref[1]                  # scalars read from SMEM
    ez = jnp.exp(-jnp.abs(z))                          # numerically stable sigmoid
    sig = jnp.where(z >= 0.0, 1.0 / (1.0 + ez), ez / (1.0 + ez))
    o_ref[0] = sig.astype(o_ref.dtype)


# ----------------------------------------------------------------------------
# Conv2d(4x4, stride 2, valid) + LeakyReLU(0.2) (+ fused adv) wrapper
# ----------------------------------------------------------------------------
def conv2d_lrelu(x_nhwc, weight, bias, *, adv=None, out_dtype=jnp.bfloat16):
    """Channels-last conv block as one Pallas kernel.

    x_nhwc: (B, H, W, C)   activations
    weight: (OC, C, 4, 4)  PyTorch OIHW layout
    bias:   (OC,)
    adv:    optional (2,) f32 [w_adv, b_adv] -> fuse 1->1 affine + sigmoid.

    Returns (out, OC) with out of shape (B, OH, OW, N_pad), N_pad = round_up(OC, 128).
    Padded output channels must not be carried into another layer (caller slices).
    """
    B, H, W, C = x_nhwc.shape
    OC, C_w, KH, KW = weight.shape
    if C_w != C:
        raise ValueError("in-channel mismatch (zero-channel carry is not used)")
    if (KH, KW) != (4, 4):
        raise ValueError("kernel specialised for 4x4 / stride-2 conv")
    OH = (H - KH) // 2 + 1
    OW = (W - KW) // 2 + 1

    # Pad spatial dims to even so the 2x2 space-to-depth is exact (no-op here).
    Hp, Wp = _round_up(H, 2), _round_up(W, 2)
    if (Hp, Wp) != (H, W):
        x_nhwc = jnp.pad(x_nhwc, ((0, 0), (0, Hp - H), (0, Wp - W), (0, 0)))
    H2, W2 = Hp // 2, Wp // 2
    C4 = 4 * C
    Ls = H2 * W2                         # s2d rows per image

    # --- glue: space-to-depth, feature order (p, q, c); ~1x activation bytes --
    x = x_nhwc.astype(jnp.bfloat16)      # MXU-native; accumulation stays f32
    x = x.reshape(B, H2, 2, W2, 2, C).transpose(0, 1, 3, 2, 4, 5)
    x = x.reshape(B, Ls, C4)

    # --- batch tiling: generation-gated, >=2 grid steps when batch allows -----
    cap = _tpu_vmem_capacity()
    if cap:
        target_rows = 256 if cap <= 64 * _MB else 512   # v7x vs v5e/v6e
        vmem_limit = min(64 * _MB, max(32 * _MB, cap // 2))
    else:
        target_rows = 256
        vmem_limit = 32 * _MB
    tb = max(1, target_rows // Ls)
    tb = min(tb, B)
    if B >= 2:
        tb = min(tb, _cdiv(B, 2))        # guarantee >=2 tiles (v7x: 2 TensorCores)
    n_tiles = _cdiv(B, tb)
    Bp = n_tiles * tb
    if Bp != B:
        x = jnp.pad(x, ((0, Bp - B), (0, 0), (0, 0)))
    rows = tb * Ls
    pad_tail = _round_up(W2 + 1, 8)      # slack so shifted slices stay in bounds
    x = x.reshape(n_tiles, rows, C4)
    x = jnp.pad(x, ((0, 0), (0, pad_tail), (0, 0)))
    Lp = rows + pad_tail

    # --- weights: (OC, C, 4, 4) -> 4 groups of (4C -> N_pad), rows (p, q, c) ---
    N_pad = _round_up(OC, LANE)
    wt = weight.transpose(2, 3, 1, 0)                  # (KH, KW, C, OC)
    wt = wt.reshape(2, 2, 2, 2, C, OC)                 # (a, p, b, q, C, OC)
    wt = wt.transpose(0, 2, 1, 3, 4, 5)                # (a, b, p, q, C, OC)
    w_mat = wt.reshape(4, C4, OC)
    w_mat = jnp.pad(w_mat, ((0, 0), (0, 0), (0, N_pad - OC))).astype(jnp.bfloat16)
    b_mat = jnp.pad(bias, (0, N_pad - OC)).reshape(1, N_pad).astype(jnp.float32)

    in_specs = [
        pl.BlockSpec((1, Lp, C4), lambda k: (k, 0, 0)),      # activation tile
        pl.BlockSpec((4, C4, N_pad), lambda k: (0, 0, 0)),   # weights, resident
        pl.BlockSpec((1, N_pad), lambda k: (0, 0)),          # bias, resident
    ]
    inputs = [x, w_mat, b_mat]
    if adv is None:
        kernel = functools.partial(_conv_group_kernel, s2d_w=W2, rows=rows)
        transcendentals = 0
    else:
        kernel = functools.partial(_conv_group_adv_kernel, s2d_w=W2, rows=rows)
        in_specs.append(pl.BlockSpec(memory_space=pltpu.MemorySpace.SMEM))
        inputs.append(adv.astype(jnp.float32))
        transcendentals = n_tiles * rows * N_pad

    out_itemsize = jnp.dtype(out_dtype).itemsize
    cost = pl.CostEstimate(
        flops=2 * n_tiles * 4 * Lp * C4 * N_pad,
        transcendentals=transcendentals,
        bytes_accessed=(n_tiles * Lp * C4 * 2 + 4 * C4 * N_pad * 2
                        + N_pad * 4 + n_tiles * rows * N_pad * out_itemsize),
    )

    out = pl.pallas_call(
        kernel,
        out_shape=jax.ShapeDtypeStruct((n_tiles, rows, N_pad), out_dtype),
        grid=(n_tiles,),
        in_specs=in_specs,
        out_specs=pl.BlockSpec((1, rows, N_pad), lambda k: (k, 0, 0)),
        compiler_params=pltpu.CompilerParams(
            dimension_semantics=("parallel",),
            vmem_limit_bytes=vmem_limit),
        cost_estimate=cost,
    )(*inputs)

    # (n_tiles, tb*Ls, N_pad) -> (Bp, H2, W2, N_pad); keep only the valid window
    # (the extra s2d rows/cols are junk outputs discarded here).
    out = out.reshape(Bp, H2, W2, N_pad)[:B, :OH, :OW, :]
    return out, OC


# ----------------------------------------------------------------------------
# Forward pass
# ----------------------------------------------------------------------------
def discriminator_forward(img, params):
    """Forward pass of the (mutated) Discriminator.

    img: (B, 784, H, W) NCHW — the Conv2d stack requires 28*28 = 784 input
    channels with spatial dims.
    """
    B = img.shape[0]
    # TODO(synk): the reference does `img.view(-1, 28*28)` and then feeds the
    # 2-D tensor to Conv2d(784, 64, (4,4), (2,2)), which has no valid PyTorch
    # semantics; we feed the NCHW tensor with 784 channels to the conv stack.
    x = jnp.transpose(img, (0, 2, 3, 1))                     # NCHW -> NHWC once
    x1, oc1 = conv2d_lrelu(x, params["w1"], params["b1"])    # block 1 (bn=False)
    x1 = x1[..., :oc1]                                       # drop lane padding
                                                             # (no zero-channel carry)

    # TODO(synk): adv_layer = Linear(1,1) cannot consume the 64-feature vector;
    # we apply the 1->1 affine + sigmoid elementwise, fused into conv2's epilogue.
    adv = jnp.stack([params["w_adv"].reshape(()), params["b_adv"].reshape(())])
    x2, oc2 = conv2d_lrelu(x1, params["w2"], params["b2"], adv=adv,
                           out_dtype=jnp.float32)            # block 2 + fused adv
    out = x2[..., :oc2]                                      # drop lane padding

    # match PyTorch's out.view(B, -1) ordering (channel-major over spatial)
    validity = jnp.transpose(out, (0, 3, 1, 2)).reshape(B, -1)
    return validity


# ----------------------------------------------------------------------------
# Pure-JAX reference (same reinterpretation) for a numerical sanity check
# ----------------------------------------------------------------------------
def _reference_forward(img, params):
    def conv_block(x, w, b):
        y = jax.lax.conv_general_dilated(
            x, w, window_strides=(2, 2), padding="VALID",
            dimension_numbers=("NCHW", "OIHW", "NCHW"))
        y = y + b[None, :, None, None]
        return jnp.where(y >= 0.0, y, 0.2 * y)

    x = conv_block(img, params["w1"], params["b1"])
    x = conv_block(x, params["w2"], params["b2"])
    out = x.reshape(img.shape[0], -1)
    z = out * params["w_adv"][0, 0] + params["b_adv"][0, 0]
    return jax.nn.sigmoid(z)


# ----------------------------------------------------------------------------
# Demo
# ----------------------------------------------------------------------------
if __name__ == "__main__":
    key = jax.random.PRNGKey(0)
    k_img, k1, k2, k3, k4, k5, k6 = jax.random.split(key, 7)

    # Small shapes consistent with the module: Conv2d(784, 64, 4x4, stride 2)
    # needs 784 input channels; H=W=10 gives conv1 -> 4x4, conv2 -> 1x1.
    B, C, H, W = 2, 28 * 28, 10, 10
    img = jax.random.normal(k_img, (B, C, H, W), dtype=jnp.float32)

    params = {
        "w1": 0.02 * jax.random.normal(k1, (64, C, 4, 4), dtype=jnp.float32),
        "b1": 0.02 * jax.random.normal(k2, (64,), dtype=jnp.float32),
        "w2": 0.05 * jax.random.normal(k3, (64, 64, 4, 4), dtype=jnp.float32),
        "b2": 0.05 * jax.random.normal(k4, (64,), dtype=jnp.float32),
        "w_adv": jax.random.normal(k5, (1, 1), dtype=jnp.float32),
        "b_adv": jax.random.normal(k6, (1, 1), dtype=jnp.float32),
    }

    fwd = jax.jit(discriminator_forward)
    validity = fwd(img, params)
    jax.block_until_ready(validity)

    assert validity.shape == (B, 64), validity.shape
    assert bool(jnp.all(jnp.isfinite(validity)))
    assert bool(jnp.all((validity >= 0.0) & (validity <= 1.0)))

    # Loose check vs. a plain-JAX reference (bf16 MXU inputs -> generous atol).
    ref = jax.jit(_reference_forward)(img, params)
    jax.block_until_ready(ref)
    assert bool(jnp.max(jnp.abs(validity - ref)) < 0.1)

    print("KERNEL_OK")
</pallas_src>

<mosaic_0001>
module attributes {stable_mosaic.version = 11 : i64} {
  func.func @_conv_group_kernel(%arg0: i32, %arg1: memref<1x33x3136xbf16, #tpu.memory_space<vmem>>, %arg2: memref<4x3136x128xbf16, #tpu.memory_space<vmem>>, %arg3: memref<1x128xf32, #tpu.memory_space<vmem>>, %arg4: memref<1x25x128xbf16, #tpu.memory_space<vmem>>) attributes {dimension_semantics = [#tpu.dimension_semantics<parallel>], iteration_bounds = array<i64: 2>, scalar_prefetch = 0 : i64, scratch_operands = 0 : i64, tpu.core_type = #tpu.core_type<tc>, window_params = [{transform_indices = @transform_0, window_bounds = array<i64: 1, 33, 3136>}, {pipeline_mode = #tpu.pipeline_mode<synchronous>, transform_indices = @transform_1, window_bounds = array<i64: 4, 3136, 128>}, {pipeline_mode = #tpu.pipeline_mode<synchronous>, transform_indices = @transform_2, window_bounds = array<i64: 1, 128>}, {transform_indices = @transform_3, window_bounds = array<i64: 1, 25, 128>}]} {
    %c0 = arith.constant 0 : index
    %c0_0 = arith.constant 0 : index
    %c0_1 = arith.constant 0 : index
    %0 = vector.load %arg1[%c0, %c0_0, %c0_1] : memref<1x33x3136xbf16, #tpu.memory_space<vmem>>, vector<1x33x3136xbf16>
    %1 = vector.shape_cast %0 : vector<1x33x3136xbf16> to vector<33x3136xbf16>
    %c0_2 = arith.constant 0 : index
    %c0_3 = arith.constant 0 : index
    %c0_4 = arith.constant 0 : index
    %2 = vector.load %arg2[%c0_2, %c0_3, %c0_4] : memref<4x3136x128xbf16, #tpu.memory_space<vmem>>, vector<1x3136x128xbf16>
    %3 = vector.shape_cast %2 : vector<1x3136x128xbf16> to vector<3136x128xbf16>
    %cst = arith.constant dense<0.000000e+00> : vector<33x128xf32>
    %4 = tpu.matmul %1, %3, %cst {dimension_numbers = #tpu.dot_dimension_numbers<[1], [0], [0], [1], [0, 0, 1, 1], [], []>} : vector<33x3136xbf16>, vector<3136x128xbf16>, vector<33x128xf32> -> vector<33x128xf32>
    %5 = vector.extract_strided_slice %4 {offsets = [0, 0], sizes = [25, 128], strides = [1, 1]} : vector<33x128xf32> to vector<25x128xf32>
    %c1 = arith.constant 1 : index
    %c0_5 = arith.constant 0 : index
    %c0_6 = arith.constant 0 : index
    %6 = vector.load %arg2[%c1, %c0_5, %c0_6] : memref<4x3136x128xbf16, #tpu.memory_space<vmem>>, vector<1x3136x128xbf16>
    %7 = vector.shape_cast %6 : vector<1x3136x128xbf16> to vector<3136x128xbf16>
    %cst_7 = arith.constant dense<0.000000e+00> : vector<33x128xf32>
    %8 = tpu.matmul %1, %7, %cst_7 {dimension_numbers = #tpu.dot_dimension_numbers<[1], [0], [0], [1], [0, 0, 1, 1], [], []>} : vector<33x3136xbf16>, vector<3136x128xbf16>, vector<33x128xf32> -> vector<33x128xf32>
    %9 = vector.extract_strided_slice %8 {offsets = [1, 0], sizes = [25, 128], strides = [1, 1]} : vector<33x128xf32> to vector<25x128xf32>
    %10 = arith.addf %5, %9 : vector<25x128xf32>
    %c2 = arith.constant 2 : index
    %c0_8 = arith.constant 0 : index
    %c0_9 = arith.constant 0 : index
    %11 = vector.load %arg2[%c2, %c0_8, %c0_9] : memref<4x3136x128xbf16, #tpu.memory_space<vmem>>, vector<1x3136x128xbf16>
    %12 = vector.shape_cast %11 : vector<1x3136x128xbf16> to vector<3136x128xbf16>
    %cst_10 = arith.constant dense<0.000000e+00> : vector<33x128xf32>
    %13 = tpu.matmul %1, %12, %cst_10 {dimension_numbers = #tpu.dot_dimension_numbers<[1], [0], [0], [1], [0, 0, 1, 1], [], []>} : vector<33x3136xbf16>, vector<3136x128xbf16>, vector<33x128xf32> -> vector<33x128xf32>
    %14 = vector.extract_strided_slice %13 {offsets = [5, 0], sizes = [25, 128], strides = [1, 1]} : vector<33x128xf32> to vector<25x128xf32>
    %15 = arith.addf %10, %14 : vector<25x128xf32>
    %c3 = arith.constant 3 : index
    %c0_11 = arith.constant 0 : index
    %c0_12 = arith.constant 0 : index
    %16 = vector.load %arg2[%c3, %c0_11, %c0_12] : memref<4x3136x128xbf16, #tpu.memory_space<vmem>>, vector<1x3136x128xbf16>
    %17 = vector.shape_cast %16 : vector<1x3136x128xbf16> to vector<3136x128xbf16>
    %cst_13 = arith.constant dense<0.000000e+00> : vector<33x128xf32>
    %18 = tpu.matmul %1, %17, %cst_13 {dimension_numbers = #tpu.dot_dimension_numbers<[1], [0], [0], [1], [0, 0, 1, 1], [], []>} : vector<33x3136xbf16>, vector<3136x128xbf16>, vector<33x128xf32> -> vector<33x128xf32>
    %19 = vector.extract_strided_slice %18 {offsets = [6, 0], sizes = [25, 128], strides = [1, 1]} : vector<33x128xf32> to vector<25x128xf32>
    %20 = arith.addf %15, %19 : vector<25x128xf32>
    %c0_14 = arith.constant 0 : index
    %c0_15 = arith.constant 0 : index
    %21 = vector.load %arg3[%c0_14, %c0_15] : memref<1x128xf32, #tpu.memory_space<vmem>>, vector<1x128xf32>
    %22 = vector.broadcast %21 : vector<1x128xf32> to vector<25x128xf32>
    %23 = arith.addf %20, %22 : vector<25x128xf32>
    %cst_16 = arith.constant 0.000000e+00 : f32
    %24 = vector.broadcast %cst_16 : f32 to vector<25x128xf32>
    %25 = arith.cmpf oge, %23, %24 : vector<25x128xf32>
    %cst_17 = arith.constant 2.000000e-01 : f32
    %26 = vector.broadcast %cst_17 : f32 to vector<25x128xf32>
    %27 = arith.mulf %26, %23 : vector<25x128xf32>
    %28 = arith.select %25, %23, %27 : vector<25x128xi1>, vector<25x128xf32>
    %29 = arith.truncf %28 : vector<25x128xf32> to vector<25x128xbf16>
    %c0_18 = arith.constant 0 : index
    %c0_19 = arith.constant 0 : index
    %c0_20 = arith.constant 0 : index
    %30 = vector.load %arg4[%c0_18, %c0_19, %c0_20] : memref<1x25x128xbf16, #tpu.memory_space<vmem>>, vector<1x25x128xbf16>
    %31 = vector.shape_cast %30 : vector<1x25x128xbf16> to vector<25x128xbf16>
    %32 = vector.shape_cast %29 : vector<25x128xbf16> to vector<1x25x128xbf16>
    tpu.vector_store %arg4[%c0_18, %c0_19, %c0_20], %32 {strides = array<i32>} : memref<1x25x128xbf16, #tpu.memory_space<vmem>>, vector<1x25x128xbf16>,
    return
  }
  func.func @transform_0(%arg0: i32) -> (i32, i32, i32) {
    %c0_i32 = arith.constant 0 : i32
    %c0_i32_0 = arith.constant 0 : i32
    %c0_i32_1 = arith.constant 0 : i32
    return %arg0, %c0_i32, %c0_i32_0 : i32, i32, i32
  }
  func.func @transform_1(%arg0: i32) -> (i32, i32, i32) {
    %c0_i32 = arith.constant 0 : i32
    %c0_i32_0 = arith.constant 0 : i32
    %c0_i32_1 = arith.constant 0 : i32
    %c0_i32_2 = arith.constant 0 : i32
    return %c0_i32, %c0_i32_0, %c0_i32_1 : i32, i32, i32
  }
  func.func @transform_2(%arg0: i32) -> (i32, i32) {
    %c0_i32 = arith.constant 0 : i32
    %c0_i32_0 = arith.constant 0 : i32
    %c0_i32_1 = arith.constant 0 : i32
    return %c0_i32, %c0_i32_0 : i32, i32
  }
  func.func @transform_3(%arg0: i32) -> (i32, i32, i32) {
    %c0_i32 = arith.constant 0 : i32
    %c0_i32_0 = arith.constant 0 : i32
    %c0_i32_1 = arith.constant 0 : i32
    return %arg0, %c0_i32, %c0_i32_0 : i32, i32, i32
  }
}

module attributes {stable_mosaic.version = 11 : i64} {
  func.func @_conv_group_adv_kernel(%arg0: i32, %arg1: memref<1x12x256xbf16, #tpu.memory_space<vmem>>, %arg2: memref<4x256x128xbf16, #tpu.memory_space<vmem>>, %arg3: memref<1x128xf32, #tpu.memory_space<vmem>>, %arg4: memref<2xf32, #tpu.memory_space<smem>>, %arg5: memref<1x4x128xf32, #tpu.memory_space<vmem>>) attributes {dimension_semantics = [#tpu.dimension_semantics<parallel>], iteration_bounds = array<i64: 2>, scalar_prefetch = 0 : i64, scratch_operands = 0 : i64, tpu.core_type = #tpu.core_type<tc>, window_params = [{transform_indices = @transform_0, window_bounds = array<i64: 1, 12, 256>}, {pipeline_mode = #tpu.pipeline_mode<synchronous>, transform_indices = @transform_1, window_bounds = array<i64: 4, 256, 128>}, {pipeline_mode = #tpu.pipeline_mode<synchronous>, transform_indices = @transform_2, window_bounds = array<i64: 1, 128>}, {transform_indices = @transform_3, window_bounds = array<i64: 2>}, {transform_indices = @transform_4, window_bounds = array<i64: 1, 4, 128>}]} {
    %c0 = arith.constant 0 : index
    %c0_0 = arith.constant 0 : index
    %c0_1 = arith.constant 0 : index
    %0 = vector.load %arg1[%c0, %c0_0, %c0_1] : memref<1x12x256xbf16, #tpu.memory_space<vmem>>, vector<1x12x256xbf16>
    %1 = vector.shape_cast %0 : vector<1x12x256xbf16> to vector<12x256xbf16>
    %c0_2 = arith.constant 0 : index
    %c0_3 = arith.constant 0 : index
    %c0_4 = arith.constant 0 : index
    %2 = vector.load %arg2[%c0_2, %c0_3, %c0_4] : memref<4x256x128xbf16, #tpu.memory_space<vmem>>, vector<1x256x128xbf16>
    %3 = vector.shape_cast %2 : vector<1x256x128xbf16> to vector<256x128xbf16>
    %cst = arith.constant dense<0.000000e+00> : vector<12x128xf32>
    %4 = tpu.matmul %1, %3, %cst {dimension_numbers = #tpu.dot_dimension_numbers<[1], [0], [0], [1], [0, 0, 1, 1], [], []>} : vector<12x256xbf16>, vector<256x128xbf16>, vector<12x128xf32> -> vector<12x128xf32>
    %5 = vector.extract_strided_slice %4 {offsets = [0, 0], sizes = [4, 128], strides = [1, 1]} : vector<12x128xf32> to vector<4x128xf32>
    %c1 = arith.constant 1 : index
    %c0_5 = arith.constant 0 : index
    %c0_6 = arith.constant 0 : index
    %6 = vector.load %arg2[%c1, %c0_5, %c0_6] : memref<4x256x128xbf16, #tpu.memory_space<vmem>>, vector<1x256x128xbf16>
    %7 = vector.shape_cast %6 : vector<1x256x128xbf16> to vector<256x128xbf16>
    %cst_7 = arith.constant dense<0.000000e+00> : vector<12x128xf32>
    %8 = tpu.matmul %1, %7, %cst_7 {dimension_numbers = #tpu.dot_dimension_numbers<[1], [0], [0], [1], [0, 0, 1, 1], [], []>} : vector<12x256xbf16>, vector<256x128xbf16>, vector<12x128xf32> -> vector<12x128xf32>
    %9 = vector.extract_strided_slice %8 {offsets = [1, 0], sizes = [4, 128], strides = [1, 1]} : vector<12x128xf32> to vector<4x128xf32>
    %10 = arith.addf %5, %9 : vector<4x128xf32>
    %c2 = arith.constant 2 : index
    %c0_8 = arith.constant 0 : index
    %c0_9 = arith.constant 0 : index
    %11 = vector.load %arg2[%c2, %c0_8, %c0_9] : memref<4x256x128xbf16, #tpu.memory_space<vmem>>, vector<1x256x128xbf16>
    %12 = vector.shape_cast %11 : vector<1x256x128xbf16> to vector<256x128xbf16>
    %cst_10 = arith.constant dense<0.000000e+00> : vector<12x128xf32>
    %13 = tpu.matmul %1, %12, %cst_10 {dimension_numbers = #tpu.dot_dimension_numbers<[1], [0], [0], [1], [0, 0, 1, 1], [], []>} : vector<12x256xbf16>, vector<256x128xbf16>, vector<12x128xf32> -> vector<12x128xf32>
    %14 = vector.extract_strided_slice %13 {offsets = [2, 0], sizes = [4, 128], strides = [1, 1]} : vector<12x128xf32> to vector<4x128xf32>
    %15 = arith.addf %10, %14 : vector<4x128xf32>
    %c3 = arith.constant 3 : index
    %c0_11 = arith.constant 0 : index
    %c0_12 = arith.constant 0 : index
    %16 = vector.load %arg2[%c3, %c0_11, %c0_12] : memref<4x256x128xbf16, #tpu.memory_space<vmem>>, vector<1x256x128xbf16>
    %17 = vector.shape_cast %16 : vector<1x256x128xbf16> to vector<256x128xbf16>
    %cst_13 = arith.constant dense<0.000000e+00> : vector<12x128xf32>
    %18 = tpu.matmul %1, %17, %cst_13 {dimension_numbers = #tpu.dot_dimension_numbers<[1], [0], [0], [1], [0, 0, 1, 1], [], []>} : vector<12x256xbf16>, vector<256x128xbf16>, vector<12x128xf32> -> vector<12x128xf32>
    %19 = vector.extract_strided_slice %18 {offsets = [3, 0], sizes = [4, 128], strides = [1, 1]} : vector<12x128xf32> to vector<4x128xf32>
    %20 = arith.addf %15, %19 : vector<4x128xf32>
    %c0_14 = arith.constant 0 : index
    %c0_15 = arith.constant 0 : index
    %21 = vector.load %arg3[%c0_14, %c0_15] : memref<1x128xf32, #tpu.memory_space<vmem>>, vector<1x128xf32>
    %22 = vector.broadcast %21 : vector<1x128xf32> to vector<4x128xf32>
    %23 = arith.addf %20, %22 : vector<4x128xf32>
    %cst_16 = arith.constant 0.000000e+00 : f32
    %24 = vector.broadcast %cst_16 : f32 to vector<4x128xf32>
    %25 = arith.cmpf oge, %23, %24 : vector<4x128xf32>
    %cst_17 = arith.constant 2.000000e-01 : f32
    %26 = vector.broadcast %cst_17 : f32 to vector<4x128xf32>
    %27 = arith.mulf %26, %23 : vector<4x128xf32>
    %28 = arith.select %25, %23, %27 : vector<4x128xi1>, vector<4x128xf32>
    %c0_18 = arith.constant 0 : index
    %29 = memref.load %arg4[%c0_18] : memref<2xf32, #tpu.memory_space<smem>>
    %30 = vector.broadcast %29 : f32 to vector<4x128xf32>
    %31 = arith.mulf %28, %30 : vector<4x128xf32>
    %c1_19 = arith.constant 1 : index
    %32 = memref.load %arg4[%c1_19] : memref<2xf32, #tpu.memory_space<smem>>
    %33 = vector.broadcast %32 : f32 to vector<4x128xf32>
    %34 = arith.addf %31, %33 : vector<4x128xf32>
    %35 = math.absf %34 : vector<4x128xf32>
    %cst_20 = arith.constant 0.000000e+00 : f32
    %36 = vector.broadcast %cst_20 : f32 to vector<4x128xf32>
    %37 = arith.subf %36, %35 : vector<4x128xf32>
    %38 = math.exp %37 : vector<4x128xf32>
    %cst_21 = arith.constant 0.000000e+00 : f32
    %39 = vector.broadcast %cst_21 : f32 to vector<4x128xf32>
    %40 = arith.cmpf oge, %34, %39 : vector<4x128xf32>
    %cst_22 = arith.constant 1.000000e+00 : f32
    %41 = vector.broadcast %cst_22 : f32 to vector<4x128xf32>
    %42 = arith.addf %41, %38 : vector<4x128xf32>
    %cst_23 = arith.constant 1.000000e+00 : f32
    %43 = vector.broadcast %cst_23 : f32 to vector<4x128xf32>
    %44 = arith.divf %43, %42 : vector<4x128xf32>
    %cst_24 = arith.constant 1.000000e+00 : f32
    %45 = vector.broadcast %cst_24 : f32 to vector<4x128xf32>
    %46 = arith.addf %45, %38 : vector<4x128xf32>
    %47 = arith.divf %38, %46 : vector<4x128xf32>
    %48 = arith.select %40, %44, %47 : vector<4x128xi1>, vector<4x128xf32>
    %c0_25 = arith.constant 0 : index
    %c0_26 = arith.constant 0 : index
    %c0_27 = arith.constant 0 : index
    %49 = vector.load %arg5[%c0_25, %c0_26, %c0_27] : memref<1x4x128xf32, #tpu.memory_space<vmem>>, vector<1x4x128xf32>
    %50 = vector.shape_cast %49 : vector<1x4x128xf32> to vector<4x128xf32>
    %51 = vector.shape_cast %48 : vector<4x128xf32> to vector<1x4x128xf32>
    tpu.vector_store %arg5[%c0_25, %c0_26, %c0_27], %51 {strides = array<i32>} : memref<1x4x128xf32, #tpu.memory_space<vmem>>, vector<1x4x128xf32>,
    return
  }
  func.func @transform_0(%arg0: i32) -> (i32, i32, i32) {
    %c0_i32 = arith.constant 0 : i32
    %c0_i32_0 = arith.constant 0 : i32
    %c0_i32_1 = arith.constant 0 : i32
    return %arg0, %c0_i32, %c0_i32_0 : i32, i32, i32
  }
  func.func @transform_1(%arg0: i32) -> (i32, i32, i32) {
    %c0_i32 = arith.constant 0 : i32
    %c0_i32_0 = arith.constant 0 : i32
    %c0_i32_1 = arith.constant 0 : i32
    %c0_i32_2 = arith.constant 0 : i32
    return %c0_i32, %c0_i32_0, %c0_i32_1 : i32, i32, i32
  }
  func.func @transform_2(%arg0: i32) -> (i32, i32) {
    %c0_i32 = arith.constant 0 : i32
    %c0_i32_0 = arith.constant 0 : i32
    %c0_i32_1 = arith.constant 0 : i32
    return %c0_i32, %c0_i32_0 : i32, i32
  }
  func.func @transform_3(%arg0: i32) -> i32 {
    %c0_i32 = arith.constant 0 : i32
    %c0_i32_0 = arith.constant 0 : i32
    return %c0_i32 : i32
  }
  func.func @transform_4(%arg0: i32) -> (i32, i32, i32) {
    %c0_i32 = arith.constant 0 : i32
    %c0_i32_0 = arith.constant 0 : i32
    %c0_i32_1 = arith.constant 0 : i32
    return %arg0, %c0_i32, %c0_i32_0 : i32, i32, i32
  }
}

</mosaic_0001>

<llo_original>
// kernel: discriminator_forward.3
$region0: #{discriminator_forward.3}
  #allocation0 [shape = 'u32[]', space=smem, size = 0x4, offset = 0x4, fixed_abs, tag = 'smem constant byte address 0x4 - core index']
  #allocation1 [shape = 'u32[72,128]{1,0:T(1,128)}', space=vmem, size = 0x9000, scoped, tag = 'internal scratch']
  %s0 = inlined_call_operand.vmem [shape: bf16[2,12,256], index: 0, kind: input, shape index: {}]
  %s1 = inlined_call_operand.vmem [shape: bf16[4,256,128], index: 1, kind: input, shape index: {}]
  %s2 = inlined_call_operand.vmem [shape: f32[1,128], index: 2, kind: input, shape index: {}]
  %s3 = inlined_call_operand.vmem [shape: f32[2], index: 3, kind: input, shape index: {}]
  %s4 = inlined_call_operand.vmem [shape: f32[2,4,128], index: 4, kind: output, shape index: {}]
  %s5 = sld [smem:[#allocation0]]
  $region53: #{discriminator_forward.3} parent=0
    _
  %s7 = ssub.s32 1, %s5
  %s8 = scalar_select 0, %s7, %s5
  $region1: #{discriminator_forward.3} parent=0
    #allocation2 [shape = 'u8[512]{0}', space=smem, size = 0x200, scoped, tag = 'input window, operand 3, single buffered']
    #allocation3 [shape = 's32[2]{0}', space=sflag, size = 0x8, scoped, tag = 'scoped memory for discriminator_forward.3']
    %9 = vsyncpa [#allocation3], 0
    loop: start=0, step=1, limit=4
    $region2: #{discriminator_forward.3} parent=1 // loop_pre_header
      _
    $region3: #{discriminator_forward.3} parent=1 // loop_header
      %s11 = sphi 0, %s15
      %p12 = scmp.ge.s32.totalorder %s11, 4
      %s21 = sphi 0, %s23
      %s24 = sphi 0, %s21
      %s25 = sphi 0, %s24
      %s41 = sphi 0, %s25
      %s45 = sphi 0, %s45
      %s47 = sphi 0, %s45
      %s48 = sphi 0, %s47
      %s62 = sphi 0, %s48
      %s66 = sphi 0, %s66
      %s68 = sphi 0, %s66
      %s69 = sphi 0, %s68
      %s83 = sphi 0, %s69
      %s87 = sphi 0, %s87
      %s89 = sphi 0, %s87
      %s90 = sphi 0, %s89
      %s104 = sphi 0, %s90
      %s110 = sphi 0, %s112
      %s113 = sphi 0, %s110
      %s114 = sphi 0, %s113
      %s130 = sphi 0, %s114
    $region4: #{discriminator_forward.3} parent=1 // loop_header_branch
      %14 = sbr.rel (%p12) target = $region8
    $region5: #{discriminator_forward.3} parent=1 // loop_body
      %s16 = ssub.s32 %s11, 1
      %s17 = ssub.s32 %s11, 2
      %s18 = sadd.s32 %s11, 1
      %s19 = ssub.s32 %s11, %s18
      %p20 = scmp.eq.s32.totalorder %s19, 0
      %s22 = sadd.s32 %s21, 1
      %s23 = scalar_select %p20, %s21, %s22
      %p26 = pneg %p20
      %p27 = scmp.eq.s32.totalorder %s11, 1
      %p28 = por %p26, %p27
      %p29 = scmp.ne.s32.totalorder %s21, %s24
      %p30 = scmp.eq.s32.totalorder %s11, 0
      %p31 = por %p29, %p30
      %p32 = scmp.ne.s32.totalorder %s21, %s24
      %p33 = scmp.eq.s32.totalorder %s16, 1
      %p34 = por %p32, %p33
      %p35 = scmp.ne.s32.totalorder %s24, %s25
      %p36 = scmp.eq.s32.totalorder %s16, 0
      %p37 = por %p35, %p36
      %p38 = scmp.ne.s32.totalorder %s24, %s25
      %p39 = scmp.eq.s32.totalorder %s17, 1
      %p40 = por %p38, %p39
      %p42 = scmp.ne.s32.totalorder %s25, %s41
      %p43 = scmp.eq.s32.totalorder %s17, 0
      %p44 = por %p42, %p43
      %s46 = sadd.s32 %s45, 1
      %p49 = scmp.eq.s32.totalorder %s11, 1
      %p50 = scmp.ne.s32.totalorder %s45, %s47
      %p51 = scmp.eq.s32.totalorder %s11, 0
      %p52 = por %p50, %p51
      %p53 = scmp.ne.s32.totalorder %s45, %s47
      %p54 = scmp.eq.s32.totalorder %s16, 1
      %p55 = por %p53, %p54
      %p56 = scmp.ne.s32.totalorder %s47, %s48
      %p57 = scmp.eq.s32.totalorder %s16, 0
      %p58 = por %p56, %p57
      %p59 = scmp.ne.s32.totalorder %s47, %s48
      %p60 = scmp.eq.s32.totalorder %s17, 1
      %p61 = por %p59, %p60
      %p63 = scmp.ne.s32.totalorder %s48, %s62
      %p64 = scmp.eq.s32.totalorder %s17, 0
      %p65 = por %p63, %p64
      %s67 = sadd.s32 %s66, 1
      %p70 = scmp.eq.s32.totalorder %s11, 1
      %p71 = scmp.ne.s32.totalorder %s66, %s68
      %p72 = scmp.eq.s32.totalorder %s11, 0
      %p73 = por %p71, %p72
      %p74 = scmp.ne.s32.totalorder %s66, %s68
      %p75 = scmp.eq.s32.totalorder %s16, 1
      %p76 = por %p74, %p75
      %p77 = scmp.ne.s32.totalorder %s68, %s69
      %p78 = scmp.eq.s32.totalorder %s16, 0
      %p79 = por %p77, %p78
      %p80 = scmp.ne.s32.totalorder %s68, %s69
      %p81 = scmp.eq.s32.totalorder %s17, 1
      %p82 = por %p80, %p81
      %p84 = scmp.ne.s32.totalorder %s69, %s83
      %p85 = scmp.eq.s32.totalorder %s17, 0
      %p86 = por %p84, %p85
      %s88 = sadd.s32 %s87, 1
      %p91 = scmp.eq.s32.totalorder %s11, 1
      %p92 = scmp.ne.s32.totalorder %s87, %s89
      %p93 = scmp.eq.s32.totalorder %s11, 0
      %p94 = por %p92, %p93
      %p95 = scmp.ne.s32.totalorder %s87, %s89
      %p96 = scmp.eq.s32.totalorder %s16, 1
      %p97 = por %p95, %p96
      %p98 = scmp.ne.s32.totalorder %s89, %s90
      %p99 = scmp.eq.s32.totalorder %s16, 0
      %p100 = por %p98, %p99
      %p101 = scmp.ne.s32.totalorder %s89, %s90
      %p102 = scmp.eq.s32.totalorder %s17, 1
      %p103 = por %p101, %p102
      %p105 = scmp.ne.s32.totalorder %s90, %s104
      %p106 = scmp.eq.s32.totalorder %s17, 0
      %p107 = por %p105, %p106
      %s108 = ssub.s32 %s11, %s18
      %p109 = scmp.eq.s32.totalorder %s108, 0
      %s111 = sadd.s32 %s110, 1
      %s112 = scalar_select %p109, %s110, %s111
      %p115 = pneg %p109
      %p116 = scmp.eq.s32.totalorder %s11, 1
      %p117 = por %p115, %p116
      %p118 = scmp.ne.s32.totalorder %s110, %s113
      %p119 = scmp.eq.s32.totalorder %s11, 0
      %p120 = por %p118, %p119
      %p121 = scmp.ne.s32.totalorder %s110, %s113
      %p122 = scmp.eq.s32.totalorder %s16, 1
      %p123 = por %p121, %p122
      %p124 = scmp.ne.s32.totalorder %s113, %s114
      %p125 = scmp.eq.s32.totalorder %s16, 0
      %p126 = por %p124, %p125
      %p127 = scmp.ne.s32.totalorder %s113, %s114
      %p128 = scmp.eq.s32.totalorder %s17, 1
      %p129 = por %p127, %p128
      %p131 = scmp.ne.s32.totalorder %s114, %s130
      %p132 = scmp.eq.s32.totalorder %s17, 0
      %p133 = por %p131, %p132
      %p134 = scmp.le.s32.totalorder 1, %s11
      %p135 = scmp.lt.s32.totalorder %s11, 3
      %p136 = pnand %p134, %p135
      %p137 = pneg %p136
      // Predicated region
      $region9: #{discriminator_forward.3} parent=5 // pred_check
        _
      $region10: #{discriminator_forward.3} parent=5 // pred_check_branch
        %139 = sbr.rel (%p136) target = $region12
      $region11: #{discriminator_forward.3} parent=5 // pred_region
        %s140 = ssub.s32 %s11, 1
        // Predicated region
        $region13: #{discriminator_forward.3} parent=11 // pred_check
          %p141 = pneg %p58
        $region14: #{discriminator_forward.3} parent=11 // pred_check_branch
          %143 = sbr.rel (%p141) target = $region16
        $region15: #{discriminator_forward.3} parent=11 // pred_region
          _
        $region16: #{discriminator_forward.3} parent=11 // pred_fallthru
          _
        // Predicated region
        $region17: #{discriminator_forward.3} parent=11 // pred_check
          %p144 = pneg %p79
        $region18: #{discriminator_forward.3} parent=11 // pred_check_branch
          %146 = sbr.rel (%p144) target = $region20
        $region19: #{discriminator_forward.3} parent=11 // pred_region
          _
        $region20: #{discriminator_forward.3} parent=11 // pred_fallthru
          _
        // Predicated region
        $region21: #{discriminator_forward.3} parent=11 // pred_check
          %p147 = pneg %p100
        $region22: #{discriminator_forward.3} parent=11 // pred_check_branch
          %149 = sbr.rel (%p147) target = $region24
        $region23: #{discriminator_forward.3} parent=11 // pred_region
          %151 = vsyncadd [#allocation3], 0
          %s153 = sshll.u32 %s3, 4
          %s154 = int_to_ptr.vmem [resolvable:$true] %s153
          %156 = dma.vmem_to_smem %s154, 16, [#allocation2], [#allocation3]
        $region24: #{discriminator_forward.3} parent=11 // pred_fallthru
          _
      $region12: #{discriminator_forward.3} parent=5 // pred_fallthru
        _
      %p157 = scmp.lt.s32.totalorder %s11, 2
      // Predicated region
      $region25: #{discriminator_forward.3} parent=5 // pred_check
        %p158 = pneg %p157
      $region26: #{discriminator_forward.3} parent=5 // pred_check_branch
        %160 = sbr.rel (%p158) target = $region28
      $region27: #{discriminator_forward.3} parent=5 // pred_region
        // Predicated region
        $region29: #{discriminator_forward.3} parent=27 // pred_check
          %p161 = pneg %p31
        $region30: #{discriminator_forward.3} parent=27 // pred_check_branch
          %163 = sbr.rel (%p161) target = $region32
        $region31: #{discriminator_forward.3} parent=27 // pred_region
          %p164 = scmp.lt.s32.totalorder %s11, 1
          %s165 = scalar_select %p164, %s11, 1
          %s166 = smul.addr %s165, 4
          %s167 = smul.addr %s166, 4
          %s168 = scalar_lea.vmem %s0, %s167
        $region32: #{discriminator_forward.3} parent=27 // pred_fallthru
          _
      $region28: #{discriminator_forward.3} parent=5 // pred_fallthru
        _
      %p169 = scmp.le.s32.totalorder 1, %s11
      %p170 = scmp.lt.s32.totalorder %s11, 3
      %p171 = pnand %p169, %p170
      %p172 = pneg %p171
      // Predicated region
      $region33: #{discriminator_forward.3} parent=5 // pred_check
        _
      $region34: #{discriminator_forward.3} parent=5 // pred_check_branch
        %174 = sbr.rel (%p171) target = $region36
      $region35: #{discriminator_forward.3} parent=5 // pred_region
        %s175 = ssub.s32 %s11, 1
        // Predicated region
        $region37: #{discriminator_forward.3} parent=35 // pred_check
          %p176 = pneg %p100
        $region38: #{discriminator_forward.3} parent=35 // pred_check_branch
          %178 = sbr.rel (%p176) target = $region40
        $region39: #{discriminator_forward.3} parent=35 // pred_region
          %180 = dma.done [#allocation3], 16
        $region40: #{discriminator_forward.3} parent=35 // pred_fallthru
          _
        %181 = sfence
        %p182 = scmp.lt.s32.totalorder %s16, 1
        %s183 = scalar_select %p182, %s16, 1
        %s184 = smul.addr %s183, 4
        %s185 = smul.addr %s184, 4
        %s186 = scalar_lea.vmem %s0, %s185
        %p187 = pneg %p37
        %p188 = pneg %p34
        %p189 = pneg %p58
        %p190 = pneg %p55
        %p191 = pneg %p79
        %p192 = pneg %p76
        %p193 = pneg %p100
        %p194 = pneg %p97
        %p195 = pneg %p126
        %p196 = pneg %p123
        %p197 = scmp.lt.s32.totalorder %s16, 1
        %s198 = scalar_select %p197, %s16, 1
        %s199 = smul.addr %s198, 4
        %s200 = scalar_lea.vmem %s4, %s199
        %p201 = scmp.lt.s32.totalorder %s16, 1
        %s202 = scalar_select %p201, %s16, 1
        %s203 = smul.addr %s202, 4
        %s204 = smul.addr %s203, 4
        %s205 = scalar_lea.vmem %s0, %s204
        %p206 = scmp.lt.s32.totalorder %s16, 1
        %s207 = scalar_select %p206, %s16, 1
        %s208 = smul.addr %s207, 4
        %s209 = scalar_lea.vmem %s4, %s208
        %v210 = vld [vmem:[%s205] sm:$0xff]
        %v211 = vld [vmem:[%s205 + $0x8] sm:$0x33]
        %v212 = vld [vmem:[%s1] sm:$0xf]
        %v213 = vld [vmem:[%s1 + $0x4] sm:$0xf]
        %v214 = vld [vmem:[%s1 + $0x8] sm:$0xf]
        %v215 = vld [vmem:[%s1 + $0xc] sm:$0xf]
        %v216 = vld [vmem:[%s1 + $0x10] sm:$0xf]
        %v217 = vld [vmem:[%s1 + $0x14] sm:$0xf]
        %v218 = vld [vmem:[%s1 + $0x18] sm:$0xf]
        %v219 = vld [vmem:[%s1 + $0x1c] sm:$0xf]
        %v220 = vld [vmem:[%s1 + $0x20] sm:$0xf]
        %v221 = vld [vmem:[%s1 + $0x24] sm:$0xf]
        %v222 = vld [vmem:[%s1 + $0x28] sm:$0xf]
        %v223 = vld [vmem:[%s1 + $0x2c] sm:$0xf]
        %v224 = vld [vmem:[%s1 + $0x30] sm:$0xf]
        %v225 = vld [vmem:[%s1 + $0x34] sm:$0xf]
        %v226 = vld [vmem:[%s1 + $0x38] sm:$0xf]
        %v227 = vld [vmem:[%s1 + $0x3c] sm:$0xf]
        %v228 = vld [vmem:[%s1 + $0x40] sm:$0xf]
        %v229 = vld [vmem:[%s1 + $0x44] sm:$0xf]
        %v230 = vld [vmem:[%s1 + $0x48] sm:$0xf]
        %v231 = vld [vmem:[%s1 + $0x4c] sm:$0xf]
        %v232 = vld [vmem:[%s1 + $0x50] sm:$0xf]
        %v233 = vld [vmem:[%s1 + $0x54] sm:$0xf]
        %v234 = vld [vmem:[%s1 + $0x58] sm:$0xf]
        %v235 = vld [vmem:[%s1 + $0x5c] sm:$0xf]
        %v236 = vld [vmem:[%s1 + $0x60] sm:$0xf]
        %v237 = vld [vmem:[%s1 + $0x64] sm:$0xf]
        %v238 = vld [vmem:[%s1 + $0x68] sm:$0xf]
        %v239 = vld [vmem:[%s1 + $0x6c] sm:$0xf]
        %v240 = vld [vmem:[%s1 + $0x70] sm:$0xf]
        %v241 = vld [vmem:[%s1 + $0x74] sm:$0xf]
        %v242 = vld [vmem:[%s1 + $0x78] sm:$0xf]
        %v243 = vld [vmem:[%s1 + $0x7c] sm:$0xf]
        %v246 = vunpack.c.l.b16 %v210
        %v247 = vunpack.c.h.b16 %v210
        %v248 = vunpack.c.l.b16 %v211
        %v249 = vunpack.c.h.b16 %v211
        %v250 = vpack.c.b16 %v248, %v246
        %v251 = vpack.c.b16 %v249, %v247
        %v286 = vunpack.c.l.b16 %v212
        %v287 = vunpack.c.l.b16 %v213
        %v288 = vunpack.c.l.b16 %v214
        %v289 = vunpack.c.l.b16 %v215
        %v290 = vunpack.c.l.b16 %v216
        %v291 = vunpack.c.l.b16 %v217
        %v292 = vunpack.c.l.b16 %v218
        %v293 = vunpack.c.l.b16 %v219
        %v294 = vunpack.c.l.b16 %v220
        %v295 = vunpack.c.l.b16 %v221
        %v296 = vunpack.c.l.b16 %v222
        %v297 = vunpack.c.l.b16 %v223
        %v298 = vunpack.c.l.b16 %v224
        %v299 = vunpack.c.l.b16 %v225
        %v300 = vunpack.c.l.b16 %v226
        %v301 = vunpack.c.l.b16 %v227
        %v302 = vunpack.c.l.b16 %v228
        %v303 = vunpack.c.l.b16 %v229
        %v304 = vunpack.c.l.b16 %v230
        %v305 = vunpack.c.l.b16 %v231
        %v306 = vunpack.c.l.b16 %v232
        %v307 = vunpack.c.l.b16 %v233
        %v308 = vunpack.c.l.b16 %v234
        %v309 = vunpack.c.l.b16 %v235
        %v310 = vunpack.c.l.b16 %v236
        %v311 = vunpack.c.l.b16 %v237
        %v312 = vunpack.c.l.b16 %v238
        %v313 = vunpack.c.l.b16 %v239
        %v314 = vunpack.c.l.b16 %v240
        %v315 = vunpack.c.l.b16 %v241
        %v316 = vunpack.c.l.b16 %v242
        %v317 = vunpack.c.l.b16 %v243
        %v318 = vpack.c.b16 %v287, %v286
        %v319 = vpack.c.b16 %v289, %v288
        %v320 = vpack.c.b16 %v291, %v290
        %v321 = vpack.c.b16 %v293, %v292
        %v322 = vpack.c.b16 %v295, %v294
        %v323 = vpack.c.b16 %v297, %v296
        %v324 = vpack.c.b16 %v299, %v298
        %v325 = vpack.c.b16 %v301, %v300
        %v326 = vpack.c.b16 %v303, %v302
        %v327 = vpack.c.b16 %v305, %v304
        %v328 = vpack.c.b16 %v307, %v306
        %v329 = vpack.c.b16 %v309, %v308
        %v330 = vpack.c.b16 %v311, %v310
        %v331 = vpack.c.b16 %v313, %v312
        %v332 = vpack.c.b16 %v315, %v314
        %v333 = vpack.c.b16 %v317, %v316
        %350 = vmatpush.bf16.msra.mxu0 %v325
        %351 = vmatpush.bf16.msra.mxu0 %v324
        %352 = vmatpush.bf16.msra.mxu0 %v323
        %353 = vmatpush.bf16.msra.mxu0 %v322
        %354 = vmatpush.bf16.msra.mxu0 %v321
        %355 = vmatpush.bf16.msra.mxu0 %v320
        %356 = vmatpush.bf16.msra.mxu0 %v319
        %357 = vmatpush.bf16.msra.mxu0 %v318
        %358 = vmatmul.bf16.gmra.mxu0 %v250
        %v359 = vpop.f32.mrf.mxu0
        %v360 = vadd.f32 0.0, %v359
        %v361 = vpop.f32.mrf.mxu0
        %362 = vdwg.mxu0
        %363 = vmatpush.bf16.msra.mxu0 %v333
        %364 = vmatpush.bf16.msra.mxu0 %v332
        %365 = vmatpush.bf16.msra.mxu0 %v331
        %366 = vmatpush.bf16.msra.mxu0 %v330
        %367 = vmatpush.bf16.msra.mxu0 %v329
        %368 = vmatpush.bf16.msra.mxu0 %v328
        %369 = vmatpush.bf16.msra.mxu0 %v327
        %370 = vmatpush.bf16.msra.mxu0 %v326
        %371 = vmatmul.bf16.gmra.mxu0 %v251
        %v372 = vpop.f32.mrf.mxu0
        %v373 = vadd.f32 %v360, %v372
        %v374 = vpop.f32.mrf.mxu0
        %375 = vdwg.mxu0
        %s376 = scalar_lea.vmem %s1, 128
        %v377 = vld [vmem:[%s376] sm:$0xf]
        %v378 = vld [vmem:[%s376 + $0x4] sm:$0xf]
        %v379 = vld [vmem:[%s376 + $0x8] sm:$0xf]
        %v380 = vld [vmem:[%s376 + $0xc] sm:$0xf]
        %v381 = vld [vmem:[%s376 + $0x10] sm:$0xf]
        %v382 = vld [vmem:[%s376 + $0x14] sm:$0xf]
        %v383 = vld [vmem:[%s376 + $0x18] sm:$0xf]
        %v384 = vld [vmem:[%s376 + $0x1c] sm:$0xf]
        %v385 = vld [vmem:[%s376 + $0x20] sm:$0xf]
        %v386 = vld [vmem:[%s376 + $0x24] sm:$0xf]
        %v387 = vld [vmem:[%s376 + $0x28] sm:$0xf]
        %v388 = vld [vmem:[%s376 + $0x2c] sm:$0xf]
        %v389 = vld [vmem:[%s376 + $0x30] sm:$0xf]
        %v390 = vld [vmem:[%s376 + $0x34] sm:$0xf]
        %v391 = vld [vmem:[%s376 + $0x38] sm:$0xf]
        %v392 = vld [vmem:[%s376 + $0x3c] sm:$0xf]
        %v393 = vld [vmem:[%s376 + $0x40] sm:$0xf]
        %v394 = vld [vmem:[%s376 + $0x44] sm:$0xf]
        %v395 = vld [vmem:[%s376 + $0x48] sm:$0xf]
        %v396 = vld [vmem:[%s376 + $0x4c] sm:$0xf]
        %v397 = vld [vmem:[%s376 + $0x50] sm:$0xf]
        %v398 = vld [vmem:[%s376 + $0x54] sm:$0xf]
        %v399 = vld [vmem:[%s376 + $0x58] sm:$0xf]
        %v400 = vld [vmem:[%s376 + $0x5c] sm:$0xf]
        %v401 = vld [vmem:[%s376 + $0x60] sm:$0xf]
        %v402 = vld [vmem:[%s376 + $0x64] sm:$0xf]
        %v403 = vld [vmem:[%s376 + $0x68] sm:$0xf]
        %v404 = vld [vmem:[%s376 + $0x6c] sm:$0xf]
        %v405 = vld [vmem:[%s376 + $0x70] sm:$0xf]
        %v406 = vld [vmem:[%s376 + $0x74] sm:$0xf]
        %v407 = vld [vmem:[%s376 + $0x78] sm:$0xf]
        %v408 = vld [vmem:[%s376 + $0x7c] sm:$0xf]
        %v441 = vunpack.c.l.b16 %v377
        %v442 = vunpack.c.l.b16 %v378
        %v443 = vunpack.c.l.b16 %v379
        %v444 = vunpack.c.l.b16 %v380
        %v445 = vunpack.c.l.b16 %v381
        %v446 = vunpack.c.l.b16 %v382
        %v447 = vunpack.c.l.b16 %v383
        %v448 = vunpack.c.l.b16 %v384
        %v449 = vunpack.c.l.b16 %v385
        %v450 = vunpack.c.l.b16 %v386
        %v451 = vunpack.c.l.b16 %v387
        %v452 = vunpack.c.l.b16 %v388
        %v453 = vunpack.c.l.b16 %v389
        %v454 = vunpack.c.l.b16 %v390
        %v455 = vunpack.c.l.b16 %v391
        %v456 = vunpack.c.l.b16 %v392
        %v457 = vunpack.c.l.b16 %v393
        %v458 = vunpack.c.l.b16 %v394
        %v459 = vunpack.c.l.b16 %v395
        %v460 = vunpack.c.l.b16 %v396
        %v461 = vunpack.c.l.b16 %v397
        %v462 = vunpack.c.l.b16 %v398
        %v463 = vunpack.c.l.b16 %v399
        %v464 = vunpack.c.l.b16 %v400
        %v465 = vunpack.c.l.b16 %v401
        %v466 = vunpack.c.l.b16 %v402
        %v467 = vunpack.c.l.b16 %v403
        %v468 = vunpack.c.l.b16 %v404
        %v469 = vunpack.c.l.b16 %v405
        %v470 = vunpack.c.l.b16 %v406
        %v471 = vunpack.c.l.b16 %v407
        %v472 = vunpack.c.l.b16 %v408
        %v473 = vpack.c.b16 %v442, %v441
        %v474 = vpack.c.b16 %v444, %v443
        %v475 = vpack.c.b16 %v446, %v445
        %v476 = vpack.c.b16 %v448, %v447
        %v477 = vpack.c.b16 %v450, %v449
        %v478 = vpack.c.b16 %v452, %v451
        %v479 = vpack.c.b16 %v454, %v453
        %v480 = vpack.c.b16 %v456, %v455
        %v481 = vpack.c.b16 %v458, %v457
        %v482 = vpack.c.b16 %v460, %v459
        %v483 = vpack.c.b16 %v462, %v461
        %v484 = vpack.c.b16 %v464, %v463
        %v485 = vpack.c.b16 %v466, %v465
        %v486 = vpack.c.b16 %v468, %v467
        %v487 = vpack.c.b16 %v470, %v469
        %v488 = vpack.c.b16 %v472, %v471
        %505 = vmatpush.bf16.msra.mxu0 %v480
        %506 = vmatpush.bf16.msra.mxu0 %v479
        %507 = vmatpush.bf16.msra.mxu0 %v478
        %508 = vmatpush.bf16.msra.mxu0 %v477
        %509 = vmatpush.bf16.msra.mxu0 %v476
        %510 = vmatpush.bf16.msra.mxu0 %v475
        %511 = vmatpush.bf16.msra.mxu0 %v474
        %512 = vmatpush.bf16.msra.mxu0 %v473
        %513 = vmatmul.bf16.gmra.mxu0 %v250
        %v514 = vpop.f32.mrf.mxu0
        %v515 = vadd.f32 0.0, %v514
        %v516 = vpop.f32.mrf.mxu0
        %517 = vdwg.mxu0
        %518 = vmatpush.bf16.msra.mxu0 %v488
        %519 = vmatpush.bf16.msra.mxu0 %v487
        %520 = vmatpush.bf16.msra.mxu0 %v486
        %521 = vmatpush.bf16.msra.mxu0 %v485
        %522 = vmatpush.bf16.msra.mxu0 %v484
        %523 = vmatpush.bf16.msra.mxu0 %v483
        %524 = vmatpush.bf16.msra.mxu0 %v482
        %525 = vmatpush.bf16.msra.mxu0 %v481
        %526 = vmatmul.bf16.gmra.mxu0 %v251
        %v527 = vpop.f32.mrf.mxu0
        %v528 = vadd.f32 %v515, %v527
        %v529 = vpop.f32.mrf.mxu0
        %530 = vdwg.mxu0
        %v532 = vrot.slane %v528, 1
        %v534 = vadd.f32 %v373, %v532
        %s535 = scalar_lea.vmem %s1, 256
        %v536 = vld [vmem:[%s535] sm:$0xf]
        %v537 = vld [vmem:[%s535 + $0x4] sm:$0xf]
        %v538 = vld [vmem:[%s535 + $0x8] sm:$0xf]
        %v539 = vld [vmem:[%s535 + $0xc] sm:$0xf]
        %v540 = vld [vmem:[%s535 + $0x10] sm:$0xf]
        %v541 = vld [vmem:[%s535 + $0x14] sm:$0xf]
        %v542 = vld [vmem:[%s535 + $0x18] sm:$0xf]
        %v543 = vld [vmem:[%s535 + $0x1c] sm:$0xf]
        %v544 = vld [vmem:[%s535 + $0x20] sm:$0xf]
        %v545 = vld [vmem:[%s535 + $0x24] sm:$0xf]
        %v546 = vld [vmem:[%s535 + $0x28] sm:$0xf]
        %v547 = vld [vmem:[%s535 + $0x2c] sm:$0xf]
        %v548 = vld [vmem:[%s535 + $0x30] sm:$0xf]
        %v549 = vld [vmem:[%s535 + $0x34] sm:$0xf]
        %v550 = vld [vmem:[%s535 + $0x38] sm:$0xf]
        %v551 = vld [vmem:[%s535 + $0x3c] sm:$0xf]
        %v552 = vld [vmem:[%s535 + $0x40] sm:$0xf]
        %v553 = vld [vmem:[%s535 + $0x44] sm:$0xf]
        %v554 = vld [vmem:[%s535 + $0x48] sm:$0xf]
        %v555 = vld [vmem:[%s535 + $0x4c] sm:$0xf]
        %v556 = vld [vmem:[%s535 + $0x50] sm:$0xf]
        %v557 = vld [vmem:[%s535 + $0x54] sm:$0xf]
        %v558 = vld [vmem:[%s535 + $0x58] sm:$0xf]
        %v559 = vld [vmem:[%s535 + $0x5c] sm:$0xf]
        %v560 = vld [vmem:[%s535 + $0x60] sm:$0xf]
        %v561 = vld [vmem:[%s535 + $0x64] sm:$0xf]
        %v562 = vld [vmem:[%s535 + $0x68] sm:$0xf]
        %v563 = vld [vmem:[%s535 + $0x6c] sm:$0xf]
        %v564 = vld [vmem:[%s535 + $0x70] sm:$0xf]
        %v565 = vld [vmem:[%s535 + $0x74] sm:$0xf]
        %v566 = vld [vmem:[%s535 + $0x78] sm:$0xf]
        %v567 = vld [vmem:[%s535 + $0x7c] sm:$0xf]
        %v600 = vunpack.c.l.b16 %v536
        %v601 = vunpack.c.l.b16 %v537
        %v602 = vunpack.c.l.b16 %v538
        %v603 = vunpack.c.l.b16 %v539
        %v604 = vunpack.c.l.b16 %v540
        %v605 = vunpack.c.l.b16 %v541
        %v606 = vunpack.c.l.b16 %v542
        %v607 = vunpack.c.l.b16 %v543
        %v608 = vunpack.c.l.b16 %v544
        %v609 = vunpack.c.l.b16 %v545
        %v610 = vunpack.c.l.b16 %v546
        %v611 = vunpack.c.l.b16 %v547
        %v612 = vunpack.c.l.b16 %v548
        %v613 = vunpack.c.l.b16 %v549
        %v614 = vunpack.c.l.b16 %v550
        %v615 = vunpack.c.l.b16 %v551
        %v616 = vunpack.c.l.b16 %v552
        %v617 = vunpack.c.l.b16 %v553
        %v618 = vunpack.c.l.b16 %v554
        %v619 = vunpack.c.l.b16 %v555
        %v620 = vunpack.c.l.b16 %v556
        %v621 = vunpack.c.l.b16 %v557
        %v622 = vunpack.c.l.b16 %v558
        %v623 = vunpack.c.l.b16 %v559
        %v624 = vunpack.c.l.b16 %v560
        %v625 = vunpack.c.l.b16 %v561
        %v626 = vunpack.c.l.b16 %v562
        %v627 = vunpack.c.l.b16 %v563
        %v628 = vunpack.c.l.b16 %v564
        %v629 = vunpack.c.l.b16 %v565
        %v630 = vunpack.c.l.b16 %v566
        %v631 = vunpack.c.l.b16 %v567
        %v632 = vpack.c.b16 %v601, %v600
        %v633 = vpack.c.b16 %v603, %v602
        %v634 = vpack.c.b16 %v605, %v604
        %v635 = vpack.c.b16 %v607, %v606
        %v636 = vpack.c.b16 %v609, %v608
        %v637 = vpack.c.b16 %v611, %v610
        %v638 = vpack.c.b16 %v613, %v612
        %v639 = vpack.c.b16 %v615, %v614
        %v640 = vpack.c.b16 %v617, %v616
        %v641 = vpack.c.b16 %v619, %v618
        %v642 = vpack.c.b16 %v621, %v620
        %v643 = vpack.c.b16 %v623, %v622
        %v644 = vpack.c.b16 %v625, %v624
        %v645 = vpack.c.b16 %v627, %v626
        %v646 = vpack.c.b16 %v629, %v628
        %v647 = vpack.c.b16 %v631, %v630
        %664 = vmatpush.bf16.msra.mxu0 %v639
        %665 = vmatpush.bf16.msra.mxu0 %v638
        %666 = vmatpush.bf16.msra.mxu0 %v637
        %667 = vmatpush.bf16.msra.mxu0 %v636
        %668 = vmatpush.bf16.msra.mxu0 %v635
        %669 = vmatpush.bf16.msra.mxu0 %v634
        %670 = vmatpush.bf16.msra.mxu0 %v633
        %671 = vmatpush.bf16.msra.mxu0 %v632
        %672 = vmatmul.bf16.gmra.mxu0 %v250
        %v673 = vpop.f32.mrf.mxu0
        %v674 = vadd.f32 0.0, %v673
        %v675 = vpop.f32.mrf.mxu0
        %676 = vdwg.mxu0
        %677 = vmatpush.bf16.msra.mxu0 %v647
        %678 = vmatpush.bf16.msra.mxu0 %v646
        %679 = vmatpush.bf16.msra.mxu0 %v645
        %680 = vmatpush.bf16.msra.mxu0 %v644
        %681 = vmatpush.bf16.msra.mxu0 %v643
        %682 = vmatpush.bf16.msra.mxu0 %v642
        %683 = vmatpush.bf16.msra.mxu0 %v641
        %684 = vmatpush.bf16.msra.mxu0 %v640
        %685 = vmatmul.bf16.gmra.mxu0 %v251
        %v686 = vpop.f32.mrf.mxu0
        %v687 = vadd.f32 %v674, %v686
        %v688 = vpop.f32.mrf.mxu0
        %689 = vdwg.mxu0
        %v691 = vrot.slane %v687, 2
        %v693 = vadd.f32 %v534, %v691
        %s694 = scalar_lea.vmem %s1, 384
        %v695 = vld [vmem:[%s694] sm:$0xf]
        %v696 = vld [vmem:[%s694 + $0x4] sm:$0xf]
        %v697 = vld [vmem:[%s694 + $0x8] sm:$0xf]
        %v698 = vld [vmem:[%s694 + $0xc] sm:$0xf]
        %v699 = vld [vmem:[%s694 + $0x10] sm:$0xf]
        %v700 = vld [vmem:[%s694 + $0x14] sm:$0xf]
        %v701 = vld [vmem:[%s694 + $0x18] sm:$0xf]
        %v702 = vld [vmem:[%s694 + $0x1c] sm:$0xf]
        %v703 = vld [vmem:[%s694 + $0x20] sm:$0xf]
        %v704 = vld [vmem:[%s694 + $0x24] sm:$0xf]
        %v705 = vld [vmem:[%s694 + $0x28] sm:$0xf]
        %v706 = vld [vmem:[%s694 + $0x2c] sm:$0xf]
        %v707 = vld [vmem:[%s694 + $0x30] sm:$0xf]
        %v708 = vld [vmem:[%s694 + $0x34] sm:$0xf]
        %v709 = vld [vmem:[%s694 + $0x38] sm:$0xf]
        %v710 = vld [vmem:[%s694 + $0x3c] sm:$0xf]
        %v711 = vld [vmem:[%s694 + $0x40] sm:$0xf]
        %v712 = vld [vmem:[%s694 + $0x44] sm:$0xf]
        %v713 = vld [vmem:[%s694 + $0x48] sm:$0xf]
        %v714 = vld [vmem:[%s694 + $0x4c] sm:$0xf]
        %v715 = vld [vmem:[%s694 + $0x50] sm:$0xf]
        %v716 = vld [vmem:[%s694 + $0x54] sm:$0xf]
        %v717 = vld [vmem:[%s694 + $0x58] sm:$0xf]
        %v718 = vld [vmem:[%s694 + $0x5c] sm:$0xf]
        %v719 = vld [vmem:[%s694 + $0x60] sm:$0xf]
        %v720 = vld [vmem:[%s694 + $0x64] sm:$0xf]
        %v721 = vld [vmem:[%s694 + $0x68] sm:$0xf]
        %v722 = vld [vmem:[%s694 + $0x6c] sm:$0xf]
        %v723 = vld [vmem:[%s694 + $0x70] sm:$0xf]
        %v724 = vld [vmem:[%s694 + $0x74] sm:$0xf]
        %v725 = vld [vmem:[%s694 + $0x78] sm:$0xf]
        %v726 = vld [vmem:[%s694 + $0x7c] sm:$0xf]
        %v759 = vunpack.c.l.b16 %v695
        %v760 = vunpack.c.l.b16 %v696
        %v761 = vunpack.c.l.b16 %v697
        %v762 = vunpack.c.l.b16 %v698
        %v763 = vunpack.c.l.b16 %v699
        %v764 = vunpack.c.l.b16 %v700
        %v765 = vunpack.c.l.b16 %v701
        %v766 = vunpack.c.l.b16 %v702
        %v767 = vunpack.c.l.b16 %v703
        %v768 = vunpack.c.l.b16 %v704
        %v769 = vunpack.c.l.b16 %v705
        %v770 = vunpack.c.l.b16 %v706
        %v771 = vunpack.c.l.b16 %v707
        %v772 = vunpack.c.l.b16 %v708
        %v773 = vunpack.c.l.b16 %v709
        %v774 = vunpack.c.l.b16 %v710
        %v775 = vunpack.c.l.b16 %v711
        %v776 = vunpack.c.l.b16 %v712
        %v777 = vunpack.c.l.b16 %v713
        %v778 = vunpack.c.l.b16 %v714
        %v779 = vunpack.c.l.b16 %v715
        %v780 = vunpack.c.l.b16 %v716
        %v781 = vunpack.c.l.b16 %v717
        %v782 = vunpack.c.l.b16 %v718
        %v783 = vunpack.c.l.b16 %v719
        %v784 = vunpack.c.l.b16 %v720
        %v785 = vunpack.c.l.b16 %v721
        %v786 = vunpack.c.l.b16 %v722
        %v787 = vunpack.c.l.b16 %v723
        %v788 = vunpack.c.l.b16 %v724
        %v789 = vunpack.c.l.b16 %v725
        %v790 = vunpack.c.l.b16 %v726
        %v791 = vpack.c.b16 %v760, %v759
        %v792 = vpack.c.b16 %v762, %v761
        %v793 = vpack.c.b16 %v764, %v763
        %v794 = vpack.c.b16 %v766, %v765
        %v795 = vpack.c.b16 %v768, %v767
        %v796 = vpack.c.b16 %v770, %v769
        %v797 = vpack.c.b16 %v772, %v771
        %v798 = vpack.c.b16 %v774, %v773
        %v799 = vpack.c.b16 %v776, %v775
        %v800 = vpack.c.b16 %v778, %v777
        %v801 = vpack.c.b16 %v780, %v779
        %v802 = vpack.c.b16 %v782, %v781
        %v803 = vpack.c.b16 %v784, %v783
        %v804 = vpack.c.b16 %v786, %v785
        %v805 = vpack.c.b16 %v788, %v787
        %v806 = vpack.c.b16 %v790, %v789
        %823 = vmatpush.bf16.msra.mxu0 %v798
        %824 = vmatpush.bf16.msra.mxu0 %v797
        %825 = vmatpush.bf16.msra.mxu0 %v796
        %826 = vmatpush.bf16.msra.mxu0 %v795
        %827 = vmatpush.bf16.msra.mxu0 %v794
        %828 = vmatpush.bf16.msra.mxu0 %v793
        %829 = vmatpush.bf16.msra.mxu0 %v792
        %830 = vmatpush.bf16.msra.mxu0 %v791
        %831 = vmatmul.bf16.gmra.mxu0 %v250
        %v832 = vpop.f32.mrf.mxu0
        %v833 = vadd.f32 0.0, %v832
        %v834 = vpop.f32.mrf.mxu0
        %835 = vdwg.mxu0
        %836 = vmatpush.bf16.msra.mxu0 %v806
        %837 = vmatpush.bf16.msra.mxu0 %v805
        %838 = vmatpush.bf16.msra.mxu0 %v804
        %839 = vmatpush.bf16.msra.mxu0 %v803
        %840 = vmatpush.bf16.msra.mxu0 %v802
        %841 = vmatpush.bf16.msra.mxu0 %v801
        %842 = vmatpush.bf16.msra.mxu0 %v800
        %843 = vmatpush.bf16.msra.mxu0 %v799
        %844 = vmatmul.bf16.gmra.mxu0 %v251
        %v845 = vpop.f32.mrf.mxu0
        %v846 = vadd.f32 %v833, %v845
        %v847 = vpop.f32.mrf.mxu0
        %848 = vdwg.mxu0
        %v850 = vrot.slane %v846, 3
        %v852 = vadd.f32 %v693, %v850
        %v853 = vld [vmem:[%s2] sm:$0x1]
        %v855 = vperm.slane %v853, 0
        %v857 = vadd.f32 %v852, %v855
        %vm858 = vcmp.ge.f32.partialorder %v857, 0.0
        %v859 = vmul.f32 %v857, 0.2
        %v860 = vsel %vm858, %v857, %v859
        %s861 = sld [smem:[#allocation2]]
        %v862 = vstv %s861
        %v863 = vmul.f32 %v860, %v862
        %s864 = sld [smem:[#allocation2 + $0x1]]
        %v865 = vstv %s864
        %v866 = vadd.f32 %v863, %v865
        %v867 = vand.u32 2147483647, %v866
        %v868 = vsub.f32 0.0, %v867
        %v869 = vmul.f32 %v868, 1.442695
        %v870 = vpow.pop %v869
        %vm871 = vcmp.ge.f32.partialorder %v866, 0.0
        %v872 = vadd.f32 %v870, 1.0
        %v873 = vrcp.pop %v872
        %v874 = vmul.f32 %v872, %v873
        %v875 = vsub.f32 1.0, %v874
        %v876 = vmul.f32 %v873, %v875
        %v877 = vadd.f32 %v873, %v876
        %vm878 = vweird.f32 %v872
        %vm879 = vweird.f32 %v873
        %vm880 = vmor %vm878, %vm879
        %v881 = vsel %vm880, %v873, %v877
        %v882 = vand.u32 2147483647, %v872
        %vm883 = vcmp.eq.f32.partialorder %v882, 8.507059e+37
        %v884 = vand.u32 %v872, 2147483648
        %v885 = vor.u32 1.1754944e-38, %v884
        %v886 = vsel %vm883, %v885, %v881
        %v887 = vmul.f32 1.0, %v886
        %v888 = vmul.f32 %v870, %v886
        %v889 = vsel %vm871, %v887, %v888
        %890 = vst [vmem:[%s209] sm:$0xf] %v889
        %p891 = scmp.lt.s32.totalorder %s16, 1
        %s892 = scalar_select %p891, %s16, 1
        %s893 = smul.addr %s892, 4
        %s894 = scalar_lea.vmem %s4, %s893
        // Predicated region
        $region41: #{discriminator_forward.3} parent=35 // pred_check
          %p895 = pneg %p123
        $region42: #{discriminator_forward.3} parent=35 // pred_check_branch
          %897 = sbr.rel (%p895) target = $region44
        $region43: #{discriminator_forward.3} parent=35 // pred_region
          _
        $region44: #{discriminator_forward.3} parent=35 // pred_fallthru
          _
      $region36: #{discriminator_forward.3} parent=5 // pred_fallthru
        _
      %p898 = scmp.le.s32.totalorder 2, %s11
      // Predicated region
      $region45: #{discriminator_forward.3} parent=5 // pred_check
        %p899 = pneg %p898
      $region46: #{discriminator_forward.3} parent=5 // pred_check_branch
        %901 = sbr.rel (%p899) target = $region48
      $region47: #{discriminator_forward.3} parent=5 // pred_region
        %s902 = ssub.s32 %s11, 2
        // Predicated region
        $region49: #{discriminator_forward.3} parent=47 // pred_check
          %p903 = pneg %p129
        $region50: #{discriminator_forward.3} parent=47 // pred_check_branch
          %905 = sbr.rel (%p903) target = $region52
        $region51: #{discriminator_forward.3} parent=47 // pred_region
          %p906 = scmp.lt.s32.totalorder %s17, 1
          %s907 = scalar_select %p906, %s17, 1
          %s908 = smul.addr %s907, 4
          %s909 = scalar_lea.vmem %s4, %s908
        $region52: #{discriminator_forward.3} parent=47 // pred_fallthru
          _
      $region48: #{discriminator_forward.3} parent=5 // pred_fallthru
        _
    $region6: #{discriminator_forward.3} parent=1 // loop_footer
      %s15 = sadd.s32 1, %s11
    $region7: #{discriminator_forward.3} parent=1 // loop_footer_branch
      %10 = sbr.rel target = $region3
    $region8: #{discriminator_forward.3} parent=1 // loop_exit
      _
    %910 = vsyncpa [#allocation3], 1
    %s911 = scalar_lea.sflag [#allocation3], 1
    %912 = vsyncpa %s911, 1

// kernel: discriminator_forward.2
$region0: #{discriminator_forward.2}
  #allocation0 [shape = 'u32[]', space=smem, size = 0x4, offset = 0x4, fixed_abs, tag = 'smem constant byte address 0x4 - core index']
  #allocation1 [shape = 'u32[72,128]{1,0:T(1,128)}', space=vmem, size = 0x9000, scoped, tag = 'internal scratch']
  %s0 = inlined_call_operand.vmem [shape: bf16[2,33,3136], index: 0, kind: input, shape index: {}]
  %s1 = inlined_call_operand.vmem [shape: bf16[4,3136,128], index: 1, kind: input, shape index: {}]
  %s2 = inlined_call_operand.vmem [shape: f32[1,128], index: 2, kind: input, shape index: {}]
  %s3 = inlined_call_operand.vmem [shape: bf16[2,25,128], index: 3, kind: output, shape index: {}]
  %s4 = sld [smem:[#allocation0]]
  $region45: #{discriminator_forward.2} parent=0
    _
  %s6 = ssub.s32 1, %s4
  %s7 = scalar_select 0, %s6, %s4
  loop: start=0, step=1, limit=4
  $region2: #{discriminator_forward.2} parent=0 // loop_pre_header
    _
  $region3: #{discriminator_forward.2} parent=0 // loop_header
    %s9 = sphi 0, %s13
    %p10 = scmp.ge.s32.totalorder %s9, 4
    %s19 = sphi 0, %s21
    %s22 = sphi 0, %s19
    %s23 = sphi 0, %s22
    %s39 = sphi 0, %s23
    %s43 = sphi 0, %s43
    %s45 = sphi 0, %s43
    %s46 = sphi 0, %s45
    %s60 = sphi 0, %s46
    %s64 = sphi 0, %s64
    %s66 = sphi 0, %s64
    %s67 = sphi 0, %s66
    %s81 = sphi 0, %s67
    %s87 = sphi 0, %s89
    %s90 = sphi 0, %s87
    %s91 = sphi 0, %s90
    %s107 = sphi 0, %s91
  $region4: #{discriminator_forward.2} parent=0 // loop_header_branch
    %12 = sbr.rel (%p10) target = $region8
  $region5: #{discriminator_forward.2} parent=0 // loop_body
    %s14 = ssub.s32 %s9, 1
    %s15 = ssub.s32 %s9, 2
    %s16 = sadd.s32 %s9, 1
    %s17 = ssub.s32 %s9, %s16
    %p18 = scmp.eq.s32.totalorder %s17, 0
    %s20 = sadd.s32 %s19, 1
    %s21 = scalar_select %p18, %s19, %s20
    %p24 = pneg %p18
    %p25 = scmp.eq.s32.totalorder %s9, 1
    %p26 = por %p24, %p25
    %p27 = scmp.ne.s32.totalorder %s19, %s22
    %p28 = scmp.eq.s32.totalorder %s9, 0
    %p29 = por %p27, %p28
    %p30 = scmp.ne.s32.totalorder %s19, %s22
    %p31 = scmp.eq.s32.totalorder %s14, 1
    %p32 = por %p30, %p31
    %p33 = scmp.ne.s32.totalorder %s22, %s23
    %p34 = scmp.eq.s32.totalorder %s14, 0
    %p35 = por %p33, %p34
    %p36 = scmp.ne.s32.totalorder %s22, %s23
    %p37 = scmp.eq.s32.totalorder %s15, 1
    %p38 = por %p36, %p37
    %p40 = scmp.ne.s32.totalorder %s23, %s39
    %p41 = scmp.eq.s32.totalorder %s15, 0
    %p42 = por %p40, %p41
    %s44 = sadd.s32 %s43, 1
    %p47 = scmp.eq.s32.totalorder %s9, 1
    %p48 = scmp.ne.s32.totalorder %s43, %s45
    %p49 = scmp.eq.s32.totalorder %s9, 0
    %p50 = por %p48, %p49
    %p51 = scmp.ne.s32.totalorder %s43, %s45
    %p52 = scmp.eq.s32.totalorder %s14, 1
    %p53 = por %p51, %p52
    %p54 = scmp.ne.s32.totalorder %s45, %s46
    %p55 = scmp.eq.s32.totalorder %s14, 0
    %p56 = por %p54, %p55
    %p57 = scmp.ne.s32.totalorder %s45, %s46
    %p58 = scmp.eq.s32.totalorder %s15, 1
    %p59 = por %p57, %p58
    %p61 = scmp.ne.s32.totalorder %s46, %s60
    %p62 = scmp.eq.s32.totalorder %s15, 0
    %p63 = por %p61, %p62
    %s65 = sadd.s32 %s64, 1
    %p68 = scmp.eq.s32.totalorder %s9, 1
    %p69 = scmp.ne.s32.totalorder %s64, %s66
    %p70 = scmp.eq.s32.totalorder %s9, 0
    %p71 = por %p69, %p70
    %p72 = scmp.ne.s32.totalorder %s64, %s66
    %p73 = scmp.eq.s32.totalorder %s14, 1
    %p74 = por %p72, %p73
    %p75 = scmp.ne.s32.totalorder %s66, %s67
    %p76 = scmp.eq.s32.totalorder %s14, 0
    %p77 = por %p75, %p76
    %p78 = scmp.ne.s32.totalorder %s66, %s67
    %p79 = scmp.eq.s32.totalorder %s15, 1
    %p80 = por %p78, %p79
    %p82 = scmp.ne.s32.totalorder %s67, %s81
    %p83 = scmp.eq.s32.totalorder %s15, 0
    %p84 = por %p82, %p83
    %s85 = ssub.s32 %s9, %s16
    %p86 = scmp.eq.s32.totalorder %s85, 0
    %s88 = sadd.s32 %s87, 1
    %s89 = scalar_select %p86, %s87, %s88
    %p92 = pneg %p86
    %p93 = scmp.eq.s32.totalorder %s9, 1
    %p94 = por %p92, %p93
    %p95 = scmp.ne.s32.totalorder %s87, %s90
    %p96 = scmp.eq.s32.totalorder %s9, 0
    %p97 = por %p95, %p96
    %p98 = scmp.ne.s32.totalorder %s87, %s90
    %p99 = scmp.eq.s32.totalorder %s14, 1
    %p100 = por %p98, %p99
    %p101 = scmp.ne.s32.totalorder %s90, %s91
    %p102 = scmp.eq.s32.totalorder %s14, 0
    %p103 = por %p101, %p102
    %p104 = scmp.ne.s32.totalorder %s90, %s91
    %p105 = scmp.eq.s32.totalorder %s15, 1
    %p106 = por %p104, %p105
    %p108 = scmp.ne.s32.totalorder %s91, %s107
    %p109 = scmp.eq.s32.totalorder %s15, 0
    %p110 = por %p108, %p109
    %p111 = scmp.le.s32.totalorder 1, %s9
    %p112 = scmp.lt.s32.totalorder %s9, 3
    %p113 = pnand %p111, %p112
    %p114 = pneg %p113
    // Predicated region
    $region9: #{discriminator_forward.2} parent=5 // pred_check
      _
    $region10: #{discriminator_forward.2} parent=5 // pred_check_branch
      %116 = sbr.rel (%p113) target = $region12
    $region11: #{discriminator_forward.2} parent=5 // pred_region
      %s117 = ssub.s32 %s9, 1
      // Predicated region
      $region13: #{discriminator_forward.2} parent=11 // pred_check
        %p118 = pneg %p56
      $region14: #{discriminator_forward.2} parent=11 // pred_check_branch
        %120 = sbr.rel (%p118) target = $region16
      $region15: #{discriminator_forward.2} parent=11 // pred_region
        _
      $region16: #{discriminator_forward.2} parent=11 // pred_fallthru
        _
      // Predicated region
      $region17: #{discriminator_forward.2} parent=11 // pred_check
        %p121 = pneg %p77
      $region18: #{discriminator_forward.2} parent=11 // pred_check_branch
        %123 = sbr.rel (%p121) target = $region20
      $region19: #{discriminator_forward.2} parent=11 // pred_region
        _
      $region20: #{discriminator_forward.2} parent=11 // pred_fallthru
        _
    $region12: #{discriminator_forward.2} parent=5 // pred_fallthru
      _
    %p124 = scmp.lt.s32.totalorder %s9, 2
    // Predicated region
    $region21: #{discriminator_forward.2} parent=5 // pred_check
      %p125 = pneg %p124
    $region22: #{discriminator_forward.2} parent=5 // pred_check_branch
      %127 = sbr.rel (%p125) target = $region24
    $region23: #{discriminator_forward.2} parent=5 // pred_region
      // Predicated region
      $region25: #{discriminator_forward.2} parent=23 // pred_check
        %p128 = pneg %p29
      $region26: #{discriminator_forward.2} parent=23 // pred_check_branch
        %130 = sbr.rel (%p128) target = $region28
      $region27: #{discriminator_forward.2} parent=23 // pred_region
        %p131 = scmp.lt.s32.totalorder %s9, 1
        %s132 = scalar_select %p131, %s9, 1
        %s133 = smul.addr %s132, 125
        %s134 = smul.addr %s133, 4
        %s135 = scalar_lea.vmem %s0, %s134
      $region28: #{discriminator_forward.2} parent=23 // pred_fallthru
        _
    $region24: #{discriminator_forward.2} parent=5 // pred_fallthru
      _
    %p136 = scmp.le.s32.totalorder 1, %s9
    %p137 = scmp.lt.s32.totalorder %s9, 3
    %p138 = pnand %p136, %p137
    %p139 = pneg %p138
    // Predicated region
    $region29: #{discriminator_forward.2} parent=5 // pred_check
      _
    $region30: #{discriminator_forward.2} parent=5 // pred_check_branch
      %141 = sbr.rel (%p138) target = $region32
    $region31: #{discriminator_forward.2} parent=5 // pred_region
      %s142 = ssub.s32 %s9, 1
      %p143 = scmp.lt.s32.totalorder %s14, 1
      %s144 = scalar_select %p143, %s14, 1
      %s145 = smul.addr %s144, 125
      %s146 = smul.addr %s145, 4
      %s147 = scalar_lea.vmem %s0, %s146
      %p148 = pneg %p35
      %p149 = pneg %p32
      %p150 = pneg %p56
      %p151 = pneg %p53
      %p152 = pneg %p77
      %p153 = pneg %p74
      %p154 = pneg %p103
      %p155 = pneg %p100
      %p156 = scmp.lt.s32.totalorder %s14, 1
      %s157 = scalar_select %p156, %s14, 1
      %s158 = smul.addr %s157, 4
      %s159 = smul.addr %s158, 4
      %s160 = scalar_lea.vmem %s3, %s159
      %p161 = scmp.lt.s32.totalorder %s14, 1
      %s162 = scalar_select %p161, %s14, 1
      %s163 = smul.addr %s162, 125
      %s164 = smul.addr %s163, 4
      %s165 = scalar_lea.vmem %s0, %s164
      %p166 = scmp.lt.s32.totalorder %s14, 1
      %s167 = scalar_select %p166, %s14, 1
      %s168 = smul.addr %s167, 4
      %s169 = smul.addr %s168, 4
      %s170 = scalar_lea.vmem %s3, %s169
      %v172 = vld [vmem:[%s165] sm:$0xff]
      %v173 = vld [vmem:[%s165 + $0x8] sm:$0xff]
      %v174 = vld [vmem:[%s165 + $0x10] sm:$0xff]
      %v175 = vld [vmem:[%s165 + $0x18] sm:$0xff]
      %v176 = vld [vmem:[%s165 + $0x20] sm:$0xff]
      %v177 = vld [vmem:[%s165 + $0x28] sm:$0xff]
      %v178 = vld [vmem:[%s165 + $0x30] sm:$0xff]
      %v179 = vld [vmem:[%s165 + $0x38] sm:$0xff]
      %v180 = vld [vmem:[%s165 + $0x40] sm:$0xff]
      %v181 = vld [vmem:[%s165 + $0x48] sm:$0xff]
      %v182 = vld [vmem:[%s165 + $0x50] sm:$0xff]
      %v183 = vld [vmem:[%s165 + $0x58] sm:$0xff]
      %v184 = vld [vmem:[%s165 + $0x60] sm:$0xf]
      %v185 = vld [vmem:[%s165 + $0x64] sm:$0xff]
      %v186 = vld [vmem:[%s165 + $0x6c] sm:$0xff]
      %v187 = vld [vmem:[%s165 + $0x74] sm:$0xff]
      %v188 = vld [vmem:[%s165 + $0x7c] sm:$0xff]
      %v189 = vld [vmem:[%s165 + $0x84] sm:$0xff]
      %v190 = vld [vmem:[%s165 + $0x8c] sm:$0xff]
      %v191 = vld [vmem:[%s165 + $0x94] sm:$0xff]
      %v192 = vld [vmem:[%s165 + $0x9c] sm:$0xff]
      %v193 = vld [vmem:[%s165 + $0xa4] sm:$0xff]
      %v194 = vld [vmem:[%s165 + $0xac] sm:$0xff]
      %v195 = vld [vmem:[%s165 + $0xb4] sm:$0xff]
      %v196 = vld [vmem:[%s165 + $0xbc] sm:$0xff]
      %v197 = vld [vmem:[%s165 + $0xc4] sm:$0xf]
      %v198 = vld [vmem:[%s165 + $0xc8] sm:$0xff]
      %v199 = vld [vmem:[%s165 + $0xd0] sm:$0xff]
      %v200 = vld [vmem:[%s165 + $0xd8] sm:$0xff]
      %v201 = vld [vmem:[%s165 + $0xe0] sm:$0xff]
      %v202 = vld [vmem:[%s165 + $0xe8] sm:$0xff]
      %v203 = vld [vmem:[%s165 + $0xf0] sm:$0xff]
      %v204 = vld [vmem:[%s165 + $0xf8] sm:$0xff]
      %v205 = vld [vmem:[%s165 + $0x100] sm:$0xff]
      %v206 = vld [vmem:[%s165 + $0x108] sm:$0xff]
      %v207 = vld [vmem:[%s165 + $0x110] sm:$0xff]
      %v208 = vld [vmem:[%s165 + $0x118] sm:$0xff]
      %v209 = vld [vmem:[%s165 + $0x120] sm:$0xff]
      %v210 = vld [vmem:[%s165 + $0x128] sm:$0xf]
      %v211 = vld [vmem:[%s165 + $0x12c] sm:$0xff]
      %v212 = vld [vmem:[%s165 + $0x134] sm:$0xff]
      %v213 = vld [vmem:[%s165 + $0x13c] sm:$0xff]
      %v214 = vld [vmem:[%s165 + $0x144] sm:$0xff]
      %v215 = vld [vmem:[%s165 + $0x14c] sm:$0xff]
      %v216 = vld [vmem:[%s165 + $0x154] sm:$0xff]
      %v217 = vld [vmem:[%s165 + $0x15c] sm:$0xff]
      %v218 = vld [vmem:[%s165 + $0x164] sm:$0xff]
      %v219 = vld [vmem:[%s165 + $0x16c] sm:$0xff]
      %v220 = vld [vmem:[%s165 + $0x174] sm:$0xff]
      %v221 = vld [vmem:[%s165 + $0x17c] sm:$0xff]
      %v222 = vld [vmem:[%s165 + $0x184] sm:$0xff]
      %v223 = vld [vmem:[%s165 + $0x18c] sm:$0xf]
      %v224 = vld [vmem:[%s165 + $0x190] sm:$0x11]
      %v225 = vld [vmem:[%s165 + $0x198] sm:$0x11]
      %v226 = vld [vmem:[%s165 + $0x1a0] sm:$0x11]
      %v227 = vld [vmem:[%s165 + $0x1a8] sm:$0x11]
      %v228 = vld [vmem:[%s165 + $0x1b0] sm:$0x11]
      %v229 = vld [vmem:[%s165 + $0x1b8] sm:$0x11]
      %v230 = vld [vmem:[%s165 + $0x1c0] sm:$0x11]
      %v231 = vld [vmem:[%s165 + $0x1c8] sm:$0x11]
      %v232 = vld [vmem:[%s165 + $0x1d0] sm:$0x11]
      %v233 = vld [vmem:[%s165 + $0x1d8] sm:$0x11]
      %v234 = vld [vmem:[%s165 + $0x1e0] sm:$0x11]
      %v235 = vld [vmem:[%s165 + $0x1e8] sm:$0x11]
      %v236 = vld [vmem:[%s165 + $0x1f0] sm:$0x1]
      %v237 = vld [vmem:[%s1] sm:$0xf]
      %v238 = vld [vmem:[%s1 + $0x4] sm:$0xf]
      %v239 = vld [vmem:[%s1 + $0x8] sm:$0xf]
      %v240 = vld [vmem:[%s1 + $0xc] sm:$0xf]
      %v241 = vld [vmem:[%s1 + $0x10] sm:$0xf]
      %v242 = vld [vmem:[%s1 + $0x14] sm:$0xf]
      %v243 = vld [vmem:[%s1 + $0x18] sm:$0xf]
      %v244 = vld [vmem:[%s1 + $0x1c] sm:$0xf]
      %v245 = vld [vmem:[%s1 + $0x20] sm:$0xf]
      %v246 = vld [vmem:[%s1 + $0x24] sm:$0xf]
      %v247 = vld [vmem:[%s1 + $0x28] sm:$0xf]
      %v248 = vld [vmem:[%s1 + $0x2c] sm:$0xf]
      %v249 = vld [vmem:[%s1 + $0x30] sm:$0xf]
      %v250 = vld [vmem:[%s1 + $0x34] sm:$0xf]
      %v251 = vld [vmem:[%s1 + $0x38] sm:$0xf]
      %v252 = vld [vmem:[%s1 + $0x3c] sm:$0xf]
      %v253 = vld [vmem:[%s1 + $0x40] sm:$0xf]
      %v254 = vld [vmem:[%s1 + $0x44] sm:$0xf]
      %v255 = vld [vmem:[%s1 + $0x48] sm:$0xf]
      %v256 = vld [vmem:[%s1 + $0x4c] sm:$0xf]
      %v257 = vld [vmem:[%s1 + $0x50] sm:$0xf]
      %v258 = vld [vmem:[%s1 + $0x54] sm:$0xf]
      %v259 = vld [vmem:[%s1 + $0x58] sm:$0xf]
      %v260 = vld [vmem:[%s1 + $0x5c] sm:$0xf]
      %v261 = vld [vmem:[%s1 + $0x60] sm:$0xf]
      %v262 = vld [vmem:[%s1 + $0x64] sm:$0xf]
      %v263 = vld [vmem:[%s1 + $0x68] sm:$0xf]
      %v264 = vld [vmem:[%s1 + $0x6c] sm:$0xf]
      %v265 = vld [vmem:[%s1 + $0x70] sm:$0xf]
      %v266 = vld [vmem:[%s1 + $0x74] sm:$0xf]
      %v267 = vld [vmem:[%s1 + $0x78] sm:$0xf]
      %v268 = vld [vmem:[%s1 + $0x7c] sm:$0xf]
      %v269 = vld [vmem:[%s1 + $0x80] sm:$0xf]
      %v270 = vld [vmem:[%s1 + $0x84] sm:$0xf]
      %v271 = vld [vmem:[%s1 + $0x88] sm:$0xf]
      %v272 = vld [vmem:[%s1 + $0x8c] sm:$0xf]
      %v273 = vld [vmem:[%s1 + $0x90] sm:$0xf]
      %v274 = vld [vmem:[%s1 + $0x94] sm:$0xf]
      %v275 = vld [vmem:[%s1 + $0x98] sm:$0xf]
      %v276 = vld [vmem:[%s1 + $0x9c] sm:$0xf]
      %v277 = vld [vmem:[%s1 + $0xa0] sm:$0xf]
      %v278 = vld [vmem:[%s1 + $0xa4] sm:$0xf]
      %v279 = vld [vmem:[%s1 + $0xa8] sm:$0xf]
      %v280 = vld [vmem:[%s1 + $0xac] sm:$0xf]
      %v281 = vld [vmem:[%s1 + $0xb0] sm:$0xf]
      %v282 = vld [vmem:[%s1 + $0xb4] sm:$0xf]
      %v283 = vld [vmem:[%s1 + $0xb8] sm:$0xf]
      %v284 = vld [vmem:[%s1 + $0xbc] sm:$0xf]
      %v285 = vld [vmem:[%s1 + $0xc0] sm:$0xf]
      %v286 = vld [vmem:[%s1 + $0xc4] sm:$0xf]
      %v287 = vld [vmem:[%s1 + $0xc8] sm:$0xf]
      %v288 = vld [vmem:[%s1 + $0xcc] sm:$0xf]
      %v289 = vld [vmem:[%s1 + $0xd0] sm:$0xf]
      %v290 = vld [vmem:[%s1 + $0xd4] sm:$0xf]
      %v291 = vld [vmem:[%s1 + $0xd8] sm:$0xf]
      %v292 = vld [vmem:[%s1 + $0xdc] sm:$0xf]
      %v293 = vld [vmem:[%s1 + $0xe0] sm:$0xf]
      %v294 = vld [vmem:[%s1 + $0xe4] sm:$0xf]
      %v295 = vld [vmem:[%s1 + $0xe8] sm:$0xf]
      %v296 = vld [vmem:[%s1 + $0xec] sm:$0xf]
      %v297 = vld [vmem:[%s1 + $0xf0] sm:$0xf]
      %v298 = vld [vmem:[%s1 + $0xf4] sm:$0xf]
      %v299 = vld [vmem:[%s1 + $0xf8] sm:$0xf]
      %v300 = vld [vmem:[%s1 + $0xfc] sm:$0xf]
      %v301 = vld [vmem:[%s1 + $0x100] sm:$0xf]
      %v302 = vld [vmem:[%s1 + $0x104] sm:$0xf]
      %v303 = vld [vmem:[%s1 + $0x108] sm:$0xf]
      %v304 = vld [vmem:[%s1 + $0x10c] sm:$0xf]
      %v305 = vld [vmem:[%s1 + $0x110] sm:$0xf]
      %v306 = vld [vmem:[%s1 + $0x114] sm:$0xf]
      %v307 = vld [vmem:[%s1 + $0x118] sm:$0xf]
      %v308 = vld [vmem:[%s1 + $0x11c] sm:$0xf]
      %v309 = vld [vmem:[%s1 + $0x120] sm:$0xf]
      %v310 = vld [vmem:[%s1 + $0x124] sm:$0xf]
      %v311 = vld [vmem:[%s1 + $0x128] sm:$0xf]
      %v312 = vld [vmem:[%s1 + $0x12c] sm:$0xf]
      %v313 = vld [vmem:[%s1 + $0x130] sm:$0xf]
      %v314 = vld [vmem:[%s1 + $0x134] sm:$0xf]
      %v315 = vld [vmem:[%s1 + $0x138] sm:$0xf]
      %v316 = vld [vmem:[%s1 + $0x13c] sm:$0xf]
      %v317 = vld [vmem:[%s1 + $0x140] sm:$0xf]
      %v318 = vld [vmem:[%s1 + $0x144] sm:$0xf]
      %v319 = vld [vmem:[%s1 + $0x148] sm:$0xf]
      %v320 = vld [vmem:[%s1 + $0x14c] sm:$0xf]
      %v321 = vld [vmem:[%s1 + $0x150] sm:$0xf]
      %v322 = vld [vmem:[%s1 + $0x154] sm:$0xf]
      %v323 = vld [vmem:[%s1 + $0x158] sm:$0xf]
      %v324 = vld [vmem:[%s1 + $0x15c] sm:$0xf]
      %v325 = vld [vmem:[%s1 + $0x160] sm:$0xf]
      %v326 = vld [vmem:[%s1 + $0x164] sm:$0xf]
      %v327 = vld [vmem:[%s1 + $0x168] sm:$0xf]
      %v328 = vld [vmem:[%s1 + $0x16c] sm:$0xf]
      %v329 = vld [vmem:[%s1 + $0x170] sm:$0xf]
      %v330 = vld [vmem:[%s1 + $0x174] sm:$0xf]
      %v331 = vld [vmem:[%s1 + $0x178] sm:$0xf]
      %v332 = vld [vmem:[%s1 + $0x17c] sm:$0xf]
      %v333 = vld [vmem:[%s1 + $0x180] sm:$0xf]
      %v334 = vld [vmem:[%s1 + $0x184] sm:$0xf]
      %v335 = vld [vmem:[%s1 + $0x188] sm:$0xf]
      %v336 = vld [vmem:[%s1 + $0x18c] sm:$0xf]
      %v337 = vld [vmem:[%s1 + $0x190] sm:$0xf]
      %v338 = vld [vmem:[%s1 + $0x194] sm:$0xf]
      %v339 = vld [vmem:[%s1 + $0x198] sm:$0xf]
      %v340 = vld [vmem:[%s1 + $0x19c] sm:$0xf]
      %v341 = vld [vmem:[%s1 + $0x1a0] sm:$0xf]
      %v342 = vld [vmem:[%s1 + $0x1a4] sm:$0xf]
      %v343 = vld [vmem:[%s1 + $0x1a8] sm:$0xf]
      %v344 = vld [vmem:[%s1 + $0x1ac] sm:$0xf]
      %v345 = vld [vmem:[%s1 + $0x1b0] sm:$0xf]
      %v346 = vld [vmem:[%s1 + $0x1b4] sm:$0xf]
      %v347 = vld [vmem:[%s1 + $0x1b8] sm:$0xf]
      %v348 = vld [vmem:[%s1 + $0x1bc] sm:$0xf]
      %v349 = vld [vmem:[%s1 + $0x1c0] sm:$0xf]
      %v350 = vld [vmem:[%s1 + $0x1c4] sm:$0xf]
      %v351 = vld [vmem:[%s1 + $0x1c8] sm:$0xf]
      %v352 = vld [vmem:[%s1 + $0x1cc] sm:$0xf]
      %v353 = vld [vmem:[%s1 + $0x1d0] sm:$0xf]
      %v354 = vld [vmem:[%s1 + $0x1d4] sm:$0xf]
      %v355 = vld [vmem:[%s1 + $0x1d8] sm:$0xf]
      %v356 = vld [vmem:[%s1 + $0x1dc] sm:$0xf]
      %v357 = vld [vmem:[%s1 + $0x1e0] sm:$0xf]
      %v358 = vld [vmem:[%s1 + $0x1e4] sm:$0xf]
      %v359 = vld [vmem:[%s1 + $0x1e8] sm:$0xf]
      %v360 = vld [vmem:[%s1 + $0x1ec] sm:$0xf]
      %v361 = vld [vmem:[%s1 + $0x1f0] sm:$0xf]
      %v362 = vld [vmem:[%s1 + $0x1f4] sm:$0xf]
      %v363 = vld [vmem:[%s1 + $0x1f8] sm:$0xf]
      %v364 = vld [vmem:[%s1 + $0x1fc] sm:$0xf]
      %v365 = vld [vmem:[%s1 + $0x200] sm:$0xf]
      %v366 = vld [vmem:[%s1 + $0x204] sm:$0xf]
      %v367 = vld [vmem:[%s1 + $0x208] sm:$0xf]
      %v368 = vld [vmem:[%s1 + $0x20c] sm:$0xf]
      %v369 = vld [vmem:[%s1 + $0x210] sm:$0xf]
      %v370 = vld [vmem:[%s1 + $0x214] sm:$0xf]
      %v371 = vld [vmem:[%s1 + $0x218] sm:$0xf]
      %v372 = vld [vmem:[%s1 + $0x21c] sm:$0xf]
      %v373 = vld [vmem:[%s1 + $0x220] sm:$0xf]
      %v374 = vld [vmem:[%s1 + $0x224] sm:$0xf]
      %v375 = vld [vmem:[%s1 + $0x228] sm:$0xf]
      %v376 = vld [vmem:[%s1 + $0x22c] sm:$0xf]
      %v377 = vld [vmem:[%s1 + $0x230] sm:$0xf]
      %v378 = vld [vmem:[%s1 + $0x234] sm:$0xf]
      %v379 = vld [vmem:[%s1 + $0x238] sm:$0xf]
      %v380 = vld [vmem:[%s1 + $0x23c] sm:$0xf]
      %v381 = vld [vmem:[%s1 + $0x240] sm:$0xf]
      %v382 = vld [vmem:[%s1 + $0x244] sm:$0xf]
      %v383 = vld [vmem:[%s1 + $0x248] sm:$0xf]
      %v384 = vld [vmem:[%s1 + $0x24c] sm:$0xf]
      %v385 = vld [vmem:[%s1 + $0x250] sm:$0xf]
      %v386 = vld [vmem:[%s1 + $0x254] sm:$0xf]
      %v387 = vld [vmem:[%s1 + $0x258] sm:$0xf]
      %v388 = vld [vmem:[%s1 + $0x25c] sm:$0xf]
      %v389 = vld [vmem:[%s1 + $0x260] sm:$0xf]
      %v390 = vld [vmem:[%s1 + $0x264] sm:$0xf]
      %v391 = vld [vmem:[%s1 + $0x268] sm:$0xf]
      %v392 = vld [vmem:[%s1 + $0x26c] sm:$0xf]
      %v393 = vld [vmem:[%s1 + $0x270] sm:$0xf]
      %v394 = vld [vmem:[%s1 + $0x274] sm:$0xf]
      %v395 = vld [vmem:[%s1 + $0x278] sm:$0xf]
      %v396 = vld [vmem:[%s1 + $0x27c] sm:$0xf]
      %v397 = vld [vmem:[%s1 + $0x280] sm:$0xf]
      %v398 = vld [vmem:[%s1 + $0x284] sm:$0xf]
      %v399 = vld [vmem:[%s1 + $0x288] sm:$0xf]
      %v400 = vld [vmem:[%s1 + $0x28c] sm:$0xf]
      %v401 = vld [vmem:[%s1 + $0x290] sm:$0xf]
      %v402 = vld [vmem:[%s1 + $0x294] sm:$0xf]
      %v403 = vld [vmem:[%s1 + $0x298] sm:$0xf]
      %v404 = vld [vmem:[%s1 + $0x29c] sm:$0xf]
      %v405 = vld [vmem:[%s1 + $0x2a0] sm:$0xf]
      %v406 = vld [vmem:[%s1 + $0x2a4] sm:$0xf]
      %v407 = vld [vmem:[%s1 + $0x2a8] sm:$0xf]
      %v408 = vld [vmem:[%s1 + $0x2ac] sm:$0xf]
      %v409 = vld [vmem:[%s1 + $0x2b0] sm:$0xf]
      %v410 = vld [vmem:[%s1 + $0x2b4] sm:$0xf]
      %v411 = vld [vmem:[%s1 + $0x2b8] sm:$0xf]
      %v412 = vld [vmem:[%s1 + $0x2bc] sm:$0xf]
      %v413 = vld [vmem:[%s1 + $0x2c0] sm:$0xf]
      %v414 = vld [vmem:[%s1 + $0x2c4] sm:$0xf]
      %v415 = vld [vmem:[%s1 + $0x2c8] sm:$0xf]
      %v416 = vld [vmem:[%s1 + $0x2cc] sm:$0xf]
      %v417 = vld [vmem:[%s1 + $0x2d0] sm:$0xf]
      %v418 = vld [vmem:[%s1 + $0x2d4] sm:$0xf]
      %v419 = vld [vmem:[%s1 + $0x2d8] sm:$0xf]
      %v420 = vld [vmem:[%s1 + $0x2dc] sm:$0xf]
      %v421 = vld [vmem:[%s1 + $0x2e0] sm:$0xf]
      %v422 = vld [vmem:[%s1 + $0x2e4] sm:$0xf]
      %v423 = vld [vmem:[%s1 + $0x2e8] sm:$0xf]
      %v424 = vld [vmem:[%s1 + $0x2ec] sm:$0xf]
      %v425 = vld [vmem:[%s1 + $0x2f0] sm:$0xf]
      %v426 = vld [vmem:[%s1 + $0x2f4] sm:$0xf]
      %v427 = vld [vmem:[%s1 + $0x2f8] sm:$0xf]
      %v428 = vld [vmem:[%s1 + $0x2fc] sm:$0xf]
      %v429 = vld [vmem:[%s1 + $0x300] sm:$0xf]
      %v430 = vld [vmem:[%s1 + $0x304] sm:$0xf]
      %v431 = vld [vmem:[%s1 + $0x308] sm:$0xf]
      %v432 = vld [vmem:[%s1 + $0x30c] sm:$0xf]
      %v433 = vld [vmem:[%s1 + $0x310] sm:$0xf]
      %v434 = vld [vmem:[%s1 + $0x314] sm:$0xf]
      %v435 = vld [vmem:[%s1 + $0x318] sm:$0xf]
      %v436 = vld [vmem:[%s1 + $0x31c] sm:$0xf]
      %v437 = vld [vmem:[%s1 + $0x320] sm:$0xf]
      %v438 = vld [vmem:[%s1 + $0x324] sm:$0xf]
      %v439 = vld [vmem:[%s1 + $0x328] sm:$0xf]
      %v440 = vld [vmem:[%s1 + $0x32c] sm:$0xf]
      %v441 = vld [vmem:[%s1 + $0x330] sm:$0xf]
      %v442 = vld [vmem:[%s1 + $0x334] sm:$0xf]
      %v443 = vld [vmem:[%s1 + $0x338] sm:$0xf]
      %v444 = vld [vmem:[%s1 + $0x33c] sm:$0xf]
      %v445 = vld [vmem:[%s1 + $0x340] sm:$0xf]
      %v446 = vld [vmem:[%s1 + $0x344] sm:$0xf]
      %v447 = vld [vmem:[%s1 + $0x348] sm:$0xf]
      %v448 = vld [vmem:[%s1 + $0x34c] sm:$0xf]
      %v449 = vld [vmem:[%s1 + $0x350] sm:$0xf]
      %v450 = vld [vmem:[%s1 + $0x354] sm:$0xf]
      %v451 = vld [vmem:[%s1 + $0x358] sm:$0xf]
      %v452 = vld [vmem:[%s1 + $0x35c] sm:$0xf]
      %v453 = vld [vmem:[%s1 + $0x360] sm:$0xf]
      %v454 = vld [vmem:[%s1 + $0x364] sm:$0xf]
      %v455 = vld [vmem:[%s1 + $0x368] sm:$0xf]
      %v456 = vld [vmem:[%s1 + $0x36c] sm:$0xf]
      %v457 = vld [vmem:[%s1 + $0x370] sm:$0xf]
      %v458 = vld [vmem:[%s1 + $0x374] sm:$0xf]
      %v459 = vld [vmem:[%s1 + $0x378] sm:$0xf]
      %v460 = vld [vmem:[%s1 + $0x37c] sm:$0xf]
      %v461 = vld [vmem:[%s1 + $0x380] sm:$0xf]
      %v462 = vld [vmem:[%s1 + $0x384] sm:$0xf]
      %v463 = vld [vmem:[%s1 + $0x388] sm:$0xf]
      %v464 = vld [vmem:[%s1 + $0x38c] sm:$0xf]
      %v465 = vld [vmem:[%s1 + $0x390] sm:$0xf]
      %v466 = vld [vmem:[%s1 + $0x394] sm:$0xf]
      %v467 = vld [vmem:[%s1 + $0x398] sm:$0xf]
      %v468 = vld [vmem:[%s1 + $0x39c] sm:$0xf]
      %v469 = vld [vmem:[%s1 + $0x3a0] sm:$0xf]
      %v470 = vld [vmem:[%s1 + $0x3a4] sm:$0xf]
      %v471 = vld [vmem:[%s1 + $0x3a8] sm:$0xf]
      %v472 = vld [vmem:[%s1 + $0x3ac] sm:$0xf]
      %v473 = vld [vmem:[%s1 + $0x3b0] sm:$0xf]
      %v474 = vld [vmem:[%s1 + $0x3b4] sm:$0xf]
      %v475 = vld [vmem:[%s1 + $0x3b8] sm:$0xf]
      %v476 = vld [vmem:[%s1 + $0x3bc] sm:$0xf]
      %v477 = vld [vmem:[%s1 + $0x3c0] sm:$0xf]
      %v478 = vld [vmem:[%s1 + $0x3c4] sm:$0xf]
      %v479 = vld [vmem:[%s1 + $0x3c8] sm:$0xf]
      %v480 = vld [vmem:[%s1 + $0x3cc] sm:$0xf]
      %v481 = vld [vmem:[%s1 + $0x3d0] sm:$0xf]
      %v482 = vld [vmem:[%s1 + $0x3d4] sm:$0xf]
      %v483 = vld [vmem:[%s1 + $0x3d8] sm:$0xf]
      %v484 = vld [vmem:[%s1 + $0x3dc] sm:$0xf]
      %v485 = vld [vmem:[%s1 + $0x3e0] sm:$0xf]
      %v486 = vld [vmem:[%s1 + $0x3e4] sm:$0xf]
      %v487 = vld [vmem:[%s1 + $0x3e8] sm:$0xf]
      %v488 = vld [vmem:[%s1 + $0x3ec] sm:$0xf]
      %v489 = vld [vmem:[%s1 + $0x3f0] sm:$0xf]
      %v490 = vld [vmem:[%s1 + $0x3f4] sm:$0xf]
      %v491 = vld [vmem:[%s1 + $0x3f8] sm:$0xf]
      %v492 = vld [vmem:[%s1 + $0x3fc] sm:$0xf]
      %v493 = vld [vmem:[%s1 + $0x400] sm:$0xf]
      %v494 = vld [vmem:[%s1 + $0x404] sm:$0xf]
      %v495 = vld [vmem:[%s1 + $0x408] sm:$0xf]
      %v496 = vld [vmem:[%s1 + $0x40c] sm:$0xf]
      %v497 = vld [vmem:[%s1 + $0x410] sm:$0xf]
      %v498 = vld [vmem:[%s1 + $0x414] sm:$0xf]
      %v499 = vld [vmem:[%s1 + $0x418] sm:$0xf]
      %v500 = vld [vmem:[%s1 + $0x41c] sm:$0xf]
      %v501 = vld [vmem:[%s1 + $0x420] sm:$0xf]
      %v502 = vld [vmem:[%s1 + $0x424] sm:$0xf]
      %v503 = vld [vmem:[%s1 + $0x428] sm:$0xf]
      %v504 = vld [vmem:[%s1 + $0x42c] sm:$0xf]
      %v505 = vld [vmem:[%s1 + $0x430] sm:$0xf]
      %v506 = vld [vmem:[%s1 + $0x434] sm:$0xf]
      %v507 = vld [vmem:[%s1 + $0x438] sm:$0xf]
      %v508 = vld [vmem:[%s1 + $0x43c] sm:$0xf]
      %v509 = vld [vmem:[%s1 + $0x440] sm:$0xf]
      %v510 = vld [vmem:[%s1 + $0x444] sm:$0xf]
      %v511 = vld [vmem:[%s1 + $0x448] sm:$0xf]
      %v512 = vld [vmem:[%s1 + $0x44c] sm:$0xf]
      %v513 = vld [vmem:[%s1 + $0x450] sm:$0xf]
      %v514 = vld [vmem:[%s1 + $0x454] sm:$0xf]
      %v515 = vld [vmem:[%s1 + $0x458] sm:$0xf]
      %v516 = vld [vmem:[%s1 + $0x45c] sm:$0xf]
      %v517 = vld [vmem:[%s1 + $0x460] sm:$0xf]
      %v518 = vld [vmem:[%s1 + $0x464] sm:$0xf]
      %v519 = vld [vmem:[%s1 + $0x468] sm:$0xf]
      %v520 = vld [vmem:[%s1 + $0x46c] sm:$0xf]
      %v521 = vld [vmem:[%s1 + $0x470] sm:$0xf]
      %v522 = vld [vmem:[%s1 + $0x474] sm:$0xf]
      %v523 = vld [vmem:[%s1 + $0x478] sm:$0xf]
      %v524 = vld [vmem:[%s1 + $0x47c] sm:$0xf]
      %v525 = vld [vmem:[%s1 + $0x480] sm:$0xf]
      %v526 = vld [vmem:[%s1 + $0x484] sm:$0xf]
      %v527 = vld [vmem:[%s1 + $0x488] sm:$0xf]
      %v528 = vld [vmem:[%s1 + $0x48c] sm:$0xf]
      %v529 = vld [vmem:[%s1 + $0x490] sm:$0xf]
      %v530 = vld [vmem:[%s1 + $0x494] sm:$0xf]
      %v531 = vld [vmem:[%s1 + $0x498] sm:$0xf]
      %v532 = vld [vmem:[%s1 + $0x49c] sm:$0xf]
      %v533 = vld [vmem:[%s1 + $0x4a0] sm:$0xf]
      %v534 = vld [vmem:[%s1 + $0x4a4] sm:$0xf]
      %v535 = vld [vmem:[%s1 + $0x4a8] sm:$0xf]
      %v536 = vld [vmem:[%s1 + $0x4ac] sm:$0xf]
      %v537 = vld [vmem:[%s1 + $0x4b0] sm:$0xf]
      %v538 = vld [vmem:[%s1 + $0x4b4] sm:$0xf]
      %v539 = vld [vmem:[%s1 + $0x4b8] sm:$0xf]
      %v540 = vld [vmem:[%s1 + $0x4bc] sm:$0xf]
      %v541 = vld [vmem:[%s1 + $0x4c0] sm:$0xf]
      %v542 = vld [vmem:[%s1 + $0x4c4] sm:$0xf]
      %v543 = vld [vmem:[%s1 + $0x4c8] sm:$0xf]
      %v544 = vld [vmem:[%s1 + $0x4cc] sm:$0xf]
      %v545 = vld [vmem:[%s1 + $0x4d0] sm:$0xf]
      %v546 = vld [vmem:[%s1 + $0x4d4] sm:$0xf]
      %v547 = vld [vmem:[%s1 + $0x4d8] sm:$0xf]
      %v548 = vld [vmem:[%s1 + $0x4dc] sm:$0xf]
      %v549 = vld [vmem:[%s1 + $0x4e0] sm:$0xf]
      %v550 = vld [vmem:[%s1 + $0x4e4] sm:$0xf]
      %v551 = vld [vmem:[%s1 + $0x4e8] sm:$0xf]
      %v552 = vld [vmem:[%s1 + $0x4ec] sm:$0xf]
      %v553 = vld [vmem:[%s1 + $0x4f0] sm:$0xf]
      %v554 = vld [vmem:[%s1 + $0x4f4] sm:$0xf]
      %v555 = vld [vmem:[%s1 + $0x4f8] sm:$0xf]
      %v556 = vld [vmem:[%s1 + $0x4fc] sm:$0xf]
      %v557 = vld [vmem:[%s1 + $0x500] sm:$0xf]
      %v558 = vld [vmem:[%s1 + $0x504] sm:$0xf]
      %v559 = vld [vmem:[%s1 + $0x508] sm:$0xf]
      %v560 = vld [vmem:[%s1 + $0x50c] sm:$0xf]
      %v561 = vld [vmem:[%s1 + $0x510] sm:$0xf]
      %v562 = vld [vmem:[%s1 + $0x514] sm:$0xf]
      %v563 = vld [vmem:[%s1 + $0x518] sm:$0xf]
      %v564 = vld [vmem:[%s1 + $0x51c] sm:$0xf]
      %v565 = vld [vmem:[%s1 + $0x520] sm:$0xf]
      %v566 = vld [vmem:[%s1 + $0x524] sm:$0xf]
      %v567 = vld [vmem:[%s1 + $0x528] sm:$0xf]
      %v568 = vld [vmem:[%s1 + $0x52c] sm:$0xf]
      %v569 = vld [vmem:[%s1 + $0x530] sm:$0xf]
      %v570 = vld [vmem:[%s1 + $0x534] sm:$0xf]
      %v571 = vld [vmem:[%s1 + $0x538] sm:$0xf]
      %v572 = vld [vmem:[%s1 + $0x53c] sm:$0xf]
      %v573 = vld [vmem:[%s1 + $0x540] sm:$0xf]
      %v574 = vld [vmem:[%s1 + $0x544] sm:$0xf]
      %v575 = vld [vmem:[%s1 + $0x548] sm:$0xf]
      %v576 = vld [vmem:[%s1 + $0x54c] sm:$0xf]
      %v577 = vld [vmem:[%s1 + $0x550] sm:$0xf]
      %v578 = vld [vmem:[%s1 + $0x554] sm:$0xf]
      %v579 = vld [vmem:[%s1 + $0x558] sm:$0xf]
      %v580 = vld [vmem:[%s1 + $0x55c] sm:$0xf]
      %v581 = vld [vmem:[%s1 + $0x560] sm:$0xf]
      %v582 = vld [vmem:[%s1 + $0x564] sm:$0xf]
      %v583 = vld [vmem:[%s1 + $0x568] sm:$0xf]
      %v584 = vld [vmem:[%s1 + $0x56c] sm:$0xf]
      %v585 = vld [vmem:[%s1 + $0x570] sm:$0xf]
      %v586 = vld [vmem:[%s1 + $0x574] sm:$0xf]
      %v587 = vld [vmem:[%s1 + $0x578] sm:$0xf]
      %v588 = vld [vmem:[%s1 + $0x57c] sm:$0xf]
      %v589 = vld [vmem:[%s1 + $0x580] sm:$0xf]
      %v590 = vld [vmem:[%s1 + $0x584] sm:$0xf]
      %v591 = vld [vmem:[%s1 + $0x588] sm:$0xf]
      %v592 = vld [vmem:[%s1 + $0x58c] sm:$0xf]
      %v593 = vld [vmem:[%s1 + $0x590] sm:$0xf]
      %v594 = vld [vmem:[%s1 + $0x594] sm:$0xf]
      %v595 = vld [vmem:[%s1 + $0x598] sm:$0xf]
      %v596 = vld [vmem:[%s1 + $0x59c] sm:$0xf]
      %v597 = vld [vmem:[%s1 + $0x5a0] sm:$0xf]
      %v598 = vld [vmem:[%s1 + $0x5a4] sm:$0xf]
      %v599 = vld [vmem:[%s1 + $0x5a8] sm:$0xf]
      %v600 = vld [vmem:[%s1 + $0x5ac] sm:$0xf]
      %v601 = vld [vmem:[%s1 + $0x5b0] sm:$0xf]
      %v602 = vld [vmem:[%s1 + $0x5b4] sm:$0xf]
      %v603 = vld [vmem:[%s1 + $0x5b8] sm:$0xf]
      %v604 = vld [vmem:[%s1 + $0x5bc] sm:$0xf]
      %v605 = vld [vmem:[%s1 + $0x5c0] sm:$0xf]
      %v606 = vld [vmem:[%s1 + $0x5c4] sm:$0xf]
      %v607 = vld [vmem:[%s1 + $0x5c8] sm:$0xf]
      %v608 = vld [vmem:[%s1 + $0x5cc] sm:$0xf]
      %v609 = vld [vmem:[%s1 + $0x5d0] sm:$0xf]
      %v610 = vld [vmem:[%s1 + $0x5d4] sm:$0xf]
      %v611 = vld [vmem:[%s1 + $0x5d8] sm:$0xf]
      %v612 = vld [vmem:[%s1 + $0x5dc] sm:$0xf]
      %v613 = vld [vmem:[%s1 + $0x5e0] sm:$0xf]
      %v614 = vld [vmem:[%s1 + $0x5e4] sm:$0xf]
      %v615 = vld [vmem:[%s1 + $0x5e8] sm:$0xf]
      %v616 = vld [vmem:[%s1 + $0x5ec] sm:$0xf]
      %v617 = vld [vmem:[%s1 + $0x5f0] sm:$0xf]
      %v618 = vld [vmem:[%s1 + $0x5f4] sm:$0xf]
      %v619 = vld [vmem:[%s1 + $0x5f8] sm:$0xf]
      %v620 = vld [vmem:[%s1 + $0x5fc] sm:$0xf]
      %v621 = vld [vmem:[%s1 + $0x600] sm:$0xf]
      %v622 = vld [vmem:[%s1 + $0x604] sm:$0xf]
      %v623 = vld [vmem:[%s1 + $0x608] sm:$0xf]
      %v624 = vld [vmem:[%s1 + $0x60c] sm:$0xf]
      %v625 = vld [vmem:[%s1 + $0x610] sm:$0xf]
      %v626 = vld [vmem:[%s1 + $0x614] sm:$0xf]
      %v627 = vld [vmem:[%s1 + $0x618] sm:$0xf]
      %v628 = vld [vmem:[%s1 + $0x61c] sm:$0xf]
      %v694 = vunpack.c.l.b16 %v172
      %v695 = vunpack.c.h.b16 %v172
      %v696 = vunpack.c.l.b16 %v173
      %v697 = vunpack.c.h.b16 %v173
      %v698 = vunpack.c.l.b16 %v174
      %v699 = vunpack.c.h.b16 %v174
      %v700 = vunpack.c.l.b16 %v175
      %v701 = vunpack.c.h.b16 %v175
      %v702 = vunpack.c.l.b16 %v176
      %v703 = vunpack.c.h.b16 %v176
      %v704 = vunpack.c.l.b16 %v177
      %v705 = vunpack.c.h.b16 %v177
      %v706 = vunpack.c.l.b16 %v178
      %v707 = vunpack.c.h.b16 %v178
      %v708 = vunpack.c.l.b16 %v179
      %v709 = vunpack.c.h.b16 %v179
      %v710 = vunpack.c.l.b16 %v180
      %v711 = vunpack.c.h.b16 %v180
      %v712 = vunpack.c.l.b16 %v181
      %v713 = vunpack.c.h.b16 %v181
      %v714 = vunpack.c.l.b16 %v182
      %v715 = vunpack.c.h.b16 %v182
      %v716 = vunpack.c.l.b16 %v183
      %v717 = vunpack.c.h.b16 %v183
      %v718 = vunpack.c.l.b16 %v184
      %v719 = vunpack.c.l.b16 %v185
      %v720 = vunpack.c.h.b16 %v185
      %v721 = vunpack.c.l.b16 %v186
      %v722 = vunpack.c.h.b16 %v186
      %v723 = vunpack.c.l.b16 %v187
      %v724 = vunpack.c.h.b16 %v187
      %v725 = vunpack.c.l.b16 %v188
      %v726 = vunpack.c.h.b16 %v188
      %v727 = vunpack.c.l.b16 %v189
      %v728 = vunpack.c.h.b16 %v189
      %v729 = vunpack.c.l.b16 %v190
      %v730 = vunpack.c.h.b16 %v190
      %v731 = vunpack.c.l.b16 %v191
      %v732 = vunpack.c.h.b16 %v191
      %v733 = vunpack.c.l.b16 %v192
      %v734 = vunpack.c.h.b16 %v192
      %v735 = vunpack.c.l.b16 %v193
      %v736 = vunpack.c.h.b16 %v193
      %v737 = vunpack.c.l.b16 %v194
      %v738 = vunpack.c.h.b16 %v194
      %v739 = vunpack.c.l.b16 %v195
      %v740 = vunpack.c.h.b16 %v195
      %v741 = vunpack.c.l.b16 %v196
      %v742 = vunpack.c.h.b16 %v196
      %v743 = vunpack.c.l.b16 %v197
      %v744 = vunpack.c.l.b16 %v198
      %v745 = vunpack.c.h.b16 %v198
      %v746 = vunpack.c.l.b16 %v199
      %v747 = vunpack.c.h.b16 %v199
      %v748 = vunpack.c.l.b16 %v200
      %v749 = vunpack.c.h.b16 %v200
      %v750 = vunpack.c.l.b16 %v201
      %v751 = vunpack.c.h.b16 %v201
      %v752 = vunpack.c.l.b16 %v202
      %v753 = vunpack.c.h.b16 %v202
      %v754 = vunpack.c.l.b16 %v203
      %v755 = vunpack.c.h.b16 %v203
      %v756 = vunpack.c.l.b16 %v204
      %v757 = vunpack.c.h.b16 %v204
      %v758 = vunpack.c.l.b16 %v205
      %v759 = vunpack.c.h.b16 %v205
      %v760 = vunpack.c.l.b16 %v206
      %v761 = vunpack.c.h.b16 %v206
      %v762 = vunpack.c.l.b16 %v207
      %v763 = vunpack.c.h.b16 %v207
      %v764 = vunpack.c.l.b16 %v208
      %v765 = vunpack.c.h.b16 %v208
      %v766 = vunpack.c.l.b16 %v209
      %v767 = vunpack.c.h.b16 %v209
      %v768 = vunpack.c.l.b16 %v210
      %v769 = vunpack.c.l.b16 %v211
      %v770 = vunpack.c.h.b16 %v211
      %v771 = vunpack.c.l.b16 %v212
      %v772 = vunpack.c.h.b16 %v212
      %v773 = vunpack.c.l.b16 %v213
      %v774 = vunpack.c.h.b16 %v213
      %v775 = vunpack.c.l.b16 %v214
      %v776 = vunpack.c.h.b16 %v214
      %v777 = vunpack.c.l.b16 %v215
      %v778 = vunpack.c.h.b16 %v215
      %v779 = vunpack.c.l.b16 %v216
      %v780 = vunpack.c.h.b16 %v216
      %v781 = vunpack.c.l.b16 %v217
      %v782 = vunpack.c.h.b16 %v217
      %v783 = vunpack.c.l.b16 %v218
      %v784 = vunpack.c.h.b16 %v218
      %v785 = vunpack.c.l.b16 %v219
      %v786 = vunpack.c.h.b16 %v219
      %v787 = vunpack.c.l.b16 %v220
      %v788 = vunpack.c.h.b16 %v220
      %v789 = vunpack.c.l.b16 %v221
      %v790 = vunpack.c.h.b16 %v221
      %v791 = vunpack.c.l.b16 %v222
      %v792 = vunpack.c.h.b16 %v222
      %v793 = vunpack.c.l.b16 %v223
      %v794 = vunpack.c.l.b16 %v224
      %v795 = vunpack.c.h.b16 %v224
      %v796 = vunpack.c.l.b16 %v225
      %v797 = vunpack.c.h.b16 %v225
      %v798 = vunpack.c.l.b16 %v226
      %v799 = vunpack.c.h.b16 %v226
      %v800 = vunpack.c.l.b16 %v227
      %v801 = vunpack.c.h.b16 %v227
      %v802 = vunpack.c.l.b16 %v228
      %v803 = vunpack.c.h.b16 %v228
      %v804 = vunpack.c.l.b16 %v229
      %v805 = vunpack.c.h.b16 %v229
      %v806 = vunpack.c.l.b16 %v230
      %v807 = vunpack.c.h.b16 %v230
      %v808 = vunpack.c.l.b16 %v231
      %v809 = vunpack.c.h.b16 %v231
      %v810 = vunpack.c.l.b16 %v232
      %v811 = vunpack.c.h.b16 %v232
      %v812 = vunpack.c.l.b16 %v233
      %v813 = vunpack.c.h.b16 %v233
      %v814 = vunpack.c.l.b16 %v234
      %v815 = vunpack.c.h.b16 %v234
      %v816 = vunpack.c.l.b16 %v235
      %v817 = vunpack.c.h.b16 %v235
      %v818 = vunpack.c.l.b16 %v236
      %v819 = vpack.c.b16 %v719, %v694
      %v820 = vpack.c.b16 %v720, %v695
      %v821 = vpack.c.b16 %v721, %v696
      %v822 = vpack.c.b16 %v722, %v697
      %v823 = vpack.c.b16 %v723, %v698
      %v824 = vpack.c.b16 %v724, %v699
      %v825 = vpack.c.b16 %v725, %v700
      %v826 = vpack.c.b16 %v726, %v701
      %v827 = vpack.c.b16 %v727, %v702
      %v828 = vpack.c.b16 %v728, %v703
      %v829 = vpack.c.b16 %v729, %v704
      %v830 = vpack.c.b16 %v730, %v705
      %v831 = vpack.c.b16 %v731, %v706
      %v832 = vpack.c.b16 %v732, %v707
      %v833 = vpack.c.b16 %v733, %v708
      %v834 = vpack.c.b16 %v734, %v709
      %v835 = vpack.c.b16 %v735, %v710
      %v836 = vpack.c.b16 %v736, %v711
      %v837 = vpack.c.b16 %v737, %v712
      %v838 = vpack.c.b16 %v738, %v713
      %v839 = vpack.c.b16 %v739, %v714
      %v840 = vpack.c.b16 %v740, %v715
      %v841 = vpack.c.b16 %v741, %v716
      %v842 = vpack.c.b16 %v742, %v717
      %v843 = vpack.c.b16 %v743, %v718
      %v844 = vpack.c.b16 %v769, %v744
      %v845 = vpack.c.b16 %v770, %v745
      %v846 = vpack.c.b16 %v771, %v746
      %v847 = vpack.c.b16 %v772, %v747
      %v848 = vpack.c.b16 %v773, %v748
      %v849 = vpack.c.b16 %v774, %v749
      %v850 = vpack.c.b16 %v775, %v750
      %v851 = vpack.c.b16 %v776, %v751
      %v852 = vpack.c.b16 %v777, %v752
      %v853 = vpack.c.b16 %v778, %v753
      %v854 = vpack.c.b16 %v779, %v754
      %v855 = vpack.c.b16 %v780, %v755
      %v856 = vpack.c.b16 %v781, %v756
      %v857 = vpack.c.b16 %v782, %v757
      %v858 = vpack.c.b16 %v783, %v758
      %v859 = vpack.c.b16 %v784, %v759
      %v860 = vpack.c.b16 %v785, %v760
      %v861 = vpack.c.b16 %v786, %v761
      %v862 = vpack.c.b16 %v787, %v762
      %v863 = vpack.c.b16 %v788, %v763
      %v864 = vpack.c.b16 %v789, %v764
      %v865 = vpack.c.b16 %v790, %v765
      %v866 = vpack.c.b16 %v791, %v766
      %v867 = vpack.c.b16 %v792, %v767
      %v868 = vpack.c.b16 %v793, %v768
      %v869 = vpack.c.b16 %v794, %v794
      %v870 = vpack.c.b16 %v795, %v795
      %v871 = vpack.c.b16 %v796, %v796
      %v872 = vpack.c.b16 %v797, %v797
      %v873 = vpack.c.b16 %v798, %v798
      %v874 = vpack.c.b16 %v799, %v799
      %v875 = vpack.c.b16 %v800, %v800
      %v876 = vpack.c.b16 %v801, %v801
      %v877 = vpack.c.b16 %v802, %v802
      %v878 = vpack.c.b16 %v803, %v803
      %v879 = vpack.c.b16 %v804, %v804
      %v880 = vpack.c.b16 %v805, %v805
      %v881 = vpack.c.b16 %v806, %v806
      %v882 = vpack.c.b16 %v807, %v807
      %v883 = vpack.c.b16 %v808, %v808
      %v884 = vpack.c.b16 %v809, %v809
      %v885 = vpack.c.b16 %v810, %v810
      %v886 = vpack.c.b16 %v811, %v811
      %v887 = vpack.c.b16 %v812, %v812
      %v888 = vpack.c.b16 %v813, %v813
      %v889 = vpack.c.b16 %v814, %v814
      %v890 = vpack.c.b16 %v815, %v815
      %v891 = vpack.c.b16 %v816, %v816
      %v892 = vpack.c.b16 %v817, %v817
      %v893 = vpack.c.b16 %v818, %v818
      %v1358 = vunpack.c.l.b16 %v237
      %v1359 = vunpack.c.l.b16 %v238
      %v1360 = vunpack.c.l.b16 %v239
      %v1361 = vunpack.c.l.b16 %v240
      %v1362 = vunpack.c.l.b16 %v241
      %v1363 = vunpack.c.l.b16 %v242
      %v1364 = vunpack.c.l.b16 %v243
      %v1365 = vunpack.c.l.b16 %v244
      %v1366 = vunpack.c.l.b16 %v245
      %v1367 = vunpack.c.l.b16 %v246
      %v1368 = vunpack.c.l.b16 %v247
      %v1369 = vunpack.c.l.b16 %v248
      %v1370 = vunpack.c.l.b16 %v249
      %v1371 = vunpack.c.l.b16 %v250
      %v1372 = vunpack.c.l.b16 %v251
      %v1373 = vunpack.c.l.b16 %v252
      %v1374 = vunpack.c.l.b16 %v253
      %v1375 = vunpack.c.l.b16 %v254
      %v1376 = vunpack.c.l.b16 %v255
      %v1377 = vunpack.c.l.b16 %v256
      %v1378 = vunpack.c.l.b16 %v257
      %v1379 = vunpack.c.l.b16 %v258
      %v1380 = vunpack.c.l.b16 %v259
      %v1381 = vunpack.c.l.b16 %v260
      %v1382 = vunpack.c.l.b16 %v261
      %v1383 = vunpack.c.l.b16 %v262
      %v1384 = vunpack.c.l.b16 %v263
      %v1385 = vunpack.c.l.b16 %v264
      %v1386 = vunpack.c.l.b16 %v265
      %v1387 = vunpack.c.l.b16 %v266
      %v1388 = vunpack.c.l.b16 %v267
      %v1389 = vunpack.c.l.b16 %v268
      %v1390 = vunpack.c.l.b16 %v269
      %v1391 = vunpack.c.l.b16 %v270
      %v1392 = vunpack.c.l.b16 %v271
      %v1393 = vunpack.c.l.b16 %v272
      %v1394 = vunpack.c.l.b16 %v273
      %v1395 = vunpack.c.l.b16 %v274
      %v1396 = vunpack.c.l.b16 %v275
      %v1397 = vunpack.c.l.b16 %v276
      %v1398 = vunpack.c.l.b16 %v277
      %v1399 = vunpack.c.l.b16 %v278
      %v1400 = vunpack.c.l.b16 %v279
      %v1401 = vunpack.c.l.b16 %v280
      %v1402 = vunpack.c.l.b16 %v281
      %v1403 = vunpack.c.l.b16 %v282
      %v1404 = vunpack.c.l.b16 %v283
      %v1405 = vunpack.c.l.b16 %v284
      %v1406 = vunpack.c.l.b16 %v285
      %v1407 = vunpack.c.l.b16 %v286
      %v1408 = vunpack.c.l.b16 %v287
      %v1409 = vunpack.c.l.b16 %v288
      %v1410 = vunpack.c.l.b16 %v289
      %v1411 = vunpack.c.l.b16 %v290
      %v1412 = vunpack.c.l.b16 %v291
      %v1413 = vunpack.c.l.b16 %v292
      %v1414 = vunpack.c.l.b16 %v293
      %v1415 = vunpack.c.l.b16 %v294
      %v1416 = vunpack.c.l.b16 %v295
      %v1417 = vunpack.c.l.b16 %v296
      %v1418 = vunpack.c.l.b16 %v297
      %v1419 = vunpack.c.l.b16 %v298
      %v1420 = vunpack.c.l.b16 %v299
      %v1421 = vunpack.c.l.b16 %v300
      %v1422 = vunpack.c.l.b16 %v301
      %v1423 = vunpack.c.l.b16 %v302
      %v1424 = vunpack.c.l.b16 %v303
      %v1425 = vunpack.c.l.b16 %v304
      %v1426 = vunpack.c.l.b16 %v305
      %v1427 = vunpack.c.l.b16 %v306
      %v1428 = vunpack.c.l.b16 %v307
      %v1429 = vunpack.c.l.b16 %v308
      %v1430 = vunpack.c.l.b16 %v309
      %v1431 = vunpack.c.l.b16 %v310
      %v1432 = vunpack.c.l.b16 %v311
      %v1433 = vunpack.c.l.b16 %v312
      %v1434 = vunpack.c.l.b16 %v313
      %v1435 = vunpack.c.l.b16 %v314
      %v1436 = vunpack.c.l.b16 %v315
      %v1437 = vunpack.c.l.b16 %v316
      %v1438 = vunpack.c.l.b16 %v317
      %v1439 = vunpack.c.l.b16 %v318
      %v1440 = vunpack.c.l.b16 %v319
      %v1441 = vunpack.c.l.b16 %v320
      %v1442 = vunpack.c.l.b16 %v321
      %v1443 = vunpack.c.l.b16 %v322
      %v1444 = vunpack.c.l.b16 %v323
      %v1445 = vunpack.c.l.b16 %v324
      %v1446 = vunpack.c.l.b16 %v325
      %v1447 = vunpack.c.l.b16 %v326
      %v1448 = vunpack.c.l.b16 %v327
      %v1449 = vunpack.c.l.b16 %v328
      %v1450 = vunpack.c.l.b16 %v329
      %v1451 = vunpack.c.l.b16 %v330
      %v1452 = vunpack.c.l.b16 %v331
      %v1453 = vunpack.c.l.b16 %v332
      %v1454 = vunpack.c.l.b16 %v333
      %v1455 = vunpack.c.l.b16 %v334
      %v1456 = vunpack.c.l.b16 %v335
      %v1457 = vunpack.c.l.b16 %v336
      %v1458 = vunpack.c.l.b16 %v337
      %v1459 = vunpack.c.l.b16 %v338
      %v1460 = vunpack.c.l.b16 %v339
      %v1461 = vunpack.c.l.b16 %v340
      %v1462 = vunpack.c.l.b16 %v341
      %v1463 = vunpack.c.l.b16 %v342
      %v1464 = vunpack.c.l.b16 %v343
      %v1465 = vunpack.c.l.b16 %v344
      %v1466 = vunpack.c.l.b16 %v345
      %v1467 = vunpack.c.l.b16 %v346
      %v1468 = vunpack.c.l.b16 %v347
      %v1469 = vunpack.c.l.b16 %v348
      %v1470 = vunpack.c.l.b16 %v349
      %v1471 = vunpack.c.l.b16 %v350
      %v1472 = vunpack.c.l.b16 %v351
      %v1473 = vunpack.c.l.b16 %v352
      %v1474 = vunpack.c.l.b16 %v353
      %v1475 = vunpack.c.l.b16 %v354
      %v1476 = vunpack.c.l.b16 %v355
      %v1477 = vunpack.c.l.b16 %v356
      %v1478 = vunpack.c.l.b16 %v357
      %v1479 = vunpack.c.l.b16 %v358
      %v1480 = vunpack.c.l.b16 %v359
      %v1481 = vunpack.c.l.b16 %v360
      %v1482 = vunpack.c.l.b16 %v361
      %v1483 = vunpack.c.l.b16 %v362
      %v1484 = vunpack.c.l.b16 %v363
      %v1485 = vunpack.c.l.b16 %v364
      %v1486 = vunpack.c.l.b16 %v365
      %v1487 = vunpack.c.l.b16 %v366
      %v1488 = vunpack.c.l.b16 %v367
      %v1489 = vunpack.c.l.b16 %v368
      %v1490 = vunpack.c.l.b16 %v369
      %v1491 = vunpack.c.l.b16 %v370
      %v1492 = vunpack.c.l.b16 %v371
      %v1493 = vunpack.c.l.b16 %v372
      %v1494 = vunpack.c.l.b16 %v373
      %v1495 = vunpack.c.l.b16 %v374
      %v1496 = vunpack.c.l.b16 %v375
      %v1497 = vunpack.c.l.b16 %v376
      %v1498 = vunpack.c.l.b16 %v377
      %v1499 = vunpack.c.l.b16 %v378
      %v1500 = vunpack.c.l.b16 %v379
      %v1501 = vunpack.c.l.b16 %v380
      %v1502 = vunpack.c.l.b16 %v381
      %v1503 = vunpack.c.l.b16 %v382
      %v1504 = vunpack.c.l.b16 %v383
      %v1505 = vunpack.c.l.b16 %v384
      %v1506 = vunpack.c.l.b16 %v385
      %v1507 = vunpack.c.l.b16 %v386
      %v1508 = vunpack.c.l.b16 %v387
      %v1509 = vunpack.c.l.b16 %v388
      %v1510 = vunpack.c.l.b16 %v389
      %v1511 = vunpack.c.l.b16 %v390
      %v1512 = vunpack.c.l.b16 %v391
      %v1513 = vunpack.c.l.b16 %v392
      %v1514 = vunpack.c.l.b16 %v393
      %v1515 = vunpack.c.l.b16 %v394
      %v1516 = vunpack.c.l.b16 %v395
      %v1517 = vunpack.c.l.b16 %v396
      %v1518 = vunpack.c.l.b16 %v397
      %v1519 = vunpack.c.l.b16 %v398
      %v1520 = vunpack.c.l.b16 %v399
      %v1521 = vunpack.c.l.b16 %v400
      %v1522 = vunpack.c.l.b16 %v401
      %v1523 = vunpack.c.l.b16 %v402
      %v1524 = vunpack.c.l.b16 %v403
      %v1525 = vunpack.c.l.b16 %v404
      %v1526 = vunpack.c.l.b16 %v405
      %v1527 = vunpack.c.l.b16 %v406
      %v1528 = vunpack.c.l.b16 %v407
      %v1529 = vunpack.c.l.b16 %v408
      %v1530 = vunpack.c.l.b16 %v409
      %v1531 = vunpack.c.l.b16 %v410
      %v1532 = vunpack.c.l.b16 %v411
      %v1533 = vunpack.c.l.b16 %v412
      %v1534 = vunpack.c.l.b16 %v413
      %v1535 = vunpack.c.l.b16 %v414
      %v1536 = vunpack.c.l.b16 %v415
      %v1537 = vunpack.c.l.b16 %v416
      %v1538 = vunpack.c.l.b16 %v417
      %v1539 = vunpack.c.l.b16 %v418
      %v1540 = vunpack.c.l.b16 %v419
      %v1541 = vunpack.c.l.b16 %v420
      %v1542 = vunpack.c.l.b16 %v421
      %v1543 = vunpack.c.l.b16 %v422
      %v1544 = vunpack.c.l.b16 %v423
      %v1545 = vunpack.c.l.b16 %v424
      %v1546 = vunpack.c.l.b16 %v425
      %v1547 = vunpack.c.l.b16 %v426
      %v1548 = vunpack.c.l.b16 %v427
      %v1549 = vunpack.c.l.b16 %v428
      %v1550 = vunpack.c.l.b16 %v429
      %v1551 = vunpack.c.l.b16 %v430
      %v1552 = vunpack.c.l.b16 %v431
      %v1553 = vunpack.c.l.b16 %v432
      %v1554 = vunpack.c.l.b16 %v433
      %v1555 = vunpack.c.l.b16 %v434
      %v1556 = vunpack.c.l.b16 %v435
      %v1557 = vunpack.c.l.b16 %v436
      %v1558 = vunpack.c.l.b16 %v437
      %v1559 = vunpack.c.l.b16 %v438
      %v1560 = vunpack.c.l.b16 %v439
      %v1561 = vunpack.c.l.b16 %v440
      %v1562 = vunpack.c.l.b16 %v441
      %v1563 = vunpack.c.l.b16 %v442
      %v1564 = vunpack.c.l.b16 %v443
      %v1565 = vunpack.c.l.b16 %v444
      %v1566 = vunpack.c.l.b16 %v445
      %v1567 = vunpack.c.l.b16 %v446
      %v1568 = vunpack.c.l.b16 %v447
      %v1569 = vunpack.c.l.b16 %v448
      %v1570 = vunpack.c.l.b16 %v449
      %v1571 = vunpack.c.l.b16 %v450
      %v1572 = vunpack.c.l.b16 %v451
      %v1573 = vunpack.c.l.b16 %v452
      %v1574 = vunpack.c.l.b16 %v453
      %v1575 = vunpack.c.l.b16 %v454
      %v1576 = vunpack.c.l.b16 %v455
      %v1577 = vunpack.c.l.b16 %v456
      %v1578 = vunpack.c.l.b16 %v457
      %v1579 = vunpack.c.l.b16 %v458
      %v1580 = vunpack.c.l.b16 %v459
      %v1581 = vunpack.c.l.b16 %v460
      %v1582 = vunpack.c.l.b16 %v461
      %v1583 = vunpack.c.l.b16 %v462
      %v1584 = vunpack.c.l.b16 %v463
      %v1585 = vunpack.c.l.b16 %v464
      %v1586 = vunpack.c.l.b16 %v465
      %v1587 = vunpack.c.l.b16 %v466
      %v1588 = vunpack.c.l.b16 %v467
      %v1589 = vunpack.c.l.b16 %v468
      %v1590 = vunpack.c.l.b16 %v469
      %v1591 = vunpack.c.l.b16 %v470
      %v1592 = vunpack.c.l.b16 %v471
      %v1593 = vunpack.c.l.b16 %v472
      %v1594 = vunpack.c.l.b16 %v473
      %v1595 = vunpack.c.l.b16 %v474
      %v1596 = vunpack.c.l.b16 %v475
      %v1597 = vunpack.c.l.b16 %v476
      %v1598 = vunpack.c.l.b16 %v477
      %v1599 = vunpack.c.l.b16 %v478
      %v1600 = vunpack.c.l.b16 %v479
      %v1601 = vunpack.c.l.b16 %v480
      %v1602 = vunpack.c.l.b16 %v481
      %v1603 = vunpack.c.l.b16 %v482
      %v1604 = vunpack.c.l.b16 %v483
      %v1605 = vunpack.c.l.b16 %v484
      %v1606 = vunpack.c.l.b16 %v485
      %v1607 = vunpack.c.l.b16 %v486
      %v1608 = vunpack.c.l.b16 %v487
      %v1609 = vunpack.c.l.b16 %v488
      %v1610 = vunpack.c.l.b16 %v489
      %v1611 = vunpack.c.l.b16 %v490
      %v1612 = vunpack.c.l.b16 %v491
      %v1613 = vunpack.c.l.b16 %v492
      %v1614 = vunpack.c.l.b16 %v493
      %v1615 = vunpack.c.l.b16 %v494
      %v1616 = vunpack.c.l.b16 %v495
      %v1617 = vunpack.c.l.b16 %v496
      %v1618 = vunpack.c.l.b16 %v497
      %v1619 = vunpack.c.l.b16 %v498
      %v1620 = vunpack.c.l.b16 %v499
      %v1621 = vunpack.c.l.b16 %v500
      %v1622 = vunpack.c.l.b16 %v501
      %v1623 = vunpack.c.l.b16 %v502
      %v1624 = vunpack.c.l.b16 %v503
      %v1625 = vunpack.c.l.b16 %v504
      %v1626 = vunpack.c.l.b16 %v505
      %v1627 = vunpack.c.l.b16 %v506
      %v1628 = vunpack.c.l.b16 %v507
      %v1629 = vunpack.c.l.b16 %v508
      %v1630 = vunpack.c.l.b16 %v509
      %v1631 = vunpack.c.l.b16 %v510
      %v1632 = vunpack.c.l.b16 %v511
      %v1633 = vunpack.c.l.b16 %v512
      %v1634 = vunpack.c.l.b16 %v513
      %v1635 = vunpack.c.l.b16 %v514
      %v1636 = vunpack.c.l.b16 %v515
      %v1637 = vunpack.c.l.b16 %v516
      %v1638 = vunpack.c.l.b16 %v517
      %v1639 = vunpack.c.l.b16 %v518
      %v1640 = vunpack.c.l.b16 %v519
      %v1641 = vunpack.c.l.b16 %v520
      %v1642 = vunpack.c.l.b16 %v521
      %v1643 = vunpack.c.l.b16 %v522
      %v1644 = vunpack.c.l.b16 %v523
      %v1645 = vunpack.c.l.b16 %v524
      %v1646 = vunpack.c.l.b16 %v525
      %v1647 = vunpack.c.l.b16 %v526
      %v1648 = vunpack.c.l.b16 %v527
      %v1649 = vunpack.c.l.b16 %v528
      %v1650 = vunpack.c.l.b16 %v529
      %v1651 = vunpack.c.l.b16 %v530
      %v1652 = vunpack.c.l.b16 %v531
      %v1653 = vunpack.c.l.b16 %v532
      %v1654 = vunpack.c.l.b16 %v533
      %v1655 = vunpack.c.l.b16 %v534
      %v1656 = vunpack.c.l.b16 %v535
      %v1657 = vunpack.c.l.b16 %v536
      %v1658 = vunpack.c.l.b16 %v537
      %v1659 = vunpack.c.l.b16 %v538
      %v1660 = vunpack.c.l.b16 %v539
      %v1661 = vunpack.c.l.b16 %v540
      %v1662 = vunpack.c.l.b16 %v541
      %v1663 = vunpack.c.l.b16 %v542
      %v1664 = vunpack.c.l.b16 %v543
      %v1665 = vunpack.c.l.b16 %v544
      %v1666 = vunpack.c.l.b16 %v545
      %v1667 = vunpack.c.l.b16 %v546
      %v1668 = vunpack.c.l.b16 %v547
      %v1669 = vunpack.c.l.b16 %v548
      %v1670 = vunpack.c.l.b16 %v549
      %v1671 = vunpack.c.l.b16 %v550
      %v1672 = vunpack.c.l.b16 %v551
      %v1673 = vunpack.c.l.b16 %v552
      %v1674 = vunpack.c.l.b16 %v553
      %v1675 = vunpack.c.l.b16 %v554
      %v1676 = vunpack.c.l.b16 %v555
      %v1677 = vunpack.c.l.b16 %v556
      %v1678 = vunpack.c.l.b16 %v557
      %v1679 = vunpack.c.l.b16 %v558
      %v1680 = vunpack.c.l.b16 %v559
      %v1681 = vunpack.c.l.b16 %v560
      %v1682 = vunpack.c.l.b16 %v561
      %v1683 = vunpack.c.l.b16 %v562
      %v1684 = vunpack.c.l.b16 %v563
      %v1685 = vunpack.c.l.b16 %v564
      %v1686 = vunpack.c.l.b16 %v565
      %v1687 = vunpack.c.l.b16 %v566
      %v1688 = vunpack.c.l.b16 %v567
      %v1689 = vunpack.c.l.b16 %v568
      %v1690 = vunpack.c.l.b16 %v569
      %v1691 = vunpack.c.l.b16 %v570
      %v1692 = vunpack.c.l.b16 %v571
      %v1693 = vunpack.c.l.b16 %v572
      %v1694 = vunpack.c.l.b16 %v573
      %v1695 = vunpack.c.l.b16 %v574
      %v1696 = vunpack.c.l.b16 %v575
      %v1697 = vunpack.c.l.b16 %v576
      %v1698 = vunpack.c.l.b16 %v577
      %v1699 = vunpack.c.l.b16 %v578
      %v1700 = vunpack.c.l.b16 %v579
      %v1701 = vunpack.c.l.b16 %v580
      %v1702 = vunpack.c.l.b16 %v581
      %v1703 = vunpack.c.l.b16 %v582
      %v1704 = vunpack.c.l.b16 %v583
      %v1705 = vunpack.c.l.b16 %v584
      %v1706 = vunpack.c.l.b16 %v585
      %v1707 = vunpack.c.l.b16 %v586
      %v1708 = vunpack.c.l.b16 %v587
      %v1709 = vunpack.c.l.b16 %v588
      %v1710 = vunpack.c.l.b16 %v589
      %v1711 = vunpack.c.l.b16 %v590
      %v1712 = vunpack.c.l.b16 %v591
      %v1713 = vunpack.c.l.b16 %v592
      %v1714 = vunpack.c.l.b16 %v593
      %v1715 = vunpack.c.l.b16 %v594
      %v1716 = vunpack.c.l.b16 %v595
      %v1717 = vunpack.c.l.b16 %v596
      %v1718 = vunpack.c.l.b16 %v597
      %v1719 = vunpack.c.l.b16 %v598
      %v1720 = vunpack.c.l.b16 %v599
      %v1721 = vunpack.c.l.b16 %v600
      %v1722 = vunpack.c.l.b16 %v601
      %v1723 = vunpack.c.l.b16 %v602
      %v1724 = vunpack.c.l.b16 %v603
      %v1725 = vunpack.c.l.b16 %v604
      %v1726 = vunpack.c.l.b16 %v605
      %v1727 = vunpack.c.l.b16 %v606
      %v1728 = vunpack.c.l.b16 %v607
      %v1729 = vunpack.c.l.b16 %v608
      %v1730 = vunpack.c.l.b16 %v609
      %v1731 = vunpack.c.l.b16 %v610
      %v1732 = vunpack.c.l.b16 %v611
      %v1733 = vunpack.c.l.b16 %v612
      %v1734 = vunpack.c.l.b16 %v613
      %v1735 = vunpack.c.l.b16 %v614
      %v1736 = vunpack.c.l.b16 %v615
      %v1737 = vunpack.c.l.b16 %v616
      %v1738 = vunpack.c.l.b16 %v617
      %v1739 = vunpack.c.l.b16 %v618
      %v1740 = vunpack.c.l.b16 %v619
      %v1741 = vunpack.c.l.b16 %v620
      %v1742 = vunpack.c.l.b16 %v621
      %v1743 = vunpack.c.l.b16 %v622
      %v1744 = vunpack.c.l.b16 %v623
      %v1745 = vunpack.c.l.b16 %v624
      %v1746 = vunpack.c.l.b16 %v625
      %v1747 = vunpack.c.l.b16 %v626
      %v1748 = vunpack.c.l.b16 %v627
      %v1749 = vunpack.c.l.b16 %v628
      %v1750 = vpack.c.b16 %v1359, %v1358
      %v1751 = vpack.c.b16 %v1361, %v1360
      %v1752 = vpack.c.b16 %v1363, %v1362
      %v1753 = vpack.c.b16 %v1365, %v1364
      %v1754 = vpack.c.b16 %v1367, %v1366
      %v1755 = vpack.c.b16 %v1369, %v1368
      %v1756 = vpack.c.b16 %v1371, %v1370
      %v1757 = vpack.c.b16 %v1373, %v1372
      %v1758 = vpack.c.b16 %v1375, %v1374
      %v1759 = vpack.c.b16 %v1377, %v1376
      %v1760 = vpack.c.b16 %v1379, %v1378
      %v1761 = vpack.c.b16 %v1381, %v1380
      %v1762 = vpack.c.b16 %v1383, %v1382
      %v1763 = vpack.c.b16 %v1385, %v1384
      %v1764 = vpack.c.b16 %v1387, %v1386
      %v1765 = vpack.c.b16 %v1389, %v1388
      %v1766 = vpack.c.b16 %v1391, %v1390
      %v1767 = vpack.c.b16 %v1393, %v1392
      %v1768 = vpack.c.b16 %v1395, %v1394
      %v1769 = vpack.c.b16 %v1397, %v1396
      %v1770 = vpack.c.b16 %v1399, %v1398
      %v1771 = vpack.c.b16 %v1401, %v1400
      %v1772 = vpack.c.b16 %v1403, %v1402
      %v1773 = vpack.c.b16 %v1405, %v1404
      %v1774 = vpack.c.b16 %v1407, %v1406
      %v1775 = vpack.c.b16 %v1409, %v1408
      %v1776 = vpack.c.b16 %v1411, %v1410
      %v1777 = vpack.c.b16 %v1413, %v1412
      %v1778 = vpack.c.b16 %v1415, %v1414
      %v1779 = vpack.c.b16 %v1417, %v1416
      %v1780 = vpack.c.b16 %v1419, %v1418
      %v1781 = vpack.c.b16 %v1421, %v1420
      %v1782 = vpack.c.b16 %v1423, %v1422
      %v1783 = vpack.c.b16 %v1425, %v1424
      %v1784 = vpack.c.b16 %v1427, %v1426
      %v1785 = vpack.c.b16 %v1429, %v1428
      %v1786 = vpack.c.b16 %v1431, %v1430
      %v1787 = vpack.c.b16 %v1433, %v1432
      %v1788 = vpack.c.b16 %v1435, %v1434
      %v1789 = vpack.c.b16 %v1437, %v1436
      %v1790 = vpack.c.b16 %v1439, %v1438
      %v1791 = vpack.c.b16 %v1441, %v1440
      %v1792 = vpack.c.b16 %v1443, %v1442
      %v1793 = vpack.c.b16 %v1445, %v1444
      %v1794 = vpack.c.b16 %v1447, %v1446
      %v1795 = vpack.c.b16 %v1449, %v1448
      %v1796 = vpack.c.b16 %v1451, %v1450
      %v1797 = vpack.c.b16 %v1453, %v1452
      %v1798 = vpack.c.b16 %v1455, %v1454
      %v1799 = vpack.c.b16 %v1457, %v1456
      %v1800 = vpack.c.b16 %v1459, %v1458
      %v1801 = vpack.c.b16 %v1461, %v1460
      %v1802 = vpack.c.b16 %v1463, %v1462
      %v1803 = vpack.c.b16 %v1465, %v1464
      %v1804 = vpack.c.b16 %v1467, %v1466
      %v1805 = vpack.c.b16 %v1469, %v1468
      %v1806 = vpack.c.b16 %v1471, %v1470
      %v1807 = vpack.c.b16 %v1473, %v1472
      %v1808 = vpack.c.b16 %v1475, %v1474
      %v1809 = vpack.c.b16 %v1477, %v1476
      %v1810 = vpack.c.b16 %v1479, %v1478
      %v1811 = vpack.c.b16 %v1481, %v1480
      %v1812 = vpack.c.b16 %v1483, %v1482
      %v1813 = vpack.c.b16 %v1485, %v1484
      %v1814 = vpack.c.b16 %v1487, %v1486
      %v1815 = vpack.c.b16 %v1489, %v1488
      %v1816 = vpack.c.b16 %v1491, %v1490
      %v1817 = vpack.c.b16 %v1493, %v1492
      %v1818 = vpack.c.b16 %v1495, %v1494
      %v1819 = vpack.c.b16 %v1497, %v1496
      %v1820 = vpack.c.b16 %v1499, %v1498
      %v1821 = vpack.c.b16 %v1501, %v1500
      %v1822 = vpack.c.b16 %v1503, %v1502
      %v1823 = vpack.c.b16 %v1505, %v1504
      %v1824 = vpack.c.b16 %v1507, %v1506
      %v1825 = vpack.c.b16 %v1509, %v1508
      %v1826 = vpack.c.b16 %v1511, %v1510
      %v1827 = vpack.c.b16 %v1513, %v1512
      %v1828 = vpack.c.b16 %v1515, %v1514
      %v1829 = vpack.c.b16 %v1517, %v1516
      %v1830 = vpack.c.b16 %v1519, %v1518
      %v1831 = vpack.c.b16 %v1521, %v1520
      %v1832 = vpack.c.b16 %v1523, %v1522
      %v1833 = vpack.c.b16 %v1525, %v1524
      %v1834 = vpack.c.b16 %v1527, %v1526
      %v1835 = vpack.c.b16 %v1529, %v1528
      %v1836 = vpack.c.b16 %v1531, %v1530
      %v1837 = vpack.c.b16 %v1533, %v1532
      %v1838 = vpack.c.b16 %v1535, %v1534
      %v1839 = vpack.c.b16 %v1537, %v1536
      %v1840 = vpack.c.b16 %v1539, %v1538
      %v1841 = vpack.c.b16 %v1541, %v1540
      %v1842 = vpack.c.b16 %v1543, %v1542
      %v1843 = vpack.c.b16 %v1545, %v1544
      %v1844 = vpack.c.b16 %v1547, %v1546
      %v1845 = vpack.c.b16 %v1549, %v1548
      %v1846 = vpack.c.b16 %v1551, %v1550
      %v1847 = vpack.c.b16 %v1553, %v1552
      %v1848 = vpack.c.b16 %v1555, %v1554
      %v1849 = vpack.c.b16 %v1557, %v1556
      %v1850 = vpack.c.b16 %v1559, %v1558
      %v1851 = vpack.c.b16 %v1561, %v1560
      %v1852 = vpack.c.b16 %v1563, %v1562
      %v1853 = vpack.c.b16 %v1565, %v1564
      %v1854 = vpack.c.b16 %v1567, %v1566
      %v1855 = vpack.c.b16 %v1569, %v1568
      %v1856 = vpack.c.b16 %v1571, %v1570
      %v1857 = vpack.c.b16 %v1573, %v1572
      %v1858 = vpack.c.b16 %v1575, %v1574
      %v1859 = vpack.c.b16 %v1577, %v1576
      %v1860 = vpack.c.b16 %v1579, %v1578
      %v1861 = vpack.c.b16 %v1581, %v1580
      %v1862 = vpack.c.b16 %v1583, %v1582
      %v1863 = vpack.c.b16 %v1585, %v1584
      %v1864 = vpack.c.b16 %v1587, %v1586
      %v1865 = vpack.c.b16 %v1589, %v1588
      %v1866 = vpack.c.b16 %v1591, %v1590
      %v1867 = vpack.c.b16 %v1593, %v1592
      %v1868 = vpack.c.b16 %v1595, %v1594
      %v1869 = vpack.c.b16 %v1597, %v1596
      %v1870 = vpack.c.b16 %v1599, %v1598
      %v1871 = vpack.c.b16 %v1601, %v1600
      %v1872 = vpack.c.b16 %v1603, %v1602
      %v1873 = vpack.c.b16 %v1605, %v1604
      %v1874 = vpack.c.b16 %v1607, %v1606
      %v1875 = vpack.c.b16 %v1609, %v1608
      %v1876 = vpack.c.b16 %v1611, %v1610
      %v1877 = vpack.c.b16 %v1613, %v1612
      %v1878 = vpack.c.b16 %v1615, %v1614
      %v1879 = vpack.c.b16 %v1617, %v1616
      %v1880 = vpack.c.b16 %v1619, %v1618
      %v1881 = vpack.c.b16 %v1621, %v1620
      %v1882 = vpack.c.b16 %v1623, %v1622
      %v1883 = vpack.c.b16 %v1625, %v1624
      %v1884 = vpack.c.b16 %v1627, %v1626
      %v1885 = vpack.c.b16 %v1629, %v1628
      %v1886 = vpack.c.b16 %v1631, %v1630
      %v1887 = vpack.c.b16 %v1633, %v1632
      %v1888 = vpack.c.b16 %v1635, %v1634
      %v1889 = vpack.c.b16 %v1637, %v1636
      %v1890 = vpack.c.b16 %v1639, %v1638
      %v1891 = vpack.c.b16 %v1641, %v1640
      %v1892 = vpack.c.b16 %v1643, %v1642
      %v1893 = vpack.c.b16 %v1645, %v1644
      %v1894 = vpack.c.b16 %v1647, %v1646
      %v1895 = vpack.c.b16 %v1649, %v1648
      %v1896 = vpack.c.b16 %v1651, %v1650
      %v1897 = vpack.c.b16 %v1653, %v1652
      %v1898 = vpack.c.b16 %v1655, %v1654
      %v1899 = vpack.c.b16 %v1657, %v1656
      %v1900 = vpack.c.b16 %v1659, %v1658
      %v1901 = vpack.c.b16 %v1661, %v1660
      %v1902 = vpack.c.b16 %v1663, %v1662
      %v1903 = vpack.c.b16 %v1665, %v1664
      %v1904 = vpack.c.b16 %v1667, %v1666
      %v1905 = vpack.c.b16 %v1669, %v1668
      %v1906 = vpack.c.b16 %v1671, %v1670
      %v1907 = vpack.c.b16 %v1673, %v1672
      %v1908 = vpack.c.b16 %v1675, %v1674
      %v1909 = vpack.c.b16 %v1677, %v1676
      %v1910 = vpack.c.b16 %v1679, %v1678
      %v1911 = vpack.c.b16 %v1681, %v1680
      %v1912 = vpack.c.b16 %v1683, %v1682
      %v1913 = vpack.c.b16 %v1685, %v1684
      %v1914 = vpack.c.b16 %v1687, %v1686
      %v1915 = vpack.c.b16 %v1689, %v1688
      %v1916 = vpack.c.b16 %v1691, %v1690
      %v1917 = vpack.c.b16 %v1693, %v1692
      %v1918 = vpack.c.b16 %v1695, %v1694
      %v1919 = vpack.c.b16 %v1697, %v1696
      %v1920 = vpack.c.b16 %v1699, %v1698
      %v1921 = vpack.c.b16 %v1701, %v1700
      %v1922 = vpack.c.b16 %v1703, %v1702
      %v1923 = vpack.c.b16 %v1705, %v1704
      %v1924 = vpack.c.b16 %v1707, %v1706
      %v1925 = vpack.c.b16 %v1709, %v1708
      %v1926 = vpack.c.b16 %v1711, %v1710
      %v1927 = vpack.c.b16 %v1713, %v1712
      %v1928 = vpack.c.b16 %v1715, %v1714
      %v1929 = vpack.c.b16 %v1717, %v1716
      %v1930 = vpack.c.b16 %v1719, %v1718
      %v1931 = vpack.c.b16 %v1721, %v1720
      %v1932 = vpack.c.b16 %v1723, %v1722
      %v1933 = vpack.c.b16 %v1725, %v1724
      %v1934 = vpack.c.b16 %v1727, %v1726
      %v1935 = vpack.c.b16 %v1729, %v1728
      %v1936 = vpack.c.b16 %v1731, %v1730
      %v1937 = vpack.c.b16 %v1733, %v1732
      %v1938 = vpack.c.b16 %v1735, %v1734
      %v1939 = vpack.c.b16 %v1737, %v1736
      %v1940 = vpack.c.b16 %v1739, %v1738
      %v1941 = vpack.c.b16 %v1741, %v1740
      %v1942 = vpack.c.b16 %v1743, %v1742
      %v1943 = vpack.c.b16 %v1745, %v1744
      %v1944 = vpack.c.b16 %v1747, %v1746
      %v1945 = vpack.c.b16 %v1749, %v1748
      %vm2142 = vcmask 523264
      %v2144 = vsel %vm2142, %v843, 0
      %v2147 = vsel %vm2142, %v868, 0
      %v2150 = vsel %vm2142, %v893, 0
      %2152 = vmatpush.bf16.msra.mxu0 %v1757
      %2153 = vmatpush.bf16.msra.mxu0 %v1756
      %2154 = vmatpush.bf16.msra.mxu0 %v1755
      %2155 = vmatpush.bf16.msra.mxu0 %v1754
      %2156 = vmatpush.bf16.msra.mxu0 %v1753
      %2157 = vmatpush.bf16.msra.mxu0 %v1752
      %2158 = vmatpush.bf16.msra.mxu0 %v1751
      %2159 = vmatpush.bf16.msra.mxu0 %v1750
      %2160 = vmatmul.bf16.gmra.mxu0 %v819
      %v2161 = vpop.f32.mrf.mxu0
      %v2162 = vadd.f32 0.0, %v2161
      %v2163 = vpop.f32.mrf.mxu0
      %v2164 = vadd.f32 0.0, %v2163
      %2165 = vmatmul.bf16.gmra.mxu0 %v844
      %v2166 = vpop.f32.mrf.mxu0
      %v2167 = vadd.f32 0.0, %v2166
      %v2168 = vpop.f32.mrf.mxu0
      %v2169 = vadd.f32 0.0, %v2168
      %2170 = vmatmul.bf16.gmra.mxu0 %v869
      %v2171 = vpop.f32.mrf.mxu0
      %v2172 = vpop.f32.mrf.mxu0
      %2173 = vdwg.mxu0
      %2174 = vmatpush.bf16.msra.mxu0 %v1765
      %2175 = vmatpush.bf16.msra.mxu0 %v1764
      %2176 = vmatpush.bf16.msra.mxu0 %v1763
      %2177 = vmatpush.bf16.msra.mxu0 %v1762
      %2178 = vmatpush.bf16.msra.mxu0 %v1761
      %2179 = vmatpush.bf16.msra.mxu0 %v1760
      %2180 = vmatpush.bf16.msra.mxu0 %v1759
      %2181 = vmatpush.bf16.msra.mxu0 %v1758
      %2182 = vmatmul.bf16.gmra.mxu0 %v820
      %v2183 = vpop.f32.mrf.mxu0
      %v2184 = vadd.f32 %v2162, %v2183
      %v2185 = vpop.f32.mrf.mxu0
      %v2186 = vadd.f32 %v2164, %v2185
      %2187 = vmatmul.bf16.gmra.mxu0 %v845
      %v2188 = vpop.f32.mrf.mxu0
      %v2189 = vadd.f32 %v2167, %v2188
      %v2190 = vpop.f32.mrf.mxu0
      %v2191 = vadd.f32 %v2169, %v2190
      %2192 = vmatmul.bf16.gmra.mxu0 %v870
      %v2193 = vpop.f32.mrf.mxu0
      %v2194 = vpop.f32.mrf.mxu0
      %2195 = vdwg.mxu0
      %2196 = vmatpush.bf16.msra.mxu0 %v1773
      %2197 = vmatpush.bf16.msra.mxu0 %v1772
      %2198 = vmatpush.bf16.msra.mxu0 %v1771
      %2199 = vmatpush.bf16.msra.mxu0 %v1770
      %2200 = vmatpush.bf16.msra.mxu0 %v1769
      %2201 = vmatpush.bf16.msra.mxu0 %v1768
      %2202 = vmatpush.bf16.msra.mxu0 %v1767
      %2203 = vmatpush.bf16.msra.mxu0 %v1766
      %2204 = vmatmul.bf16.gmra.mxu0 %v821
      %v2205 = vpop.f32.mrf.mxu0
      %v2206 = vadd.f32 %v2184, %v2205
      %v2207 = vpop.f32.mrf.mxu0
      %v2208 = vadd.f32 %v2186, %v2207
      %2209 = vmatmul.bf16.gmra.mxu0 %v846
      %v2210 = vpop.f32.mrf.mxu0
      %v2211 = vadd.f32 %v2189, %v2210
      %v2212 = vpop.f32.mrf.mxu0
      %v2213 = vadd.f32 %v2191, %v2212
      %2214 = vmatmul.bf16.gmra.mxu0 %v871
      %v2215 = vpop.f32.mrf.mxu0
      %v2216 = vpop.f32.mrf.mxu0
      %2217 = vdwg.mxu0
      %2218 = vmatpush.bf16.msra.mxu0 %v1781
      %2219 = vmatpush.bf16.msra.mxu0 %v1780
      %2220 = vmatpush.bf16.msra.mxu0 %v1779
      %2221 = vmatpush.bf16.msra.mxu0 %v1778
      %2222 = vmatpush.bf16.msra.mxu0 %v1777
      %2223 = vmatpush.bf16.msra.mxu0 %v1776
      %2224 = vmatpush.bf16.msra.mxu0 %v1775
      %2225 = vmatpush.bf16.msra.mxu0 %v1774
      %2226 = vmatmul.bf16.gmra.mxu0 %v822
      %v2227 = vpop.f32.mrf.mxu0
      %v2228 = vadd.f32 %v2206, %v2227
      %v2229 = vpop.f32.mrf.mxu0
      %v2230 = vadd.f32 %v2208, %v2229
      %2231 = vmatmul.bf16.gmra.mxu0 %v847
      %v2232 = vpop.f32.mrf.mxu0
      %v2233 = vadd.f32 %v2211, %v2232
      %v2234 = vpop.f32.mrf.mxu0
      %v2235 = vadd.f32 %v2213, %v2234
      %2236 = vmatmul.bf16.gmra.mxu0 %v872
      %v2237 = vpop.f32.mrf.mxu0
      %v2238 = vpop.f32.mrf.mxu0
      %2239 = vdwg.mxu0
      %2240 = vmatpush.bf16.msra.mxu0 %v1789
      %2241 = vmatpush.bf16.msra.mxu0 %v1788
      %2242 = vmatpush.bf16.msra.mxu0 %v1787
      %2243 = vmatpush.bf16.msra.mxu0 %v1786
      %2244 = vmatpush.bf16.msra.mxu0 %v1785
      %2245 = vmatpush.bf16.msra.mxu0 %v1784
      %2246 = vmatpush.bf16.msra.mxu0 %v1783
      %2247 = vmatpush.bf16.msra.mxu0 %v1782
      %2248 = vmatmul.bf16.gmra.mxu0 %v823
      %v2249 = vpop.f32.mrf.mxu0
      %v2250 = vadd.f32 %v2228, %v2249
      %v2251 = vpop.f32.mrf.mxu0
      %v2252 = vadd.f32 %v2230, %v2251
      %2253 = vmatmul.bf16.gmra.mxu0 %v848
      %v2254 = vpop.f32.mrf.mxu0
      %v2255 = vadd.f32 %v2233, %v2254
      %v2256 = vpop.f32.mrf.mxu0
      %v2257 = vadd.f32 %v2235, %v2256
      %2258 = vmatmul.bf16.gmra.mxu0 %v873
      %v2259 = vpop.f32.mrf.mxu0
      %v2260 = vpop.f32.mrf.mxu0
      %2261 = vdwg.mxu0
      %2262 = vmatpush.bf16.msra.mxu0 %v1797
      %2263 = vmatpush.bf16.msra.mxu0 %v1796
      %2264 = vmatpush.bf16.msra.mxu0 %v1795
      %2265 = vmatpush.bf16.msra.mxu0 %v1794
      %2266 = vmatpush.bf16.msra.mxu0 %v1793
      %2267 = vmatpush.bf16.msra.mxu0 %v1792
      %2268 = vmatpush.bf16.msra.mxu0 %v1791
      %2269 = vmatpush.bf16.msra.mxu0 %v1790
      %2270 = vmatmul.bf16.gmra.mxu0 %v824
      %v2271 = vpop.f32.mrf.mxu0
      %v2272 = vadd.f32 %v2250, %v2271
      %v2273 = vpop.f32.mrf.mxu0
      %v2274 = vadd.f32 %v2252, %v2273
      %2275 = vmatmul.bf16.gmra.mxu0 %v849
      %v2276 = vpop.f32.mrf.mxu0
      %v2277 = vadd.f32 %v2255, %v2276
      %v2278 = vpop.f32.mrf.mxu0
      %v2279 = vadd.f32 %v2257, %v2278
      %2280 = vmatmul.bf16.gmra.mxu0 %v874
      %v2281 = vpop.f32.mrf.mxu0
      %v2282 = vpop.f32.mrf.mxu0
      %2283 = vdwg.mxu0
      %2284 = vmatpush.bf16.msra.mxu0 %v1805
      %2285 = vmatpush.bf16.msra.mxu0 %v1804
      %2286 = vmatpush.bf16.msra.mxu0 %v1803
      %2287 = vmatpush.bf16.msra.mxu0 %v1802
      %2288 = vmatpush.bf16.msra.mxu0 %v1801
      %2289 = vmatpush.bf16.msra.mxu0 %v1800
      %2290 = vmatpush.bf16.msra.mxu0 %v1799
      %2291 = vmatpush.bf16.msra.mxu0 %v1798
      %2292 = vmatmul.bf16.gmra.mxu0 %v825
      %v2293 = vpop.f32.mrf.mxu0
      %v2294 = vadd.f32 %v2272, %v2293
      %v2295 = vpop.f32.mrf.mxu0
      %v2296 = vadd.f32 %v2274, %v2295
      %2297 = vmatmul.bf16.gmra.mxu0 %v850
      %v2298 = vpop.f32.mrf.mxu0
      %v2299 = vadd.f32 %v2277, %v2298
      %v2300 = vpop.f32.mrf.mxu0
      %v2301 = vadd.f32 %v2279, %v2300
      %2302 = vmatmul.bf16.gmra.mxu0 %v875
      %v2303 = vpop.f32.mrf.mxu0
      %v2304 = vpop.f32.mrf.mxu0
      %2305 = vdwg.mxu0
      %2306 = vmatpush.bf16.msra.mxu0 %v1813
      %2307 = vmatpush.bf16.msra.mxu0 %v1812
      %2308 = vmatpush.bf16.msra.mxu0 %v1811
      %2309 = vmatpush.bf16.msra.mxu0 %v1810
      %2310 = vmatpush.bf16.msra.mxu0 %v1809
      %2311 = vmatpush.bf16.msra.mxu0 %v1808
      %2312 = vmatpush.bf16.msra.mxu0 %v1807
      %2313 = vmatpush.bf16.msra.mxu0 %v1806
      %2314 = vmatmul.bf16.gmra.mxu0 %v826
      %v2315 = vpop.f32.mrf.mxu0
      %v2316 = vadd.f32 %v2294, %v2315
      %v2317 = vpop.f32.mrf.mxu0
      %v2318 = vadd.f32 %v2296, %v2317
      %2319 = vmatmul.bf16.gmra.mxu0 %v851
      %v2320 = vpop.f32.mrf.mxu0
      %v2321 = vadd.f32 %v2299, %v2320
      %v2322 = vpop.f32.mrf.mxu0
      %v2323 = vadd.f32 %v2301, %v2322
      %2324 = vmatmul.bf16.gmra.mxu0 %v876
      %v2325 = vpop.f32.mrf.mxu0
      %v2326 = vpop.f32.mrf.mxu0
      %2327 = vdwg.mxu0
      %2328 = vmatpush.bf16.msra.mxu0 %v1821
      %2329 = vmatpush.bf16.msra.mxu0 %v1820
      %2330 = vmatpush.bf16.msra.mxu0 %v1819
      %2331 = vmatpush.bf16.msra.mxu0 %v1818
      %2332 = vmatpush.bf16.msra.mxu0 %v1817
      %2333 = vmatpush.bf16.msra.mxu0 %v1816
      %2334 = vmatpush.bf16.msra.mxu0 %v1815
      %2335 = vmatpush.bf16.msra.mxu0 %v1814
      %2336 = vmatmul.bf16.gmra.mxu0 %v827
      %v2337 = vpop.f32.mrf.mxu0
      %v2338 = vadd.f32 %v2316, %v2337
      %v2339 = vpop.f32.mrf.mxu0
      %v2340 = vadd.f32 %v2318, %v2339
      %2341 = vmatmul.bf16.gmra.mxu0 %v852
      %v2342 = vpop.f32.mrf.mxu0
      %v2343 = vadd.f32 %v2321, %v2342
      %v2344 = vpop.f32.mrf.mxu0
      %v2345 = vadd.f32 %v2323, %v2344
      %2346 = vmatmul.bf16.gmra.mxu0 %v877
      %v2347 = vpop.f32.mrf.mxu0
      %v2348 = vpop.f32.mrf.mxu0
      %2349 = vdwg.mxu0
      %2350 = vmatpush.bf16.msra.mxu0 %v1829
      %2351 = vmatpush.bf16.msra.mxu0 %v1828
      %2352 = vmatpush.bf16.msra.mxu0 %v1827
      %2353 = vmatpush.bf16.msra.mxu0 %v1826
      %2354 = vmatpush.bf16.msra.mxu0 %v1825
      %2355 = vmatpush.bf16.msra.mxu0 %v1824
      %2356 = vmatpush.bf16.msra.mxu0 %v1823
      %2357 = vmatpush.bf16.msra.mxu0 %v1822
      %2358 = vmatmul.bf16.gmra.mxu0 %v828
      %v2359 = vpop.f32.mrf.mxu0
      %v2360 = vadd.f32 %v2338, %v2359
      %v2361 = vpop.f32.mrf.mxu0
      %v2362 = vadd.f32 %v2340, %v2361
      %2363 = vmatmul.bf16.gmra.mxu0 %v853
      %v2364 = vpop.f32.mrf.mxu0
      %v2365 = vadd.f32 %v2343, %v2364
      %v2366 = vpop.f32.mrf.mxu0
      %v2367 = vadd.f32 %v2345, %v2366
      %2368 = vmatmul.bf16.gmra.mxu0 %v878
      %v2369 = vpop.f32.mrf.mxu0
      %v2370 = vpop.f32.mrf.mxu0
      %2371 = vdwg.mxu0
      %2372 = vmatpush.bf16.msra.mxu0 %v1837
      %2373 = vmatpush.bf16.msra.mxu0 %v1836
      %2374 = vmatpush.bf16.msra.mxu0 %v1835
      %2375 = vmatpush.bf16.msra.mxu0 %v1834
      %2376 = vmatpush.bf16.msra.mxu0 %v1833
      %2377 = vmatpush.bf16.msra.mxu0 %v1832
      %2378 = vmatpush.bf16.msra.mxu0 %v1831
      %2379 = vmatpush.bf16.msra.mxu0 %v1830
      %2380 = vmatmul.bf16.gmra.mxu0 %v829
      %v2381 = vpop.f32.mrf.mxu0
      %v2382 = vadd.f32 %v2360, %v2381
      %v2383 = vpop.f32.mrf.mxu0
      %v2384 = vadd.f32 %v2362, %v2383
      %2385 = vmatmul.bf16.gmra.mxu0 %v854
      %v2386 = vpop.f32.mrf.mxu0
      %v2387 = vadd.f32 %v2365, %v2386
      %v2388 = vpop.f32.mrf.mxu0
      %v2389 = vadd.f32 %v2367, %v2388
      %2390 = vmatmul.bf16.gmra.mxu0 %v879
      %v2391 = vpop.f32.mrf.mxu0
      %v2392 = vpop.f32.mrf.mxu0
      %2393 = vdwg.mxu0
      %2394 = vmatpush.bf16.msra.mxu0 %v1845
      %2395 = vmatpush.bf16.msra.mxu0 %v1844
      %2396 = vmatpush.bf16.msra.mxu0 %v1843
      %2397 = vmatpush.bf16.msra.mxu0 %v1842
      %2398 = vmatpush.bf16.msra.mxu0 %v1841
      %2399 = vmatpush.bf16.msra.mxu0 %v1840
      %2400 = vmatpush.bf16.msra.mxu0 %v1839
      %2401 = vmatpush.bf16.msra.mxu0 %v1838
      %2402 = vmatmul.bf16.gmra.mxu0 %v830
      %v2403 = vpop.f32.mrf.mxu0
      %v2404 = vadd.f32 %v2382, %v2403
      %v2405 = vpop.f32.mrf.mxu0
      %v2406 = vadd.f32 %v2384, %v2405
      %2407 = vmatmul.bf16.gmra.mxu0 %v855
      %v2408 = vpop.f32.mrf.mxu0
      %v2409 = vadd.f32 %v2387, %v2408
      %v2410 = vpop.f32.mrf.mxu0
      %v2411 = vadd.f32 %v2389, %v2410
      %2412 = vmatmul.bf16.gmra.mxu0 %v880
      %v2413 = vpop.f32.mrf.mxu0
      %v2414 = vpop.f32.mrf.mxu0
      %2415 = vdwg.mxu0
      %2416 = vmatpush.bf16.msra.mxu0 %v1853
      %2417 = vmatpush.bf16.msra.mxu0 %v1852
      %2418 = vmatpush.bf16.msra.mxu0 %v1851
      %2419 = vmatpush.bf16.msra.mxu0 %v1850
      %2420 = vmatpush.bf16.msra.mxu0 %v1849
      %2421 = vmatpush.bf16.msra.mxu0 %v1848
      %2422 = vmatpush.bf16.msra.mxu0 %v1847
      %2423 = vmatpush.bf16.msra.mxu0 %v1846
      %2424 = vmatmul.bf16.gmra.mxu0 %v831
      %v2425 = vpop.f32.mrf.mxu0
      %v2426 = vadd.f32 %v2404, %v2425
      %v2427 = vpop.f32.mrf.mxu0
      %v2428 = vadd.f32 %v2406, %v2427
      %2429 = vmatmul.bf16.gmra.mxu0 %v856
      %v2430 = vpop.f32.mrf.mxu0
      %v2431 = vadd.f32 %v2409, %v2430
      %v2432 = vpop.f32.mrf.mxu0
      %v2433 = vadd.f32 %v2411, %v2432
      %2434 = vmatmul.bf16.gmra.mxu0 %v881
      %v2435 = vpop.f32.mrf.mxu0
      %v2436 = vpop.f32.mrf.mxu0
      %2437 = vdwg.mxu0
      %2438 = vmatpush.bf16.msra.mxu0 %v1861
      %2439 = vmatpush.bf16.msra.mxu0 %v1860
      %2440 = vmatpush.bf16.msra.mxu0 %v1859
      %2441 = vmatpush.bf16.msra.mxu0 %v1858
      %2442 = vmatpush.bf16.msra.mxu0 %v1857
      %2443 = vmatpush.bf16.msra.mxu0 %v1856
      %2444 = vmatpush.bf16.msra.mxu0 %v1855
      %2445 = vmatpush.bf16.msra.mxu0 %v1854
      %2446 = vmatmul.bf16.gmra.mxu0 %v832
      %v2447 = vpop.f32.mrf.mxu0
      %v2448 = vadd.f32 %v2426, %v2447
      %v2449 = vpop.f32.mrf.mxu0
      %v2450 = vadd.f32 %v2428, %v2449
      %2451 = vmatmul.bf16.gmra.mxu0 %v857
      %v2452 = vpop.f32.mrf.mxu0
      %v2453 = vadd.f32 %v2431, %v2452
      %v2454 = vpop.f32.mrf.mxu0
      %v2455 = vadd.f32 %v2433, %v2454
      %2456 = vmatmul.bf16.gmra.mxu0 %v882
      %v2457 = vpop.f32.mrf.mxu0
      %v2458 = vpop.f32.mrf.mxu0
      %2459 = vdwg.mxu0
      %2460 = vmatpush.bf16.msra.mxu0 %v1869
      %2461 = vmatpush.bf16.msra.mxu0 %v1868
      %2462 = vmatpush.bf16.msra.mxu0 %v1867
      %2463 = vmatpush.bf16.msra.mxu0 %v1866
      %2464 = vmatpush.bf16.msra.mxu0 %v1865
      %2465 = vmatpush.bf16.msra.mxu0 %v1864
      %2466 = vmatpush.bf16.msra.mxu0 %v1863
      %2467 = vmatpush.bf16.msra.mxu0 %v1862
      %2468 = vmatmul.bf16.gmra.mxu0 %v833
      %v2469 = vpop.f32.mrf.mxu0
      %v2470 = vadd.f32 %v2448, %v2469
      %v2471 = vpop.f32.mrf.mxu0
      %v2472 = vadd.f32 %v2450, %v2471
      %2473 = vmatmul.bf16.gmra.mxu0 %v858
      %v2474 = vpop.f32.mrf.mxu0
      %v2475 = vadd.f32 %v2453, %v2474
      %v2476 = vpop.f32.mrf.mxu0
      %v2477 = vadd.f32 %v2455, %v2476
      %2478 = vmatmul.bf16.gmra.mxu0 %v883
      %v2479 = vpop.f32.mrf.mxu0
      %v2480 = vpop.f32.mrf.mxu0
      %2481 = vdwg.mxu0
      %2482 = vmatpush.bf16.msra.mxu0 %v1877
      %2483 = vmatpush.bf16.msra.mxu0 %v1876
      %2484 = vmatpush.bf16.msra.mxu0 %v1875
      %2485 = vmatpush.bf16.msra.mxu0 %v1874
      %2486 = vmatpush.bf16.msra.mxu0 %v1873
      %2487 = vmatpush.bf16.msra.mxu0 %v1872
      %2488 = vmatpush.bf16.msra.mxu0 %v1871
      %2489 = vmatpush.bf16.msra.mxu0 %v1870
      %2490 = vmatmul.bf16.gmra.mxu0 %v834
      %v2491 = vpop.f32.mrf.mxu0
      %v2492 = vadd.f32 %v2470, %v2491
      %v2493 = vpop.f32.mrf.mxu0
      %v2494 = vadd.f32 %v2472, %v2493
      %2495 = vmatmul.bf16.gmra.mxu0 %v859
      %v2496 = vpop.f32.mrf.mxu0
      %v2497 = vadd.f32 %v2475, %v2496
      %v2498 = vpop.f32.mrf.mxu0
      %v2499 = vadd.f32 %v2477, %v2498
      %2500 = vmatmul.bf16.gmra.mxu0 %v884
      %v2501 = vpop.f32.mrf.mxu0
      %v2502 = vpop.f32.mrf.mxu0
      %2503 = vdwg.mxu0
      %2504 = vmatpush.bf16.msra.mxu0 %v1885
      %2505 = vmatpush.bf16.msra.mxu0 %v1884
      %2506 = vmatpush.bf16.msra.mxu0 %v1883
      %2507 = vmatpush.bf16.msra.mxu0 %v1882
      %2508 = vmatpush.bf16.msra.mxu0 %v1881
      %2509 = vmatpush.bf16.msra.mxu0 %v1880
      %2510 = vmatpush.bf16.msra.mxu0 %v1879
      %2511 = vmatpush.bf16.msra.mxu0 %v1878
      %2512 = vmatmul.bf16.gmra.mxu0 %v835
      %v2513 = vpop.f32.mrf.mxu0
      %v2514 = vadd.f32 %v2492, %v2513
      %v2515 = vpop.f32.mrf.mxu0
      %v2516 = vadd.f32 %v2494, %v2515
      %2517 = vmatmul.bf16.gmra.mxu0 %v860
      %v2518 = vpop.f32.mrf.mxu0
      %v2519 = vadd.f32 %v2497, %v2518
      %v2520 = vpop.f32.mrf.mxu0
      %v2521 = vadd.f32 %v2499, %v2520
      %2522 = vmatmul.bf16.gmra.mxu0 %v885
      %v2523 = vpop.f32.mrf.mxu0
      %v2524 = vpop.f32.mrf.mxu0
      %2525 = vdwg.mxu0
      %2526 = vmatpush.bf16.msra.mxu0 %v1893
      %2527 = vmatpush.bf16.msra.mxu0 %v1892
      %2528 = vmatpush.bf16.msra.mxu0 %v1891
      %2529 = vmatpush.bf16.msra.mxu0 %v1890
      %2530 = vmatpush.bf16.msra.mxu0 %v1889
      %2531 = vmatpush.bf16.msra.mxu0 %v1888
      %2532 = vmatpush.bf16.msra.mxu0 %v1887
      %2533 = vmatpush.bf16.msra.mxu0 %v1886
      %2534 = vmatmul.bf16.gmra.mxu0 %v836
      %v2535 = vpop.f32.mrf.mxu0
      %v2536 = vadd.f32 %v2514, %v2535
      %v2537 = vpop.f32.mrf.mxu0
      %v2538 = vadd.f32 %v2516, %v2537
      %2539 = vmatmul.bf16.gmra.mxu0 %v861
      %v2540 = vpop.f32.mrf.mxu0
      %v2541 = vadd.f32 %v2519, %v2540
      %v2542 = vpop.f32.mrf.mxu0
      %v2543 = vadd.f32 %v2521, %v2542
      %2544 = vmatmul.bf16.gmra.mxu0 %v886
      %v2545 = vpop.f32.mrf.mxu0
      %v2546 = vpop.f32.mrf.mxu0
      %2547 = vdwg.mxu0
      %2548 = vmatpush.bf16.msra.mxu0 %v1901
      %2549 = vmatpush.bf16.msra.mxu0 %v1900
      %2550 = vmatpush.bf16.msra.mxu0 %v1899
      %2551 = vmatpush.bf16.msra.mxu0 %v1898
      %2552 = vmatpush.bf16.msra.mxu0 %v1897
      %2553 = vmatpush.bf16.msra.mxu0 %v1896
      %2554 = vmatpush.bf16.msra.mxu0 %v1895
      %2555 = vmatpush.bf16.msra.mxu0 %v1894
      %2556 = vmatmul.bf16.gmra.mxu0 %v837
      %v2557 = vpop.f32.mrf.mxu0
      %v2558 = vadd.f32 %v2536, %v2557
      %v2559 = vpop.f32.mrf.mxu0
      %v2560 = vadd.f32 %v2538, %v2559
      %2561 = vmatmul.bf16.gmra.mxu0 %v862
      %v2562 = vpop.f32.mrf.mxu0
      %v2563 = vadd.f32 %v2541, %v2562
      %v2564 = vpop.f32.mrf.mxu0
      %v2565 = vadd.f32 %v2543, %v2564
      %2566 = vmatmul.bf16.gmra.mxu0 %v887
      %v2567 = vpop.f32.mrf.mxu0
      %v2568 = vpop.f32.mrf.mxu0
      %2569 = vdwg.mxu0
      %2570 = vmatpush.bf16.msra.mxu0 %v1909
      %2571 = vmatpush.bf16.msra.mxu0 %v1908
      %2572 = vmatpush.bf16.msra.mxu0 %v1907
      %2573 = vmatpush.bf16.msra.mxu0 %v1906
      %2574 = vmatpush.bf16.msra.mxu0 %v1905
      %2575 = vmatpush.bf16.msra.mxu0 %v1904
      %2576 = vmatpush.bf16.msra.mxu0 %v1903
      %2577 = vmatpush.bf16.msra.mxu0 %v1902
      %2578 = vmatmul.bf16.gmra.mxu0 %v838
      %v2579 = vpop.f32.mrf.mxu0
      %v2580 = vadd.f32 %v2558, %v2579
      %v2581 = vpop.f32.mrf.mxu0
      %v2582 = vadd.f32 %v2560, %v2581
      %2583 = vmatmul.bf16.gmra.mxu0 %v863
      %v2584 = vpop.f32.mrf.mxu0
      %v2585 = vadd.f32 %v2563, %v2584
      %v2586 = vpop.f32.mrf.mxu0
      %v2587 = vadd.f32 %v2565, %v2586
      %2588 = vmatmul.bf16.gmra.mxu0 %v888
      %v2589 = vpop.f32.mrf.mxu0
      %v2590 = vpop.f32.mrf.mxu0
      %2591 = vdwg.mxu0
      %2592 = vmatpush.bf16.msra.mxu0 %v1917
      %2593 = vmatpush.bf16.msra.mxu0 %v1916
      %2594 = vmatpush.bf16.msra.mxu0 %v1915
      %2595 = vmatpush.bf16.msra.mxu0 %v1914
      %2596 = vmatpush.bf16.msra.mxu0 %v1913
      %2597 = vmatpush.bf16.msra.mxu0 %v1912
      %2598 = vmatpush.bf16.msra.mxu0 %v1911
      %2599 = vmatpush.bf16.msra.mxu0 %v1910
      %2600 = vmatmul.bf16.gmra.mxu0 %v839
      %v2601 = vpop.f32.mrf.mxu0
      %v2602 = vadd.f32 %v2580, %v2601
      %v2603 = vpop.f32.mrf.mxu0
      %v2604 = vadd.f32 %v2582, %v2603
      %2605 = vmatmul.bf16.gmra.mxu0 %v864
      %v2606 = vpop.f32.mrf.mxu0
      %v2607 = vadd.f32 %v2585, %v2606
      %v2608 = vpop.f32.mrf.mxu0
      %v2609 = vadd.f32 %v2587, %v2608
      %2610 = vmatmul.bf16.gmra.mxu0 %v889
      %v2611 = vpop.f32.mrf.mxu0
      %v2612 = vpop.f32.mrf.mxu0
      %2613 = vdwg.mxu0
      %2614 = vmatpush.bf16.msra.mxu0 %v1925
      %2615 = vmatpush.bf16.msra.mxu0 %v1924
      %2616 = vmatpush.bf16.msra.mxu0 %v1923
      %2617 = vmatpush.bf16.msra.mxu0 %v1922
      %2618 = vmatpush.bf16.msra.mxu0 %v1921
      %2619 = vmatpush.bf16.msra.mxu0 %v1920
      %2620 = vmatpush.bf16.msra.mxu0 %v1919
      %2621 = vmatpush.bf16.msra.mxu0 %v1918
      %2622 = vmatmul.bf16.gmra.mxu0 %v840
      %v2623 = vpop.f32.mrf.mxu0
      %v2624 = vadd.f32 %v2602, %v2623
      %v2625 = vpop.f32.mrf.mxu0
      %v2626 = vadd.f32 %v2604, %v2625
      %2627 = vmatmul.bf16.gmra.mxu0 %v865
      %v2628 = vpop.f32.mrf.mxu0
      %v2629 = vadd.f32 %v2607, %v2628
      %v2630 = vpop.f32.mrf.mxu0
      %v2631 = vadd.f32 %v2609, %v2630
      %2632 = vmatmul.bf16.gmra.mxu0 %v890
      %v2633 = vpop.f32.mrf.mxu0
      %v2634 = vpop.f32.mrf.mxu0
      %2635 = vdwg.mxu0
      %2636 = vmatpush.bf16.msra.mxu0 %v1933
      %2637 = vmatpush.bf16.msra.mxu0 %v1932
      %2638 = vmatpush.bf16.msra.mxu0 %v1931
      %2639 = vmatpush.bf16.msra.mxu0 %v1930
      %2640 = vmatpush.bf16.msra.mxu0 %v1929
      %2641 = vmatpush.bf16.msra.mxu0 %v1928
      %2642 = vmatpush.bf16.msra.mxu0 %v1927
      %2643 = vmatpush.bf16.msra.mxu0 %v1926
      %2644 = vmatmul.bf16.gmra.mxu0 %v841
      %v2645 = vpop.f32.mrf.mxu0
      %v2646 = vadd.f32 %v2624, %v2645
      %v2647 = vpop.f32.mrf.mxu0
      %v2648 = vadd.f32 %v2626, %v2647
      %2649 = vmatmul.bf16.gmra.mxu0 %v866
      %v2650 = vpop.f32.mrf.mxu0
      %v2651 = vadd.f32 %v2629, %v2650
      %v2652 = vpop.f32.mrf.mxu0
      %v2653 = vadd.f32 %v2631, %v2652
      %2654 = vmatmul.bf16.gmra.mxu0 %v891
      %v2655 = vpop.f32.mrf.mxu0
      %v2656 = vpop.f32.mrf.mxu0
      %2657 = vdwg.mxu0
      %2658 = vmatpush.bf16.msra.mxu0 %v1941
      %2659 = vmatpush.bf16.msra.mxu0 %v1940
      %2660 = vmatpush.bf16.msra.mxu0 %v1939
      %2661 = vmatpush.bf16.msra.mxu0 %v1938
      %2662 = vmatpush.bf16.msra.mxu0 %v1937
      %2663 = vmatpush.bf16.msra.mxu0 %v1936
      %2664 = vmatpush.bf16.msra.mxu0 %v1935
      %2665 = vmatpush.bf16.msra.mxu0 %v1934
      %2666 = vmatmul.bf16.gmra.mxu0 %v842
      %v2667 = vpop.f32.mrf.mxu0
      %v2668 = vadd.f32 %v2646, %v2667
      %v2669 = vpop.f32.mrf.mxu0
      %v2670 = vadd.f32 %v2648, %v2669
      %2671 = vmatmul.bf16.gmra.mxu0 %v867
      %v2672 = vpop.f32.mrf.mxu0
      %v2673 = vadd.f32 %v2651, %v2672
      %v2674 = vpop.f32.mrf.mxu0
      %v2675 = vadd.f32 %v2653, %v2674
      %2676 = vmatmul.bf16.gmra.mxu0 %v892
      %v2677 = vpop.f32.mrf.mxu0
      %v2678 = vpop.f32.mrf.mxu0
      %2679 = vdwg.mxu0
      %2680 = vmatpush.bf16.msra.mxu0 0
      %2681 = vmatpush.bf16.msra.mxu0 0
      %2682 = vmatpush.bf16.msra.mxu0 0
      %2683 = vmatpush.bf16.msra.mxu0 0
      %2684 = vmatpush.bf16.msra.mxu0 %v1945
      %2685 = vmatpush.bf16.msra.mxu0 %v1944
      %2686 = vmatpush.bf16.msra.mxu0 %v1943
      %2687 = vmatpush.bf16.msra.mxu0 %v1942
      %2688 = vmatmul.bf16.gmra.mxu0 %v2144
      %v2689 = vpop.f32.mrf.mxu0
      %v2690 = vadd.f32 %v2668, %v2689
      %v2691 = vpop.f32.mrf.mxu0
      %v2692 = vadd.f32 %v2670, %v2691
      %2693 = vmatmul.bf16.gmra.mxu0 %v2147
      %v2694 = vpop.f32.mrf.mxu0
      %v2695 = vadd.f32 %v2673, %v2694
      %v2696 = vpop.f32.mrf.mxu0
      %v2697 = vadd.f32 %v2675, %v2696
      %2698 = vmatmul.bf16.gmra.mxu0 %v2150
      %v2699 = vpop.f32.mrf.mxu0
      %v2700 = vpop.f32.mrf.mxu0
      %2701 = vdwg.mxu0
      %s2702 = scalar_lea.vmem %s1, 1568
      %v2703 = vld [vmem:[%s2702] sm:$0xf]
      %v2704 = vld [vmem:[%s2702 + $0x4] sm:$0xf]
      %v2705 = vld [vmem:[%s2702 + $0x8] sm:$0xf]
      %v2706 = vld [vmem:[%s2702 + $0xc] sm:$0xf]
      %v2707 = vld [vmem:[%s2702 + $0x10] sm:$0xf]
      %v2708 = vld [vmem:[%s2702 + $0x14] sm:$0xf]
      %v2709 = vld [vmem:[%s2702 + $0x18] sm:$0xf]
      %v2710 = vld [vmem:[%s2702 + $0x1c] sm:$0xf]
      %v2711 = vld [vmem:[%s2702 + $0x20] sm:$0xf]
      %v2712 = vld [vmem:[%s2702 + $0x24] sm:$0xf]
      %v2713 = vld [vmem:[%s2702 + $0x28] sm:$0xf]
      %v2714 = vld [vmem:[%s2702 + $0x2c] sm:$0xf]
      %v2715 = vld [vmem:[%s2702 + $0x30] sm:$0xf]
      %v2716 = vld [vmem:[%s2702 + $0x34] sm:$0xf]
      %v2717 = vld [vmem:[%s2702 + $0x38] sm:$0xf]
      %v2718 = vld [vmem:[%s2702 + $0x3c] sm:$0xf]
      %v2719 = vld [vmem:[%s2702 + $0x40] sm:$0xf]
      %v2720 = vld [vmem:[%s2702 + $0x44] sm:$0xf]
      %v2721 = vld [vmem:[%s2702 + $0x48] sm:$0xf]
      %v2722 = vld [vmem:[%s2702 + $0x4c] sm:$0xf]
      %v2723 = vld [vmem:[%s2702 + $0x50] sm:$0xf]
      %v2724 = vld [vmem:[%s2702 + $0x54] sm:$0xf]
      %v2725 = vld [vmem:[%s2702 + $0x58] sm:$0xf]
      %v2726 = vld [vmem:[%s2702 + $0x5c] sm:$0xf]
      %v2727 = vld [vmem:[%s2702 + $0x60] sm:$0xf]
      %v2728 = vld [vmem:[%s2702 + $0x64] sm:$0xf]
      %v2729 = vld [vmem:[%s2702 + $0x68] sm:$0xf]
      %v2730 = vld [vmem:[%s2702 + $0x6c] sm:$0xf]
      %v2731 = vld [vmem:[%s2702 + $0x70] sm:$0xf]
      %v2732 = vld [vmem:[%s2702 + $0x74] sm:$0xf]
      %v2733 = vld [vmem:[%s2702 + $0x78] sm:$0xf]
      %v2734 = vld [vmem:[%s2702 + $0x7c] sm:$0xf]
      %v2735 = vld [vmem:[%s2702 + $0x80] sm:$0xf]
      %v2736 = vld [vmem:[%s2702 + $0x84] sm:$0xf]
      %v2737 = vld [vmem:[%s2702 + $0x88] sm:$0xf]
      %v2738 = vld [vmem:[%s2702 + $0x8c] sm:$0xf]
      %v2739 = vld [vmem:[%s2702 + $0x90] sm:$0xf]
      %v2740 = vld [vmem:[%s2702 + $0x94] sm:$0xf]
      %v2741 = vld [vmem:[%s2702 + $0x98] sm:$0xf]
      %v2742 = vld [vmem:[%s2702 + $0x9c] sm:$0xf]
      %v2743 = vld [vmem:[%s2702 + $0xa0] sm:$0xf]
      %v2744 = vld [vmem:[%s2702 + $0xa4] sm:$0xf]
      %v2745 = vld [vmem:[%s2702 + $0xa8] sm:$0xf]
      %v2746 = vld [vmem:[%s2702 + $0xac] sm:$0xf]
      %v2747 = vld [vmem:[%s2702 + $0xb0] sm:$0xf]
      %v2748 = vld [vmem:[%s2702 + $0xb4] sm:$0xf]
      %v2749 = vld [vmem:[%s2702 + $0xb8] sm:$0xf]
      %v2750 = vld [vmem:[%s2702 + $0xbc] sm:$0xf]
      %v2751 = vld [vmem:[%s2702 + $0xc0] sm:$0xf]
      %v2752 = vld [vmem:[%s2702 + $0xc4] sm:$0xf]
      %v2753 = vld [vmem:[%s2702 + $0xc8] sm:$0xf]
      %v2754 = vld [vmem:[%s2702 + $0xcc] sm:$0xf]
      %v2755 = vld [vmem:[%s2702 + $0xd0] sm:$0xf]
      %v2756 = vld [vmem:[%s2702 + $0xd4] sm:$0xf]
      %v2757 = vld [vmem:[%s2702 + $0xd8] sm:$0xf]
      %v2758 = vld [vmem:[%s2702 + $0xdc] sm:$0xf]
      %v2759 = vld [vmem:[%s2702 + $0xe0] sm:$0xf]
      %v2760 = vld [vmem:[%s2702 + $0xe4] sm:$0xf]
      %v2761 = vld [vmem:[%s2702 + $0xe8] sm:$0xf]
      %v2762 = vld [vmem:[%s2702 + $0xec] sm:$0xf]
      %v2763 = vld [vmem:[%s2702 + $0xf0] sm:$0xf]
      %v2764 = vld [vmem:[%s2702 + $0xf4] sm:$0xf]
      %v2765 = vld [vmem:[%s2702 + $0xf8] sm:$0xf]
      %v2766 = vld [vmem:[%s2702 + $0xfc] sm:$0xf]
      %v2767 = vld [vmem:[%s2702 + $0x100] sm:$0xf]
      %v2768 = vld [vmem:[%s2702 + $0x104] sm:$0xf]
      %v2769 = vld [vmem:[%s2702 + $0x108] sm:$0xf]
      %v2770 = vld [vmem:[%s2702 + $0x10c] sm:$0xf]
      %v2771 = vld [vmem:[%s2702 + $0x110] sm:$0xf]
      %v2772 = vld [vmem:[%s2702 + $0x114] sm:$0xf]
      %v2773 = vld [vmem:[%s2702 + $0x118] sm:$0xf]
      %v2774 = vld [vmem:[%s2702 + $0x11c] sm:$0xf]
      %v2775 = vld [vmem:[%s2702 + $0x120] sm:$0xf]
      %v2776 = vld [vmem:[%s2702 + $0x124] sm:$0xf]
      %v2777 = vld [vmem:[%s2702 + $0x128] sm:$0xf]
      %v2778 = vld [vmem:[%s2702 + $0x12c] sm:$0xf]
      %v2779 = vld [vmem:[%s2702 + $0x130] sm:$0xf]
      %v2780 = vld [vmem:[%s2702 + $0x134] sm:$0xf]
      %v2781 = vld [vmem:[%s2702 + $0x138] sm:$0xf]
      %v2782 = vld [vmem:[%s2702 + $0x13c] sm:$0xf]
      %v2783 = vld [vmem:[%s2702 + $0x140] sm:$0xf]
      %v2784 = vld [vmem:[%s2702 + $0x144] sm:$0xf]
      %v2785 = vld [vmem:[%s2702 + $0x148] sm:$0xf]
      %v2786 = vld [vmem:[%s2702 + $0x14c] sm:$0xf]
      %v2787 = vld [vmem:[%s2702 + $0x150] sm:$0xf]
      %v2788 = vld [vmem:[%s2702 + $0x154] sm:$0xf]
      %v2789 = vld [vmem:[%s2702 + $0x158] sm:$0xf]
      %v2790 = vld [vmem:[%s2702 + $0x15c] sm:$0xf]
      %v2791 = vld [vmem:[%s2702 + $0x160] sm:$0xf]
      %v2792 = vld [vmem:[%s2702 + $0x164] sm:$0xf]
      %v2793 = vld [vmem:[%s2702 + $0x168] sm:$0xf]
      %v2794 = vld [vmem:[%s2702 + $0x16c] sm:$0xf]
      %v2795 = vld [vmem:[%s2702 + $0x170] sm:$0xf]
      %v2796 = vld [vmem:[%s2702 + $0x174] sm:$0xf]
      %v2797 = vld [vmem:[%s2702 + $0x178] sm:$0xf]
      %v2798 = vld [vmem:[%s2702 + $0x17c] sm:$0xf]
      %v2799 = vld [vmem:[%s2702 + $0x180] sm:$0xf]
      %v2800 = vld [vmem:[%s2702 + $0x184] sm:$0xf]
      %v2801 = vld [vmem:[%s2702 + $0x188] sm:$0xf]
      %v2802 = vld [vmem:[%s2702 + $0x18c] sm:$0xf]
      %v2803 = vld [vmem:[%s2702 + $0x190] sm:$0xf]
      %v2804 = vld [vmem:[%s2702 + $0x194] sm:$0xf]
      %v2805 = vld [vmem:[%s2702 + $0x198] sm:$0xf]
      %v2806 = vld [vmem:[%s2702 + $0x19c] sm:$0xf]
      %v2807 = vld [vmem:[%s2702 + $0x1a0] sm:$0xf]
      %v2808 = vld [vmem:[%s2702 + $0x1a4] sm:$0xf]
      %v2809 = vld [vmem:[%s2702 + $0x1a8] sm:$0xf]
      %v2810 = vld [vmem:[%s2702 + $0x1ac] sm:$0xf]
      %v2811 = vld [vmem:[%s2702 + $0x1b0] sm:$0xf]
      %v2812 = vld [vmem:[%s2702 + $0x1b4] sm:$0xf]
      %v2813 = vld [vmem:[%s2702 + $0x1b8] sm:$0xf]
      %v2814 = vld [vmem:[%s2702 + $0x1bc] sm:$0xf]
      %v2815 = vld [vmem:[%s2702 + $0x1c0] sm:$0xf]
      %v2816 = vld [vmem:[%s2702 + $0x1c4] sm:$0xf]
      %v2817 = vld [vmem:[%s2702 + $0x1c8] sm:$0xf]
      %v2818 = vld [vmem:[%s2702 + $0x1cc] sm:$0xf]
      %v2819 = vld [vmem:[%s2702 + $0x1d0] sm:$0xf]
      %v2820 = vld [vmem:[%s2702 + $0x1d4] sm:$0xf]
      %v2821 = vld [vmem:[%s2702 + $0x1d8] sm:$0xf]
      %v2822 = vld [vmem:[%s2702 + $0x1dc] sm:$0xf]
      %v2823 = vld [vmem:[%s2702 + $0x1e0] sm:$0xf]
      %v2824 = vld [vmem:[%s2702 + $0x1e4] sm:$0xf]
      %v2825 = vld [vmem:[%s2702 + $0x1e8] sm:$0xf]
      %v2826 = vld [vmem:[%s2702 + $0x1ec] sm:$0xf]
      %v2827 = vld [vmem:[%s2702 + $0x1f0] sm:$0xf]
      %v2828 = vld [vmem:[%s2702 + $0x1f4] sm:$0xf]
      %v2829 = vld [vmem:[%s2702 + $0x1f8] sm:$0xf]
      %v2830 = vld [vmem:[%s2702 + $0x1fc] sm:$0xf]
      %v2831 = vld [vmem:[%s2702 + $0x200] sm:$0xf]
      %v2832 = vld [vmem:[%s2702 + $0x204] sm:$0xf]
      %v2833 = vld [vmem:[%s2702 + $0x208] sm:$0xf]
      %v2834 = vld [vmem:[%s2702 + $0x20c] sm:$0xf]
      %v2835 = vld [vmem:[%s2702 + $0x210] sm:$0xf]
      %v2836 = vld [vmem:[%s2702 + $0x214] sm:$0xf]
      %v2837 = vld [vmem:[%s2702 + $0x218] sm:$0xf]
      %v2838 = vld [vmem:[%s2702 + $0x21c] sm:$0xf]
      %v2839 = vld [vmem:[%s2702 + $0x220] sm:$0xf]
      %v2840 = vld [vmem:[%s2702 + $0x224] sm:$0xf]
      %v2841 = vld [vmem:[%s2702 + $0x228] sm:$0xf]
      %v2842 = vld [vmem:[%s2702 + $0x22c] sm:$0xf]
      %v2843 = vld [vmem:[%s2702 + $0x230] sm:$0xf]
      %v2844 = vld [vmem:[%s2702 + $0x234] sm:$0xf]
      %v2845 = vld [vmem:[%s2702 + $0x238] sm:$0xf]
      %v2846 = vld [vmem:[%s2702 + $0x23c] sm:$0xf]
      %v2847 = vld [vmem:[%s2702 + $0x240] sm:$0xf]
      %v2848 = vld [vmem:[%s2702 + $0x244] sm:$0xf]
      %v2849 = vld [vmem:[%s2702 + $0x248] sm:$0xf]
      %v2850 = vld [vmem:[%s2702 + $0x24c] sm:$0xf]
      %v2851 = vld [vmem:[%s2702 + $0x250] sm:$0xf]
      %v2852 = vld [vmem:[%s2702 + $0x254] sm:$0xf]
      %v2853 = vld [vmem:[%s2702 + $0x258] sm:$0xf]
      %v2854 = vld [vmem:[%s2702 + $0x25c] sm:$0xf]
      %v2855 = vld [vmem:[%s2702 + $0x260] sm:$0xf]
      %v2856 = vld [vmem:[%s2702 + $0x264] sm:$0xf]
      %v2857 = vld [vmem:[%s2702 + $0x268] sm:$0xf]
      %v2858 = vld [vmem:[%s2702 + $0x26c] sm:$0xf]
      %v2859 = vld [vmem:[%s2702 + $0x270] sm:$0xf]
      %v2860 = vld [vmem:[%s2702 + $0x274] sm:$0xf]
      %v2861 = vld [vmem:[%s2702 + $0x278] sm:$0xf]
      %v2862 = vld [vmem:[%s2702 + $0x27c] sm:$0xf]
      %v2863 = vld [vmem:[%s2702 + $0x280] sm:$0xf]
      %v2864 = vld [vmem:[%s2702 + $0x284] sm:$0xf]
      %v2865 = vld [vmem:[%s2702 + $0x288] sm:$0xf]
      %v2866 = vld [vmem:[%s2702 + $0x28c] sm:$0xf]
      %v2867 = vld [vmem:[%s2702 + $0x290] sm:$0xf]
      %v2868 = vld [vmem:[%s2702 + $0x294] sm:$0xf]
      %v2869 = vld [vmem:[%s2702 + $0x298] sm:$0xf]
      %v2870 = vld [vmem:[%s2702 + $0x29c] sm:$0xf]
      %v2871 = vld [vmem:[%s2702 + $0x2a0] sm:$0xf]
      %v2872 = vld [vmem:[%s2702 + $0x2a4] sm:$0xf]
      %v2873 = vld [vmem:[%s2702 + $0x2a8] sm:$0xf]
      %v2874 = vld [vmem:[%s2702 + $0x2ac] sm:$0xf]
      %v2875 = vld [vmem:[%s2702 + $0x2b0] sm:$0xf]
      %v2876 = vld [vmem:[%s2702 + $0x2b4] sm:$0xf]
      %v2877 = vld [vmem:[%s2702 + $0x2b8] sm:$0xf]
      %v2878 = vld [vmem:[%s2702 + $0x2bc] sm:$0xf]
      %v2879 = vld [vmem:[%s2702 + $0x2c0] sm:$0xf]
      %v2880 = vld [vmem:[%s2702 + $0x2c4] sm:$0xf]
      %v2881 = vld [vmem:[%s2702 + $0x2c8] sm:$0xf]
      %v2882 = vld [vmem:[%s2702 + $0x2cc] sm:$0xf]
      %v2883 = vld [vmem:[%s2702 + $0x2d0] sm:$0xf]
      %v2884 = vld [vmem:[%s2702 + $0x2d4] sm:$0xf]
      %v2885 = vld [vmem:[%s2702 + $0x2d8] sm:$0xf]
      %v2886 = vld [vmem:[%s2702 + $0x2dc] sm:$0xf]
      %v2887 = vld [vmem:[%s2702 + $0x2e0] sm:$0xf]
      %v2888 = vld [vmem:[%s2702 + $0x2e4] sm:$0xf]
      %v2889 = vld [vmem:[%s2702 + $0x2e8] sm:$0xf]
      %v2890 = vld [vmem:[%s2702 + $0x2ec] sm:$0xf]
      %v2891 = vld [vmem:[%s2702 + $0x2f0] sm:$0xf]
      %v2892 = vld [vmem:[%s2702 + $0x2f4] sm:$0xf]
      %v2893 = vld [vmem:[%s2702 + $0x2f8] sm:$0xf]
      %v2894 = vld [vmem:[%s2702 + $0x2fc] sm:$0xf]
      %v2895 = vld [vmem:[%s2702 + $0x300] sm:$0xf]
      %v2896 = vld [vmem:[%s2702 + $0x304] sm:$0xf]
      %v2897 = vld [vmem:[%s2702 + $0x308] sm:$0xf]
      %v2898 = vld [vmem:[%s2702 + $0x30c] sm:$0xf]
      %v2899 = vld [vmem:[%s2702 + $0x310] sm:$0xf]
      %v2900 = vld [vmem:[%s2702 + $0x314] sm:$0xf]
      %v2901 = vld [vmem:[%s2702 + $0x318] sm:$0xf]
      %v2902 = vld [vmem:[%s2702 + $0x31c] sm:$0xf]
      %v2903 = vld [vmem:[%s2702 + $0x320] sm:$0xf]
      %v2904 = vld [vmem:[%s2702 + $0x324] sm:$0xf]
      %v2905 = vld [vmem:[%s2702 + $0x328] sm:$0xf]
      %v2906 = vld [vmem:[%s2702 + $0x32c] sm:$0xf]
      %v2907 = vld [vmem:[%s2702 + $0x330] sm:$0xf]
      %v2908 = vld [vmem:[%s2702 + $0x334] sm:$0xf]
      %v2909 = vld [vmem:[%s2702 + $0x338] sm:$0xf]
      %v2910 = vld [vmem:[%s2702 + $0x33c] sm:$0xf]
      %v2911 = vld [vmem:[%s2702 + $0x340] sm:$0xf]
      %v2912 = vld [vmem:[%s2702 + $0x344] sm:$0xf]
      %v2913 = vld [vmem:[%s2702 + $0x348] sm:$0xf]
      %v2914 = vld [vmem:[%s2702 + $0x34c] sm:$0xf]
      %v2915 = vld [vmem:[%s2702 + $0x350] sm:$0xf]
      %v2916 = vld [vmem:[%s2702 + $0x354] sm:$0xf]
      %v2917 = vld [vmem:[%s2702 + $0x358] sm:$0xf]
      %v2918 = vld [vmem:[%s2702 + $0x35c] sm:$0xf]
      %v2919 = vld [vmem:[%s2702 + $0x360] sm:$0xf]
      %v2920 = vld [vmem:[%s2702 + $0x364] sm:$0xf]
      %v2921 = vld [vmem:[%s2702 + $0x368] sm:$0xf]
      %v2922 = vld [vmem:[%s2702 + $0x36c] sm:$0xf]
      %v2923 = vld [vmem:[%s2702 + $0x370] sm:$0xf]
      %v2924 = vld [vmem:[%s2702 + $0x374] sm:$0xf]
      %v2925 = vld [vmem:[%s2702 + $0x378] sm:$0xf]
      %v2926 = vld [vmem:[%s2702 + $0x37c] sm:$0xf]
      %v2927 = vld [vmem:[%s2702 + $0x380] sm:$0xf]
      %v2928 = vld [vmem:[%s2702 + $0x384] sm:$0xf]
      %v2929 = vld [vmem:[%s2702 + $0x388] sm:$0xf]
      %v2930 = vld [vmem:[%s2702 + $0x38c] sm:$0xf]
      %v2931 = vld [vmem:[%s2702 + $0x390] sm:$0xf]
      %v2932 = vld [vmem:[%s2702 + $0x394] sm:$0xf]
      %v2933 = vld [vmem:[%s2702 + $0x398] sm:$0xf]
      %v2934 = vld [vmem:[%s2702 + $0x39c] sm:$0xf]
      %v2935 = vld [vmem:[%s2702 + $0x3a0] sm:$0xf]
      %v2936 = vld [vmem:[%s2702 + $0x3a4] sm:$0xf]
      %v2937 = vld [vmem:[%s2702 + $0x3a8] sm:$0xf]
      %v2938 = vld [vmem:[%s2702 + $0x3ac] sm:$0xf]
      %v2939 = vld [vmem:[%s2702 + $0x3b0] sm:$0xf]
      %v2940 = vld [vmem:[%s2702 + $0x3b4] sm:$0xf]
      %v2941 = vld [vmem:[%s2702 + $0x3b8] sm:$0xf]
      %v2942 = vld [vmem:[%s2702 + $0x3bc] sm:$0xf]
      %v2943 = vld [vmem:[%s2702 + $0x3c0] sm:$0xf]
      %v2944 = vld [vmem:[%s2702 + $0x3c4] sm:$0xf]
      %v2945 = vld [vmem:[%s2702 + $0x3c8] sm:$0xf]
      %v2946 = vld [vmem:[%s2702 + $0x3cc] sm:$0xf]
      %v2947 = vld [vmem:[%s2702 + $0x3d0] sm:$0xf]
      %v2948 = vld [vmem:[%s2702 + $0x3d4] sm:$0xf]
      %v2949 = vld [vmem:[%s2702 + $0x3d8] sm:$0xf]
      %v2950 = vld [vmem:[%s2702 + $0x3dc] sm:$0xf]
      %v2951 = vld [vmem:[%s2702 + $0x3e0] sm:$0xf]
      %v2952 = vld [vmem:[%s2702 + $0x3e4] sm:$0xf]
      %v2953 = vld [vmem:[%s2702 + $0x3e8] sm:$0xf]
      %v2954 = vld [vmem:[%s2702 + $0x3ec] sm:$0xf]
      %v2955 = vld [vmem:[%s2702 + $0x3f0] sm:$0xf]
      %v2956 = vld [vmem:[%s2702 + $0x3f4] sm:$0xf]
      %v2957 = vld [vmem:[%s2702 + $0x3f8] sm:$0xf]
      %v2958 = vld [vmem:[%s2702 + $0x3fc] sm:$0xf]
      %v2959 = vld [vmem:[%s2702 + $0x400] sm:$0xf]
      %v2960 = vld [vmem:[%s2702 + $0x404] sm:$0xf]
      %v2961 = vld [vmem:[%s2702 + $0x408] sm:$0xf]
      %v2962 = vld [vmem:[%s2702 + $0x40c] sm:$0xf]
      %v2963 = vld [vmem:[%s2702 + $0x410] sm:$0xf]
      %v2964 = vld [vmem:[%s2702 + $0x414] sm:$0xf]
      %v2965 = vld [vmem:[%s2702 + $0x418] sm:$0xf]
      %v2966 = vld [vmem:[%s2702 + $0x41c] sm:$0xf]
      %v2967 = vld [vmem:[%s2702 + $0x420] sm:$0xf]
      %v2968 = vld [vmem:[%s2702 + $0x424] sm:$0xf]
      %v2969 = vld [vmem:[%s2702 + $0x428] sm:$0xf]
      %v2970 = vld [vmem:[%s2702 + $0x42c] sm:$0xf]
      %v2971 = vld [vmem:[%s2702 + $0x430] sm:$0xf]
      %v2972 = vld [vmem:[%s2702 + $0x434] sm:$0xf]
      %v2973 = vld [vmem:[%s2702 + $0x438] sm:$0xf]
      %v2974 = vld [vmem:[%s2702 + $0x43c] sm:$0xf]
      %v2975 = vld [vmem:[%s2702 + $0x440] sm:$0xf]
      %v2976 = vld [vmem:[%s2702 + $0x444] sm:$0xf]
      %v2977 = vld [vmem:[%s2702 + $0x448] sm:$0xf]
      %v2978 = vld [vmem:[%s2702 + $0x44c] sm:$0xf]
      %v2979 = vld [vmem:[%s2702 + $0x450] sm:$0xf]
      %v2980 = vld [vmem:[%s2702 + $0x454] sm:$0xf]
      %v2981 = vld [vmem:[%s2702 + $0x458] sm:$0xf]
      %v2982 = vld [vmem:[%s2702 + $0x45c] sm:$0xf]
      %v2983 = vld [vmem:[%s2702 + $0x460] sm:$0xf]
      %v2984 = vld [vmem:[%s2702 + $0x464] sm:$0xf]
      %v2985 = vld [vmem:[%s2702 + $0x468] sm:$0xf]
      %v2986 = vld [vmem:[%s2702 + $0x46c] sm:$0xf]
      %v2987 = vld [vmem:[%s2702 + $0x470] sm:$0xf]
      %v2988 = vld [vmem:[%s2702 + $0x474] sm:$0xf]
      %v2989 = vld [vmem:[%s2702 + $0x478] sm:$0xf]
      %v2990 = vld [vmem:[%s2702 + $0x47c] sm:$0xf]
      %v2991 = vld [vmem:[%s2702 + $0x480] sm:$0xf]
      %v2992 = vld [vmem:[%s2702 + $0x484] sm:$0xf]
      %v2993 = vld [vmem:[%s2702 + $0x488] sm:$0xf]
      %v2994 = vld [vmem:[%s2702 + $0x48c] sm:$0xf]
      %v2995 = vld [vmem:[%s2702 + $0x490] sm:$0xf]
      %v2996 = vld [vmem:[%s2702 + $0x494] sm:$0xf]
      %v2997 = vld [vmem:[%s2702 + $0x498] sm:$0xf]
      %v2998 = vld [vmem:[%s2702 + $0x49c] sm:$0xf]
      %v2999 = vld [vmem:[%s2702 + $0x4a0] sm:$0xf]
      %v3000 = vld [vmem:[%s2702 + $0x4a4] sm:$0xf]
      %v3001 = vld [vmem:[%s2702 + $0x4a8] sm:$0xf]
      %v3002 = vld [vmem:[%s2702 + $0x4ac] sm:$0xf]
      %v3003 = vld [vmem:[%s2702 + $0x4b0] sm:$0xf]
      %v3004 = vld [vmem:[%s2702 + $0x4b4] sm:$0xf]
      %v3005 = vld [vmem:[%s2702 + $0x4b8] sm:$0xf]
      %v3006 = vld [vmem:[%s2702 + $0x4bc] sm:$0xf]
      %v3007 = vld [vmem:[%s2702 + $0x4c0] sm:$0xf]
      %v3008 = vld [vmem:[%s2702 + $0x4c4] sm:$0xf]
      %v3009 = vld [vmem:[%s2702 + $0x4c8] sm:$0xf]
      %v3010 = vld [vmem:[%s2702 + $0x4cc] sm:$0xf]
      %v3011 = vld [vmem:[%s2702 + $0x4d0] sm:$0xf]
      %v3012 = vld [vmem:[%s2702 + $0x4d4] sm:$0xf]
      %v3013 = vld [vmem:[%s2702 + $0x4d8] sm:$0xf]
      %v3014 = vld [vmem:[%s2702 + $0x4dc] sm:$0xf]
      %v3015 = vld [vmem:[%s2702 + $0x4e0] sm:$0xf]
      %v3016 = vld [vmem:[%s2702 + $0x4e4] sm:$0xf]
      %v3017 = vld [vmem:[%s2702 + $0x4e8] sm:$0xf]
      %v3018 = vld [vmem:[%s2702 + $0x4ec] sm:$0xf]
      %v3019 = vld [vmem:[%s2702 + $0x4f0] sm:$0xf]
      %v3020 = vld [vmem:[%s2702 + $0x4f4] sm:$0xf]
      %v3021 = vld [vmem:[%s2702 + $0x4f8] sm:$0xf]
      %v3022 = vld [vmem:[%s2702 + $0x4fc] sm:$0xf]
      %v3023 = vld [vmem:[%s2702 + $0x500] sm:$0xf]
      %v3024 = vld [vmem:[%s2702 + $0x504] sm:$0xf]
      %v3025 = vld [vmem:[%s2702 + $0x508] sm:$0xf]
      %v3026 = vld [vmem:[%s2702 + $0x50c] sm:$0xf]
      %v3027 = vld [vmem:[%s2702 + $0x510] sm:$0xf]
      %v3028 = vld [vmem:[%s2702 + $0x514] sm:$0xf]
      %v3029 = vld [vmem:[%s2702 + $0x518] sm:$0xf]
      %v3030 = vld [vmem:[%s2702 + $0x51c] sm:$0xf]
      %v3031 = vld [vmem:[%s2702 + $0x520] sm:$0xf]
      %v3032 = vld [vmem:[%s2702 + $0x524] sm:$0xf]
      %v3033 = vld [vmem:[%s2702 + $0x528] sm:$0xf]
      %v3034 = vld [vmem:[%s2702 + $0x52c] sm:$0xf]
      %v3035 = vld [vmem:[%s2702 + $0x530] sm:$0xf]
      %v3036 = vld [vmem:[%s2702 + $0x534] sm:$0xf]
      %v3037 = vld [vmem:[%s2702 + $0x538] sm:$0xf]
      %v3038 = vld [vmem:[%s2702 + $0x53c] sm:$0xf]
      %v3039 = vld [vmem:[%s2702 + $0x540] sm:$0xf]
      %v3040 = vld [vmem:[%s2702 + $0x544] sm:$0xf]
      %v3041 = vld [vmem:[%s2702 + $0x548] sm:$0xf]
      %v3042 = vld [vmem:[%s2702 + $0x54c] sm:$0xf]
      %v3043 = vld [vmem:[%s2702 + $0x550] sm:$0xf]
      %v3044 = vld [vmem:[%s2702 + $0x554] sm:$0xf]
      %v3045 = vld [vmem:[%s2702 + $0x558] sm:$0xf]
      %v3046 = vld [vmem:[%s2702 + $0x55c] sm:$0xf]
      %v3047 = vld [vmem:[%s2702 + $0x560] sm:$0xf]
      %v3048 = vld [vmem:[%s2702 + $0x564] sm:$0xf]
      %v3049 = vld [vmem:[%s2702 + $0x568] sm:$0xf]
      %v3050 = vld [vmem:[%s2702 + $0x56c] sm:$0xf]
      %v3051 = vld [vmem:[%s2702 + $0x570] sm:$0xf]
      %v3052 = vld [vmem:[%s2702 + $0x574] sm:$0xf]
      %v3053 = vld [vmem:[%s2702 + $0x578] sm:$0xf]
      %v3054 = vld [vmem:[%s2702 + $0x57c] sm:$0xf]
      %v3055 = vld [vmem:[%s2702 + $0x580] sm:$0xf]
      %v3056 = vld [vmem:[%s2702 + $0x584] sm:$0xf]
      %v3057 = vld [vmem:[%s2702 + $0x588] sm:$0xf]
      %v3058 = vld [vmem:[%s2702 + $0x58c] sm:$0xf]
      %v3059 = vld [vmem:[%s2702 + $0x590] sm:$0xf]
      %v3060 = vld [vmem:[%s2702 + $0x594] sm:$0xf]
      %v3061 = vld [vmem:[%s2702 + $0x598] sm:$0xf]
      %v3062 = vld [vmem:[%s2702 + $0x59c] sm:$0xf]
      %v3063 = vld [vmem:[%s2702 + $0x5a0] sm:$0xf]
      %v3064 = vld [vmem:[%s2702 + $0x5a4] sm:$0xf]
      %v3065 = vld [vmem:[%s2702 + $0x5a8] sm:$0xf]
      %v3066 = vld [vmem:[%s2702 + $0x5ac] sm:$0xf]
      %v3067 = vld [vmem:[%s2702 + $0x5b0] sm:$0xf]
      %v3068 = vld [vmem:[%s2702 + $0x5b4] sm:$0xf]
      %v3069 = vld [vmem:[%s2702 + $0x5b8] sm:$0xf]
      %v3070 = vld [vmem:[%s2702 + $0x5bc] sm:$0xf]
      %v3071 = vld [vmem:[%s2702 + $0x5c0] sm:$0xf]
      %v3072 = vld [vmem:[%s2702 + $0x5c4] sm:$0xf]
      %v3073 = vld [vmem:[%s2702 + $0x5c8] sm:$0xf]
      %v3074 = vld [vmem:[%s2702 + $0x5cc] sm:$0xf]
      %v3075 = vld [vmem:[%s2702 + $0x5d0] sm:$0xf]
      %v3076 = vld [vmem:[%s2702 + $0x5d4] sm:$0xf]
      %v3077 = vld [vmem:[%s2702 + $0x5d8] sm:$0xf]
      %v3078 = vld [vmem:[%s2702 + $0x5dc] sm:$0xf]
      %v3079 = vld [vmem:[%s2702 + $0x5e0] sm:$0xf]
      %v3080 = vld [vmem:[%s2702 + $0x5e4] sm:$0xf]
      %v3081 = vld [vmem:[%s2702 + $0x5e8] sm:$0xf]
      %v3082 = vld [vmem:[%s2702 + $0x5ec] sm:$0xf]
      %v3083 = vld [vmem:[%s2702 + $0x5f0] sm:$0xf]
      %v3084 = vld [vmem:[%s2702 + $0x5f4] sm:$0xf]
      %v3085 = vld [vmem:[%s2702 + $0x5f8] sm:$0xf]
      %v3086 = vld [vmem:[%s2702 + $0x5fc] sm:$0xf]
      %v3087 = vld [vmem:[%s2702 + $0x600] sm:$0xf]
      %v3088 = vld [vmem:[%s2702 + $0x604] sm:$0xf]
      %v3089 = vld [vmem:[%s2702 + $0x608] sm:$0xf]
      %v3090 = vld [vmem:[%s2702 + $0x60c] sm:$0xf]
      %v3091 = vld [vmem:[%s2702 + $0x610] sm:$0xf]
      %v3092 = vld [vmem:[%s2702 + $0x614] sm:$0xf]
      %v3093 = vld [vmem:[%s2702 + $0x618] sm:$0xf]
      %v3094 = vld [vmem:[%s2702 + $0x61c] sm:$0xf]
      %v3487 = vunpack.c.l.b16 %v2703
      %v3488 = vunpack.c.l.b16 %v2704
      %v3489 = vunpack.c.l.b16 %v2705
      %v3490 = vunpack.c.l.b16 %v2706
      %v3491 = vunpack.c.l.b16 %v2707
      %v3492 = vunpack.c.l.b16 %v2708
      %v3493 = vunpack.c.l.b16 %v2709
      %v3494 = vunpack.c.l.b16 %v2710
      %v3495 = vunpack.c.l.b16 %v2711
      %v3496 = vunpack.c.l.b16 %v2712
      %v3497 = vunpack.c.l.b16 %v2713
      %v3498 = vunpack.c.l.b16 %v2714
      %v3499 = vunpack.c.l.b16 %v2715
      %v3500 = vunpack.c.l.b16 %v2716
      %v3501 = vunpack.c.l.b16 %v2717
      %v3502 = vunpack.c.l.b16 %v2718
      %v3503 = vunpack.c.l.b16 %v2719
      %v3504 = vunpack.c.l.b16 %v2720
      %v3505 = vunpack.c.l.b16 %v2721
      %v3506 = vunpack.c.l.b16 %v2722
      %v3507 = vunpack.c.l.b16 %v2723
      %v3508 = vunpack.c.l.b16 %v2724
      %v3509 = vunpack.c.l.b16 %v2725
      %v3510 = vunpack.c.l.b16 %v2726
      %v3511 = vunpack.c.l.b16 %v2727
      %v3512 = vunpack.c.l.b16 %v2728
      %v3513 = vunpack.c.l.b16 %v2729
      %v3514 = vunpack.c.l.b16 %v2730
      %v3515 = vunpack.c.l.b16 %v2731
      %v3516 = vunpack.c.l.b16 %v2732
      %v3517 = vunpack.c.l.b16 %v2733
      %v3518 = vunpack.c.l.b16 %v2734
      %v3519 = vunpack.c.l.b16 %v2735
      %v3520 = vunpack.c.l.b16 %v2736
      %v3521 = vunpack.c.l.b16 %v2737
      %v3522 = vunpack.c.l.b16 %v2738
      %v3523 = vunpack.c.l.b16 %v2739
      %v3524 = vunpack.c.l.b16 %v2740
      %v3525 = vunpack.c.l.b16 %v2741
      %v3526 = vunpack.c.l.b16 %v2742
      %v3527 = vunpack.c.l.b16 %v2743
      %v3528 = vunpack.c.l.b16 %v2744
      %v3529 = vunpack.c.l.b16 %v2745
      %v3530 = vunpack.c.l.b16 %v2746
      %v3531 = vunpack.c.l.b16 %v2747
      %v3532 = vunpack.c.l.b16 %v2748
      %v3533 = vunpack.c.l.b16 %v2749
      %v3534 = vunpack.c.l.b16 %v2750
      %v3535 = vunpack.c.l.b16 %v2751
      %v3536 = vunpack.c.l.b16 %v2752
      %v3537 = vunpack.c.l.b16 %v2753
      %v3538 = vunpack.c.l.b16 %v2754
      %v3539 = vunpack.c.l.b16 %v2755
      %v3540 = vunpack.c.l.b16 %v2756
      %v3541 = vunpack.c.l.b16 %v2757
      %v3542 = vunpack.c.l.b16 %v2758
      %v3543 = vunpack.c.l.b16 %v2759
      %v3544 = vunpack.c.l.b16 %v2760
      %v3545 = vunpack.c.l.b16 %v2761
      %v3546 = vunpack.c.l.b16 %v2762
      %v3547 = vunpack.c.l.b16 %v2763
      %v3548 = vunpack.c.l.b16 %v2764
      %v3549 = vunpack.c.l.b16 %v2765
      %v3550 = vunpack.c.l.b16 %v2766
      %v3551 = vunpack.c.l.b16 %v2767
      %v3552 = vunpack.c.l.b16 %v2768
      %v3553 = vunpack.c.l.b16 %v2769
      %v3554 = vunpack.c.l.b16 %v2770
      %v3555 = vunpack.c.l.b16 %v2771
      %v3556 = vunpack.c.l.b16 %v2772
      %v3557 = vunpack.c.l.b16 %v2773
      %v3558 = vunpack.c.l.b16 %v2774
      %v3559 = vunpack.c.l.b16 %v2775
      %v3560 = vunpack.c.l.b16 %v2776
      %v3561 = vunpack.c.l.b16 %v2777
      %v3562 = vunpack.c.l.b16 %v2778
      %v3563 = vunpack.c.l.b16 %v2779
      %v3564 = vunpack.c.l.b16 %v2780
      %v3565 = vunpack.c.l.b16 %v2781
      %v3566 = vunpack.c.l.b16 %v2782
      %v3567 = vunpack.c.l.b16 %v2783
      %v3568 = vunpack.c.l.b16 %v2784
      %v3569 = vunpack.c.l.b16 %v2785
      %v3570 = vunpack.c.l.b16 %v2786
      %v3571 = vunpack.c.l.b16 %v2787
      %v3572 = vunpack.c.l.b16 %v2788
      %v3573 = vunpack.c.l.b16 %v2789
      %v3574 = vunpack.c.l.b16 %v2790
      %v3575 = vunpack.c.l.b16 %v2791
      %v3576 = vunpack.c.l.b16 %v2792
      %v3577 = vunpack.c.l.b16 %v2793
      %v3578 = vunpack.c.l.b16 %v2794
      %v3579 = vunpack.c.l.b16 %v2795
      %v3580 = vunpack.c.l.b16 %v2796
      %v3581 = vunpack.c.l.b16 %v2797
      %v3582 = vunpack.c.l.b16 %v2798
      %v3583 = vunpack.c.l.b16 %v2799
      %v3584 = vunpack.c.l.b16 %v2800
      %v3585 = vunpack.c.l.b16 %v2801
      %v3586 = vunpack.c.l.b16 %v2802
      %v3587 = vunpack.c.l.b16 %v2803
      %v3588 = vunpack.c.l.b16 %v2804
      %v3589 = vunpack.c.l.b16 %v2805
      %v3590 = vunpack.c.l.b16 %v2806
      %v3591 = vunpack.c.l.b16 %v2807
      %v3592 = vunpack.c.l.b16 %v2808
      %v3593 = vunpack.c.l.b16 %v2809
      %v3594 = vunpack.c.l.b16 %v2810
      %v3595 = vunpack.c.l.b16 %v2811
      %v3596 = vunpack.c.l.b16 %v2812
      %v3597 = vunpack.c.l.b16 %v2813
      %v3598 = vunpack.c.l.b16 %v2814
      %v3599 = vunpack.c.l.b16 %v2815
      %v3600 = vunpack.c.l.b16 %v2816
      %v3601 = vunpack.c.l.b16 %v2817
      %v3602 = vunpack.c.l.b16 %v2818
      %v3603 = vunpack.c.l.b16 %v2819
      %v3604 = vunpack.c.l.b16 %v2820
      %v3605 = vunpack.c.l.b16 %v2821
      %v3606 = vunpack.c.l.b16 %v2822
      %v3607 = vunpack.c.l.b16 %v2823
      %v3608 = vunpack.c.l.b16 %v2824
      %v3609 = vunpack.c.l.b16 %v2825
      %v3610 = vunpack.c.l.b16 %v2826
      %v3611 = vunpack.c.l.b16 %v2827
      %v3612 = vunpack.c.l.b16 %v2828
      %v3613 = vunpack.c.l.b16 %v2829
      %v3614 = vunpack.c.l.b16 %v2830
      %v3615 = vunpack.c.l.b16 %v2831
      %v3616 = vunpack.c.l.b16 %v2832
      %v3617 = vunpack.c.l.b16 %v2833
      %v3618 = vunpack.c.l.b16 %v2834
      %v3619 = vunpack.c.l.b16 %v2835
      %v3620 = vunpack.c.l.b16 %v2836
      %v3621 = vunpack.c.l.b16 %v2837
      %v3622 = vunpack.c.l.b16 %v2838
      %v3623 = vunpack.c.l.b16 %v2839
      %v3624 = vunpack.c.l.b16 %v2840
      %v3625 = vunpack.c.l.b16 %v2841
      %v3626 = vunpack.c.l.b16 %v2842
      %v3627 = vunpack.c.l.b16 %v2843
      %v3628 = vunpack.c.l.b16 %v2844
      %v3629 = vunpack.c.l.b16 %v2845
      %v3630 = vunpack.c.l.b16 %v2846
      %v3631 = vunpack.c.l.b16 %v2847
      %v3632 = vunpack.c.l.b16 %v2848
      %v3633 = vunpack.c.l.b16 %v2849
      %v3634 = vunpack.c.l.b16 %v2850
      %v3635 = vunpack.c.l.b16 %v2851
      %v3636 = vunpack.c.l.b16 %v2852
      %v3637 = vunpack.c.l.b16 %v2853
      %v3638 = vunpack.c.l.b16 %v2854
      %v3639 = vunpack.c.l.b16 %v2855
      %v3640 = vunpack.c.l.b16 %v2856
      %v3641 = vunpack.c.l.b16 %v2857
      %v3642 = vunpack.c.l.b16 %v2858
      %v3643 = vunpack.c.l.b16 %v2859
      %v3644 = vunpack.c.l.b16 %v2860
      %v3645 = vunpack.c.l.b16 %v2861
      %v3646 = vunpack.c.l.b16 %v2862
      %v3647 = vunpack.c.l.b16 %v2863
      %v3648 = vunpack.c.l.b16 %v2864
      %v3649 = vunpack.c.l.b16 %v2865
      %v3650 = vunpack.c.l.b16 %v2866
      %v3651 = vunpack.c.l.b16 %v2867
      %v3652 = vunpack.c.l.b16 %v2868
      %v3653 = vunpack.c.l.b16 %v2869
      %v3654 = vunpack.c.l.b16 %v2870
      %v3655 = vunpack.c.l.b16 %v2871
      %v3656 = vunpack.c.l.b16 %v2872
      %v3657 = vunpack.c.l.b16 %v2873
      %v3658 = vunpack.c.l.b16 %v2874
      %v3659 = vunpack.c.l.b16 %v2875
      %v3660 = vunpack.c.l.b16 %v2876
      %v3661 = vunpack.c.l.b16 %v2877
      %v3662 = vunpack.c.l.b16 %v2878
      %v3663 = vunpack.c.l.b16 %v2879
      %v3664 = vunpack.c.l.b16 %v2880
      %v3665 = vunpack.c.l.b16 %v2881
      %v3666 = vunpack.c.l.b16 %v2882
      %v3667 = vunpack.c.l.b16 %v2883
      %v3668 = vunpack.c.l.b16 %v2884
      %v3669 = vunpack.c.l.b16 %v2885
      %v3670 = vunpack.c.l.b16 %v2886
      %v3671 = vunpack.c.l.b16 %v2887
      %v3672 = vunpack.c.l.b16 %v2888
      %v3673 = vunpack.c.l.b16 %v2889
      %v3674 = vunpack.c.l.b16 %v2890
      %v3675 = vunpack.c.l.b16 %v2891
      %v3676 = vunpack.c.l.b16 %v2892
      %v3677 = vunpack.c.l.b16 %v2893
      %v3678 = vunpack.c.l.b16 %v2894
      %v3679 = vunpack.c.l.b16 %v2895
      %v3680 = vunpack.c.l.b16 %v2896
      %v3681 = vunpack.c.l.b16 %v2897
      %v3682 = vunpack.c.l.b16 %v2898
      %v3683 = vunpack.c.l.b16 %v2899
      %v3684 = vunpack.c.l.b16 %v2900
      %v3685 = vunpack.c.l.b16 %v2901
      %v3686 = vunpack.c.l.b16 %v2902
      %v3687 = vunpack.c.l.b16 %v2903
      %v3688 = vunpack.c.l.b16 %v2904
      %v3689 = vunpack.c.l.b16 %v2905
      %v3690 = vunpack.c.l.b16 %v2906
      %v3691 = vunpack.c.l.b16 %v2907
      %v3692 = vunpack.c.l.b16 %v2908
      %v3693 = vunpack.c.l.b16 %v2909
      %v3694 = vunpack.c.l.b16 %v2910
      %v3695 = vunpack.c.l.b16 %v2911
      %v3696 = vunpack.c.l.b16 %v2912
      %v3697 = vunpack.c.l.b16 %v2913
      %v3698 = vunpack.c.l.b16 %v2914
      %v3699 = vunpack.c.l.b16 %v2915
      %v3700 = vunpack.c.l.b16 %v2916
      %v3701 = vunpack.c.l.b16 %v2917
      %v3702 = vunpack.c.l.b16 %v2918
      %v3703 = vunpack.c.l.b16 %v2919
      %v3704 = vunpack.c.l.b16 %v2920
      %v3705 = vunpack.c.l.b16 %v2921
      %v3706 = vunpack.c.l.b16 %v2922
      %v3707 = vunpack.c.l.b16 %v2923
      %v3708 = vunpack.c.l.b16 %v2924
      %v3709 = vunpack.c.l.b16 %v2925
      %v3710 = vunpack.c.l.b16 %v2926
      %v3711 = vunpack.c.l.b16 %v2927
      %v3712 = vunpack.c.l.b16 %v2928
      %v3713 = vunpack.c.l.b16 %v2929
      %v3714 = vunpack.c.l.b16 %v2930
      %v3715 = vunpack.c.l.b16 %v2931
      %v3716 = vunpack.c.l.b16 %v2932
      %v3717 = vunpack.c.l.b16 %v2933
      %v3718 = vunpack.c.l.b16 %v2934
      %v3719 = vunpack.c.l.b16 %v2935
      %v3720 = vunpack.c.l.b16 %v2936
      %v3721 = vunpack.c.l.b16 %v2937
      %v3722 = vunpack.c.l.b16 %v2938
      %v3723 = vunpack.c.l.b16 %v2939
      %v3724 = vunpack.c.l.b16 %v2940
      %v3725 = vunpack.c.l.b16 %v2941
      %v3726 = vunpack.c.l.b16 %v2942
      %v3727 = vunpack.c.l.b16 %v2943
      %v3728 = vunpack.c.l.b16 %v2944
      %v3729 = vunpack.c.l.b16 %v2945
      %v3730 = vunpack.c.l.b16 %v2946
      %v3731 = vunpack.c.l.b16 %v2947
      %v3732 = vunpack.c.l.b16 %v2948
      %v3733 = vunpack.c.l.b16 %v2949
      %v3734 = vunpack.c.l.b16 %v2950
      %v3735 = vunpack.c.l.b16 %v2951
      %v3736 = vunpack.c.l.b16 %v2952
      %v3737 = vunpack.c.l.b16 %v2953
      %v3738 = vunpack.c.l.b16 %v2954
      %v3739 = vunpack.c.l.b16 %v2955
      %v3740 = vunpack.c.l.b16 %v2956
      %v3741 = vunpack.c.l.b16 %v2957
      %v3742 = vunpack.c.l.b16 %v2958
      %v3743 = vunpack.c.l.b16 %v2959
      %v3744 = vunpack.c.l.b16 %v2960
      %v3745 = vunpack.c.l.b16 %v2961
      %v3746 = vunpack.c.l.b16 %v2962
      %v3747 = vunpack.c.l.b16 %v2963
      %v3748 = vunpack.c.l.b16 %v2964
      %v3749 = vunpack.c.l.b16 %v2965
      %v3750 = vunpack.c.l.b16 %v2966
      %v3751 = vunpack.c.l.b16 %v2967
      %v3752 = vunpack.c.l.b16 %v2968
      %v3753 = vunpack.c.l.b16 %v2969
      %v3754 = vunpack.c.l.b16 %v2970
      %v3755 = vunpack.c.l.b16 %v2971
      %v3756 = vunpack.c.l.b16 %v2972
      %v3757 = vunpack.c.l.b16 %v2973
      %v3758 = vunpack.c.l.b16 %v2974
      %v3759 = vunpack.c.l.b16 %v2975
      %v3760 = vunpack.c.l.b16 %v2976
      %v3761 = vunpack.c.l.b16 %v2977
      %v3762 = vunpack.c.l.b16 %v2978
      %v3763 = vunpack.c.l.b16 %v2979
      %v3764 = vunpack.c.l.b16 %v2980
      %v3765 = vunpack.c.l.b16 %v2981
      %v3766 = vunpack.c.l.b16 %v2982
      %v3767 = vunpack.c.l.b16 %v2983
      %v3768 = vunpack.c.l.b16 %v2984
      %v3769 = vunpack.c.l.b16 %v2985
      %v3770 = vunpack.c.l.b16 %v2986
      %v3771 = vunpack.c.l.b16 %v2987
      %v3772 = vunpack.c.l.b16 %v2988
      %v3773 = vunpack.c.l.b16 %v2989
      %v3774 = vunpack.c.l.b16 %v2990
      %v3775 = vunpack.c.l.b16 %v2991
      %v3776 = vunpack.c.l.b16 %v2992
      %v3777 = vunpack.c.l.b16 %v2993
      %v3778 = vunpack.c.l.b16 %v2994
      %v3779 = vunpack.c.l.b16 %v2995
      %v3780 = vunpack.c.l.b16 %v2996
      %v3781 = vunpack.c.l.b16 %v2997
      %v3782 = vunpack.c.l.b16 %v2998
      %v3783 = vunpack.c.l.b16 %v2999
      %v3784 = vunpack.c.l.b16 %v3000
      %v3785 = vunpack.c.l.b16 %v3001
      %v3786 = vunpack.c.l.b16 %v3002
      %v3787 = vunpack.c.l.b16 %v3003
      %v3788 = vunpack.c.l.b16 %v3004
      %v3789 = vunpack.c.l.b16 %v3005
      %v3790 = vunpack.c.l.b16 %v3006
      %v3791 = vunpack.c.l.b16 %v3007
      %v3792 = vunpack.c.l.b16 %v3008
      %v3793 = vunpack.c.l.b16 %v3009
      %v3794 = vunpack.c.l.b16 %v3010
      %v3795 = vunpack.c.l.b16 %v3011
      %v3796 = vunpack.c.l.b16 %v3012
      %v3797 = vunpack.c.l.b16 %v3013
      %v3798 = vunpack.c.l.b16 %v3014
      %v3799 = vunpack.c.l.b16 %v3015
      %v3800 = vunpack.c.l.b16 %v3016
      %v3801 = vunpack.c.l.b16 %v3017
      %v3802 = vunpack.c.l.b16 %v3018
      %v3803 = vunpack.c.l.b16 %v3019
      %v3804 = vunpack.c.l.b16 %v3020
      %v3805 = vunpack.c.l.b16 %v3021
      %v3806 = vunpack.c.l.b16 %v3022
      %v3807 = vunpack.c.l.b16 %v3023
      %v3808 = vunpack.c.l.b16 %v3024
      %v3809 = vunpack.c.l.b16 %v3025
      %v3810 = vunpack.c.l.b16 %v3026
      %v3811 = vunpack.c.l.b16 %v3027
      %v3812 = vunpack.c.l.b16 %v3028
      %v3813 = vunpack.c.l.b16 %v3029
      %v3814 = vunpack.c.l.b16 %v3030
      %v3815 = vunpack.c.l.b16 %v3031
      %v3816 = vunpack.c.l.b16 %v3032
      %v3817 = vunpack.c.l.b16 %v3033
      %v3818 = vunpack.c.l.b16 %v3034
      %v3819 = vunpack.c.l.b16 %v3035
      %v3820 = vunpack.c.l.b16 %v3036
      %v3821 = vunpack.c.l.b16 %v3037
      %v3822 = vunpack.c.l.b16 %v3038
      %v3823 = vunpack.c.l.b16 %v3039
      %v3824 = vunpack.c.l.b16 %v3040
      %v3825 = vunpack.c.l.b16 %v3041
      %v3826 = vunpack.c.l.b16 %v3042
      %v3827 = vunpack.c.l.b16 %v3043
      %v3828 = vunpack.c.l.b16 %v3044
      %v3829 = vunpack.c.l.b16 %v3045
      %v3830 = vunpack.c.l.b16 %v3046
      %v3831 = vunpack.c.l.b16 %v3047
      %v3832 = vunpack.c.l.b16 %v3048
      %v3833 = vunpack.c.l.b16 %v3049
      %v3834 = vunpack.c.l.b16 %v3050
      %v3835 = vunpack.c.l.b16 %v3051
      %v3836 = vunpack.c.l.b16 %v3052
      %v3837 = vunpack.c.l.b16 %v3053
      %v3838 = vunpack.c.l.b16 %v3054
      %v3839 = vunpack.c.l.b16 %v3055
      %v3840 = vunpack.c.l.b16 %v3056
      %v3841 = vunpack.c.l.b16 %v3057
      %v3842 = vunpack.c.l.b16 %v3058
      %v3843 = vunpack.c.l.b16 %v3059
      %v3844 = vunpack.c.l.b16 %v3060
      %v3845 = vunpack.c.l.b16 %v3061
      %v3846 = vunpack.c.l.b16 %v3062
      %v3847 = vunpack.c.l.b16 %v3063
      %v3848 = vunpack.c.l.b16 %v3064
      %v3849 = vunpack.c.l.b16 %v3065
      %v3850 = vunpack.c.l.b16 %v3066
      %v3851 = vunpack.c.l.b16 %v3067
      %v3852 = vunpack.c.l.b16 %v3068
      %v3853 = vunpack.c.l.b16 %v3069
      %v3854 = vunpack.c.l.b16 %v3070
      %v3855 = vunpack.c.l.b16 %v3071
      %v3856 = vunpack.c.l.b16 %v3072
      %v3857 = vunpack.c.l.b16 %v3073
      %v3858 = vunpack.c.l.b16 %v3074
      %v3859 = vunpack.c.l.b16 %v3075
      %v3860 = vunpack.c.l.b16 %v3076
      %v3861 = vunpack.c.l.b16 %v3077
      %v3862 = vunpack.c.l.b16 %v3078
      %v3863 = vunpack.c.l.b16 %v3079
      %v3864 = vunpack.c.l.b16 %v3080
      %v3865 = vunpack.c.l.b16 %v3081
      %v3866 = vunpack.c.l.b16 %v3082
      %v3867 = vunpack.c.l.b16 %v3083
      %v3868 = vunpack.c.l.b16 %v3084
      %v3869 = vunpack.c.l.b16 %v3085
      %v3870 = vunpack.c.l.b16 %v3086
      %v3871 = vunpack.c.l.b16 %v3087
      %v3872 = vunpack.c.l.b16 %v3088
      %v3873 = vunpack.c.l.b16 %v3089
      %v3874 = vunpack.c.l.b16 %v3090
      %v3875 = vunpack.c.l.b16 %v3091
      %v3876 = vunpack.c.l.b16 %v3092
      %v3877 = vunpack.c.l.b16 %v3093
      %v3878 = vunpack.c.l.b16 %v3094
      %v3879 = vpack.c.b16 %v3488, %v3487
      %v3880 = vpack.c.b16 %v3490, %v3489
      %v3881 = vpack.c.b16 %v3492, %v3491
      %v3882 = vpack.c.b16 %v3494, %v3493
      %v3883 = vpack.c.b16 %v3496, %v3495
      %v3884 = vpack.c.b16 %v3498, %v3497
      %v3885 = vpack.c.b16 %v3500, %v3499
      %v3886 = vpack.c.b16 %v3502, %v3501
      %v3887 = vpack.c.b16 %v3504, %v3503
      %v3888 = vpack.c.b16 %v3506, %v3505
      %v3889 = vpack.c.b16 %v3508, %v3507
      %v3890 = vpack.c.b16 %v3510, %v3509
      %v3891 = vpack.c.b16 %v3512, %v3511
      %v3892 = vpack.c.b16 %v3514, %v3513
      %v3893 = vpack.c.b16 %v3516, %v3515
      %v3894 = vpack.c.b16 %v3518, %v3517
      %v3895 = vpack.c.b16 %v3520, %v3519
      %v3896 = vpack.c.b16 %v3522, %v3521
      %v3897 = vpack.c.b16 %v3524, %v3523
      %v3898 = vpack.c.b16 %v3526, %v3525
      %v3899 = vpack.c.b16 %v3528, %v3527
      %v3900 = vpack.c.b16 %v3530, %v3529
      %v3901 = vpack.c.b16 %v3532, %v3531
      %v3902 = vpack.c.b16 %v3534, %v3533
      %v3903 = vpack.c.b16 %v3536, %v3535
      %v3904 = vpack.c.b16 %v3538, %v3537
      %v3905 = vpack.c.b16 %v3540, %v3539
      %v3906 = vpack.c.b16 %v3542, %v3541
      %v3907 = vpack.c.b16 %v3544, %v3543
      %v3908 = vpack.c.b16 %v3546, %v3545
      %v3909 = vpack.c.b16 %v3548, %v3547
      %v3910 = vpack.c.b16 %v3550, %v3549
      %v3911 = vpack.c.b16 %v3552, %v3551
      %v3912 = vpack.c.b16 %v3554, %v3553
      %v3913 = vpack.c.b16 %v3556, %v3555
      %v3914 = vpack.c.b16 %v3558, %v3557
      %v3915 = vpack.c.b16 %v3560, %v3559
      %v3916 = vpack.c.b16 %v3562, %v3561
      %v3917 = vpack.c.b16 %v3564, %v3563
      %v3918 = vpack.c.b16 %v3566, %v3565
      %v3919 = vpack.c.b16 %v3568, %v3567
      %v3920 = vpack.c.b16 %v3570, %v3569
      %v3921 = vpack.c.b16 %v3572, %v3571
      %v3922 = vpack.c.b16 %v3574, %v3573
      %v3923 = vpack.c.b16 %v3576, %v3575
      %v3924 = vpack.c.b16 %v3578, %v3577
      %v3925 = vpack.c.b16 %v3580, %v3579
      %v3926 = vpack.c.b16 %v3582, %v3581
      %v3927 = vpack.c.b16 %v3584, %v3583
      %v3928 = vpack.c.b16 %v3586, %v3585
      %v3929 = vpack.c.b16 %v3588, %v3587
      %v3930 = vpack.c.b16 %v3590, %v3589
      %v3931 = vpack.c.b16 %v3592, %v3591
      %v3932 = vpack.c.b16 %v3594, %v3593
      %v3933 = vpack.c.b16 %v3596, %v3595
      %v3934 = vpack.c.b16 %v3598, %v3597
      %v3935 = vpack.c.b16 %v3600, %v3599
      %v3936 = vpack.c.b16 %v3602, %v3601
      %v3937 = vpack.c.b16 %v3604, %v3603
      %v3938 = vpack.c.b16 %v3606, %v3605
      %v3939 = vpack.c.b16 %v3608, %v3607
      %v3940 = vpack.c.b16 %v3610, %v3609
      %v3941 = vpack.c.b16 %v3612, %v3611
      %v3942 = vpack.c.b16 %v3614, %v3613
      %v3943 = vpack.c.b16 %v3616, %v3615
      %v3944 = vpack.c.b16 %v3618, %v3617
      %v3945 = vpack.c.b16 %v3620, %v3619
      %v3946 = vpack.c.b16 %v3622, %v3621
      %v3947 = vpack.c.b16 %v3624, %v3623
      %v3948 = vpack.c.b16 %v3626, %v3625
      %v3949 = vpack.c.b16 %v3628, %v3627
      %v3950 = vpack.c.b16 %v3630, %v3629
      %v3951 = vpack.c.b16 %v3632, %v3631
      %v3952 = vpack.c.b16 %v3634, %v3633
      %v3953 = vpack.c.b16 %v3636, %v3635
      %v3954 = vpack.c.b16 %v3638, %v3637
      %v3955 = vpack.c.b16 %v3640, %v3639
      %v3956 = vpack.c.b16 %v3642, %v3641
      %v3957 = vpack.c.b16 %v3644, %v3643
      %v3958 = vpack.c.b16 %v3646, %v3645
      %v3959 = vpack.c.b16 %v3648, %v3647
      %v3960 = vpack.c.b16 %v3650, %v3649
      %v3961 = vpack.c.b16 %v3652, %v3651
      %v3962 = vpack.c.b16 %v3654, %v3653
      %v3963 = vpack.c.b16 %v3656, %v3655
      %v3964 = vpack.c.b16 %v3658, %v3657
      %v3965 = vpack.c.b16 %v3660, %v3659
      %v3966 = vpack.c.b16 %v3662, %v3661
      %v3967 = vpack.c.b16 %v3664, %v3663
      %v3968 = vpack.c.b16 %v3666, %v3665
      %v3969 = vpack.c.b16 %v3668, %v3667
      %v3970 = vpack.c.b16 %v3670, %v3669
      %v3971 = vpack.c.b16 %v3672, %v3671
      %v3972 = vpack.c.b16 %v3674, %v3673
      %v3973 = vpack.c.b16 %v3676, %v3675
      %v3974 = vpack.c.b16 %v3678, %v3677
      %v3975 = vpack.c.b16 %v3680, %v3679
      %v3976 = vpack.c.b16 %v3682, %v3681
      %v3977 = vpack.c.b16 %v3684, %v3683
      %v3978 = vpack.c.b16 %v3686, %v3685
      %v3979 = vpack.c.b16 %v3688, %v3687
      %v3980 = vpack.c.b16 %v3690, %v3689
      %v3981 = vpack.c.b16 %v3692, %v3691
      %v3982 = vpack.c.b16 %v3694, %v3693
      %v3983 = vpack.c.b16 %v3696, %v3695
      %v3984 = vpack.c.b16 %v3698, %v3697
      %v3985 = vpack.c.b16 %v3700, %v3699
      %v3986 = vpack.c.b16 %v3702, %v3701
      %v3987 = vpack.c.b16 %v3704, %v3703
      %v3988 = vpack.c.b16 %v3706, %v3705
      %v3989 = vpack.c.b16 %v3708, %v3707
      %v3990 = vpack.c.b16 %v3710, %v3709
      %v3991 = vpack.c.b16 %v3712, %v3711
      %v3992 = vpack.c.b16 %v3714, %v3713
      %v3993 = vpack.c.b16 %v3716, %v3715
      %v3994 = vpack.c.b16 %v3718, %v3717
      %v3995 = vpack.c.b16 %v3720, %v3719
      %v3996 = vpack.c.b16 %v3722, %v3721
      %v3997 = vpack.c.b16 %v3724, %v3723
      %v3998 = vpack.c.b16 %v3726, %v3725
      %v3999 = vpack.c.b16 %v3728, %v3727
      %v4000 = vpack.c.b16 %v3730, %v3729
      %v4001 = vpack.c.b16 %v3732, %v3731
      %v4002 = vpack.c.b16 %v3734, %v3733
      %v4003 = vpack.c.b16 %v3736, %v3735
      %v4004 = vpack.c.b16 %v3738, %v3737
      %v4005 = vpack.c.b16 %v3740, %v3739
      %v4006 = vpack.c.b16 %v3742, %v3741
      %v4007 = vpack.c.b16 %v3744, %v3743
      %v4008 = vpack.c.b16 %v3746, %v3745
      %v4009 = vpack.c.b16 %v3748, %v3747
      %v4010 = vpack.c.b16 %v3750, %v3749
      %v4011 = vpack.c.b16 %v3752, %v3751
      %v4012 = vpack.c.b16 %v3754, %v3753
      %v4013 = vpack.c.b16 %v3756, %v3755
      %v4014 = vpack.c.b16 %v3758, %v3757
      %v4015 = vpack.c.b16 %v3760, %v3759
      %v4016 = vpack.c.b16 %v3762, %v3761
      %v4017 = vpack.c.b16 %v3764, %v3763
      %v4018 = vpack.c.b16 %v3766, %v3765
      %v4019 = vpack.c.b16 %v3768, %v3767
      %v4020 = vpack.c.b16 %v3770, %v3769
      %v4021 = vpack.c.b16 %v3772, %v3771
      %v4022 = vpack.c.b16 %v3774, %v3773
      %v4023 = vpack.c.b16 %v3776, %v3775
      %v4024 = vpack.c.b16 %v3778, %v3777
      %v4025 = vpack.c.b16 %v3780, %v3779
      %v4026 = vpack.c.b16 %v3782, %v3781
      %v4027 = vpack.c.b16 %v3784, %v3783
      %v4028 = vpack.c.b16 %v3786, %v3785
      %v4029 = vpack.c.b16 %v3788, %v3787
      %v4030 = vpack.c.b16 %v3790, %v3789
      %v4031 = vpack.c.b16 %v3792, %v3791
      %v4032 = vpack.c.b16 %v3794, %v3793
      %v4033 = vpack.c.b16 %v3796, %v3795
      %v4034 = vpack.c.b16 %v3798, %v3797
      %v4035 = vpack.c.b16 %v3800, %v3799
      %v4036 = vpack.c.b16 %v3802, %v3801
      %v4037 = vpack.c.b16 %v3804, %v3803
      %v4038 = vpack.c.b16 %v3806, %v3805
      %v4039 = vpack.c.b16 %v3808, %v3807
      %v4040 = vpack.c.b16 %v3810, %v3809
      %v4041 = vpack.c.b16 %v3812, %v3811
      %v4042 = vpack.c.b16 %v3814, %v3813
      %v4043 = vpack.c.b16 %v3816, %v3815
      %v4044 = vpack.c.b16 %v3818, %v3817
      %v4045 = vpack.c.b16 %v3820, %v3819
      %v4046 = vpack.c.b16 %v3822, %v3821
      %v4047 = vpack.c.b16 %v3824, %v3823
      %v4048 = vpack.c.b16 %v3826, %v3825
      %v4049 = vpack.c.b16 %v3828, %v3827
      %v4050 = vpack.c.b16 %v3830, %v3829
      %v4051 = vpack.c.b16 %v3832, %v3831
      %v4052 = vpack.c.b16 %v3834, %v3833
      %v4053 = vpack.c.b16 %v3836, %v3835
      %v4054 = vpack.c.b16 %v3838, %v3837
      %v4055 = vpack.c.b16 %v3840, %v3839
      %v4056 = vpack.c.b16 %v3842, %v3841
      %v4057 = vpack.c.b16 %v3844, %v3843
      %v4058 = vpack.c.b16 %v3846, %v3845
      %v4059 = vpack.c.b16 %v3848, %v3847
      %v4060 = vpack.c.b16 %v3850, %v3849
      %v4061 = vpack.c.b16 %v3852, %v3851
      %v4062 = vpack.c.b16 %v3854, %v3853
      %v4063 = vpack.c.b16 %v3856, %v3855
      %v4064 = vpack.c.b16 %v3858, %v3857
      %v4065 = vpack.c.b16 %v3860, %v3859
      %v4066 = vpack.c.b16 %v3862, %v3861
      %v4067 = vpack.c.b16 %v3864, %v3863
      %v4068 = vpack.c.b16 %v3866, %v3865
      %v4069 = vpack.c.b16 %v3868, %v3867
      %v4070 = vpack.c.b16 %v3870, %v3869
      %v4071 = vpack.c.b16 %v3872, %v3871
      %v4072 = vpack.c.b16 %v3874, %v3873
      %v4073 = vpack.c.b16 %v3876, %v3875
      %v4074 = vpack.c.b16 %v3878, %v3877
      %4271 = vmatpush.bf16.msra.mxu0 %v3886
      %4272 = vmatpush.bf16.msra.mxu0 %v3885
      %4273 = vmatpush.bf16.msra.mxu0 %v3884
      %4274 = vmatpush.bf16.msra.mxu0 %v3883
      %4275 = vmatpush.bf16.msra.mxu0 %v3882
      %4276 = vmatpush.bf16.msra.mxu0 %v3881
      %4277 = vmatpush.bf16.msra.mxu0 %v3880
      %4278 = vmatpush.bf16.msra.mxu0 %v3879
      %4279 = vmatmul.bf16.gmra.mxu0 %v819
      %v4280 = vpop.f32.mrf.mxu0
      %v4281 = vadd.f32 0.0, %v4280
      %v4282 = vpop.f32.mrf.mxu0
      %v4283 = vadd.f32 0.0, %v4282
      %4284 = vmatmul.bf16.gmra.mxu0 %v844
      %v4285 = vpop.f32.mrf.mxu0
      %v4286 = vadd.f32 0.0, %v4285
      %v4287 = vpop.f32.mrf.mxu0
      %v4288 = vadd.f32 0.0, %v4287
      %4289 = vmatmul.bf16.gmra.mxu0 %v869
      %v4290 = vpop.f32.mrf.mxu0
      %v4291 = vpop.f32.mrf.mxu0
      %4292 = vdwg.mxu0
      %4293 = vmatpush.bf16.msra.mxu0 %v3894
      %4294 = vmatpush.bf16.msra.mxu0 %v3893
      %4295 = vmatpush.bf16.msra.mxu0 %v3892
      %4296 = vmatpush.bf16.msra.mxu0 %v3891
      %4297 = vmatpush.bf16.msra.mxu0 %v3890
      %4298 = vmatpush.bf16.msra.mxu0 %v3889
      %4299 = vmatpush.bf16.msra.mxu0 %v3888
      %4300 = vmatpush.bf16.msra.mxu0 %v3887
      %4301 = vmatmul.bf16.gmra.mxu0 %v820
      %v4302 = vpop.f32.mrf.mxu0
      %v4303 = vadd.f32 %v4281, %v4302
      %v4304 = vpop.f32.mrf.mxu0
      %v4305 = vadd.f32 %v4283, %v4304
      %4306 = vmatmul.bf16.gmra.mxu0 %v845
      %v4307 = vpop.f32.mrf.mxu0
      %v4308 = vadd.f32 %v4286, %v4307
      %v4309 = vpop.f32.mrf.mxu0
      %v4310 = vadd.f32 %v4288, %v4309
      %4311 = vmatmul.bf16.gmra.mxu0 %v870
      %v4312 = vpop.f32.mrf.mxu0
      %v4313 = vpop.f32.mrf.mxu0
      %4314 = vdwg.mxu0
      %4315 = vmatpush.bf16.msra.mxu0 %v3902
      %4316 = vmatpush.bf16.msra.mxu0 %v3901
      %4317 = vmatpush.bf16.msra.mxu0 %v3900
      %4318 = vmatpush.bf16.msra.mxu0 %v3899
      %4319 = vmatpush.bf16.msra.mxu0 %v3898
      %4320 = vmatpush.bf16.msra.mxu0 %v3897
      %4321 = vmatpush.bf16.msra.mxu0 %v3896
      %4322 = vmatpush.bf16.msra.mxu0 %v3895
      %4323 = vmatmul.bf16.gmra.mxu0 %v821
      %v4324 = vpop.f32.mrf.mxu0
      %v4325 = vadd.f32 %v4303, %v4324
      %v4326 = vpop.f32.mrf.mxu0
      %v4327 = vadd.f32 %v4305, %v4326
      %4328 = vmatmul.bf16.gmra.mxu0 %v846
      %v4329 = vpop.f32.mrf.mxu0
      %v4330 = vadd.f32 %v4308, %v4329
      %v4331 = vpop.f32.mrf.mxu0
      %v4332 = vadd.f32 %v4310, %v4331
      %4333 = vmatmul.bf16.gmra.mxu0 %v871
      %v4334 = vpop.f32.mrf.mxu0
      %v4335 = vpop.f32.mrf.mxu0
      %4336 = vdwg.mxu0
      %4337 = vmatpush.bf16.msra.mxu0 %v3910
      %4338 = vmatpush.bf16.msra.mxu0 %v3909
      %4339 = vmatpush.bf16.msra.mxu0 %v3908
      %4340 = vmatpush.bf16.msra.mxu0 %v3907
      %4341 = vmatpush.bf16.msra.mxu0 %v3906
      %4342 = vmatpush.bf16.msra.mxu0 %v3905
      %4343 = vmatpush.bf16.msra.mxu0 %v3904
      %4344 = vmatpush.bf16.msra.mxu0 %v3903
      %4345 = vmatmul.bf16.gmra.mxu0 %v822
      %v4346 = vpop.f32.mrf.mxu0
      %v4347 = vadd.f32 %v4325, %v4346
      %v4348 = vpop.f32.mrf.mxu0
      %v4349 = vadd.f32 %v4327, %v4348
      %4350 = vmatmul.bf16.gmra.mxu0 %v847
      %v4351 = vpop.f32.mrf.mxu0
      %v4352 = vadd.f32 %v4330, %v4351
      %v4353 = vpop.f32.mrf.mxu0
      %v4354 = vadd.f32 %v4332, %v4353
      %4355 = vmatmul.bf16.gmra.mxu0 %v872
      %v4356 = vpop.f32.mrf.mxu0
      %v4357 = vpop.f32.mrf.mxu0
      %4358 = vdwg.mxu0
      %4359 = vmatpush.bf16.msra.mxu0 %v3918
      %4360 = vmatpush.bf16.msra.mxu0 %v3917
      %4361 = vmatpush.bf16.msra.mxu0 %v3916
      %4362 = vmatpush.bf16.msra.mxu0 %v3915
      %4363 = vmatpush.bf16.msra.mxu0 %v3914
      %4364 = vmatpush.bf16.msra.mxu0 %v3913
      %4365 = vmatpush.bf16.msra.mxu0 %v3912
      %4366 = vmatpush.bf16.msra.mxu0 %v3911
      %4367 = vmatmul.bf16.gmra.mxu0 %v823
      %v4368 = vpop.f32.mrf.mxu0
      %v4369 = vadd.f32 %v4347, %v4368
      %v4370 = vpop.f32.mrf.mxu0
      %v4371 = vadd.f32 %v4349, %v4370
      %4372 = vmatmul.bf16.gmra.mxu0 %v848
      %v4373 = vpop.f32.mrf.mxu0
      %v4374 = vadd.f32 %v4352, %v4373
      %v4375 = vpop.f32.mrf.mxu0
      %v4376 = vadd.f32 %v4354, %v4375
      %4377 = vmatmul.bf16.gmra.mxu0 %v873
      %v4378 = vpop.f32.mrf.mxu0
      %v4379 = vpop.f32.mrf.mxu0
      %4380 = vdwg.mxu0
      %4381 = vmatpush.bf16.msra.mxu0 %v3926
      %4382 = vmatpush.bf16.msra.mxu0 %v3925
      %4383 = vmatpush.bf16.msra.mxu0 %v3924
      %4384 = vmatpush.bf16.msra.mxu0 %v3923
      %4385 = vmatpush.bf16.msra.mxu0 %v3922
      %4386 = vmatpush.bf16.msra.mxu0 %v3921
      %4387 = vmatpush.bf16.msra.mxu0 %v3920
      %4388 = vmatpush.bf16.msra.mxu0 %v3919
      %4389 = vmatmul.bf16.gmra.mxu0 %v824
      %v4390 = vpop.f32.mrf.mxu0
      %v4391 = vadd.f32 %v4369, %v4390
      %v4392 = vpop.f32.mrf.mxu0
      %v4393 = vadd.f32 %v4371, %v4392
      %4394 = vmatmul.bf16.gmra.mxu0 %v849
      %v4395 = vpop.f32.mrf.mxu0
      %v4396 = vadd.f32 %v4374, %v4395
      %v4397 = vpop.f32.mrf.mxu0
      %v4398 = vadd.f32 %v4376, %v4397
      %4399 = vmatmul.bf16.gmra.mxu0 %v874
      %v4400 = vpop.f32.mrf.mxu0
      %v4401 = vpop.f32.mrf.mxu0
      %4402 = vdwg.mxu0
      %4403 = vmatpush.bf16.msra.mxu0 %v3934
      %4404 = vmatpush.bf16.msra.mxu0 %v3933
      %4405 = vmatpush.bf16.msra.mxu0 %v3932
      %4406 = vmatpush.bf16.msra.mxu0 %v3931
      %4407 = vmatpush.bf16.msra.mxu0 %v3930
      %4408 = vmatpush.bf16.msra.mxu0 %v3929
      %4409 = vmatpush.bf16.msra.mxu0 %v3928
      %4410 = vmatpush.bf16.msra.mxu0 %v3927
      %4411 = vmatmul.bf16.gmra.mxu0 %v825
      %v4412 = vpop.f32.mrf.mxu0
      %v4413 = vadd.f32 %v4391, %v4412
      %v4414 = vpop.f32.mrf.mxu0
      %v4415 = vadd.f32 %v4393, %v4414
      %4416 = vmatmul.bf16.gmra.mxu0 %v850
      %v4417 = vpop.f32.mrf.mxu0
      %v4418 = vadd.f32 %v4396, %v4417
      %v4419 = vpop.f32.mrf.mxu0
      %v4420 = vadd.f32 %v4398, %v4419
      %4421 = vmatmul.bf16.gmra.mxu0 %v875
      %v4422 = vpop.f32.mrf.mxu0
      %v4423 = vpop.f32.mrf.mxu0
      %4424 = vdwg.mxu0
      %4425 = vmatpush.bf16.msra.mxu0 %v3942
      %4426 = vmatpush.bf16.msra.mxu0 %v3941
      %4427 = vmatpush.bf16.msra.mxu0 %v3940
      %4428 = vmatpush.bf16.msra.mxu0 %v3939
      %4429 = vmatpush.bf16.msra.mxu0 %v3938
      %4430 = vmatpush.bf16.msra.mxu0 %v3937
      %4431 = vmatpush.bf16.msra.mxu0 %v3936
      %4432 = vmatpush.bf16.msra.mxu0 %v3935
      %4433 = vmatmul.bf16.gmra.mxu0 %v826
      %v4434 = vpop.f32.mrf.mxu0
      %v4435 = vadd.f32 %v4413, %v4434
      %v4436 = vpop.f32.mrf.mxu0
      %v4437 = vadd.f32 %v4415, %v4436
      %4438 = vmatmul.bf16.gmra.mxu0 %v851
      %v4439 = vpop.f32.mrf.mxu0
      %v4440 = vadd.f32 %v4418, %v4439
      %v4441 = vpop.f32.mrf.mxu0
      %v4442 = vadd.f32 %v4420, %v4441
      %4443 = vmatmul.bf16.gmra.mxu0 %v876
      %v4444 = vpop.f32.mrf.mxu0
      %v4445 = vpop.f32.mrf.mxu0
      %4446 = vdwg.mxu0
      %4447 = vmatpush.bf16.msra.mxu0 %v3950
      %4448 = vmatpush.bf16.msra.mxu0 %v3949
      %4449 = vmatpush.bf16.msra.mxu0 %v3948
      %4450 = vmatpush.bf16.msra.mxu0 %v3947
      %4451 = vmatpush.bf16.msra.mxu0 %v3946
      %4452 = vmatpush.bf16.msra.mxu0 %v3945
      %4453 = vmatpush.bf16.msra.mxu0 %v3944
      %4454 = vmatpush.bf16.msra.mxu0 %v3943
      %4455 = vmatmul.bf16.gmra.mxu0 %v827
      %v4456 = vpop.f32.mrf.mxu0
      %v4457 = vadd.f32 %v4435, %v4456
      %v4458 = vpop.f32.mrf.mxu0
      %v4459 = vadd.f32 %v4437, %v4458
      %4460 = vmatmul.bf16.gmra.mxu0 %v852
      %v4461 = vpop.f32.mrf.mxu0
      %v4462 = vadd.f32 %v4440, %v4461
      %v4463 = vpop.f32.mrf.mxu0
      %v4464 = vadd.f32 %v4442, %v4463
      %4465 = vmatmul.bf16.gmra.mxu0 %v877
      %v4466 = vpop.f32.mrf.mxu0
      %v4467 = vpop.f32.mrf.mxu0
      %4468 = vdwg.mxu0
      %4469 = vmatpush.bf16.msra.mxu0 %v3958
      %4470 = vmatpush.bf16.msra.mxu0 %v3957
      %4471 = vmatpush.bf16.msra.mxu0 %v3956
      %4472 = vmatpush.bf16.msra.mxu0 %v3955
      %4473 = vmatpush.bf16.msra.mxu0 %v3954
      %4474 = vmatpush.bf16.msra.mxu0 %v3953
      %4475 = vmatpush.bf16.msra.mxu0 %v3952
      %4476 = vmatpush.bf16.msra.mxu0 %v3951
      %4477 = vmatmul.bf16.gmra.mxu0 %v828
      %v4478 = vpop.f32.mrf.mxu0
      %v4479 = vadd.f32 %v4457, %v4478
      %v4480 = vpop.f32.mrf.mxu0
      %v4481 = vadd.f32 %v4459, %v4480
      %4482 = vmatmul.bf16.gmra.mxu0 %v853
      %v4483 = vpop.f32.mrf.mxu0
      %v4484 = vadd.f32 %v4462, %v4483
      %v4485 = vpop.f32.mrf.mxu0
      %v4486 = vadd.f32 %v4464, %v4485
      %4487 = vmatmul.bf16.gmra.mxu0 %v878
      %v4488 = vpop.f32.mrf.mxu0
      %v4489 = vpop.f32.mrf.mxu0
      %4490 = vdwg.mxu0
      %4491 = vmatpush.bf16.msra.mxu0 %v3966
      %4492 = vmatpush.bf16.msra.mxu0 %v3965
      %4493 = vmatpush.bf16.msra.mxu0 %v3964
      %4494 = vmatpush.bf16.msra.mxu0 %v3963
      %4495 = vmatpush.bf16.msra.mxu0 %v3962
      %4496 = vmatpush.bf16.msra.mxu0 %v3961
      %4497 = vmatpush.bf16.msra.mxu0 %v3960
      %4498 = vmatpush.bf16.msra.mxu0 %v3959
      %4499 = vmatmul.bf16.gmra.mxu0 %v829
      %v4500 = vpop.f32.mrf.mxu0
      %v4501 = vadd.f32 %v4479, %v4500
      %v4502 = vpop.f32.mrf.mxu0
      %v4503 = vadd.f32 %v4481, %v4502
      %4504 = vmatmul.bf16.gmra.mxu0 %v854
      %v4505 = vpop.f32.mrf.mxu0
      %v4506 = vadd.f32 %v4484, %v4505
      %v4507 = vpop.f32.mrf.mxu0
      %v4508 = vadd.f32 %v4486, %v4507
      %4509 = vmatmul.bf16.gmra.mxu0 %v879
      %v4510 = vpop.f32.mrf.mxu0
      %v4511 = vpop.f32.mrf.mxu0
      %4512 = vdwg.mxu0
      %4513 = vmatpush.bf16.msra.mxu0 %v3974
      %4514 = vmatpush.bf16.msra.mxu0 %v3973
      %4515 = vmatpush.bf16.msra.mxu0 %v3972
      %4516 = vmatpush.bf16.msra.mxu0 %v3971
      %4517 = vmatpush.bf16.msra.mxu0 %v3970
      %4518 = vmatpush.bf16.msra.mxu0 %v3969
      %4519 = vmatpush.bf16.msra.mxu0 %v3968
      %4520 = vmatpush.bf16.msra.mxu0 %v3967
      %4521 = vmatmul.bf16.gmra.mxu0 %v830
      %v4522 = vpop.f32.mrf.mxu0
      %v4523 = vadd.f32 %v4501, %v4522
      %v4524 = vpop.f32.mrf.mxu0
      %v4525 = vadd.f32 %v4503, %v4524
      %4526 = vmatmul.bf16.gmra.mxu0 %v855
      %v4527 = vpop.f32.mrf.mxu0
      %v4528 = vadd.f32 %v4506, %v4527
      %v4529 = vpop.f32.mrf.mxu0
      %v4530 = vadd.f32 %v4508, %v4529
      %4531 = vmatmul.bf16.gmra.mxu0 %v880
      %v4532 = vpop.f32.mrf.mxu0
      %v4533 = vpop.f32.mrf.mxu0
      %4534 = vdwg.mxu0
      %4535 = vmatpush.bf16.msra.mxu0 %v3982
      %4536 = vmatpush.bf16.msra.mxu0 %v3981
      %4537 = vmatpush.bf16.msra.mxu0 %v3980
      %4538 = vmatpush.bf16.msra.mxu0 %v3979
      %4539 = vmatpush.bf16.msra.mxu0 %v3978
      %4540 = vmatpush.bf16.msra.mxu0 %v3977
      %4541 = vmatpush.bf16.msra.mxu0 %v3976
      %4542 = vmatpush.bf16.msra.mxu0 %v3975
      %4543 = vmatmul.bf16.gmra.mxu0 %v831
      %v4544 = vpop.f32.mrf.mxu0
      %v4545 = vadd.f32 %v4523, %v4544
      %v4546 = vpop.f32.mrf.mxu0
      %v4547 = vadd.f32 %v4525, %v4546
      %4548 = vmatmul.bf16.gmra.mxu0 %v856
      %v4549 = vpop.f32.mrf.mxu0
      %v4550 = vadd.f32 %v4528, %v4549
      %v4551 = vpop.f32.mrf.mxu0
      %v4552 = vadd.f32 %v4530, %v4551
      %4553 = vmatmul.bf16.gmra.mxu0 %v881
      %v4554 = vpop.f32.mrf.mxu0
      %v4555 = vpop.f32.mrf.mxu0
      %4556 = vdwg.mxu0
      %4557 = vmatpush.bf16.msra.mxu0 %v3990
      %4558 = vmatpush.bf16.msra.mxu0 %v3989
      %4559 = vmatpush.bf16.msra.mxu0 %v3988
      %4560 = vmatpush.bf16.msra.mxu0 %v3987
      %4561 = vmatpush.bf16.msra.mxu0 %v3986
      %4562 = vmatpush.bf16.msra.mxu0 %v3985
      %4563 = vmatpush.bf16.msra.mxu0 %v3984
      %4564 = vmatpush.bf16.msra.mxu0 %v3983
      %4565 = vmatmul.bf16.gmra.mxu0 %v832
      %v4566 = vpop.f32.mrf.mxu0
      %v4567 = vadd.f32 %v4545, %v4566
      %v4568 = vpop.f32.mrf.mxu0
      %v4569 = vadd.f32 %v4547, %v4568
      %4570 = vmatmul.bf16.gmra.mxu0 %v857
      %v4571 = vpop.f32.mrf.mxu0
      %v4572 = vadd.f32 %v4550, %v4571
      %v4573 = vpop.f32.mrf.mxu0
      %v4574 = vadd.f32 %v4552, %v4573
      %4575 = vmatmul.bf16.gmra.mxu0 %v882
      %v4576 = vpop.f32.mrf.mxu0
      %v4577 = vpop.f32.mrf.mxu0
      %4578 = vdwg.mxu0
      %4579 = vmatpush.bf16.msra.mxu0 %v3998
      %4580 = vmatpush.bf16.msra.mxu0 %v3997
      %4581 = vmatpush.bf16.msra.mxu0 %v3996
      %4582 = vmatpush.bf16.msra.mxu0 %v3995
      %4583 = vmatpush.bf16.msra.mxu0 %v3994
      %4584 = vmatpush.bf16.msra.mxu0 %v3993
      %4585 = vmatpush.bf16.msra.mxu0 %v3992
      %4586 = vmatpush.bf16.msra.mxu0 %v3991
      %4587 = vmatmul.bf16.gmra.mxu0 %v833
      %v4588 = vpop.f32.mrf.mxu0
      %v4589 = vadd.f32 %v4567, %v4588
      %v4590 = vpop.f32.mrf.mxu0
      %v4591 = vadd.f32 %v4569, %v4590
      %4592 = vmatmul.bf16.gmra.mxu0 %v858
      %v4593 = vpop.f32.mrf.mxu0
      %v4594 = vadd.f32 %v4572, %v4593
      %v4595 = vpop.f32.mrf.mxu0
      %v4596 = vadd.f32 %v4574, %v4595
      %4597 = vmatmul.bf16.gmra.mxu0 %v883
      %v4598 = vpop.f32.mrf.mxu0
      %v4599 = vpop.f32.mrf.mxu0
      %4600 = vdwg.mxu0
      %4601 = vmatpush.bf16.msra.mxu0 %v4006
      %4602 = vmatpush.bf16.msra.mxu0 %v4005
      %4603 = vmatpush.bf16.msra.mxu0 %v4004
      %4604 = vmatpush.bf16.msra.mxu0 %v4003
      %4605 = vmatpush.bf16.msra.mxu0 %v4002
      %4606 = vmatpush.bf16.msra.mxu0 %v4001
      %4607 = vmatpush.bf16.msra.mxu0 %v4000
      %4608 = vmatpush.bf16.msra.mxu0 %v3999
      %4609 = vmatmul.bf16.gmra.mxu0 %v834
      %v4610 = vpop.f32.mrf.mxu0
      %v4611 = vadd.f32 %v4589, %v4610
      %v4612 = vpop.f32.mrf.mxu0
      %v4613 = vadd.f32 %v4591, %v4612
      %4614 = vmatmul.bf16.gmra.mxu0 %v859
      %v4615 = vpop.f32.mrf.mxu0
      %v4616 = vadd.f32 %v4594, %v4615
      %v4617 = vpop.f32.mrf.mxu0
      %v4618 = vadd.f32 %v4596, %v4617
      %4619 = vmatmul.bf16.gmra.mxu0 %v884
      %v4620 = vpop.f32.mrf.mxu0
      %v4621 = vpop.f32.mrf.mxu0
      %4622 = vdwg.mxu0
      %4623 = vmatpush.bf16.msra.mxu0 %v4014
      %4624 = vmatpush.bf16.msra.mxu0 %v4013
      %4625 = vmatpush.bf16.msra.mxu0 %v4012
      %4626 = vmatpush.bf16.msra.mxu0 %v4011
      %4627 = vmatpush.bf16.msra.mxu0 %v4010
      %4628 = vmatpush.bf16.msra.mxu0 %v4009
      %4629 = vmatpush.bf16.msra.mxu0 %v4008
      %4630 = vmatpush.bf16.msra.mxu0 %v4007
      %4631 = vmatmul.bf16.gmra.mxu0 %v835
      %v4632 = vpop.f32.mrf.mxu0
      %v4633 = vadd.f32 %v4611, %v4632
      %v4634 = vpop.f32.mrf.mxu0
      %v4635 = vadd.f32 %v4613, %v4634
      %4636 = vmatmul.bf16.gmra.mxu0 %v860
      %v4637 = vpop.f32.mrf.mxu0
      %v4638 = vadd.f32 %v4616, %v4637
      %v4639 = vpop.f32.mrf.mxu0
      %v4640 = vadd.f32 %v4618, %v4639
      %4641 = vmatmul.bf16.gmra.mxu0 %v885
      %v4642 = vpop.f32.mrf.mxu0
      %v4643 = vpop.f32.mrf.mxu0
      %4644 = vdwg.mxu0
      %4645 = vmatpush.bf16.msra.mxu0 %v4022
      %4646 = vmatpush.bf16.msra.mxu0 %v4021
      %4647 = vmatpush.bf16.msra.mxu0 %v4020
      %4648 = vmatpush.bf16.msra.mxu0 %v4019
      %4649 = vmatpush.bf16.msra.mxu0 %v4018
      %4650 = vmatpush.bf16.msra.mxu0 %v4017
      %4651 = vmatpush.bf16.msra.mxu0 %v4016
      %4652 = vmatpush.bf16.msra.mxu0 %v4015
      %4653 = vmatmul.bf16.gmra.mxu0 %v836
      %v4654 = vpop.f32.mrf.mxu0
      %v4655 = vadd.f32 %v4633, %v4654
      %v4656 = vpop.f32.mrf.mxu0
      %v4657 = vadd.f32 %v4635, %v4656
      %4658 = vmatmul.bf16.gmra.mxu0 %v861
      %v4659 = vpop.f32.mrf.mxu0
      %v4660 = vadd.f32 %v4638, %v4659
      %v4661 = vpop.f32.mrf.mxu0
      %v4662 = vadd.f32 %v4640, %v4661
      %4663 = vmatmul.bf16.gmra.mxu0 %v886
      %v4664 = vpop.f32.mrf.mxu0
      %v4665 = vpop.f32.mrf.mxu0
      %4666 = vdwg.mxu0
      %4667 = vmatpush.bf16.msra.mxu0 %v4030
      %4668 = vmatpush.bf16.msra.mxu0 %v4029
      %4669 = vmatpush.bf16.msra.mxu0 %v4028
      %4670 = vmatpush.bf16.msra.mxu0 %v4027
      %4671 = vmatpush.bf16.msra.mxu0 %v4026
      %4672 = vmatpush.bf16.msra.mxu0 %v4025
      %4673 = vmatpush.bf16.msra.mxu0 %v4024
      %4674 = vmatpush.bf16.msra.mxu0 %v4023
      %4675 = vmatmul.bf16.gmra.mxu0 %v837
      %v4676 = vpop.f32.mrf.mxu0
      %v4677 = vadd.f32 %v4655, %v4676
      %v4678 = vpop.f32.mrf.mxu0
      %v4679 = vadd.f32 %v4657, %v4678
      %4680 = vmatmul.bf16.gmra.mxu0 %v862
      %v4681 = vpop.f32.mrf.mxu0
      %v4682 = vadd.f32 %v4660, %v4681
      %v4683 = vpop.f32.mrf.mxu0
      %v4684 = vadd.f32 %v4662, %v4683
      %4685 = vmatmul.bf16.gmra.mxu0 %v887
      %v4686 = vpop.f32.mrf.mxu0
      %v4687 = vpop.f32.mrf.mxu0
      %4688 = vdwg.mxu0
      %4689 = vmatpush.bf16.msra.mxu0 %v4038
      %4690 = vmatpush.bf16.msra.mxu0 %v4037
      %4691 = vmatpush.bf16.msra.mxu0 %v4036
      %4692 = vmatpush.bf16.msra.mxu0 %v4035
      %4693 = vmatpush.bf16.msra.mxu0 %v4034
      %4694 = vmatpush.bf16.msra.mxu0 %v4033
      %4695 = vmatpush.bf16.msra.mxu0 %v4032
      %4696 = vmatpush.bf16.msra.mxu0 %v4031
      %4697 = vmatmul.bf16.gmra.mxu0 %v838
      %v4698 = vpop.f32.mrf.mxu0
      %v4699 = vadd.f32 %v4677, %v4698
      %v4700 = vpop.f32.mrf.mxu0
      %v4701 = vadd.f32 %v4679, %v4700
      %4702 = vmatmul.bf16.gmra.mxu0 %v863
      %v4703 = vpop.f32.mrf.mxu0
      %v4704 = vadd.f32 %v4682, %v4703
      %v4705 = vpop.f32.mrf.mxu0
      %v4706 = vadd.f32 %v4684, %v4705
      %4707 = vmatmul.bf16.gmra.mxu0 %v888
      %v4708 = vpop.f32.mrf.mxu0
      %v4709 = vpop.f32.mrf.mxu0
      %4710 = vdwg.mxu0
      %4711 = vmatpush.bf16.msra.mxu0 %v4046
      %4712 = vmatpush.bf16.msra.mxu0 %v4045
      %4713 = vmatpush.bf16.msra.mxu0 %v4044
      %4714 = vmatpush.bf16.msra.mxu0 %v4043
      %4715 = vmatpush.bf16.msra.mxu0 %v4042
      %4716 = vmatpush.bf16.msra.mxu0 %v4041
      %4717 = vmatpush.bf16.msra.mxu0 %v4040
      %4718 = vmatpush.bf16.msra.mxu0 %v4039
      %4719 = vmatmul.bf16.gmra.mxu0 %v839
      %v4720 = vpop.f32.mrf.mxu0
      %v4721 = vadd.f32 %v4699, %v4720
      %v4722 = vpop.f32.mrf.mxu0
      %v4723 = vadd.f32 %v4701, %v4722
      %4724 = vmatmul.bf16.gmra.mxu0 %v864
      %v4725 = vpop.f32.mrf.mxu0
      %v4726 = vadd.f32 %v4704, %v4725
      %v4727 = vpop.f32.mrf.mxu0
      %v4728 = vadd.f32 %v4706, %v4727
      %4729 = vmatmul.bf16.gmra.mxu0 %v889
      %v4730 = vpop.f32.mrf.mxu0
      %v4731 = vpop.f32.mrf.mxu0
      %4732 = vdwg.mxu0
      %4733 = vmatpush.bf16.msra.mxu0 %v4054
      %4734 = vmatpush.bf16.msra.mxu0 %v4053
      %4735 = vmatpush.bf16.msra.mxu0 %v4052
      %4736 = vmatpush.bf16.msra.mxu0 %v4051
      %4737 = vmatpush.bf16.msra.mxu0 %v4050
      %4738 = vmatpush.bf16.msra.mxu0 %v4049
      %4739 = vmatpush.bf16.msra.mxu0 %v4048
      %4740 = vmatpush.bf16.msra.mxu0 %v4047
      %4741 = vmatmul.bf16.gmra.mxu0 %v840
      %v4742 = vpop.f32.mrf.mxu0
      %v4743 = vadd.f32 %v4721, %v4742
      %v4744 = vpop.f32.mrf.mxu0
      %v4745 = vadd.f32 %v4723, %v4744
      %4746 = vmatmul.bf16.gmra.mxu0 %v865
      %v4747 = vpop.f32.mrf.mxu0
      %v4748 = vadd.f32 %v4726, %v4747
      %v4749 = vpop.f32.mrf.mxu0
      %v4750 = vadd.f32 %v4728, %v4749
      %4751 = vmatmul.bf16.gmra.mxu0 %v890
      %v4752 = vpop.f32.mrf.mxu0
      %v4753 = vpop.f32.mrf.mxu0
      %4754 = vdwg.mxu0
      %4755 = vmatpush.bf16.msra.mxu0 %v4062
      %4756 = vmatpush.bf16.msra.mxu0 %v4061
      %4757 = vmatpush.bf16.msra.mxu0 %v4060
      %4758 = vmatpush.bf16.msra.mxu0 %v4059
      %4759 = vmatpush.bf16.msra.mxu0 %v4058
      %4760 = vmatpush.bf16.msra.mxu0 %v4057
      %4761 = vmatpush.bf16.msra.mxu0 %v4056
      %4762 = vmatpush.bf16.msra.mxu0 %v4055
      %4763 = vmatmul.bf16.gmra.mxu0 %v841
      %v4764 = vpop.f32.mrf.mxu0
      %v4765 = vadd.f32 %v4743, %v4764
      %v4766 = vpop.f32.mrf.mxu0
      %v4767 = vadd.f32 %v4745, %v4766
      %4768 = vmatmul.bf16.gmra.mxu0 %v866
      %v4769 = vpop.f32.mrf.mxu0
      %v4770 = vadd.f32 %v4748, %v4769
      %v4771 = vpop.f32.mrf.mxu0
      %v4772 = vadd.f32 %v4750, %v4771
      %4773 = vmatmul.bf16.gmra.mxu0 %v891
      %v4774 = vpop.f32.mrf.mxu0
      %v4775 = vpop.f32.mrf.mxu0
      %4776 = vdwg.mxu0
      %4777 = vmatpush.bf16.msra.mxu0 %v4070
      %4778 = vmatpush.bf16.msra.mxu0 %v4069
      %4779 = vmatpush.bf16.msra.mxu0 %v4068
      %4780 = vmatpush.bf16.msra.mxu0 %v4067
      %4781 = vmatpush.bf16.msra.mxu0 %v4066
      %4782 = vmatpush.bf16.msra.mxu0 %v4065
      %4783 = vmatpush.bf16.msra.mxu0 %v4064
      %4784 = vmatpush.bf16.msra.mxu0 %v4063
      %4785 = vmatmul.bf16.gmra.mxu0 %v842
      %v4786 = vpop.f32.mrf.mxu0
      %v4787 = vadd.f32 %v4765, %v4786
      %v4788 = vpop.f32.mrf.mxu0
      %v4789 = vadd.f32 %v4767, %v4788
      %4790 = vmatmul.bf16.gmra.mxu0 %v867
      %v4791 = vpop.f32.mrf.mxu0
      %v4792 = vadd.f32 %v4770, %v4791
      %v4793 = vpop.f32.mrf.mxu0
      %v4794 = vadd.f32 %v4772, %v4793
      %4795 = vmatmul.bf16.gmra.mxu0 %v892
      %v4796 = vpop.f32.mrf.mxu0
      %v4797 = vpop.f32.mrf.mxu0
      %4798 = vdwg.mxu0
      %4799 = vmatpush.bf16.msra.mxu0 0
      %4800 = vmatpush.bf16.msra.mxu0 0
      %4801 = vmatpush.bf16.msra.mxu0 0
      %4802 = vmatpush.bf16.msra.mxu0 0
      %4803 = vmatpush.bf16.msra.mxu0 %v4074
      %4804 = vmatpush.bf16.msra.mxu0 %v4073
      %4805 = vmatpush.bf16.msra.mxu0 %v4072
      %4806 = vmatpush.bf16.msra.mxu0 %v4071
      %4807 = vmatmul.bf16.gmra.mxu0 %v2144
      %v4808 = vpop.f32.mrf.mxu0
      %v4809 = vadd.f32 %v4787, %v4808
      %v4810 = vpop.f32.mrf.mxu0
      %v4811 = vadd.f32 %v4789, %v4810
      %4812 = vmatmul.bf16.gmra.mxu0 %v2147
      %v4813 = vpop.f32.mrf.mxu0
      %v4814 = vadd.f32 %v4792, %v4813
      %v4815 = vpop.f32.mrf.mxu0
      %v4816 = vadd.f32 %v4794, %v4815
      %4817 = vmatmul.bf16.gmra.mxu0 %v2150
      %v4818 = vpop.f32.mrf.mxu0
      %v4819 = vpop.f32.mrf.mxu0
      %4820 = vdwg.mxu0
      %vm4825 = vcmask 1046528
      %v4826 = vrot.slane %v4809, 1
      %v4827 = vrot.slane %v4811, 1
      %v4828 = vsel %vm4825, %v4826, %v4827
      %v4829 = vrot.slane %v4814, 1
      %v4830 = vsel %vm4825, %v4827, %v4829
      %v4831 = vrot.slane %v4816, 1
      %v4832 = vsel %vm4825, %v4829, %v4831
      %v4837 = vadd.f32 %v2690, %v4828
      %v4838 = vadd.f32 %v2692, %v4830
      %v4839 = vadd.f32 %v2695, %v4832
      %v4840 = vadd.f32 %v2697, %v4831
      %s4841 = scalar_lea.vmem %s1, 3136
      %v4842 = vld [vmem:[%s4841] sm:$0xf]
      %v4843 = vld [vmem:[%s4841 + $0x4] sm:$0xf]
      %v4844 = vld [vmem:[%s4841 + $0x8] sm:$0xf]
      %v4845 = vld [vmem:[%s4841 + $0xc] sm:$0xf]
      %v4846 = vld [vmem:[%s4841 + $0x10] sm:$0xf]
      %v4847 = vld [vmem:[%s4841 + $0x14] sm:$0xf]
      %v4848 = vld [vmem:[%s4841 + $0x18] sm:$0xf]
      %v4849 = vld [vmem:[%s4841 + $0x1c] sm:$0xf]
      %v4850 = vld [vmem:[%s4841 + $0x20] sm:$0xf]
      %v4851 = vld [vmem:[%s4841 + $0x24] sm:$0xf]
      %v4852 = vld [vmem:[%s4841 + $0x28] sm:$0xf]
      %v4853 = vld [vmem:[%s4841 + $0x2c] sm:$0xf]
      %v4854 = vld [vmem:[%s4841 + $0x30] sm:$0xf]
      %v4855 = vld [vmem:[%s4841 + $0x34] sm:$0xf]
      %v4856 = vld [vmem:[%s4841 + $0x38] sm:$0xf]
      %v4857 = vld [vmem:[%s4841 + $0x3c] sm:$0xf]
      %v4858 = vld [vmem:[%s4841 + $0x40] sm:$0xf]
      %v4859 = vld [vmem:[%s4841 + $0x44] sm:$0xf]
      %v4860 = vld [vmem:[%s4841 + $0x48] sm:$0xf]
      %v4861 = vld [vmem:[%s4841 + $0x4c] sm:$0xf]
      %v4862 = vld [vmem:[%s4841 + $0x50] sm:$0xf]
      %v4863 = vld [vmem:[%s4841 + $0x54] sm:$0xf]
      %v4864 = vld [vmem:[%s4841 + $0x58] sm:$0xf]
      %v4865 = vld [vmem:[%s4841 + $0x5c] sm:$0xf]
      %v4866 = vld [vmem:[%s4841 + $0x60] sm:$0xf]
      %v4867 = vld [vmem:[%s4841 + $0x64] sm:$0xf]
      %v4868 = vld [vmem:[%s4841 + $0x68] sm:$0xf]
      %v4869 = vld [vmem:[%s4841 + $0x6c] sm:$0xf]
      %v4870 = vld [vmem:[%s4841 + $0x70] sm:$0xf]
      %v4871 = vld [vmem:[%s4841 + $0x74] sm:$0xf]
      %v4872 = vld [vmem:[%s4841 + $0x78] sm:$0xf]
      %v4873 = vld [vmem:[%s4841 + $0x7c] sm:$0xf]
      %v4874 = vld [vmem:[%s4841 + $0x80] sm:$0xf]
      %v4875 = vld [vmem:[%s4841 + $0x84] sm:$0xf]
      %v4876 = vld [vmem:[%s4841 + $0x88] sm:$0xf]
      %v4877 = vld [vmem:[%s4841 + $0x8c] sm:$0xf]
      %v4878 = vld [vmem:[%s4841 + $0x90] sm:$0xf]
      %v4879 = vld [vmem:[%s4841 + $0x94] sm:$0xf]
      %v4880 = vld [vmem:[%s4841 + $0x98] sm:$0xf]
      %v4881 = vld [vmem:[%s4841 + $0x9c] sm:$0xf]
      %v4882 = vld [vmem:[%s4841 + $0xa0] sm:$0xf]
      %v4883 = vld [vmem:[%s4841 + $0xa4] sm:$0xf]
      %v4884 = vld [vmem:[%s4841 + $0xa8] sm:$0xf]
      %v4885 = vld [vmem:[%s4841 + $0xac] sm:$0xf]
      %v4886 = vld [vmem:[%s4841 + $0xb0] sm:$0xf]
      %v4887 = vld [vmem:[%s4841 + $0xb4] sm:$0xf]
      %v4888 = vld [vmem:[%s4841 + $0xb8] sm:$0xf]
      %v4889 = vld [vmem:[%s4841 + $0xbc] sm:$0xf]
      %v4890 = vld [vmem:[%s4841 + $0xc0] sm:$0xf]
      %v4891 = vld [vmem:[%s4841 + $0xc4] sm:$0xf]
      %v4892 = vld [vmem:[%s4841 + $0xc8] sm:$0xf]
      %v4893 = vld [vmem:[%s4841 + $0xcc] sm:$0xf]
      %v4894 = vld [vmem:[%s4841 + $0xd0] sm:$0xf]
      %v4895 = vld [vmem:[%s4841 + $0xd4] sm:$0xf]
      %v4896 = vld [vmem:[%s4841 + $0xd8] sm:$0xf]
      %v4897 = vld [vmem:[%s4841 + $0xdc] sm:$0xf]
      %v4898 = vld [vmem:[%s4841 + $0xe0] sm:$0xf]
      %v4899 = vld [vmem:[%s4841 + $0xe4] sm:$0xf]
      %v4900 = vld [vmem:[%s4841 + $0xe8] sm:$0xf]
      %v4901 = vld [vmem:[%s4841 + $0xec] sm:$0xf]
      %v4902 = vld [vmem:[%s4841 + $0xf0] sm:$0xf]
      %v4903 = vld [vmem:[%s4841 + $0xf4] sm:$0xf]
      %v4904 = vld [vmem:[%s4841 + $0xf8] sm:$0xf]
      %v4905 = vld [vmem:[%s4841 + $0xfc] sm:$0xf]
      %v4906 = vld [vmem:[%s4841 + $0x100] sm:$0xf]
      %v4907 = vld [vmem:[%s4841 + $0x104] sm:$0xf]
      %v4908 = vld [vmem:[%s4841 + $0x108] sm:$0xf]
      %v4909 = vld [vmem:[%s4841 + $0x10c] sm:$0xf]
      %v4910 = vld [vmem:[%s4841 + $0x110] sm:$0xf]
      %v4911 = vld [vmem:[%s4841 + $0x114] sm:$0xf]
      %v4912 = vld [vmem:[%s4841 + $0x118] sm:$0xf]
      %v4913 = vld [vmem:[%s4841 + $0x11c] sm:$0xf]
      %v4914 = vld [vmem:[%s4841 + $0x120] sm:$0xf]
      %v4915 = vld [vmem:[%s4841 + $0x124] sm:$0xf]
      %v4916 = vld [vmem:[%s4841 + $0x128] sm:$0xf]
      %v4917 = vld [vmem:[%s4841 + $0x12c] sm:$0xf]
      %v4918 = vld [vmem:[%s4841 + $0x130] sm:$0xf]
      %v4919 = vld [vmem:[%s4841 + $0x134] sm:$0xf]
      %v4920 = vld [vmem:[%s4841 + $0x138] sm:$0xf]
      %v4921 = vld [vmem:[%s4841 + $0x13c] sm:$0xf]
      %v4922 = vld [vmem:[%s4841 + $0x140] sm:$0xf]
      %v4923 = vld [vmem:[%s4841 + $0x144] sm:$0xf]
      %v4924 = vld [vmem:[%s4841 + $0x148] sm:$0xf]
      %v4925 = vld [vmem:[%s4841 + $0x14c] sm:$0xf]
      %v4926 = vld [vmem:[%s4841 + $0x150] sm:$0xf]
      %v4927 = vld [vmem:[%s4841 + $0x154] sm:$0xf]
      %v4928 = vld [vmem:[%s4841 + $0x158] sm:$0xf]
      %v4929 = vld [vmem:[%s4841 + $0x15c] sm:$0xf]
      %v4930 = vld [vmem:[%s4841 + $0x160] sm:$0xf]
      %v4931 = vld [vmem:[%s4841 + $0x164] sm:$0xf]
      %v4932 = vld [vmem:[%s4841 + $0x168] sm:$0xf]
      %v4933 = vld [vmem:[%s4841 + $0x16c] sm:$0xf]
      %v4934 = vld [vmem:[%s4841 + $0x170] sm:$0xf]
      %v4935 = vld [vmem:[%s4841 + $0x174] sm:$0xf]
      %v4936 = vld [vmem:[%s4841 + $0x178] sm:$0xf]
      %v4937 = vld [vmem:[%s4841 + $0x17c] sm:$0xf]
      %v4938 = vld [vmem:[%s4841 + $0x180] sm:$0xf]
      %v4939 = vld [vmem:[%s4841 + $0x184] sm:$0xf]
      %v4940 = vld [vmem:[%s4841 + $0x188] sm:$0xf]
      %v4941 = vld [vmem:[%s4841 + $0x18c] sm:$0xf]
      %v4942 = vld [vmem:[%s4841 + $0x190] sm:$0xf]
      %v4943 = vld [vmem:[%s4841 + $0x194] sm:$0xf]
      %v4944 = vld [vmem:[%s4841 + $0x198] sm:$0xf]
      %v4945 = vld [vmem:[%s4841 + $0x19c] sm:$0xf]
      %v4946 = vld [vmem:[%s4841 + $0x1a0] sm:$0xf]
      %v4947 = vld [vmem:[%s4841 + $0x1a4] sm:$0xf]
      %v4948 = vld [vmem:[%s4841 + $0x1a8] sm:$0xf]
      %v4949 = vld [vmem:[%s4841 + $0x1ac] sm:$0xf]
      %v4950 = vld [vmem:[%s4841 + $0x1b0] sm:$0xf]
      %v4951 = vld [vmem:[%s4841 + $0x1b4] sm:$0xf]
      %v4952 = vld [vmem:[%s4841 + $0x1b8] sm:$0xf]
      %v4953 = vld [vmem:[%s4841 + $0x1bc] sm:$0xf]
      %v4954 = vld [vmem:[%s4841 + $0x1c0] sm:$0xf]
      %v4955 = vld [vmem:[%s4841 + $0x1c4] sm:$0xf]
      %v4956 = vld [vmem:[%s4841 + $0x1c8] sm:$0xf]
      %v4957 = vld [vmem:[%s4841 + $0x1cc] sm:$0xf]
      %v4958 = vld [vmem:[%s4841 + $0x1d0] sm:$0xf]
      %v4959 = vld [vmem:[%s4841 + $0x1d4] sm:$0xf]
      %v4960 = vld [vmem:[%s4841 + $0x1d8] sm:$0xf]
      %v4961 = vld [vmem:[%s4841 + $0x1dc] sm:$0xf]
      %v4962 = vld [vmem:[%s4841 + $0x1e0] sm:$0xf]
      %v4963 = vld [vmem:[%s4841 + $0x1e4] sm:$0xf]
      %v4964 = vld [vmem:[%s4841 + $0x1e8] sm:$0xf]
      %v4965 = vld [vmem:[%s4841 + $0x1ec] sm:$0xf]
      %v4966 = vld [vmem:[%s4841 + $0x1f0] sm:$0xf]
      %v4967 = vld [vmem:[%s4841 + $0x1f4] sm:$0xf]
      %v4968 = vld [vmem:[%s4841 + $0x1f8] sm:$0xf]
      %v4969 = vld [vmem:[%s4841 + $0x1fc] sm:$0xf]
      %v4970 = vld [vmem:[%s4841 + $0x200] sm:$0xf]
      %v4971 = vld [vmem:[%s4841 + $0x204] sm:$0xf]
      %v4972 = vld [vmem:[%s4841 + $0x208] sm:$0xf]
      %v4973 = vld [vmem:[%s4841 + $0x20c] sm:$0xf]
      %v4974 = vld [vmem:[%s4841 + $0x210] sm:$0xf]
      %v4975 = vld [vmem:[%s4841 + $0x214] sm:$0xf]
      %v4976 = vld [vmem:[%s4841 + $0x218] sm:$0xf]
      %v4977 = vld [vmem:[%s4841 + $0x21c] sm:$0xf]
      %v4978 = vld [vmem:[%s4841 + $0x220] sm:$0xf]
      %v4979 = vld [vmem:[%s4841 + $0x224] sm:$0xf]
      %v4980 = vld [vmem:[%s4841 + $0x228] sm:$0xf]
      %v4981 = vld [vmem:[%s4841 + $0x22c] sm:$0xf]
      %v4982 = vld [vmem:[%s4841 + $0x230] sm:$0xf]
      %v4983 = vld [vmem:[%s4841 + $0x234] sm:$0xf]
      %v4984 = vld [vmem:[%s4841 + $0x238] sm:$0xf]
      %v4985 = vld [vmem:[%s4841 + $0x23c] sm:$0xf]
      %v4986 = vld [vmem:[%s4841 + $0x240] sm:$0xf]
      %v4987 = vld [vmem:[%s4841 + $0x244] sm:$0xf]
      %v4988 = vld [vmem:[%s4841 + $0x248] sm:$0xf]
      %v4989 = vld [vmem:[%s4841 + $0x24c] sm:$0xf]
      %v4990 = vld [vmem:[%s4841 + $0x250] sm:$0xf]
      %v4991 = vld [vmem:[%s4841 + $0x254] sm:$0xf]
      %v4992 = vld [vmem:[%s4841 + $0x258] sm:$0xf]
      %v4993 = vld [vmem:[%s4841 + $0x25c] sm:$0xf]
      %v4994 = vld [vmem:[%s4841 + $0x260] sm:$0xf]
      %v4995 = vld [vmem:[%s4841 + $0x264] sm:$0xf]
      %v4996 = vld [vmem:[%s4841 + $0x268] sm:$0xf]
      %v4997 = vld [vmem:[%s4841 + $0x26c] sm:$0xf]
      %v4998 = vld [vmem:[%s4841 + $0x270] sm:$0xf]
      %v4999 = vld [vmem:[%s4841 + $0x274] sm:$0xf]
      %v5000 = vld [vmem:[%s4841 + $0x278] sm:$0xf]
      %v5001 = vld [vmem:[%s4841 + $0x27c] sm:$0xf]
      %v5002 = vld [vmem:[%s4841 + $0x280] sm:$0xf]
      %v5003 = vld [vmem:[%s4841 + $0x284] sm:$0xf]
      %v5004 = vld [vmem:[%s4841 + $0x288] sm:$0xf]
      %v5005 = vld [vmem:[%s4841 + $0x28c] sm:$0xf]
      %v5006 = vld [vmem:[%s4841 + $0x290] sm:$0xf]
      %v5007 = vld [vmem:[%s4841 + $0x294] sm:$0xf]
      %v5008 = vld [vmem:[%s4841 + $0x298] sm:$0xf]
      %v5009 = vld [vmem:[%s4841 + $0x29c] sm:$0xf]
      %v5010 = vld [vmem:[%s4841 + $0x2a0] sm:$0xf]
      %v5011 = vld [vmem:[%s4841 + $0x2a4] sm:$0xf]
      %v5012 = vld [vmem:[%s4841 + $0x2a8] sm:$0xf]
      %v5013 = vld [vmem:[%s4841 + $0x2ac] sm:$0xf]
      %v5014 = vld [vmem:[%s4841 + $0x2b0] sm:$0xf]
      %v5015 = vld [vmem:[%s4841 + $0x2b4] sm:$0xf]
      %v5016 = vld [vmem:[%s4841 + $0x2b8] sm:$0xf]
      %v5017 = vld [vmem:[%s4841 + $0x2bc] sm:$0xf]
      %v5018 = vld [vmem:[%s4841 + $0x2c0] sm:$0xf]
      %v5019 = vld [vmem:[%s4841 + $0x2c4] sm:$0xf]
      %v5020 = vld [vmem:[%s4841 + $0x2c8] sm:$0xf]
      %v5021 = vld [vmem:[%s4841 + $0x2cc] sm:$0xf]
      %v5022 = vld [vmem:[%s4841 + $0x2d0] sm:$0xf]
      %v5023 = vld [vmem:[%s4841 + $0x2d4] sm:$0xf]
      %v5024 = vld [vmem:[%s4841 + $0x2d8] sm:$0xf]
      %v5025 = vld [vmem:[%s4841 + $0x2dc] sm:$0xf]
      %v5026 = vld [vmem:[%s4841 + $0x2e0] sm:$0xf]
      %v5027 = vld [vmem:[%s4841 + $0x2e4] sm:$0xf]
      %v5028 = vld [vmem:[%s4841 + $0x2e8] sm:$0xf]
      %v5029 = vld [vmem:[%s4841 + $0x2ec] sm:$0xf]
      %v5030 = vld [vmem:[%s4841 + $0x2f0] sm:$0xf]
      %v5031 = vld [vmem:[%s4841 + $0x2f4] sm:$0xf]
      %v5032 = vld [vmem:[%s4841 + $0x2f8] sm:$0xf]
      %v5033 = vld [vmem:[%s4841 + $0x2fc] sm:$0xf]
      %v5034 = vld [vmem:[%s4841 + $0x300] sm:$0xf]
      %v5035 = vld [vmem:[%s4841 + $0x304] sm:$0xf]
      %v5036 = vld [vmem:[%s4841 + $0x308] sm:$0xf]
      %v5037 = vld [vmem:[%s4841 + $0x30c] sm:$0xf]
      %v5038 = vld [vmem:[%s4841 + $0x310] sm:$0xf]
      %v5039 = vld [vmem:[%s4841 + $0x314] sm:$0xf]
      %v5040 = vld [vmem:[%s4841 + $0x318] sm:$0xf]
      %v5041 = vld [vmem:[%s4841 + $0x31c] sm:$0xf]
      %v5042 = vld [vmem:[%s4841 + $0x320] sm:$0xf]
      %v5043 = vld [vmem:[%s4841 + $0x324] sm:$0xf]
      %v5044 = vld [vmem:[%s4841 + $0x328] sm:$0xf]
      %v5045 = vld [vmem:[%s4841 + $0x32c] sm:$0xf]
      %v5046 = vld [vmem:[%s4841 + $0x330] sm:$0xf]
      %v5047 = vld [vmem:[%s4841 + $0x334] sm:$0xf]
      %v5048 = vld [vmem:[%s4841 + $0x338] sm:$0xf]
      %v5049 = vld [vmem:[%s4841 + $0x33c] sm:$0xf]
      %v5050 = vld [vmem:[%s4841 + $0x340] sm:$0xf]
      %v5051 = vld [vmem:[%s4841 + $0x344] sm:$0xf]
      %v5052 = vld [vmem:[%s4841 + $0x348] sm:$0xf]
      %v5053 = vld [vmem:[%s4841 + $0x34c] sm:$0xf]
      %v5054 = vld [vmem:[%s4841 + $0x350] sm:$0xf]
      %v5055 = vld [vmem:[%s4841 + $0x354] sm:$0xf]
      %v5056 = vld [vmem:[%s4841 + $0x358] sm:$0xf]
      %v5057 = vld [vmem:[%s4841 + $0x35c] sm:$0xf]
      %v5058 = vld [vmem:[%s4841 + $0x360] sm:$0xf]
      %v5059 = vld [vmem:[%s4841 + $0x364] sm:$0xf]
      %v5060 = vld [vmem:[%s4841 + $0x368] sm:$0xf]
      %v5061 = vld [vmem:[%s4841 + $0x36c] sm:$0xf]
      %v5062 = vld [vmem:[%s4841 + $0x370] sm:$0xf]
      %v5063 = vld [vmem:[%s4841 + $0x374] sm:$0xf]
      %v5064 = vld [vmem:[%s4841 + $0x378] sm:$0xf]
      %v5065 = vld [vmem:[%s4841 + $0x37c] sm:$0xf]
      %v5066 = vld [vmem:[%s4841 + $0x380] sm:$0xf]
      %v5067 = vld [vmem:[%s4841 + $0x384] sm:$0xf]
      %v5068 = vld [vmem:[%s4841 + $0x388] sm:$0xf]
      %v5069 = vld [vmem:[%s4841 + $0x38c] sm:$0xf]
      %v5070 = vld [vmem:[%s4841 + $0x390] sm:$0xf]
      %v5071 = vld [vmem:[%s4841 + $0x394] sm:$0xf]
      %v5072 = vld [vmem:[%s4841 + $0x398] sm:$0xf]
      %v5073 = vld [vmem:[%s4841 + $0x39c] sm:$0xf]
      %v5074 = vld [vmem:[%s4841 + $0x3a0] sm:$0xf]
      %v5075 = vld [vmem:[%s4841 + $0x3a4] sm:$0xf]
      %v5076 = vld [vmem:[%s4841 + $0x3a8] sm:$0xf]
      %v5077 = vld [vmem:[%s4841 + $0x3ac] sm:$0xf]
      %v5078 = vld [vmem:[%s4841 + $0x3b0] sm:$0xf]
      %v5079 = vld [vmem:[%s4841 + $0x3b4] sm:$0xf]
      %v5080 = vld [vmem:[%s4841 + $0x3b8] sm:$0xf]
      %v5081 = vld [vmem:[%s4841 + $0x3bc] sm:$0xf]
      %v5082 = vld [vmem:[%s4841 + $0x3c0] sm:$0xf]
      %v5083 = vld [vmem:[%s4841 + $0x3c4] sm:$0xf]
      %v5084 = vld [vmem:[%s4841 + $0x3c8] sm:$0xf]
      %v5085 = vld [vmem:[%s4841 + $0x3cc] sm:$0xf]
      %v5086 = vld [vmem:[%s4841 + $0x3d0] sm:$0xf]
      %v5087 = vld [vmem:[%s4841 + $0x3d4] sm:$0xf]
      %v5088 = vld [vmem:[%s4841 + $0x3d8] sm:$0xf]
      %v5089 = vld [vmem:[%s4841 + $0x3dc] sm:$0xf]
      %v5090 = vld [vmem:[%s4841 + $0x3e0] sm:$0xf]
      %v5091 = vld [vmem:[%s4841 + $0x3e4] sm:$0xf]
      %v5092 = vld [vmem:[%s4841 + $0x3e8] sm:$0xf]
      %v5093 = vld [vmem:[%s4841 + $0x3ec] sm:$0xf]
      %v5094 = vld [vmem:[%s4841 + $0x3f0] sm:$0xf]
      %v5095 = vld [vmem:[%s4841 + $0x3f4] sm:$0xf]
      %v5096 = vld [vmem:[%s4841 + $0x3f8] sm:$0xf]
      %v5097 = vld [vmem:[%s4841 + $0x3fc] sm:$0xf]
      %v5098 = vld [vmem:[%s4841 + $0x400] sm:$0xf]
      %v5099 = vld [vmem:[%s4841 + $0x404] sm:$0xf]
      %v5100 = vld [vmem:[%s4841 + $0x408] sm:$0xf]
      %v5101 = vld [vmem:[%s4841 + $0x40c] sm:$0xf]
      %v5102 = vld [vmem:[%s4841 + $0x410] sm:$0xf]
      %v5103 = vld [vmem:[%s4841 + $0x414] sm:$0xf]
      %v5104 = vld [vmem:[%s4841 + $0x418] sm:$0xf]
      %v5105 = vld [vmem:[%s4841 + $0x41c] sm:$0xf]
      %v5106 = vld [vmem:[%s4841 + $0x420] sm:$0xf]
      %v5107 = vld [vmem:[%s4841 + $0x424] sm:$0xf]
      %v5108 = vld [vmem:[%s4841 + $0x428] sm:$0xf]
      %v5109 = vld [vmem:[%s4841 + $0x42c] sm:$0xf]
      %v5110 = vld [vmem:[%s4841 + $0x430] sm:$0xf]
      %v5111 = vld [vmem:[%s4841 + $0x434] sm:$0xf]
      %v5112 = vld [vmem:[%s4841 + $0x438] sm:$0xf]
      %v5113 = vld [vmem:[%s4841 + $0x43c] sm:$0xf]
      %v5114 = vld [vmem:[%s4841 + $0x440] sm:$0xf]
      %v5115 = vld [vmem:[%s4841 + $0x444] sm:$0xf]
      %v5116 = vld [vmem:[%s4841 + $0x448] sm:$0xf]
      %v5117 = vld [vmem:[%s4841 + $0x44c] sm:$0xf]
      %v5118 = vld [vmem:[%s4841 + $0x450] sm:$0xf]
      %v5119 = vld [vmem:[%s4841 + $0x454] sm:$0xf]
      %v5120 = vld [vmem:[%s4841 + $0x458] sm:$0xf]
      %v5121 = vld [vmem:[%s4841 + $0x45c] sm:$0xf]
      %v5122 = vld [vmem:[%s4841 + $0x460] sm:$0xf]
      %v5123 = vld [vmem:[%s4841 + $0x464] sm:$0xf]
      %v5124 = vld [vmem:[%s4841 + $0x468] sm:$0xf]
      %v5125 = vld [vmem:[%s4841 + $0x46c] sm:$0xf]
      %v5126 = vld [vmem:[%s4841 + $0x470] sm:$0xf]
      %v5127 = vld [vmem:[%s4841 + $0x474] sm:$0xf]
      %v5128 = vld [vmem:[%s4841 + $0x478] sm:$0xf]
      %v5129 = vld [vmem:[%s4841 + $0x47c] sm:$0xf]
      %v5130 = vld [vmem:[%s4841 + $0x480] sm:$0xf]
      %v5131 = vld [vmem:[%s4841 + $0x484] sm:$0xf]
      %v5132 = vld [vmem:[%s4841 + $0x488] sm:$0xf]
      %v5133 = vld [vmem:[%s4841 + $0x48c] sm:$0xf]
      %v5134 = vld [vmem:[%s4841 + $0x490] sm:$0xf]
      %v5135 = vld [vmem:[%s4841 + $0x494] sm:$0xf]
      %v5136 = vld [vmem:[%s4841 + $0x498] sm:$0xf]
      %v5137 = vld [vmem:[%s4841 + $0x49c] sm:$0xf]
      %v5138 = vld [vmem:[%s4841 + $0x4a0] sm:$0xf]
      %v5139 = vld [vmem:[%s4841 + $0x4a4] sm:$0xf]
      %v5140 = vld [vmem:[%s4841 + $0x4a8] sm:$0xf]
      %v5141 = vld [vmem:[%s4841 + $0x4ac] sm:$0xf]
      %v5142 = vld [vmem:[%s4841 + $0x4b0] sm:$0xf]
      %v5143 = vld [vmem:[%s4841 + $0x4b4] sm:$0xf]
      %v5144 = vld [vmem:[%s4841 + $0x4b8] sm:$0xf]
      %v5145 = vld [vmem:[%s4841 + $0x4bc] sm:$0xf]
      %v5146 = vld [vmem:[%s4841 + $0x4c0] sm:$0xf]
      %v5147 = vld [vmem:[%s4841 + $0x4c4] sm:$0xf]
      %v5148 = vld [vmem:[%s4841 + $0x4c8] sm:$0xf]
      %v5149 = vld [vmem:[%s4841 + $0x4cc] sm:$0xf]
      %v5150 = vld [vmem:[%s4841 + $0x4d0] sm:$0xf]
      %v5151 = vld [vmem:[%s4841 + $0x4d4] sm:$0xf]
      %v5152 = vld [vmem:[%s4841 + $0x4d8] sm:$0xf]
      %v5153 = vld [vmem:[%s4841 + $0x4dc] sm:$0xf]
      %v5154 = vld [vmem:[%s4841 + $0x4e0] sm:$0xf]
      %v5155 = vld [vmem:[%s4841 + $0x4e4] sm:$0xf]
      %v5156 = vld [vmem:[%s4841 + $0x4e8] sm:$0xf]
      %v5157 = vld [vmem:[%s4841 + $0x4ec] sm:$0xf]
      %v5158 = vld [vmem:[%s4841 + $0x4f0] sm:$0xf]
      %v5159 = vld [vmem:[%s4841 + $0x4f4] sm:$0xf]
      %v5160 = vld [vmem:[%s4841 + $0x4f8] sm:$0xf]
      %v5161 = vld [vmem:[%s4841 + $0x4fc] sm:$0xf]
      %v5162 = vld [vmem:[%s4841 + $0x500] sm:$0xf]
      %v5163 = vld [vmem:[%s4841 + $0x504] sm:$0xf]
      %v5164 = vld [vmem:[%s4841 + $0x508] sm:$0xf]
      %v5165 = vld [vmem:[%s4841 + $0x50c] sm:$0xf]
      %v5166 = vld [vmem:[%s4841 + $0x510] sm:$0xf]
      %v5167 = vld [vmem:[%s4841 + $0x514] sm:$0xf]
      %v5168 = vld [vmem:[%s4841 + $0x518] sm:$0xf]
      %v5169 = vld [vmem:[%s4841 + $0x51c] sm:$0xf]
      %v5170 = vld [vmem:[%s4841 + $0x520] sm:$0xf]
      %v5171 = vld [vmem:[%s4841 + $0x524] sm:$0xf]
      %v5172 = vld [vmem:[%s4841 + $0x528] sm:$0xf]
      %v5173 = vld [vmem:[%s4841 + $0x52c] sm:$0xf]
      %v5174 = vld [vmem:[%s4841 + $0x530] sm:$0xf]
      %v5175 = vld [vmem:[%s4841 + $0x534] sm:$0xf]
      %v5176 = vld [vmem:[%s4841 + $0x538] sm:$0xf]
      %v5177 = vld [vmem:[%s4841 + $0x53c] sm:$0xf]
      %v5178 = vld [vmem:[%s4841 + $0x540] sm:$0xf]
      %v5179 = vld [vmem:[%s4841 + $0x544] sm:$0xf]
      %v5180 = vld [vmem:[%s4841 + $0x548] sm:$0xf]
      %v5181 = vld [vmem:[%s4841 + $0x54c] sm:$0xf]
      %v5182 = vld [vmem:[%s4841 + $0x550] sm:$0xf]
      %v5183 = vld [vmem:[%s4841 + $0x554] sm:$0xf]
      %v5184 = vld [vmem:[%s4841 + $0x558] sm:$0xf]
      %v5185 = vld [vmem:[%s4841 + $0x55c] sm:$0xf]
      %v5186 = vld [vmem:[%s4841 + $0x560] sm:$0xf]
      %v5187 = vld [vmem:[%s4841 + $0x564] sm:$0xf]
      %v5188 = vld [vmem:[%s4841 + $0x568] sm:$0xf]
      %v5189 = vld [vmem:[%s4841 + $0x56c] sm:$0xf]
      %v5190 = vld [vmem:[%s4841 + $0x570] sm:$0xf]
      %v5191 = vld [vmem:[%s4841 + $0x574] sm:$0xf]
      %v5192 = vld [vmem:[%s4841 + $0x578] sm:$0xf]
      %v5193 = vld [vmem:[%s4841 + $0x57c] sm:$0xf]
      %v5194 = vld [vmem:[%s4841 + $0x580] sm:$0xf]
      %v5195 = vld [vmem:[%s4841 + $0x584] sm:$0xf]
      %v5196 = vld [vmem:[%s4841 + $0x588] sm:$0xf]
      %v5197 = vld [vmem:[%s4841 + $0x58c] sm:$0xf]
      %v5198 = vld [vmem:[%s4841 + $0x590] sm:$0xf]
      %v5199 = vld [vmem:[%s4841 + $0x594] sm:$0xf]
      %v5200 = vld [vmem:[%s4841 + $0x598] sm:$0xf]
      %v5201 = vld [vmem:[%s4841 + $0x59c] sm:$0xf]
      %v5202 = vld [vmem:[%s4841 + $0x5a0] sm:$0xf]
      %v5203 = vld [vmem:[%s4841 + $0x5a4] sm:$0xf]
      %v5204 = vld [vmem:[%s4841 + $0x5a8] sm:$0xf]
      %v5205 = vld [vmem:[%s4841 + $0x5ac] sm:$0xf]
      %v5206 = vld [vmem:[%s4841 + $0x5b0] sm:$0xf]
      %v5207 = vld [vmem:[%s4841 + $0x5b4] sm:$0xf]
      %v5208 = vld [vmem:[%s4841 + $0x5b8] sm:$0xf]
      %v5209 = vld [vmem:[%s4841 + $0x5bc] sm:$0xf]
      %v5210 = vld [vmem:[%s4841 + $0x5c0] sm:$0xf]
      %v5211 = vld [vmem:[%s4841 + $0x5c4] sm:$0xf]
      %v5212 = vld [vmem:[%s4841 + $0x5c8] sm:$0xf]
      %v5213 = vld [vmem:[%s4841 + $0x5cc] sm:$0xf]
      %v5214 = vld [vmem:[%s4841 + $0x5d0] sm:$0xf]
      %v5215 = vld [vmem:[%s4841 + $0x5d4] sm:$0xf]
      %v5216 = vld [vmem:[%s4841 + $0x5d8] sm:$0xf]
      %v5217 = vld [vmem:[%s4841 + $0x5dc] sm:$0xf]
      %v5218 = vld [vmem:[%s4841 + $0x5e0] sm:$0xf]
      %v5219 = vld [vmem:[%s4841 + $0x5e4] sm:$0xf]
      %v5220 = vld [vmem:[%s4841 + $0x5e8] sm:$0xf]
      %v5221 = vld [vmem:[%s4841 + $0x5ec] sm:$0xf]
      %v5222 = vld [vmem:[%s4841 + $0x5f0] sm:$0xf]
      %v5223 = vld [vmem:[%s4841 + $0x5f4] sm:$0xf]
      %v5224 = vld [vmem:[%s4841 + $0x5f8] sm:$0xf]
      %v5225 = vld [vmem:[%s4841 + $0x5fc] sm:$0xf]
      %v5226 = vld [vmem:[%s4841 + $0x600] sm:$0xf]
      %v5227 = vld [vmem:[%s4841 + $0x604] sm:$0xf]
      %v5228 = vld [vmem:[%s4841 + $0x608] sm:$0xf]
      %v5229 = vld [vmem:[%s4841 + $0x60c] sm:$0xf]
      %v5230 = vld [vmem:[%s4841 + $0x610] sm:$0xf]
      %v5231 = vld [vmem:[%s4841 + $0x614] sm:$0xf]
      %v5232 = vld [vmem:[%s4841 + $0x618] sm:$0xf]
      %v5233 = vld [vmem:[%s4841 + $0x61c] sm:$0xf]
      %v5626 = vunpack.c.l.b16 %v4842
      %v5627 = vunpack.c.l.b16 %v4843
      %v5628 = vunpack.c.l.b16 %v4844
      %v5629 = vunpack.c.l.b16 %v4845
      %v5630 = vunpack.c.l.b16 %v4846
      %v5631 = vunpack.c.l.b16 %v4847
      %v5632 = vunpack.c.l.b16 %v4848
      %v5633 = vunpack.c.l.b16 %v4849
      %v5634 = vunpack.c.l.b16 %v4850
      %v5635 = vunpack.c.l.b16 %v4851
      %v5636 = vunpack.c.l.b16 %v4852
      %v5637 = vunpack.c.l.b16 %v4853
      %v5638 = vunpack.c.l.b16 %v4854
      %v5639 = vunpack.c.l.b16 %v4855
      %v5640 = vunpack.c.l.b16 %v4856
      %v5641 = vunpack.c.l.b16 %v4857
      %v5642 = vunpack.c.l.b16 %v4858
      %v5643 = vunpack.c.l.b16 %v4859
      %v5644 = vunpack.c.l.b16 %v4860
      %v5645 = vunpack.c.l.b16 %v4861
      %v5646 = vunpack.c.l.b16 %v4862
      %v5647 = vunpack.c.l.b16 %v4863
      %v5648 = vunpack.c.l.b16 %v4864
      %v5649 = vunpack.c.l.b16 %v4865
      %v5650 = vunpack.c.l.b16 %v4866
      %v5651 = vunpack.c.l.b16 %v4867
      %v5652 = vunpack.c.l.b16 %v4868
      %v5653 = vunpack.c.l.b16 %v4869
      %v5654 = vunpack.c.l.b16 %v4870
      %v5655 = vunpack.c.l.b16 %v4871
      %v5656 = vunpack.c.l.b16 %v4872
      %v5657 = vunpack.c.l.b16 %v4873
      %v5658 = vunpack.c.l.b16 %v4874
      %v5659 = vunpack.c.l.b16 %v4875
      %v5660 = vunpack.c.l.b16 %v4876
      %v5661 = vunpack.c.l.b16 %v4877
      %v5662 = vunpack.c.l.b16 %v4878
      %v5663 = vunpack.c.l.b16 %v4879
      %v5664 = vunpack.c.l.b16 %v4880
      %v5665 = vunpack.c.l.b16 %v4881
      %v5666 = vunpack.c.l.b16 %v4882
      %v5667 = vunpack.c.l.b16 %v4883
      %v5668 = vunpack.c.l.b16 %v4884
      %v5669 = vunpack.c.l.b16 %v4885
      %v5670 = vunpack.c.l.b16 %v4886
      %v5671 = vunpack.c.l.b16 %v4887
      %v5672 = vunpack.c.l.b16 %v4888
      %v5673 = vunpack.c.l.b16 %v4889
      %v5674 = vunpack.c.l.b16 %v4890
      %v5675 = vunpack.c.l.b16 %v4891
      %v5676 = vunpack.c.l.b16 %v4892
      %v5677 = vunpack.c.l.b16 %v4893
      %v5678 = vunpack.c.l.b16 %v4894
      %v5679 = vunpack.c.l.b16 %v4895
      %v5680 = vunpack.c.l.b16 %v4896
      %v5681 = vunpack.c.l.b16 %v4897
      %v5682 = vunpack.c.l.b16 %v4898
      %v5683 = vunpack.c.l.b16 %v4899
      %v5684 = vunpack.c.l.b16 %v4900
      %v5685 = vunpack.c.l.b16 %v4901
      %v5686 = vunpack.c.l.b16 %v4902
      %v5687 = vunpack.c.l.b16 %v4903
      %v5688 = vunpack.c.l.b16 %v4904
      %v5689 = vunpack.c.l.b16 %v4905
      %v5690 = vunpack.c.l.b16 %v4906
      %v5691 = vunpack.c.l.b16 %v4907
      %v5692 = vunpack.c.l.b16 %v4908
      %v5693 = vunpack.c.l.b16 %v4909
      %v5694 = vunpack.c.l.b16 %v4910
      %v5695 = vunpack.c.l.b16 %v4911
      %v5696 = vunpack.c.l.b16 %v4912
      %v5697 = vunpack.c.l.b16 %v4913
      %v5698 = vunpack.c.l.b16 %v4914
      %v5699 = vunpack.c.l.b16 %v4915
      %v5700 = vunpack.c.l.b16 %v4916
      %v5701 = vunpack.c.l.b16 %v4917
      %v5702 = vunpack.c.l.b16 %v4918
      %v5703 = vunpack.c.l.b16 %v4919
      %v5704 = vunpack.c.l.b16 %v4920
      %v5705 = vunpack.c.l.b16 %v4921
      %v5706 = vunpack.c.l.b16 %v4922
      %v5707 = vunpack.c.l.b16 %v4923
      %v5708 = vunpack.c.l.b16 %v4924
      %v5709 = vunpack.c.l.b16 %v4925
      %v5710 = vunpack.c.l.b16 %v4926
      %v5711 = vunpack.c.l.b16 %v4927
      %v5712 = vunpack.c.l.b16 %v4928
      %v5713 = vunpack.c.l.b16 %v4929
      %v5714 = vunpack.c.l.b16 %v4930
      %v5715 = vunpack.c.l.b16 %v4931
      %v5716 = vunpack.c.l.b16 %v4932
      %v5717 = vunpack.c.l.b16 %v4933
      %v5718 = vunpack.c.l.b16 %v4934
      %v5719 = vunpack.c.l.b16 %v4935
      %v5720 = vunpack.c.l.b16 %v4936
      %v5721 = vunpack.c.l.b16 %v4937
      %v5722 = vunpack.c.l.b16 %v4938
      %v5723 = vunpack.c.l.b16 %v4939
      %v5724 = vunpack.c.l.b16 %v4940
      %v5725 = vunpack.c.l.b16 %v4941
      %v5726 = vunpack.c.l.b16 %v4942
      %v5727 = vunpack.c.l.b16 %v4943
      %v5728 = vunpack.c.l.b16 %v4944
      %v5729 = vunpack.c.l.b16 %v4945
      %v5730 = vunpack.c.l.b16 %v4946
      %v5731 = vunpack.c.l.b16 %v4947
      %v5732 = vunpack.c.l.b16 %v4948
      %v5733 = vunpack.c.l.b16 %v4949
      %v5734 = vunpack.c.l.b16 %v4950
      %v5735 = vunpack.c.l.b16 %v4951
      %v5736 = vunpack.c.l.b16 %v4952
      %v5737 = vunpack.c.l.b16 %v4953
      %v5738 = vunpack.c.l.b16 %v4954
      %v5739 = vunpack.c.l.b16 %v4955
      %v5740 = vunpack.c.l.b16 %v4956
      %v5741 = vunpack.c.l.b16 %v4957
      %v5742 = vunpack.c.l.b16 %v4958
      %v5743 = vunpack.c.l.b16 %v4959
      %v5744 = vunpack.c.l.b16 %v4960
      %v5745 = vunpack.c.l.b16 %v4961
      %v5746 = vunpack.c.l.b16 %v4962
      %v5747 = vunpack.c.l.b16 %v4963
      %v5748 = vunpack.c.l.b16 %v4964
      %v5749 = vunpack.c.l.b16 %v4965
      %v5750 = vunpack.c.l.b16 %v4966
      %v5751 = vunpack.c.l.b16 %v4967
      %v5752 = vunpack.c.l.b16 %v4968
      %v5753 = vunpack.c.l.b16 %v4969
      %v5754 = vunpack.c.l.b16 %v4970
      %v5755 = vunpack.c.l.b16 %v4971
      %v5756 = vunpack.c.l.b16 %v4972
      %v5757 = vunpack.c.l.b16 %v4973
      %v5758 = vunpack.c.l.b16 %v4974
      %v5759 = vunpack.c.l.b16 %v4975
      %v5760 = vunpack.c.l.b16 %v4976
      %v5761 = vunpack.c.l.b16 %v4977
      %v5762 = vunpack.c.l.b16 %v4978
      %v5763 = vunpack.c.l.b16 %v4979
      %v5764 = vunpack.c.l.b16 %v4980
      %v5765 = vunpack.c.l.b16 %v4981
      %v5766 = vunpack.c.l.b16 %v4982
      %v5767 = vunpack.c.l.b16 %v4983
      %v5768 = vunpack.c.l.b16 %v4984
      %v5769 = vunpack.c.l.b16 %v4985
      %v5770 = vunpack.c.l.b16 %v4986
      %v5771 = vunpack.c.l.b16 %v4987
      %v5772 = vunpack.c.l.b16 %v4988
      %v5773 = vunpack.c.l.b16 %v4989
      %v5774 = vunpack.c.l.b16 %v4990
      %v5775 = vunpack.c.l.b16 %v4991
      %v5776 = vunpack.c.l.b16 %v4992
      %v5777 = vunpack.c.l.b16 %v4993
      %v5778 = vunpack.c.l.b16 %v4994
      %v5779 = vunpack.c.l.b16 %v4995
      %v5780 = vunpack.c.l.b16 %v4996
      %v5781 = vunpack.c.l.b16 %v4997
      %v5782 = vunpack.c.l.b16 %v4998
      %v5783 = vunpack.c.l.b16 %v4999
      %v5784 = vunpack.c.l.b16 %v5000
      %v5785 = vunpack.c.l.b16 %v5001
      %v5786 = vunpack.c.l.b16 %v5002
      %v5787 = vunpack.c.l.b16 %v5003
      %v5788 = vunpack.c.l.b16 %v5004
      %v5789 = vunpack.c.l.b16 %v5005
      %v5790 = vunpack.c.l.b16 %v5006
      %v5791 = vunpack.c.l.b16 %v5007
      %v5792 = vunpack.c.l.b16 %v5008
      %v5793 = vunpack.c.l.b16 %v5009
      %v5794 = vunpack.c.l.b16 %v5010
      %v5795 = vunpack.c.l.b16 %v5011
      %v5796 = vunpack.c.l.b16 %v5012
      %v5797 = vunpack.c.l.b16 %v5013
      %v5798 = vunpack.c.l.b16 %v5014
      %v5799 = vunpack.c.l.b16 %v5015
      %v5800 = vunpack.c.l.b16 %v5016
      %v5801 = vunpack.c.l.b16 %v5017
      %v5802 = vunpack.c.l.b16 %v5018
      %v5803 = vunpack.c.l.b16 %v5019
      %v5804 = vunpack.c.l.b16 %v5020
      %v5805 = vunpack.c.l.b16 %v5021
      %v5806 = vunpack.c.l.b16 %v5022
      %v5807 = vunpack.c.l.b16 %v5023
      %v5808 = vunpack.c.l.b16 %v5024
      %v5809 = vunpack.c.l.b16 %v5025
      %v5810 = vunpack.c.l.b16 %v5026
      %v5811 = vunpack.c.l.b16 %v5027
      %v5812 = vunpack.c.l.b16 %v5028
      %v5813 = vunpack.c.l.b16 %v5029
      %v5814 = vunpack.c.l.b16 %v5030
      %v5815 = vunpack.c.l.b16 %v5031
      %v5816 = vunpack.c.l.b16 %v5032
      %v5817 = vunpack.c.l.b16 %v5033
      %v5818 = vunpack.c.l.b16 %v5034
      %v5819 = vunpack.c.l.b16 %v5035
      %v5820 = vunpack.c.l.b16 %v5036
      %v5821 = vunpack.c.l.b16 %v5037
      %v5822 = vunpack.c.l.b16 %v5038
      %v5823 = vunpack.c.l.b16 %v5039
      %v5824 = vunpack.c.l.b16 %v5040
      %v5825 = vunpack.c.l.b16 %v5041
      %v5826 = vunpack.c.l.b16 %v5042
      %v5827 = vunpack.c.l.b16 %v5043
      %v5828 = vunpack.c.l.b16 %v5044
      %v5829 = vunpack.c.l.b16 %v5045
      %v5830 = vunpack.c.l.b16 %v5046
      %v5831 = vunpack.c.l.b16 %v5047
      %v5832 = vunpack.c.l.b16 %v5048
      %v5833 = vunpack.c.l.b16 %v5049
      %v5834 = vunpack.c.l.b16 %v5050
      %v5835 = vunpack.c.l.b16 %v5051
      %v5836 = vunpack.c.l.b16 %v5052
      %v5837 = vunpack.c.l.b16 %v5053
      %v5838 = vunpack.c.l.b16 %v5054
      %v5839 = vunpack.c.l.b16 %v5055
      %v5840 = vunpack.c.l.b16 %v5056
      %v5841 = vunpack.c.l.b16 %v5057
      %v5842 = vunpack.c.l.b16 %v5058
      %v5843 = vunpack.c.l.b16 %v5059
      %v5844 = vunpack.c.l.b16 %v5060
      %v5845 = vunpack.c.l.b16 %v5061
      %v5846 = vunpack.c.l.b16 %v5062
      %v5847 = vunpack.c.l.b16 %v5063
      %v5848 = vunpack.c.l.b16 %v5064
      %v5849 = vunpack.c.l.b16 %v5065
      %v5850 = vunpack.c.l.b16 %v5066
      %v5851 = vunpack.c.l.b16 %v5067
      %v5852 = vunpack.c.l.b16 %v5068
      %v5853 = vunpack.c.l.b16 %v5069
      %v5854 = vunpack.c.l.b16 %v5070
      %v5855 = vunpack.c.l.b16 %v5071
      %v5856 = vunpack.c.l.b16 %v5072
      %v5857 = vunpack.c.l.b16 %v5073
      %v5858 = vunpack.c.l.b16 %v5074
      %v5859 = vunpack.c.l.b16 %v5075
      %v5860 = vunpack.c.l.b16 %v5076
      %v5861 = vunpack.c.l.b16 %v5077
      %v5862 = vunpack.c.l.b16 %v5078
      %v5863 = vunpack.c.l.b16 %v5079
      %v5864 = vunpack.c.l.b16 %v5080
      %v5865 = vunpack.c.l.b16 %v5081
      %v5866 = vunpack.c.l.b16 %v5082
      %v5867 = vunpack.c.l.b16 %v5083
      %v5868 = vunpack.c.l.b16 %v5084
      %v5869 = vunpack.c.l.b16 %v5085
      %v5870 = vunpack.c.l.b16 %v5086
      %v5871 = vunpack.c.l.b16 %v5087
      %v5872 = vunpack.c.l.b16 %v5088
      %v5873 = vunpack.c.l.b16 %v5089
      %v5874 = vunpack.c.l.b16 %v5090
      %v5875 = vunpack.c.l.b16 %v5091
      %v5876 = vunpack.c.l.b16 %v5092
      %v5877 = vunpack.c.l.b16 %v5093
      %v5878 = vunpack.c.l.b16 %v5094
      %v5879 = vunpack.c.l.b16 %v5095
      %v5880 = vunpack.c.l.b16 %v5096
      %v5881 = vunpack.c.l.b16 %v5097
      %v5882 = vunpack.c.l.b16 %v5098
      %v5883 = vunpack.c.l.b16 %v5099
      %v5884 = vunpack.c.l.b16 %v5100
      %v5885 = vunpack.c.l.b16 %v5101
      %v5886 = vunpack.c.l.b16 %v5102
      %v5887 = vunpack.c.l.b16 %v5103
      %v5888 = vunpack.c.l.b16 %v5104
      %v5889 = vunpack.c.l.b16 %v5105
      %v5890 = vunpack.c.l.b16 %v5106
      %v5891 = vunpack.c.l.b16 %v5107
      %v5892 = vunpack.c.l.b16 %v5108
      %v5893 = vunpack.c.l.b16 %v5109
      %v5894 = vunpack.c.l.b16 %v5110
      %v5895 = vunpack.c.l.b16 %v5111
      %v5896 = vunpack.c.l.b16 %v5112
      %v5897 = vunpack.c.l.b16 %v5113
      %v5898 = vunpack.c.l.b16 %v5114
      %v5899 = vunpack.c.l.b16 %v5115
      %v5900 = vunpack.c.l.b16 %v5116
      %v5901 = vunpack.c.l.b16 %v5117
      %v5902 = vunpack.c.l.b16 %v5118
      %v5903 = vunpack.c.l.b16 %v5119
      %v5904 = vunpack.c.l.b16 %v5120
      %v5905 = vunpack.c.l.b16 %v5121
      %v5906 = vunpack.c.l.b16 %v5122
      %v5907 = vunpack.c.l.b16 %v5123
      %v5908 = vunpack.c.l.b16 %v5124
      %v5909 = vunpack.c.l.b16 %v5125
      %v5910 = vunpack.c.l.b16 %v5126
      %v5911 = vunpack.c.l.b16 %v5127
      %v5912 = vunpack.c.l.b16 %v5128
      %v5913 = vunpack.c.l.b16 %v5129
      %v5914 = vunpack.c.l.b16 %v5130
      %v5915 = vunpack.c.l.b16 %v5131
      %v5916 = vunpack.c.l.b16 %v5132
      %v5917 = vunpack.c.l.b16 %v5133
      %v5918 = vunpack.c.l.b16 %v5134
      %v5919 = vunpack.c.l.b16 %v5135
      %v5920 = vunpack.c.l.b16 %v5136
      %v5921 = vunpack.c.l.b16 %v5137
      %v5922 = vunpack.c.l.b16 %v5138
      %v5923 = vunpack.c.l.b16 %v5139
      %v5924 = vunpack.c.l.b16 %v5140
      %v5925 = vunpack.c.l.b16 %v5141
      %v5926 = vunpack.c.l.b16 %v5142
      %v5927 = vunpack.c.l.b16 %v5143
      %v5928 = vunpack.c.l.b16 %v5144
      %v5929 = vunpack.c.l.b16 %v5145
      %v5930 = vunpack.c.l.b16 %v5146
      %v5931 = vunpack.c.l.b16 %v5147
      %v5932 = vunpack.c.l.b16 %v5148
      %v5933 = vunpack.c.l.b16 %v5149
      %v5934 = vunpack.c.l.b16 %v5150
      %v5935 = vunpack.c.l.b16 %v5151
      %v5936 = vunpack.c.l.b16 %v5152
      %v5937 = vunpack.c.l.b16 %v5153
      %v5938 = vunpack.c.l.b16 %v5154
      %v5939 = vunpack.c.l.b16 %v5155
      %v5940 = vunpack.c.l.b16 %v5156
      %v5941 = vunpack.c.l.b16 %v5157
      %v5942 = vunpack.c.l.b16 %v5158
      %v5943 = vunpack.c.l.b16 %v5159
      %v5944 = vunpack.c.l.b16 %v5160
      %v5945 = vunpack.c.l.b16 %v5161
      %v5946 = vunpack.c.l.b16 %v5162
      %v5947 = vunpack.c.l.b16 %v5163
      %v5948 = vunpack.c.l.b16 %v5164
      %v5949 = vunpack.c.l.b16 %v5165
      %v5950 = vunpack.c.l.b16 %v5166
      %v5951 = vunpack.c.l.b16 %v5167
      %v5952 = vunpack.c.l.b16 %v5168
      %v5953 = vunpack.c.l.b16 %v5169
      %v5954 = vunpack.c.l.b16 %v5170
      %v5955 = vunpack.c.l.b16 %v5171
      %v5956 = vunpack.c.l.b16 %v5172
      %v5957 = vunpack.c.l.b16 %v5173
      %v5958 = vunpack.c.l.b16 %v5174
      %v5959 = vunpack.c.l.b16 %v5175
      %v5960 = vunpack.c.l.b16 %v5176
      %v5961 = vunpack.c.l.b16 %v5177
      %v5962 = vunpack.c.l.b16 %v5178
      %v5963 = vunpack.c.l.b16 %v5179
      %v5964 = vunpack.c.l.b16 %v5180
      %v5965 = vunpack.c.l.b16 %v5181
      %v5966 = vunpack.c.l.b16 %v5182
      %v5967 = vunpack.c.l.b16 %v5183
      %v5968 = vunpack.c.l.b16 %v5184
      %v5969 = vunpack.c.l.b16 %v5185
      %v5970 = vunpack.c.l.b16 %v5186
      %v5971 = vunpack.c.l.b16 %v5187
      %v5972 = vunpack.c.l.b16 %v5188
      %v5973 = vunpack.c.l.b16 %v5189
      %v5974 = vunpack.c.l.b16 %v5190
      %v5975 = vunpack.c.l.b16 %v5191
      %v5976 = vunpack.c.l.b16 %v5192
      %v5977 = vunpack.c.l.b16 %v5193
      %v5978 = vunpack.c.l.b16 %v5194
      %v5979 = vunpack.c.l.b16 %v5195
      %v5980 = vunpack.c.l.b16 %v5196
      %v5981 = vunpack.c.l.b16 %v5197
      %v5982 = vunpack.c.l.b16 %v5198
      %v5983 = vunpack.c.l.b16 %v5199
      %v5984 = vunpack.c.l.b16 %v5200
      %v5985 = vunpack.c.l.b16 %v5201
      %v5986 = vunpack.c.l.b16 %v5202
      %v5987 = vunpack.c.l.b16 %v5203
      %v5988 = vunpack.c.l.b16 %v5204
      %v5989 = vunpack.c.l.b16 %v5205
      %v5990 = vunpack.c.l.b16 %v5206
      %v5991 = vunpack.c.l.b16 %v5207
      %v5992 = vunpack.c.l.b16 %v5208
      %v5993 = vunpack.c.l.b16 %v5209
      %v5994 = vunpack.c.l.b16 %v5210
      %v5995 = vunpack.c.l.b16 %v5211
      %v5996 = vunpack.c.l.b16 %v5212
      %v5997 = vunpack.c.l.b16 %v5213
      %v5998 = vunpack.c.l.b16 %v5214
      %v5999 = vunpack.c.l.b16 %v5215
      %v6000 = vunpack.c.l.b16 %v5216
      %v6001 = vunpack.c.l.b16 %v5217
      %v6002 = vunpack.c.l.b16 %v5218
      %v6003 = vunpack.c.l.b16 %v5219
      %v6004 = vunpack.c.l.b16 %v5220
      %v6005 = vunpack.c.l.b16 %v5221
      %v6006 = vunpack.c.l.b16 %v5222
      %v6007 = vunpack.c.l.b16 %v5223
      %v6008 = vunpack.c.l.b16 %v5224
      %v6009 = vunpack.c.l.b16 %v5225
      %v6010 = vunpack.c.l.b16 %v5226
      %v6011 = vunpack.c.l.b16 %v5227
      %v6012 = vunpack.c.l.b16 %v5228
      %v6013 = vunpack.c.l.b16 %v5229
      %v6014 = vunpack.c.l.b16 %v5230
      %v6015 = vunpack.c.l.b16 %v5231
      %v6016 = vunpack.c.l.b16 %v5232
      %v6017 = vunpack.c.l.b16 %v5233
      %v6018 = vpack.c.b16 %v5627, %v5626
      %v6019 = vpack.c.b16 %v5629, %v5628
      %v6020 = vpack.c.b16 %v5631, %v5630
      %v6021 = vpack.c.b16 %v5633, %v5632
      %v6022 = vpack.c.b16 %v5635, %v5634
      %v6023 = vpack.c.b16 %v5637, %v5636
      %v6024 = vpack.c.b16 %v5639, %v5638
      %v6025 = vpack.c.b16 %v5641, %v5640
      %v6026 = vpack.c.b16 %v5643, %v5642
      %v6027 = vpack.c.b16 %v5645, %v5644
      %v6028 = vpack.c.b16 %v5647, %v5646
      %v6029 = vpack.c.b16 %v5649, %v5648
      %v6030 = vpack.c.b16 %v5651, %v5650
      %v6031 = vpack.c.b16 %v5653, %v5652
      %v6032 = vpack.c.b16 %v5655, %v5654
      %v6033 = vpack.c.b16 %v5657, %v5656
      %v6034 = vpack.c.b16 %v5659, %v5658
      %v6035 = vpack.c.b16 %v5661, %v5660
      %v6036 = vpack.c.b16 %v5663, %v5662
      %v6037 = vpack.c.b16 %v5665, %v5664
      %v6038 = vpack.c.b16 %v5667, %v5666
      %v6039 = vpack.c.b16 %v5669, %v5668
      %v6040 = vpack.c.b16 %v5671, %v5670
      %v6041 = vpack.c.b16 %v5673, %v5672
      %v6042 = vpack.c.b16 %v5675, %v5674
      %v6043 = vpack.c.b16 %v5677, %v5676
      %v6044 = vpack.c.b16 %v5679, %v5678
      %v6045 = vpack.c.b16 %v5681, %v5680
      %v6046 = vpack.c.b16 %v5683, %v5682
      %v6047 = vpack.c.b16 %v5685, %v5684
      %v6048 = vpack.c.b16 %v5687, %v5686
      %v6049 = vpack.c.b16 %v5689, %v5688
      %v6050 = vpack.c.b16 %v5691, %v5690
      %v6051 = vpack.c.b16 %v5693, %v5692
      %v6052 = vpack.c.b16 %v5695, %v5694
      %v6053 = vpack.c.b16 %v5697, %v5696
      %v6054 = vpack.c.b16 %v5699, %v5698
      %v6055 = vpack.c.b16 %v5701, %v5700
      %v6056 = vpack.c.b16 %v5703, %v5702
      %v6057 = vpack.c.b16 %v5705, %v5704
      %v6058 = vpack.c.b16 %v5707, %v5706
      %v6059 = vpack.c.b16 %v5709, %v5708
      %v6060 = vpack.c.b16 %v5711, %v5710
      %v6061 = vpack.c.b16 %v5713, %v5712
      %v6062 = vpack.c.b16 %v5715, %v5714
      %v6063 = vpack.c.b16 %v5717, %v5716
      %v6064 = vpack.c.b16 %v5719, %v5718
      %v6065 = vpack.c.b16 %v5721, %v5720
      %v6066 = vpack.c.b16 %v5723, %v5722
      %v6067 = vpack.c.b16 %v5725, %v5724
      %v6068 = vpack.c.b16 %v5727, %v5726
      %v6069 = vpack.c.b16 %v5729, %v5728
      %v6070 = vpack.c.b16 %v5731, %v5730
      %v6071 = vpack.c.b16 %v5733, %v5732
      %v6072 = vpack.c.b16 %v5735, %v5734
      %v6073 = vpack.c.b16 %v5737, %v5736
      %v6074 = vpack.c.b16 %v5739, %v5738
      %v6075 = vpack.c.b16 %v5741, %v5740
      %v6076 = vpack.c.b16 %v5743, %v5742
      %v6077 = vpack.c.b16 %v5745, %v5744
      %v6078 = vpack.c.b16 %v5747, %v5746
      %v6079 = vpack.c.b16 %v5749, %v5748
      %v6080 = vpack.c.b16 %v5751, %v5750
      %v6081 = vpack.c.b16 %v5753, %v5752
      %v6082 = vpack.c.b16 %v5755, %v5754
      %v6083 = vpack.c.b16 %v5757, %v5756
      %v6084 = vpack.c.b16 %v5759, %v5758
      %v6085 = vpack.c.b16 %v5761, %v5760
      %v6086 = vpack.c.b16 %v5763, %v5762
      %v6087 = vpack.c.b16 %v5765, %v5764
      %v6088 = vpack.c.b16 %v5767, %v5766
      %v6089 = vpack.c.b16 %v5769, %v5768
      %v6090 = vpack.c.b16 %v5771, %v5770
      %v6091 = vpack.c.b16 %v5773, %v5772
      %v6092 = vpack.c.b16 %v5775, %v5774
      %v6093 = vpack.c.b16 %v5777, %v5776
      %v6094 = vpack.c.b16 %v5779, %v5778
      %v6095 = vpack.c.b16 %v5781, %v5780
      %v6096 = vpack.c.b16 %v5783, %v5782
      %v6097 = vpack.c.b16 %v5785, %v5784
      %v6098 = vpack.c.b16 %v5787, %v5786
      %v6099 = vpack.c.b16 %v5789, %v5788
      %v6100 = vpack.c.b16 %v5791, %v5790
      %v6101 = vpack.c.b16 %v5793, %v5792
      %v6102 = vpack.c.b16 %v5795, %v5794
      %v6103 = vpack.c.b16 %v5797, %v5796
      %v6104 = vpack.c.b16 %v5799, %v5798
      %v6105 = vpack.c.b16 %v5801, %v5800
      %v6106 = vpack.c.b16 %v5803, %v5802
      %v6107 = vpack.c.b16 %v5805, %v5804
      %v6108 = vpack.c.b16 %v5807, %v5806
      %v6109 = vpack.c.b16 %v5809, %v5808
      %v6110 = vpack.c.b16 %v5811, %v5810
      %v6111 = vpack.c.b16 %v5813, %v5812
      %v6112 = vpack.c.b16 %v5815, %v5814
      %v6113 = vpack.c.b16 %v5817, %v5816
      %v6114 = vpack.c.b16 %v5819, %v5818
      %v6115 = vpack.c.b16 %v5821, %v5820
      %v6116 = vpack.c.b16 %v5823, %v5822
      %v6117 = vpack.c.b16 %v5825, %v5824
      %v6118 = vpack.c.b16 %v5827, %v5826
      %v6119 = vpack.c.b16 %v5829, %v5828
      %v6120 = vpack.c.b16 %v5831, %v5830
      %v6121 = vpack.c.b16 %v5833, %v5832
      %v6122 = vpack.c.b16 %v5835, %v5834
      %v6123 = vpack.c.b16 %v5837, %v5836
      %v6124 = vpack.c.b16 %v5839, %v5838
      %v6125 = vpack.c.b16 %v5841, %v5840
      %v6126 = vpack.c.b16 %v5843, %v5842
      %v6127 = vpack.c.b16 %v5845, %v5844
      %v6128 = vpack.c.b16 %v5847, %v5846
      %v6129 = vpack.c.b16 %v5849, %v5848
      %v6130 = vpack.c.b16 %v5851, %v5850
      %v6131 = vpack.c.b16 %v5853, %v5852
      %v6132 = vpack.c.b16 %v5855, %v5854
      %v6133 = vpack.c.b16 %v5857, %v5856
      %v6134 = vpack.c.b16 %v5859, %v5858
      %v6135 = vpack.c.b16 %v5861, %v5860
      %v6136 = vpack.c.b16 %v5863, %v5862
      %v6137 = vpack.c.b16 %v5865, %v5864
      %v6138 = vpack.c.b16 %v5867, %v5866
      %v6139 = vpack.c.b16 %v5869, %v5868
      %v6140 = vpack.c.b16 %v5871, %v5870
      %v6141 = vpack.c.b16 %v5873, %v5872
      %v6142 = vpack.c.b16 %v5875, %v5874
      %v6143 = vpack.c.b16 %v5877, %v5876
      %v6144 = vpack.c.b16 %v5879, %v5878
      %v6145 = vpack.c.b16 %v5881, %v5880
      %v6146 = vpack.c.b16 %v5883, %v5882
      %v6147 = vpack.c.b16 %v5885, %v5884
      %v6148 = vpack.c.b16 %v5887, %v5886
      %v6149 = vpack.c.b16 %v5889, %v5888
      %v6150 = vpack.c.b16 %v5891, %v5890
      %v6151 = vpack.c.b16 %v5893, %v5892
      %v6152 = vpack.c.b16 %v5895, %v5894
      %v6153 = vpack.c.b16 %v5897, %v5896
      %v6154 = vpack.c.b16 %v5899, %v5898
      %v6155 = vpack.c.b16 %v5901, %v5900
      %v6156 = vpack.c.b16 %v5903, %v5902
      %v6157 = vpack.c.b16 %v5905, %v5904
      %v6158 = vpack.c.b16 %v5907, %v5906
      %v6159 = vpack.c.b16 %v5909, %v5908
      %v6160 = vpack.c.b16 %v5911, %v5910
      %v6161 = vpack.c.b16 %v5913, %v5912
      %v6162 = vpack.c.b16 %v5915, %v5914
      %v6163 = vpack.c.b16 %v5917, %v5916
      %v6164 = vpack.c.b16 %v5919, %v5918
      %v6165 = vpack.c.b16 %v5921, %v5920
      %v6166 = vpack.c.b16 %v5923, %v5922
      %v6167 = vpack.c.b16 %v5925, %v5924
      %v6168 = vpack.c.b16 %v5927, %v5926
      %v6169 = vpack.c.b16 %v5929, %v5928
      %v6170 = vpack.c.b16 %v5931, %v5930
      %v6171 = vpack.c.b16 %v5933, %v5932
      %v6172 = vpack.c.b16 %v5935, %v5934
      %v6173 = vpack.c.b16 %v5937, %v5936
      %v6174 = vpack.c.b16 %v5939, %v5938
      %v6175 = vpack.c.b16 %v5941, %v5940
      %v6176 = vpack.c.b16 %v5943, %v5942
      %v6177 = vpack.c.b16 %v5945, %v5944
      %v6178 = vpack.c.b16 %v5947, %v5946
      %v6179 = vpack.c.b16 %v5949, %v5948
      %v6180 = vpack.c.b16 %v5951, %v5950
      %v6181 = vpack.c.b16 %v5953, %v5952
      %v6182 = vpack.c.b16 %v5955, %v5954
      %v6183 = vpack.c.b16 %v5957, %v5956
      %v6184 = vpack.c.b16 %v5959, %v5958
      %v6185 = vpack.c.b16 %v5961, %v5960
      %v6186 = vpack.c.b16 %v5963, %v5962
      %v6187 = vpack.c.b16 %v5965, %v5964
      %v6188 = vpack.c.b16 %v5967, %v5966
      %v6189 = vpack.c.b16 %v5969, %v5968
      %v6190 = vpack.c.b16 %v5971, %v5970
      %v6191 = vpack.c.b16 %v5973, %v5972
      %v6192 = vpack.c.b16 %v5975, %v5974
      %v6193 = vpack.c.b16 %v5977, %v5976
      %v6194 = vpack.c.b16 %v5979, %v5978
      %v6195 = vpack.c.b16 %v5981, %v5980
      %v6196 = vpack.c.b16 %v5983, %v5982
      %v6197 = vpack.c.b16 %v5985, %v5984
      %v6198 = vpack.c.b16 %v5987, %v5986
      %v6199 = vpack.c.b16 %v5989, %v5988
      %v6200 = vpack.c.b16 %v5991, %v5990
      %v6201 = vpack.c.b16 %v5993, %v5992
      %v6202 = vpack.c.b16 %v5995, %v5994
      %v6203 = vpack.c.b16 %v5997, %v5996
      %v6204 = vpack.c.b16 %v5999, %v5998
      %v6205 = vpack.c.b16 %v6001, %v6000
      %v6206 = vpack.c.b16 %v6003, %v6002
      %v6207 = vpack.c.b16 %v6005, %v6004
      %v6208 = vpack.c.b16 %v6007, %v6006
      %v6209 = vpack.c.b16 %v6009, %v6008
      %v6210 = vpack.c.b16 %v6011, %v6010
      %v6211 = vpack.c.b16 %v6013, %v6012
      %v6212 = vpack.c.b16 %v6015, %v6014
      %v6213 = vpack.c.b16 %v6017, %v6016
      %6410 = vmatpush.bf16.msra.mxu0 %v6025
      %6411 = vmatpush.bf16.msra.mxu0 %v6024
      %6412 = vmatpush.bf16.msra.mxu0 %v6023
      %6413 = vmatpush.bf16.msra.mxu0 %v6022
      %6414 = vmatpush.bf16.msra.mxu0 %v6021
      %6415 = vmatpush.bf16.msra.mxu0 %v6020
      %6416 = vmatpush.bf16.msra.mxu0 %v6019
      %6417 = vmatpush.bf16.msra.mxu0 %v6018
      %6418 = vmatmul.bf16.gmra.mxu0 %v819
      %v6419 = vpop.f32.mrf.mxu0
      %v6420 = vadd.f32 0.0, %v6419
      %v6421 = vpop.f32.mrf.mxu0
      %v6422 = vadd.f32 0.0, %v6421
      %6423 = vmatmul.bf16.gmra.mxu0 %v844
      %v6424 = vpop.f32.mrf.mxu0
      %v6425 = vadd.f32 0.0, %v6424
      %v6426 = vpop.f32.mrf.mxu0
      %v6427 = vadd.f32 0.0, %v6426
      %6428 = vmatmul.bf16.gmra.mxu0 %v869
      %v6429 = vpop.f32.mrf.mxu0
      %v6430 = vpop.f32.mrf.mxu0
      %6431 = vdwg.mxu0
      %6432 = vmatpush.bf16.msra.mxu0 %v6033
      %6433 = vmatpush.bf16.msra.mxu0 %v6032
      %6434 = vmatpush.bf16.msra.mxu0 %v6031
      %6435 = vmatpush.bf16.msra.mxu0 %v6030
      %6436 = vmatpush.bf16.msra.mxu0 %v6029
      %6437 = vmatpush.bf16.msra.mxu0 %v6028
      %6438 = vmatpush.bf16.msra.mxu0 %v6027
      %6439 = vmatpush.bf16.msra.mxu0 %v6026
      %6440 = vmatmul.bf16.gmra.mxu0 %v820
      %v6441 = vpop.f32.mrf.mxu0
      %v6442 = vadd.f32 %v6420, %v6441
      %v6443 = vpop.f32.mrf.mxu0
      %v6444 = vadd.f32 %v6422, %v6443
      %6445 = vmatmul.bf16.gmra.mxu0 %v845
      %v6446 = vpop.f32.mrf.mxu0
      %v6447 = vadd.f32 %v6425, %v6446
      %v6448 = vpop.f32.mrf.mxu0
      %v6449 = vadd.f32 %v6427, %v6448
      %6450 = vmatmul.bf16.gmra.mxu0 %v870
      %v6451 = vpop.f32.mrf.mxu0
      %v6452 = vpop.f32.mrf.mxu0
      %6453 = vdwg.mxu0
      %6454 = vmatpush.bf16.msra.mxu0 %v6041
      %6455 = vmatpush.bf16.msra.mxu0 %v6040
      %6456 = vmatpush.bf16.msra.mxu0 %v6039
      %6457 = vmatpush.bf16.msra.mxu0 %v6038
      %6458 = vmatpush.bf16.msra.mxu0 %v6037
      %6459 = vmatpush.bf16.msra.mxu0 %v6036
      %6460 = vmatpush.bf16.msra.mxu0 %v6035
      %6461 = vmatpush.bf16.msra.mxu0 %v6034
      %6462 = vmatmul.bf16.gmra.mxu0 %v821
      %v6463 = vpop.f32.mrf.mxu0
      %v6464 = vadd.f32 %v6442, %v6463
      %v6465 = vpop.f32.mrf.mxu0
      %v6466 = vadd.f32 %v6444, %v6465
      %6467 = vmatmul.bf16.gmra.mxu0 %v846
      %v6468 = vpop.f32.mrf.mxu0
      %v6469 = vadd.f32 %v6447, %v6468
      %v6470 = vpop.f32.mrf.mxu0
      %v6471 = vadd.f32 %v6449, %v6470
      %6472 = vmatmul.bf16.gmra.mxu0 %v871
      %v6473 = vpop.f32.mrf.mxu0
      %v6474 = vpop.f32.mrf.mxu0
      %6475 = vdwg.mxu0
      %6476 = vmatpush.bf16.msra.mxu0 %v6049
      %6477 = vmatpush.bf16.msra.mxu0 %v6048
      %6478 = vmatpush.bf16.msra.mxu0 %v6047
      %6479 = vmatpush.bf16.msra.mxu0 %v6046
      %6480 = vmatpush.bf16.msra.mxu0 %v6045
      %6481 = vmatpush.bf16.msra.mxu0 %v6044
      %6482 = vmatpush.bf16.msra.mxu0 %v6043
      %6483 = vmatpush.bf16.msra.mxu0 %v6042
      %6484 = vmatmul.bf16.gmra.mxu0 %v822
      %v6485 = vpop.f32.mrf.mxu0
      %v6486 = vadd.f32 %v6464, %v6485
      %v6487 = vpop.f32.mrf.mxu0
      %v6488 = vadd.f32 %v6466, %v6487
      %6489 = vmatmul.bf16.gmra.mxu0 %v847
      %v6490 = vpop.f32.mrf.mxu0
      %v6491 = vadd.f32 %v6469, %v6490
      %v6492 = vpop.f32.mrf.mxu0
      %v6493 = vadd.f32 %v6471, %v6492
      %6494 = vmatmul.bf16.gmra.mxu0 %v872
      %v6495 = vpop.f32.mrf.mxu0
      %v6496 = vpop.f32.mrf.mxu0
      %6497 = vdwg.mxu0
      %6498 = vmatpush.bf16.msra.mxu0 %v6057
      %6499 = vmatpush.bf16.msra.mxu0 %v6056
      %6500 = vmatpush.bf16.msra.mxu0 %v6055
      %6501 = vmatpush.bf16.msra.mxu0 %v6054
      %6502 = vmatpush.bf16.msra.mxu0 %v6053
      %6503 = vmatpush.bf16.msra.mxu0 %v6052
      %6504 = vmatpush.bf16.msra.mxu0 %v6051
      %6505 = vmatpush.bf16.msra.mxu0 %v6050
      %6506 = vmatmul.bf16.gmra.mxu0 %v823
      %v6507 = vpop.f32.mrf.mxu0
      %v6508 = vadd.f32 %v6486, %v6507
      %v6509 = vpop.f32.mrf.mxu0
      %v6510 = vadd.f32 %v6488, %v6509
      %6511 = vmatmul.bf16.gmra.mxu0 %v848
      %v6512 = vpop.f32.mrf.mxu0
      %v6513 = vadd.f32 %v6491, %v6512
      %v6514 = vpop.f32.mrf.mxu0
      %v6515 = vadd.f32 %v6493, %v6514
      %6516 = vmatmul.bf16.gmra.mxu0 %v873
      %v6517 = vpop.f32.mrf.mxu0
      %v6518 = vpop.f32.mrf.mxu0
      %6519 = vdwg.mxu0
      %6520 = vmatpush.bf16.msra.mxu0 %v6065
      %6521 = vmatpush.bf16.msra.mxu0 %v6064
      %6522 = vmatpush.bf16.msra.mxu0 %v6063
      %6523 = vmatpush.bf16.msra.mxu0 %v6062
      %6524 = vmatpush.bf16.msra.mxu0 %v6061
      %6525 = vmatpush.bf16.msra.mxu0 %v6060
      %6526 = vmatpush.bf16.msra.mxu0 %v6059
      %6527 = vmatpush.bf16.msra.mxu0 %v6058
      %6528 = vmatmul.bf16.gmra.mxu0 %v824
      %v6529 = vpop.f32.mrf.mxu0
      %v6530 = vadd.f32 %v6508, %v6529
      %v6531 = vpop.f32.mrf.mxu0
      %v6532 = vadd.f32 %v6510, %v6531
      %6533 = vmatmul.bf16.gmra.mxu0 %v849
      %v6534 = vpop.f32.mrf.mxu0
      %v6535 = vadd.f32 %v6513, %v6534
      %v6536 = vpop.f32.mrf.mxu0
      %v6537 = vadd.f32 %v6515, %v6536
      %6538 = vmatmul.bf16.gmra.mxu0 %v874
      %v6539 = vpop.f32.mrf.mxu0
      %v6540 = vpop.f32.mrf.mxu0
      %6541 = vdwg.mxu0
      %6542 = vmatpush.bf16.msra.mxu0 %v6073
      %6543 = vmatpush.bf16.msra.mxu0 %v6072
      %6544 = vmatpush.bf16.msra.mxu0 %v6071
      %6545 = vmatpush.bf16.msra.mxu0 %v6070
      %6546 = vmatpush.bf16.msra.mxu0 %v6069
      %6547 = vmatpush.bf16.msra.mxu0 %v6068
      %6548 = vmatpush.bf16.msra.mxu0 %v6067
      %6549 = vmatpush.bf16.msra.mxu0 %v6066
      %6550 = vmatmul.bf16.gmra.mxu0 %v825
      %v6551 = vpop.f32.mrf.mxu0
      %v6552 = vadd.f32 %v6530, %v6551
      %v6553 = vpop.f32.mrf.mxu0
      %v6554 = vadd.f32 %v6532, %v6553
      %6555 = vmatmul.bf16.gmra.mxu0 %v850
      %v6556 = vpop.f32.mrf.mxu0
      %v6557 = vadd.f32 %v6535, %v6556
      %v6558 = vpop.f32.mrf.mxu0
      %v6559 = vadd.f32 %v6537, %v6558
      %6560 = vmatmul.bf16.gmra.mxu0 %v875
      %v6561 = vpop.f32.mrf.mxu0
      %v6562 = vpop.f32.mrf.mxu0
      %6563 = vdwg.mxu0
      %6564 = vmatpush.bf16.msra.mxu0 %v6081
      %6565 = vmatpush.bf16.msra.mxu0 %v6080
      %6566 = vmatpush.bf16.msra.mxu0 %v6079
      %6567 = vmatpush.bf16.msra.mxu0 %v6078
      %6568 = vmatpush.bf16.msra.mxu0 %v6077
      %6569 = vmatpush.bf16.msra.mxu0 %v6076
      %6570 = vmatpush.bf16.msra.mxu0 %v6075
      %6571 = vmatpush.bf16.msra.mxu0 %v6074
      %6572 = vmatmul.bf16.gmra.mxu0 %v826
      %v6573 = vpop.f32.mrf.mxu0
      %v6574 = vadd.f32 %v6552, %v6573
      %v6575 = vpop.f32.mrf.mxu0
      %v6576 = vadd.f32 %v6554, %v6575
      %6577 = vmatmul.bf16.gmra.mxu0 %v851
      %v6578 = vpop.f32.mrf.mxu0
      %v6579 = vadd.f32 %v6557, %v6578
      %v6580 = vpop.f32.mrf.mxu0
      %v6581 = vadd.f32 %v6559, %v6580
      %6582 = vmatmul.bf16.gmra.mxu0 %v876
      %v6583 = vpop.f32.mrf.mxu0
      %v6584 = vpop.f32.mrf.mxu0
      %6585 = vdwg.mxu0
      %6586 = vmatpush.bf16.msra.mxu0 %v6089
      %6587 = vmatpush.bf16.msra.mxu0 %v6088
      %6588 = vmatpush.bf16.msra.mxu0 %v6087
      %6589 = vmatpush.bf16.msra.mxu0 %v6086
      %6590 = vmatpush.bf16.msra.mxu0 %v6085
      %6591 = vmatpush.bf16.msra.mxu0 %v6084
      %6592 = vmatpush.bf16.msra.mxu0 %v6083
      %6593 = vmatpush.bf16.msra.mxu0 %v6082
      %6594 = vmatmul.bf16.gmra.mxu0 %v827
      %v6595 = vpop.f32.mrf.mxu0
      %v6596 = vadd.f32 %v6574, %v6595
      %v6597 = vpop.f32.mrf.mxu0
      %v6598 = vadd.f32 %v6576, %v6597
      %6599 = vmatmul.bf16.gmra.mxu0 %v852
      %v6600 = vpop.f32.mrf.mxu0
      %v6601 = vadd.f32 %v6579, %v6600
      %v6602 = vpop.f32.mrf.mxu0
      %v6603 = vadd.f32 %v6581, %v6602
      %6604 = vmatmul.bf16.gmra.mxu0 %v877
      %v6605 = vpop.f32.mrf.mxu0
      %v6606 = vpop.f32.mrf.mxu0
      %6607 = vdwg.mxu0
      %6608 = vmatpush.bf16.msra.mxu0 %v6097
      %6609 = vmatpush.bf16.msra.mxu0 %v6096
      %6610 = vmatpush.bf16.msra.mxu0 %v6095
      %6611 = vmatpush.bf16.msra.mxu0 %v6094
      %6612 = vmatpush.bf16.msra.mxu0 %v6093
      %6613 = vmatpush.bf16.msra.mxu0 %v6092
      %6614 = vmatpush.bf16.msra.mxu0 %v6091
      %6615 = vmatpush.bf16.msra.mxu0 %v6090
      %6616 = vmatmul.bf16.gmra.mxu0 %v828
      %v6617 = vpop.f32.mrf.mxu0
      %v6618 = vadd.f32 %v6596, %v6617
      %v6619 = vpop.f32.mrf.mxu0
      %v6620 = vadd.f32 %v6598, %v6619
      %6621 = vmatmul.bf16.gmra.mxu0 %v853
      %v6622 = vpop.f32.mrf.mxu0
      %v6623 = vadd.f32 %v6601, %v6622
      %v6624 = vpop.f32.mrf.mxu0
      %v6625 = vadd.f32 %v6603, %v6624
      %6626 = vmatmul.bf16.gmra.mxu0 %v878
      %v6627 = vpop.f32.mrf.mxu0
      %v6628 = vpop.f32.mrf.mxu0
      %6629 = vdwg.mxu0
      %6630 = vmatpush.bf16.msra.mxu0 %v6105
      %6631 = vmatpush.bf16.msra.mxu0 %v6104
      %6632 = vmatpush.bf16.msra.mxu0 %v6103
      %6633 = vmatpush.bf16.msra.mxu0 %v6102
      %6634 = vmatpush.bf16.msra.mxu0 %v6101
      %6635 = vmatpush.bf16.msra.mxu0 %v6100
      %6636 = vmatpush.bf16.msra.mxu0 %v6099
      %6637 = vmatpush.bf16.msra.mxu0 %v6098
      %6638 = vmatmul.bf16.gmra.mxu0 %v829
      %v6639 = vpop.f32.mrf.mxu0
      %v6640 = vadd.f32 %v6618, %v6639
      %v6641 = vpop.f32.mrf.mxu0
      %v6642 = vadd.f32 %v6620, %v6641
      %6643 = vmatmul.bf16.gmra.mxu0 %v854
      %v6644 = vpop.f32.mrf.mxu0
      %v6645 = vadd.f32 %v6623, %v6644
      %v6646 = vpop.f32.mrf.mxu0
      %v6647 = vadd.f32 %v6625, %v6646
      %6648 = vmatmul.bf16.gmra.mxu0 %v879
      %v6649 = vpop.f32.mrf.mxu0
      %v6650 = vpop.f32.mrf.mxu0
      %6651 = vdwg.mxu0
      %6652 = vmatpush.bf16.msra.mxu0 %v6113
      %6653 = vmatpush.bf16.msra.mxu0 %v6112
      %6654 = vmatpush.bf16.msra.mxu0 %v6111
      %6655 = vmatpush.bf16.msra.mxu0 %v6110
      %6656 = vmatpush.bf16.msra.mxu0 %v6109
      %6657 = vmatpush.bf16.msra.mxu0 %v6108
      %6658 = vmatpush.bf16.msra.mxu0 %v6107
      %6659 = vmatpush.bf16.msra.mxu0 %v6106
      %6660 = vmatmul.bf16.gmra.mxu0 %v830
      %v6661 = vpop.f32.mrf.mxu0
      %v6662 = vadd.f32 %v6640, %v6661
      %v6663 = vpop.f32.mrf.mxu0
      %v6664 = vadd.f32 %v6642, %v6663
      %6665 = vmatmul.bf16.gmra.mxu0 %v855
      %v6666 = vpop.f32.mrf.mxu0
      %v6667 = vadd.f32 %v6645, %v6666
      %v6668 = vpop.f32.mrf.mxu0
      %v6669 = vadd.f32 %v6647, %v6668
      %6670 = vmatmul.bf16.gmra.mxu0 %v880
      %v6671 = vpop.f32.mrf.mxu0
      %v6672 = vpop.f32.mrf.mxu0
      %6673 = vdwg.mxu0
      %6674 = vmatpush.bf16.msra.mxu0 %v6121
      %6675 = vmatpush.bf16.msra.mxu0 %v6120
      %6676 = vmatpush.bf16.msra.mxu0 %v6119
      %6677 = vmatpush.bf16.msra.mxu0 %v6118
      %6678 = vmatpush.bf16.msra.mxu0 %v6117
      %6679 = vmatpush.bf16.msra.mxu0 %v6116
      %6680 = vmatpush.bf16.msra.mxu0 %v6115
      %6681 = vmatpush.bf16.msra.mxu0 %v6114
      %6682 = vmatmul.bf16.gmra.mxu0 %v831
      %v6683 = vpop.f32.mrf.mxu0
      %v6684 = vadd.f32 %v6662, %v6683
      %v6685 = vpop.f32.mrf.mxu0
      %v6686 = vadd.f32 %v6664, %v6685
      %6687 = vmatmul.bf16.gmra.mxu0 %v856
      %v6688 = vpop.f32.mrf.mxu0
      %v6689 = vadd.f32 %v6667, %v6688
      %v6690 = vpop.f32.mrf.mxu0
      %v6691 = vadd.f32 %v6669, %v6690
      %6692 = vmatmul.bf16.gmra.mxu0 %v881
      %v6693 = vpop.f32.mrf.mxu0
      %v6694 = vpop.f32.mrf.mxu0
      %6695 = vdwg.mxu0
      %6696 = vmatpush.bf16.msra.mxu0 %v6129
      %6697 = vmatpush.bf16.msra.mxu0 %v6128
      %6698 = vmatpush.bf16.msra.mxu0 %v6127
      %6699 = vmatpush.bf16.msra.mxu0 %v6126
      %6700 = vmatpush.bf16.msra.mxu0 %v6125
      %6701 = vmatpush.bf16.msra.mxu0 %v6124
      %6702 = vmatpush.bf16.msra.mxu0 %v6123
      %6703 = vmatpush.bf16.msra.mxu0 %v6122
      %6704 = vmatmul.bf16.gmra.mxu0 %v832
      %v6705 = vpop.f32.mrf.mxu0
      %v6706 = vadd.f32 %v6684, %v6705
      %v6707 = vpop.f32.mrf.mxu0
      %v6708 = vadd.f32 %v6686, %v6707
      %6709 = vmatmul.bf16.gmra.mxu0 %v857
      %v6710 = vpop.f32.mrf.mxu0
      %v6711 = vadd.f32 %v6689, %v6710
      %v6712 = vpop.f32.mrf.mxu0
      %v6713 = vadd.f32 %v6691, %v6712
      %6714 = vmatmul.bf16.gmra.mxu0 %v882
      %v6715 = vpop.f32.mrf.mxu0
      %v6716 = vpop.f32.mrf.mxu0
      %6717 = vdwg.mxu0
      %6718 = vmatpush.bf16.msra.mxu0 %v6137
      %6719 = vmatpush.bf16.msra.mxu0 %v6136
      %6720 = vmatpush.bf16.msra.mxu0 %v6135
      %6721 = vmatpush.bf16.msra.mxu0 %v6134
      %6722 = vmatpush.bf16.msra.mxu0 %v6133
      %6723 = vmatpush.bf16.msra.mxu0 %v6132
      %6724 = vmatpush.bf16.msra.mxu0 %v6131
      %6725 = vmatpush.bf16.msra.mxu0 %v6130
      %6726 = vmatmul.bf16.gmra.mxu0 %v833
      %v6727 = vpop.f32.mrf.mxu0
      %v6728 = vadd.f32 %v6706, %v6727
      %v6729 = vpop.f32.mrf.mxu0
      %v6730 = vadd.f32 %v6708, %v6729
      %6731 = vmatmul.bf16.gmra.mxu0 %v858
      %v6732 = vpop.f32.mrf.mxu0
      %v6733 = vadd.f32 %v6711, %v6732
      %v6734 = vpop.f32.mrf.mxu0
      %v6735 = vadd.f32 %v6713, %v6734
      %6736 = vmatmul.bf16.gmra.mxu0 %v883
      %v6737 = vpop.f32.mrf.mxu0
      %v6738 = vpop.f32.mrf.mxu0
      %6739 = vdwg.mxu0
      %6740 = vmatpush.bf16.msra.mxu0 %v6145
      %6741 = vmatpush.bf16.msra.mxu0 %v6144
      %6742 = vmatpush.bf16.msra.mxu0 %v6143
      %6743 = vmatpush.bf16.msra.mxu0 %v6142
      %6744 = vmatpush.bf16.msra.mxu0 %v6141
      %6745 = vmatpush.bf16.msra.mxu0 %v6140
      %6746 = vmatpush.bf16.msra.mxu0 %v6139
      %6747 = vmatpush.bf16.msra.mxu0 %v6138
      %6748 = vmatmul.bf16.gmra.mxu0 %v834
      %v6749 = vpop.f32.mrf.mxu0
      %v6750 = vadd.f32 %v6728, %v6749
      %v6751 = vpop.f32.mrf.mxu0
      %v6752 = vadd.f32 %v6730, %v6751
      %6753 = vmatmul.bf16.gmra.mxu0 %v859
      %v6754 = vpop.f32.mrf.mxu0
      %v6755 = vadd.f32 %v6733, %v6754
      %v6756 = vpop.f32.mrf.mxu0
      %v6757 = vadd.f32 %v6735, %v6756
      %6758 = vmatmul.bf16.gmra.mxu0 %v884
      %v6759 = vpop.f32.mrf.mxu0
      %v6760 = vpop.f32.mrf.mxu0
      %6761 = vdwg.mxu0
      %6762 = vmatpush.bf16.msra.mxu0 %v6153
      %6763 = vmatpush.bf16.msra.mxu0 %v6152
      %6764 = vmatpush.bf16.msra.mxu0 %v6151
      %6765 = vmatpush.bf16.msra.mxu0 %v6150
      %6766 = vmatpush.bf16.msra.mxu0 %v6149
      %6767 = vmatpush.bf16.msra.mxu0 %v6148
      %6768 = vmatpush.bf16.msra.mxu0 %v6147
      %6769 = vmatpush.bf16.msra.mxu0 %v6146
      %6770 = vmatmul.bf16.gmra.mxu0 %v835
      %v6771 = vpop.f32.mrf.mxu0
      %v6772 = vadd.f32 %v6750, %v6771
      %v6773 = vpop.f32.mrf.mxu0
      %v6774 = vadd.f32 %v6752, %v6773
      %6775 = vmatmul.bf16.gmra.mxu0 %v860
      %v6776 = vpop.f32.mrf.mxu0
      %v6777 = vadd.f32 %v6755, %v6776
      %v6778 = vpop.f32.mrf.mxu0
      %v6779 = vadd.f32 %v6757, %v6778
      %6780 = vmatmul.bf16.gmra.mxu0 %v885
      %v6781 = vpop.f32.mrf.mxu0
      %v6782 = vpop.f32.mrf.mxu0
      %6783 = vdwg.mxu0
      %6784 = vmatpush.bf16.msra.mxu0 %v6161
      %6785 = vmatpush.bf16.msra.mxu0 %v6160
      %6786 = vmatpush.bf16.msra.mxu0 %v6159
      %6787 = vmatpush.bf16.msra.mxu0 %v6158
      %6788 = vmatpush.bf16.msra.mxu0 %v6157
      %6789 = vmatpush.bf16.msra.mxu0 %v6156
      %6790 = vmatpush.bf16.msra.mxu0 %v6155
      %6791 = vmatpush.bf16.msra.mxu0 %v6154
      %6792 = vmatmul.bf16.gmra.mxu0 %v836
      %v6793 = vpop.f32.mrf.mxu0
      %v6794 = vadd.f32 %v6772, %v6793
      %v6795 = vpop.f32.mrf.mxu0
      %v6796 = vadd.f32 %v6774, %v6795
      %6797 = vmatmul.bf16.gmra.mxu0 %v861
      %v6798 = vpop.f32.mrf.mxu0
      %v6799 = vadd.f32 %v6777, %v6798
      %v6800 = vpop.f32.mrf.mxu0
      %v6801 = vadd.f32 %v6779, %v6800
      %6802 = vmatmul.bf16.gmra.mxu0 %v886
      %v6803 = vpop.f32.mrf.mxu0
      %v6804 = vpop.f32.mrf.mxu0
      %6805 = vdwg.mxu0
      %6806 = vmatpush.bf16.msra.mxu0 %v6169
      %6807 = vmatpush.bf16.msra.mxu0 %v6168
      %6808 = vmatpush.bf16.msra.mxu0 %v6167
      %6809 = vmatpush.bf16.msra.mxu0 %v6166
      %6810 = vmatpush.bf16.msra.mxu0 %v6165
      %6811 = vmatpush.bf16.msra.mxu0 %v6164
      %6812 = vmatpush.bf16.msra.mxu0 %v6163
      %6813 = vmatpush.bf16.msra.mxu0 %v6162
      %6814 = vmatmul.bf16.gmra.mxu0 %v837
      %v6815 = vpop.f32.mrf.mxu0
      %v6816 = vadd.f32 %v6794, %v6815
      %v6817 = vpop.f32.mrf.mxu0
      %v6818 = vadd.f32 %v6796, %v6817
      %6819 = vmatmul.bf16.gmra.mxu0 %v862
      %v6820 = vpop.f32.mrf.mxu0
      %v6821 = vadd.f32 %v6799, %v6820
      %v6822 = vpop.f32.mrf.mxu0
      %v6823 = vadd.f32 %v6801, %v6822
      %6824 = vmatmul.bf16.gmra.mxu0 %v887
      %v6825 = vpop.f32.mrf.mxu0
      %v6826 = vpop.f32.mrf.mxu0
      %6827 = vdwg.mxu0
      %6828 = vmatpush.bf16.msra.mxu0 %v6177
      %6829 = vmatpush.bf16.msra.mxu0 %v6176
      %6830 = vmatpush.bf16.msra.mxu0 %v6175
      %6831 = vmatpush.bf16.msra.mxu0 %v6174
      %6832 = vmatpush.bf16.msra.mxu0 %v6173
      %6833 = vmatpush.bf16.msra.mxu0 %v6172
      %6834 = vmatpush.bf16.msra.mxu0 %v6171
      %6835 = vmatpush.bf16.msra.mxu0 %v6170
      %6836 = vmatmul.bf16.gmra.mxu0 %v838
      %v6837 = vpop.f32.mrf.mxu0
      %v6838 = vadd.f32 %v6816, %v6837
      %v6839 = vpop.f32.mrf.mxu0
      %v6840 = vadd.f32 %v6818, %v6839
      %6841 = vmatmul.bf16.gmra.mxu0 %v863
      %v6842 = vpop.f32.mrf.mxu0
      %v6843 = vadd.f32 %v6821, %v6842
      %v6844 = vpop.f32.mrf.mxu0
      %v6845 = vadd.f32 %v6823, %v6844
      %6846 = vmatmul.bf16.gmra.mxu0 %v888
      %v6847 = vpop.f32.mrf.mxu0
      %v6848 = vpop.f32.mrf.mxu0
      %6849 = vdwg.mxu0
      %6850 = vmatpush.bf16.msra.mxu0 %v6185
      %6851 = vmatpush.bf16.msra.mxu0 %v6184
      %6852 = vmatpush.bf16.msra.mxu0 %v6183
      %6853 = vmatpush.bf16.msra.mxu0 %v6182
      %6854 = vmatpush.bf16.msra.mxu0 %v6181
      %6855 = vmatpush.bf16.msra.mxu0 %v6180
      %6856 = vmatpush.bf16.msra.mxu0 %v6179
      %6857 = vmatpush.bf16.msra.mxu0 %v6178
      %6858 = vmatmul.bf16.gmra.mxu0 %v839
      %v6859 = vpop.f32.mrf.mxu0
      %v6860 = vadd.f32 %v6838, %v6859
      %v6861 = vpop.f32.mrf.mxu0
      %v6862 = vadd.f32 %v6840, %v6861
      %6863 = vmatmul.bf16.gmra.mxu0 %v864
      %v6864 = vpop.f32.mrf.mxu0
      %v6865 = vadd.f32 %v6843, %v6864
      %v6866 = vpop.f32.mrf.mxu0
      %v6867 = vadd.f32 %v6845, %v6866
      %6868 = vmatmul.bf16.gmra.mxu0 %v889
      %v6869 = vpop.f32.mrf.mxu0
      %v6870 = vpop.f32.mrf.mxu0
      %6871 = vdwg.mxu0
      %6872 = vmatpush.bf16.msra.mxu0 %v6193
      %6873 = vmatpush.bf16.msra.mxu0 %v6192
      %6874 = vmatpush.bf16.msra.mxu0 %v6191
      %6875 = vmatpush.bf16.msra.mxu0 %v6190
      %6876 = vmatpush.bf16.msra.mxu0 %v6189
      %6877 = vmatpush.bf16.msra.mxu0 %v6188
      %6878 = vmatpush.bf16.msra.mxu0 %v6187
      %6879 = vmatpush.bf16.msra.mxu0 %v6186
      %6880 = vmatmul.bf16.gmra.mxu0 %v840
      %v6881 = vpop.f32.mrf.mxu0
      %v6882 = vadd.f32 %v6860, %v6881
      %v6883 = vpop.f32.mrf.mxu0
      %v6884 = vadd.f32 %v6862, %v6883
      %6885 = vmatmul.bf16.gmra.mxu0 %v865
      %v6886 = vpop.f32.mrf.mxu0
      %v6887 = vadd.f32 %v6865, %v6886
      %v6888 = vpop.f32.mrf.mxu0
      %v6889 = vadd.f32 %v6867, %v6888
      %6890 = vmatmul.bf16.gmra.mxu0 %v890
      %v6891 = vpop.f32.mrf.mxu0
      %v6892 = vpop.f32.mrf.mxu0
      %6893 = vdwg.mxu0
      %6894 = vmatpush.bf16.msra.mxu0 %v6201
      %6895 = vmatpush.bf16.msra.mxu0 %v6200
      %6896 = vmatpush.bf16.msra.mxu0 %v6199
      %6897 = vmatpush.bf16.msra.mxu0 %v6198
      %6898 = vmatpush.bf16.msra.mxu0 %v6197
      %6899 = vmatpush.bf16.msra.mxu0 %v6196
      %6900 = vmatpush.bf16.msra.mxu0 %v6195
      %6901 = vmatpush.bf16.msra.mxu0 %v6194
      %6902 = vmatmul.bf16.gmra.mxu0 %v841
      %v6903 = vpop.f32.mrf.mxu0
      %v6904 = vadd.f32 %v6882, %v6903
      %v6905 = vpop.f32.mrf.mxu0
      %v6906 = vadd.f32 %v6884, %v6905
      %6907 = vmatmul.bf16.gmra.mxu0 %v866
      %v6908 = vpop.f32.mrf.mxu0
      %v6909 = vadd.f32 %v6887, %v6908
      %v6910 = vpop.f32.mrf.mxu0
      %v6911 = vadd.f32 %v6889, %v6910
      %6912 = vmatmul.bf16.gmra.mxu0 %v891
      %v6913 = vpop.f32.mrf.mxu0
      %v6914 = vpop.f32.mrf.mxu0
      %6915 = vdwg.mxu0
      %6916 = vmatpush.bf16.msra.mxu0 %v6209
      %6917 = vmatpush.bf16.msra.mxu0 %v6208
      %6918 = vmatpush.bf16.msra.mxu0 %v6207
      %6919 = vmatpush.bf16.msra.mxu0 %v6206
      %6920 = vmatpush.bf16.msra.mxu0 %v6205
      %6921 = vmatpush.bf16.msra.mxu0 %v6204
      %6922 = vmatpush.bf16.msra.mxu0 %v6203
      %6923 = vmatpush.bf16.msra.mxu0 %v6202
      %6924 = vmatmul.bf16.gmra.mxu0 %v842
      %v6925 = vpop.f32.mrf.mxu0
      %v6926 = vadd.f32 %v6904, %v6925
      %v6927 = vpop.f32.mrf.mxu0
      %v6928 = vadd.f32 %v6906, %v6927
      %6929 = vmatmul.bf16.gmra.mxu0 %v867
      %v6930 = vpop.f32.mrf.mxu0
      %v6931 = vadd.f32 %v6909, %v6930
      %v6932 = vpop.f32.mrf.mxu0
      %v6933 = vadd.f32 %v6911, %v6932
      %6934 = vmatmul.bf16.gmra.mxu0 %v892
      %v6935 = vpop.f32.mrf.mxu0
      %v6936 = vpop.f32.mrf.mxu0
      %6937 = vdwg.mxu0
      %6938 = vmatpush.bf16.msra.mxu0 0
      %6939 = vmatpush.bf16.msra.mxu0 0
      %6940 = vmatpush.bf16.msra.mxu0 0
      %6941 = vmatpush.bf16.msra.mxu0 0
      %6942 = vmatpush.bf16.msra.mxu0 %v6213
      %6943 = vmatpush.bf16.msra.mxu0 %v6212
      %6944 = vmatpush.bf16.msra.mxu0 %v6211
      %6945 = vmatpush.bf16.msra.mxu0 %v6210
      %6946 = vmatmul.bf16.gmra.mxu0 %v2144
      %v6947 = vpop.f32.mrf.mxu0
      %v6948 = vadd.f32 %v6926, %v6947
      %v6949 = vpop.f32.mrf.mxu0
      %v6950 = vadd.f32 %v6928, %v6949
      %6951 = vmatmul.bf16.gmra.mxu0 %v2147
      %v6952 = vpop.f32.mrf.mxu0
      %v6953 = vadd.f32 %v6931, %v6952
      %v6954 = vpop.f32.mrf.mxu0
      %v6955 = vadd.f32 %v6933, %v6954
      %6956 = vmatmul.bf16.gmra.mxu0 %v2150
      %v6957 = vpop.f32.mrf.mxu0
      %v6958 = vpop.f32.mrf.mxu0
      %6959 = vdwg.mxu0
      %vm6964 = vcmask 1042432
      %v6965 = vrot.slane %v6948, 5
      %v6966 = vrot.slane %v6950, 5
      %v6967 = vsel %vm6964, %v6965, %v6966
      %v6968 = vrot.slane %v6953, 5
      %v6969 = vsel %vm6964, %v6966, %v6968
      %v6970 = vrot.slane %v6955, 5
      %v6971 = vsel %vm6964, %v6968, %v6970
      %v6976 = vadd.f32 %v4837, %v6967
      %v6977 = vadd.f32 %v4838, %v6969
      %v6978 = vadd.f32 %v4839, %v6971
      %v6979 = vadd.f32 %v4840, %v6970
      %s6980 = scalar_lea.vmem %s1, 4704
      %v6981 = vld [vmem:[%s6980] sm:$0xf]
      %v6982 = vld [vmem:[%s6980 + $0x4] sm:$0xf]
      %v6983 = vld [vmem:[%s6980 + $0x8] sm:$0xf]
      %v6984 = vld [vmem:[%s6980 + $0xc] sm:$0xf]
      %v6985 = vld [vmem:[%s6980 + $0x10] sm:$0xf]
      %v6986 = vld [vmem:[%s6980 + $0x14] sm:$0xf]
      %v6987 = vld [vmem:[%s6980 + $0x18] sm:$0xf]
      %v6988 = vld [vmem:[%s6980 + $0x1c] sm:$0xf]
      %v6989 = vld [vmem:[%s6980 + $0x20] sm:$0xf]
      %v6990 = vld [vmem:[%s6980 + $0x24] sm:$0xf]
      %v6991 = vld [vmem:[%s6980 + $0x28] sm:$0xf]
      %v6992 = vld [vmem:[%s6980 + $0x2c] sm:$0xf]
      %v6993 = vld [vmem:[%s6980 + $0x30] sm:$0xf]
      %v6994 = vld [vmem:[%s6980 + $0x34] sm:$0xf]
      %v6995 = vld [vmem:[%s6980 + $0x38] sm:$0xf]
      %v6996 = vld [vmem:[%s6980 + $0x3c] sm:$0xf]
      %v6997 = vld [vmem:[%s6980 + $0x40] sm:$0xf]
      %v6998 = vld [vmem:[%s6980 + $0x44] sm:$0xf]
      %v6999 = vld [vmem:[%s6980 + $0x48] sm:$0xf]
      %v7000 = vld [vmem:[%s6980 + $0x4c] sm:$0xf]
      %v7001 = vld [vmem:[%s6980 + $0x50] sm:$0xf]
      %v7002 = vld [vmem:[%s6980 + $0x54] sm:$0xf]
      %v7003 = vld [vmem:[%s6980 + $0x58] sm:$0xf]
      %v7004 = vld [vmem:[%s6980 + $0x5c] sm:$0xf]
      %v7005 = vld [vmem:[%s6980 + $0x60] sm:$0xf]
      %v7006 = vld [vmem:[%s6980 + $0x64] sm:$0xf]
      %v7007 = vld [vmem:[%s6980 + $0x68] sm:$0xf]
      %v7008 = vld [vmem:[%s6980 + $0x6c] sm:$0xf]
      %v7009 = vld [vmem:[%s6980 + $0x70] sm:$0xf]
      %v7010 = vld [vmem:[%s6980 + $0x74] sm:$0xf]
      %v7011 = vld [vmem:[%s6980 + $0x78] sm:$0xf]
      %v7012 = vld [vmem:[%s6980 + $0x7c] sm:$0xf]
      %v7013 = vld [vmem:[%s6980 + $0x80] sm:$0xf]
      %v7014 = vld [vmem:[%s6980 + $0x84] sm:$0xf]
      %v7015 = vld [vmem:[%s6980 + $0x88] sm:$0xf]
      %v7016 = vld [vmem:[%s6980 + $0x8c] sm:$0xf]
      %v7017 = vld [vmem:[%s6980 + $0x90] sm:$0xf]
      %v7018 = vld [vmem:[%s6980 + $0x94] sm:$0xf]
      %v7019 = vld [vmem:[%s6980 + $0x98] sm:$0xf]
      %v7020 = vld [vmem:[%s6980 + $0x9c] sm:$0xf]
      %v7021 = vld [vmem:[%s6980 + $0xa0] sm:$0xf]
      %v7022 = vld [vmem:[%s6980 + $0xa4] sm:$0xf]
      %v7023 = vld [vmem:[%s6980 + $0xa8] sm:$0xf]
      %v7024 = vld [vmem:[%s6980 + $0xac] sm:$0xf]
      %v7025 = vld [vmem:[%s6980 + $0xb0] sm:$0xf]
      %v7026 = vld [vmem:[%s6980 + $0xb4] sm:$0xf]
      %v7027 = vld [vmem:[%s6980 + $0xb8] sm:$0xf]
      %v7028 = vld [vmem:[%s6980 + $0xbc] sm:$0xf]
      %v7029 = vld [vmem:[%s6980 + $0xc0] sm:$0xf]
      %v7030 = vld [vmem:[%s6980 + $0xc4] sm:$0xf]
      %v7031 = vld [vmem:[%s6980 + $0xc8] sm:$0xf]
      %v7032 = vld [vmem:[%s6980 + $0xcc] sm:$0xf]
      %v7033 = vld [vmem:[%s6980 + $0xd0] sm:$0xf]
      %v7034 = vld [vmem:[%s6980 + $0xd4] sm:$0xf]
      %v7035 = vld [vmem:[%s6980 + $0xd8] sm:$0xf]
      %v7036 = vld [vmem:[%s6980 + $0xdc] sm:$0xf]
      %v7037 = vld [vmem:[%s6980 + $0xe0] sm:$0xf]
      %v7038 = vld [vmem:[%s6980 + $0xe4] sm:$0xf]
      %v7039 = vld [vmem:[%s6980 + $0xe8] sm:$0xf]
      %v7040 = vld [vmem:[%s6980 + $0xec] sm:$0xf]
      %v7041 = vld [vmem:[%s6980 + $0xf0] sm:$0xf]
      %v7042 = vld [vmem:[%s6980 + $0xf4] sm:$0xf]
      %v7043 = vld [vmem:[%s6980 + $0xf8] sm:$0xf]
      %v7044 = vld [vmem:[%s6980 + $0xfc] sm:$0xf]
      %v7045 = vld [vmem:[%s6980 + $0x100] sm:$0xf]
      %v7046 = vld [vmem:[%s6980 + $0x104] sm:$0xf]
      %v7047 = vld [vmem:[%s6980 + $0x108] sm:$0xf]
      %v7048 = vld [vmem:[%s6980 + $0x10c] sm:$0xf]
      %v7049 = vld [vmem:[%s6980 + $0x110] sm:$0xf]
      %v7050 = vld [vmem:[%s6980 + $0x114] sm:$0xf]
      %v7051 = vld [vmem:[%s6980 + $0x118] sm:$0xf]
      %v7052 = vld [vmem:[%s6980 + $0x11c] sm:$0xf]
      %v7053 = vld [vmem:[%s6980 + $0x120] sm:$0xf]
      %v7054 = vld [vmem:[%s6980 + $0x124] sm:$0xf]
      %v7055 = vld [vmem:[%s6980 + $0x128] sm:$0xf]
      %v7056 = vld [vmem:[%s6980 + $0x12c] sm:$0xf]
      %v7057 = vld [vmem:[%s6980 + $0x130] sm:$0xf]
      %v7058 = vld [vmem:[%s6980 + $0x134] sm:$0xf]
      %v7059 = vld [vmem:[%s6980 + $0x138] sm:$0xf]
      %v7060 = vld [vmem:[%s6980 + $0x13c] sm:$0xf]
      %v7061 = vld [vmem:[%s6980 + $0x140] sm:$0xf]
      %v7062 = vld [vmem:[%s6980 + $0x144] sm:$0xf]
      %v7063 = vld [vmem:[%s6980 + $0x148] sm:$0xf]
      %v7064 = vld [vmem:[%s6980 + $0x14c] sm:$0xf]
      %v7065 = vld [vmem:[%s6980 + $0x150] sm:$0xf]
      %v7066 = vld [vmem:[%s6980 + $0x154] sm:$0xf]
      %v7067 = vld [vmem:[%s6980 + $0x158] sm:$0xf]
      %v7068 = vld [vmem:[%s6980 + $0x15c] sm:$0xf]
      %v7069 = vld [vmem:[%s6980 + $0x160] sm:$0xf]
      %v7070 = vld [vmem:[%s6980 + $0x164] sm:$0xf]
      %v7071 = vld [vmem:[%s6980 + $0x168] sm:$0xf]
      %v7072 = vld [vmem:[%s6980 + $0x16c] sm:$0xf]
      %v7073 = vld [vmem:[%s6980 + $0x170] sm:$0xf]
      %v7074 = vld [vmem:[%s6980 + $0x174] sm:$0xf]
      %v7075 = vld [vmem:[%s6980 + $0x178] sm:$0xf]
      %v7076 = vld [vmem:[%s6980 + $0x17c] sm:$0xf]
      %v7077 = vld [vmem:[%s6980 + $0x180] sm:$0xf]
      %v7078 = vld [vmem:[%s6980 + $0x184] sm:$0xf]
      %v7079 = vld [vmem:[%s6980 + $0x188] sm:$0xf]
      %v7080 = vld [vmem:[%s6980 + $0x18c] sm:$0xf]
      %v7081 = vld [vmem:[%s6980 + $0x190] sm:$0xf]
      %v7082 = vld [vmem:[%s6980 + $0x194] sm:$0xf]
      %v7083 = vld [vmem:[%s6980 + $0x198] sm:$0xf]
      %v7084 = vld [vmem:[%s6980 + $0x19c] sm:$0xf]
      %v7085 = vld [vmem:[%s6980 + $0x1a0] sm:$0xf]
      %v7086 = vld [vmem:[%s6980 + $0x1a4] sm:$0xf]
      %v7087 = vld [vmem:[%s6980 + $0x1a8] sm:$0xf]
      %v7088 = vld [vmem:[%s6980 + $0x1ac] sm:$0xf]
      %v7089 = vld [vmem:[%s6980 + $0x1b0] sm:$0xf]
      %v7090 = vld [vmem:[%s6980 + $0x1b4] sm:$0xf]
      %v7091 = vld [vmem:[%s6980 + $0x1b8] sm:$0xf]
      %v7092 = vld [vmem:[%s6980 + $0x1bc] sm:$0xf]
      %v7093 = vld [vmem:[%s6980 + $0x1c0] sm:$0xf]
      %v7094 = vld [vmem:[%s6980 + $0x1c4] sm:$0xf]
      %v7095 = vld [vmem:[%s6980 + $0x1c8] sm:$0xf]
      %v7096 = vld [vmem:[%s6980 + $0x1cc] sm:$0xf]
      %v7097 = vld [vmem:[%s6980 + $0x1d0] sm:$0xf]
      %v7098 = vld [vmem:[%s6980 + $0x1d4] sm:$0xf]
      %v7099 = vld [vmem:[%s6980 + $0x1d8] sm:$0xf]
      %v7100 = vld [vmem:[%s6980 + $0x1dc] sm:$0xf]
      %v7101 = vld [vmem:[%s6980 + $0x1e0] sm:$0xf]
      %v7102 = vld [vmem:[%s6980 + $0x1e4] sm:$0xf]
      %v7103 = vld [vmem:[%s6980 + $0x1e8] sm:$0xf]
      %v7104 = vld [vmem:[%s6980 + $0x1ec] sm:$0xf]
      %v7105 = vld [vmem:[%s6980 + $0x1f0] sm:$0xf]
      %v7106 = vld [vmem:[%s6980 + $0x1f4] sm:$0xf]
      %v7107 = vld [vmem:[%s6980 + $0x1f8] sm:$0xf]
      %v7108 = vld [vmem:[%s6980 + $0x1fc] sm:$0xf]
      %v7109 = vld [vmem:[%s6980 + $0x200] sm:$0xf]
      %v7110 = vld [vmem:[%s6980 + $0x204] sm:$0xf]
      %v7111 = vld [vmem:[%s6980 + $0x208] sm:$0xf]
      %v7112 = vld [vmem:[%s6980 + $0x20c] sm:$0xf]
      %v7113 = vld [vmem:[%s6980 + $0x210] sm:$0xf]
      %v7114 = vld [vmem:[%s6980 + $0x214] sm:$0xf]
      %v7115 = vld [vmem:[%s6980 + $0x218] sm:$0xf]
      %v7116 = vld [vmem:[%s6980 + $0x21c] sm:$0xf]
      %v7117 = vld [vmem:[%s6980 + $0x220] sm:$0xf]
      %v7118 = vld [vmem:[%s6980 + $0x224] sm:$0xf]
      %v7119 = vld [vmem:[%s6980 + $0x228] sm:$0xf]
      %v7120 = vld [vmem:[%s6980 + $0x22c] sm:$0xf]
      %v7121 = vld [vmem:[%s6980 + $0x230] sm:$0xf]
      %v7122 = vld [vmem:[%s6980 + $0x234] sm:$0xf]
      %v7123 = vld [vmem:[%s6980 + $0x238] sm:$0xf]
      %v7124 = vld [vmem:[%s6980 + $0x23c] sm:$0xf]
      %v7125 = vld [vmem:[%s6980 + $0x240] sm:$0xf]
      %v7126 = vld [vmem:[%s6980 + $0x244] sm:$0xf]
      %v7127 = vld [vmem:[%s6980 + $0x248] sm:$0xf]
      %v7128 = vld [vmem:[%s6980 + $0x24c] sm:$0xf]
      %v7129 = vld [vmem:[%s6980 + $0x250] sm:$0xf]
      %v7130 = vld [vmem:[%s6980 + $0x254] sm:$0xf]
      %v7131 = vld [vmem:[%s6980 + $0x258] sm:$0xf]
      %v7132 = vld [vmem:[%s6980 + $0x25c] sm:$0xf]
      %v7133 = vld [vmem:[%s6980 + $0x260] sm:$0xf]
      %v7134 = vld [vmem:[%s6980 + $0x264] sm:$0xf]
      %v7135 = vld [vmem:[%s6980 + $0x268] sm:$0xf]
      %v7136 = vld [vmem:[%s6980 + $0x26c] sm:$0xf]
      %v7137 = vld [vmem:[%s6980 + $0x270] sm:$0xf]
      %v7138 = vld [vmem:[%s6980 + $0x274] sm:$0xf]
      %v7139 = vld [vmem:[%s6980 + $0x278] sm:$0xf]
      %v7140 = vld [vmem:[%s6980 + $0x27c] sm:$0xf]
      %v7141 = vld [vmem:[%s6980 + $0x280] sm:$0xf]
      %v7142 = vld [vmem:[%s6980 + $0x284] sm:$0xf]
      %v7143 = vld [vmem:[%s6980 + $0x288] sm:$0xf]
      %v7144 = vld [vmem:[%s6980 + $0x28c] sm:$0xf]
      %v7145 = vld [vmem:[%s6980 + $0x290] sm:$0xf]
      %v7146 = vld [vmem:[%s6980 + $0x294] sm:$0xf]
      %v7147 = vld [vmem:[%s6980 + $0x298] sm:$0xf]
      %v7148 = vld [vmem:[%s6980 + $0x29c] sm:$0xf]
      %v7149 = vld [vmem:[%s6980 + $0x2a0] sm:$0xf]
      %v7150 = vld [vmem:[%s6980 + $0x2a4] sm:$0xf]
      %v7151 = vld [vmem:[%s6980 + $0x2a8] sm:$0xf]
      %v7152 = vld [vmem:[%s6980 + $0x2ac] sm:$0xf]
      %v7153 = vld [vmem:[%s6980 + $0x2b0] sm:$0xf]
      %v7154 = vld [vmem:[%s6980 + $0x2b4] sm:$0xf]
      %v7155 = vld [vmem:[%s6980 + $0x2b8] sm:$0xf]
      %v7156 = vld [vmem:[%s6980 + $0x2bc] sm:$0xf]
      %v7157 = vld [vmem:[%s6980 + $0x2c0] sm:$0xf]
      %v7158 = vld [vmem:[%s6980 + $0x2c4] sm:$0xf]
      %v7159 = vld [vmem:[%s6980 + $0x2c8] sm:$0xf]
      %v7160 = vld [vmem:[%s6980 + $0x2cc] sm:$0xf]
      %v7161 = vld [vmem:[%s6980 + $0x2d0] sm:$0xf]
      %v7162 = vld [vmem:[%s6980 + $0x2d4] sm:$0xf]
      %v7163 = vld [vmem:[%s6980 + $0x2d8] sm:$0xf]
      %v7164 = vld [vmem:[%s6980 + $0x2dc] sm:$0xf]
      %v7165 = vld [vmem:[%s6980 + $0x2e0] sm:$0xf]
      %v7166 = vld [vmem:[%s6980 + $0x2e4] sm:$0xf]
      %v7167 = vld [vmem:[%s6980 + $0x2e8] sm:$0xf]
      %v7168 = vld [vmem:[%s6980 + $0x2ec] sm:$0xf]
      %v7169 = vld [vmem:[%s6980 + $0x2f0] sm:$0xf]
      %v7170 = vld [vmem:[%s6980 + $0x2f4] sm:$0xf]
      %v7171 = vld [vmem:[%s6980 + $0x2f8] sm:$0xf]
      %v7172 = vld [vmem:[%s6980 + $0x2fc] sm:$0xf]
      %v7173 = vld [vmem:[%s6980 + $0x300] sm:$0xf]
      %v7174 = vld [vmem:[%s6980 + $0x304] sm:$0xf]
      %v7175 = vld [vmem:[%s6980 + $0x308] sm:$0xf]
      %v7176 = vld [vmem:[%s6980 + $0x30c] sm:$0xf]
      %v7177 = vld [vmem:[%s6980 + $0x310] sm:$0xf]
      %v7178 = vld [vmem:[%s6980 + $0x314] sm:$0xf]
      %v7179 = vld [vmem:[%s6980 + $0x318] sm:$0xf]
      %v7180 = vld [vmem:[%s6980 + $0x31c] sm:$0xf]
      %v7181 = vld [vmem:[%s6980 + $0x320] sm:$0xf]
      %v7182 = vld [vmem:[%s6980 + $0x324] sm:$0xf]
      %v7183 = vld [vmem:[%s6980 + $0x328] sm:$0xf]
      %v7184 = vld [vmem:[%s6980 + $0x32c] sm:$0xf]
      %v7185 = vld [vmem:[%s6980 + $0x330] sm:$0xf]
      %v7186 = vld [vmem:[%s6980 + $0x334] sm:$0xf]
      %v7187 = vld [vmem:[%s6980 + $0x338] sm:$0xf]
      %v7188 = vld [vmem:[%s6980 + $0x33c] sm:$0xf]
      %v7189 = vld [vmem:[%s6980 + $0x340] sm:$0xf]
      %v7190 = vld [vmem:[%s6980 + $0x344] sm:$0xf]
      %v7191 = vld [vmem:[%s6980 + $0x348] sm:$0xf]
      %v7192 = vld [vmem:[%s6980 + $0x34c] sm:$0xf]
      %v7193 = vld [vmem:[%s6980 + $0x350] sm:$0xf]
      %v7194 = vld [vmem:[%s6980 + $0x354] sm:$0xf]
      %v7195 = vld [vmem:[%s6980 + $0x358] sm:$0xf]
      %v7196 = vld [vmem:[%s6980 + $0x35c] sm:$0xf]
      %v7197 = vld [vmem:[%s6980 + $0x360] sm:$0xf]
      %v7198 = vld [vmem:[%s6980 + $0x364] sm:$0xf]
      %v7199 = vld [vmem:[%s6980 + $0x368] sm:$0xf]
      %v7200 = vld [vmem:[%s6980 + $0x36c] sm:$0xf]
      %v7201 = vld [vmem:[%s6980 + $0x370] sm:$0xf]
      %v7202 = vld [vmem:[%s6980 + $0x374] sm:$0xf]
      %v7203 = vld [vmem:[%s6980 + $0x378] sm:$0xf]
      %v7204 = vld [vmem:[%s6980 + $0x37c] sm:$0xf]
      %v7205 = vld [vmem:[%s6980 + $0x380] sm:$0xf]
      %v7206 = vld [vmem:[%s6980 + $0x384] sm:$0xf]
      %v7207 = vld [vmem:[%s6980 + $0x388] sm:$0xf]
      %v7208 = vld [vmem:[%s6980 + $0x38c] sm:$0xf]
      %v7209 = vld [vmem:[%s6980 + $0x390] sm:$0xf]
      %v7210 = vld [vmem:[%s6980 + $0x394] sm:$0xf]
      %v7211 = vld [vmem:[%s6980 + $0x398] sm:$0xf]
      %v7212 = vld [vmem:[%s6980 + $0x39c] sm:$0xf]
      %v7213 = vld [vmem:[%s6980 + $0x3a0] sm:$0xf]
      %v7214 = vld [vmem:[%s6980 + $0x3a4] sm:$0xf]
      %v7215 = vld [vmem:[%s6980 + $0x3a8] sm:$0xf]
      %v7216 = vld [vmem:[%s6980 + $0x3ac] sm:$0xf]
      %v7217 = vld [vmem:[%s6980 + $0x3b0] sm:$0xf]
      %v7218 = vld [vmem:[%s6980 + $0x3b4] sm:$0xf]
      %v7219 = vld [vmem:[%s6980 + $0x3b8] sm:$0xf]
      %v7220 = vld [vmem:[%s6980 + $0x3bc] sm:$0xf]
      %v7221 = vld [vmem:[%s6980 + $0x3c0] sm:$0xf]
      %v7222 = vld [vmem:[%s6980 + $0x3c4] sm:$0xf]
      %v7223 = vld [vmem:[%s6980 + $0x3c8] sm:$0xf]
      %v7224 = vld [vmem:[%s6980 + $0x3cc] sm:$0xf]
      %v7225 = vld [vmem:[%s6980 + $0x3d0] sm:$0xf]
      %v7226 = vld [vmem:[%s6980 + $0x3d4] sm:$0xf]
      %v7227 = vld [vmem:[%s6980 + $0x3d8] sm:$0xf]
      %v7228 = vld [vmem:[%s6980 + $0x3dc] sm:$0xf]
      %v7229 = vld [vmem:[%s6980 + $0x3e0] sm:$0xf]
      %v7230 = vld [vmem:[%s6980 + $0x3e4] sm:$0xf]
      %v7231 = vld [vmem:[%s6980 + $0x3e8] sm:$0xf]
      %v7232 = vld [vmem:[%s6980 + $0x3ec] sm:$0xf]
      %v7233 = vld [vmem:[%s6980 + $0x3f0] sm:$0xf]
      %v7234 = vld [vmem:[%s6980 + $0x3f4] sm:$0xf]
      %v7235 = vld [vmem:[%s6980 + $0x3f8] sm:$0xf]
      %v7236 = vld [vmem:[%s6980 + $0x3fc] sm:$0xf]
      %v7237 = vld [vmem:[%s6980 + $0x400] sm:$0xf]
      %v7238 = vld [vmem:[%s6980 + $0x404] sm:$0xf]
      %v7239 = vld [vmem:[%s6980 + $0x408] sm:$0xf]
      %v7240 = vld [vmem:[%s6980 + $0x40c] sm:$0xf]
      %v7241 = vld [vmem:[%s6980 + $0x410] sm:$0xf]
      %v7242 = vld [vmem:[%s6980 + $0x414] sm:$0xf]
      %v7243 = vld [vmem:[%s6980 + $0x418] sm:$0xf]
      %v7244 = vld [vmem:[%s6980 + $0x41c] sm:$0xf]
      %v7245 = vld [vmem:[%s6980 + $0x420] sm:$0xf]
      %v7246 = vld [vmem:[%s6980 + $0x424] sm:$0xf]
      %v7247 = vld [vmem:[%s6980 + $0x428] sm:$0xf]
      %v7248 = vld [vmem:[%s6980 + $0x42c] sm:$0xf]
      %v7249 = vld [vmem:[%s6980 + $0x430] sm:$0xf]
      %v7250 = vld [vmem:[%s6980 + $0x434] sm:$0xf]
      %v7251 = vld [vmem:[%s6980 + $0x438] sm:$0xf]
      %v7252 = vld [vmem:[%s6980 + $0x43c] sm:$0xf]
      %v7253 = vld [vmem:[%s6980 + $0x440] sm:$0xf]
      %v7254 = vld [vmem:[%s6980 + $0x444] sm:$0xf]
      %v7255 = vld [vmem:[%s6980 + $0x448] sm:$0xf]
      %v7256 = vld [vmem:[%s6980 + $0x44c] sm:$0xf]
      %v7257 = vld [vmem:[%s6980 + $0x450] sm:$0xf]
      %v7258 = vld [vmem:[%s6980 + $0x454] sm:$0xf]
      %v7259 = vld [vmem:[%s6980 + $0x458] sm:$0xf]
      %v7260 = vld [vmem:[%s6980 + $0x45c] sm:$0xf]
      %v7261 = vld [vmem:[%s6980 + $0x460] sm:$0xf]
      %v7262 = vld [vmem:[%s6980 + $0x464] sm:$0xf]
      %v7263 = vld [vmem:[%s6980 + $0x468] sm:$0xf]
      %v7264 = vld [vmem:[%s6980 + $0x46c] sm:$0xf]
      %v7265 = vld [vmem:[%s6980 + $0x470] sm:$0xf]
      %v7266 = vld [vmem:[%s6980 + $0x474] sm:$0xf]
      %v7267 = vld [vmem:[%s6980 + $0x478] sm:$0xf]
      %v7268 = vld [vmem:[%s6980 + $0x47c] sm:$0xf]
      %v7269 = vld [vmem:[%s6980 + $0x480] sm:$0xf]
      %v7270 = vld [vmem:[%s6980 + $0x484] sm:$0xf]
      %v7271 = vld [vmem:[%s6980 + $0x488] sm:$0xf]
      %v7272 = vld [vmem:[%s6980 + $0x48c] sm:$0xf]
      %v7273 = vld [vmem:[%s6980 + $0x490] sm:$0xf]
      %v7274 = vld [vmem:[%s6980 + $0x494] sm:$0xf]
      %v7275 = vld [vmem:[%s6980 + $0x498] sm:$0xf]
      %v7276 = vld [vmem:[%s6980 + $0x49c] sm:$0xf]
      %v7277 = vld [vmem:[%s6980 + $0x4a0] sm:$0xf]
      %v7278 = vld [vmem:[%s6980 + $0x4a4] sm:$0xf]
      %v7279 = vld [vmem:[%s6980 + $0x4a8] sm:$0xf]
      %v7280 = vld [vmem:[%s6980 + $0x4ac] sm:$0xf]
      %v7281 = vld [vmem:[%s6980 + $0x4b0] sm:$0xf]
      %v7282 = vld [vmem:[%s6980 + $0x4b4] sm:$0xf]
      %v7283 = vld [vmem:[%s6980 + $0x4b8] sm:$0xf]
      %v7284 = vld [vmem:[%s6980 + $0x4bc] sm:$0xf]
      %v7285 = vld [vmem:[%s6980 + $0x4c0] sm:$0xf]
      %v7286 = vld [vmem:[%s6980 + $0x4c4] sm:$0xf]
      %v7287 = vld [vmem:[%s6980 + $0x4c8] sm:$0xf]
      %v7288 = vld [vmem:[%s6980 + $0x4cc] sm:$0xf]
      %v7289 = vld [vmem:[%s6980 + $0x4d0] sm:$0xf]
      %v7290 = vld [vmem:[%s6980 + $0x4d4] sm:$0xf]
      %v7291 = vld [vmem:[%s6980 + $0x4d8] sm:$0xf]
      %v7292 = vld [vmem:[%s6980 + $0x4dc] sm:$0xf]
      %v7293 = vld [vmem:[%s6980 + $0x4e0] sm:$0xf]
      %v7294 = vld [vmem:[%s6980 + $0x4e4] sm:$0xf]
      %v7295 = vld [vmem:[%s6980 + $0x4e8] sm:$0xf]
      %v7296 = vld [vmem:[%s6980 + $0x4ec] sm:$0xf]
      %v7297 = vld [vmem:[%s6980 + $0x4f0] sm:$0xf]
      %v7298 = vld [vmem:[%s6980 + $0x4f4] sm:$0xf]
      %v7299 = vld [vmem:[%s6980 + $0x4f8] sm:$0xf]
      %v7300 = vld [vmem:[%s6980 + $0x4fc] sm:$0xf]
      %v7301 = vld [vmem:[%s6980 + $0x500] sm:$0xf]
      %v7302 = vld [vmem:[%s6980 + $0x504] sm:$0xf]
      %v7303 = vld [vmem:[%s6980 + $0x508] sm:$0xf]
      %v7304 = vld [vmem:[%s6980 + $0x50c] sm:$0xf]
      %v7305 = vld [vmem:[%s6980 + $0x510] sm:$0xf]
      %v7306 = vld [vmem:[%s6980 + $0x514] sm:$0xf]
      %v7307 = vld [vmem:[%s6980 + $0x518] sm:$0xf]
      %v7308 = vld [vmem:[%s6980 + $0x51c] sm:$0xf]
      %v7309 = vld [vmem:[%s6980 + $0x520] sm:$0xf]
      %v7310 = vld [vmem:[%s6980 + $0x524] sm:$0xf]
      %v7311 = vld [vmem:[%s6980 + $0x528] sm:$0xf]
      %v7312 = vld [vmem:[%s6980 + $0x52c] sm:$0xf]
      %v7313 = vld [vmem:[%s6980 + $0x530] sm:$0xf]
      %v7314 = vld [vmem:[%s6980 + $0x534] sm:$0xf]
      %v7315 = vld [vmem:[%s6980 + $0x538] sm:$0xf]
      %v7316 = vld [vmem:[%s6980 + $0x53c] sm:$0xf]
      %v7317 = vld [vmem:[%s6980 + $0x540] sm:$0xf]
      %v7318 = vld [vmem:[%s6980 + $0x544] sm:$0xf]
      %v7319 = vld [vmem:[%s6980 + $0x548] sm:$0xf]
      %v7320 = vld [vmem:[%s6980 + $0x54c] sm:$0xf]
      %v7321 = vld [vmem:[%s6980 + $0x550] sm:$0xf]
      %v7322 = vld [vmem:[%s6980 + $0x554] sm:$0xf]
      %v7323 = vld [vmem:[%s6980 + $0x558] sm:$0xf]
      %v7324 = vld [vmem:[%s6980 + $0x55c] sm:$0xf]
      %v7325 = vld [vmem:[%s6980 + $0x560] sm:$0xf]
      %v7326 = vld [vmem:[%s6980 + $0x564] sm:$0xf]
      %v7327 = vld [vmem:[%s6980 + $0x568] sm:$0xf]
      %v7328 = vld [vmem:[%s6980 + $0x56c] sm:$0xf]
      %v7329 = vld [vmem:[%s6980 + $0x570] sm:$0xf]
      %v7330 = vld [vmem:[%s6980 + $0x574] sm:$0xf]
      %v7331 = vld [vmem:[%s6980 + $0x578] sm:$0xf]
      %v7332 = vld [vmem:[%s6980 + $0x57c] sm:$0xf]
      %v7333 = vld [vmem:[%s6980 + $0x580] sm:$0xf]
      %v7334 = vld [vmem:[%s6980 + $0x584] sm:$0xf]
      %v7335 = vld [vmem:[%s6980 + $0x588] sm:$0xf]
      %v7336 = vld [vmem:[%s6980 + $0x58c] sm:$0xf]
      %v7337 = vld [vmem:[%s6980 + $0x590] sm:$0xf]
      %v7338 = vld [vmem:[%s6980 + $0x594] sm:$0xf]
      %v7339 = vld [vmem:[%s6980 + $0x598] sm:$0xf]
      %v7340 = vld [vmem:[%s6980 + $0x59c] sm:$0xf]
      %v7341 = vld [vmem:[%s6980 + $0x5a0] sm:$0xf]
      %v7342 = vld [vmem:[%s6980 + $0x5a4] sm:$0xf]
      %v7343 = vld [vmem:[%s6980 + $0x5a8] sm:$0xf]
      %v7344 = vld [vmem:[%s6980 + $0x5ac] sm:$0xf]
      %v7345 = vld [vmem:[%s6980 + $0x5b0] sm:$0xf]
      %v7346 = vld [vmem:[%s6980 + $0x5b4] sm:$0xf]
      %v7347 = vld [vmem:[%s6980 + $0x5b8] sm:$0xf]
      %v7348 = vld [vmem:[%s6980 + $0x5bc] sm:$0xf]
      %v7349 = vld [vmem:[%s6980 + $0x5c0] sm:$0xf]
      %v7350 = vld [vmem:[%s6980 + $0x5c4] sm:$0xf]
      %v7351 = vld [vmem:[%s6980 + $0x5c8] sm:$0xf]
      %v7352 = vld [vmem:[%s6980 + $0x5cc] sm:$0xf]
      %v7353 = vld [vmem:[%s6980 + $0x5d0] sm:$0xf]
      %v7354 = vld [vmem:[%s6980 + $0x5d4] sm:$0xf]
      %v7355 = vld [vmem:[%s6980 + $0x5d8] sm:$0xf]
      %v7356 = vld [vmem:[%s6980 + $0x5dc] sm:$0xf]
      %v7357 = vld [vmem:[%s6980 + $0x5e0] sm:$0xf]
      %v7358 = vld [vmem:[%s6980 + $0x5e4] sm:$0xf]
      %v7359 = vld [vmem:[%s6980 + $0x5e8] sm:$0xf]
      %v7360 = vld [vmem:[%s6980 + $0x5ec] sm:$0xf]
      %v7361 = vld [vmem:[%s6980 + $0x5f0] sm:$0xf]
      %v7362 = vld [vmem:[%s6980 + $0x5f4] sm:$0xf]
      %v7363 = vld [vmem:[%s6980 + $0x5f8] sm:$0xf]
      %v7364 = vld [vmem:[%s6980 + $0x5fc] sm:$0xf]
      %v7365 = vld [vmem:[%s6980 + $0x600] sm:$0xf]
      %v7366 = vld [vmem:[%s6980 + $0x604] sm:$0xf]
      %v7367 = vld [vmem:[%s6980 + $0x608] sm:$0xf]
      %v7368 = vld [vmem:[%s6980 + $0x60c] sm:$0xf]
      %v7369 = vld [vmem:[%s6980 + $0x610] sm:$0xf]
      %v7370 = vld [vmem:[%s6980 + $0x614] sm:$0xf]
      %v7371 = vld [vmem:[%s6980 + $0x618] sm:$0xf]
      %v7372 = vld [vmem:[%s6980 + $0x61c] sm:$0xf]
      %v7765 = vunpack.c.l.b16 %v6981
      %v7766 = vunpack.c.l.b16 %v6982
      %v7767 = vunpack.c.l.b16 %v6983
      %v7768 = vunpack.c.l.b16 %v6984
      %v7769 = vunpack.c.l.b16 %v6985
      %v7770 = vunpack.c.l.b16 %v6986
      %v7771 = vunpack.c.l.b16 %v6987
      %v7772 = vunpack.c.l.b16 %v6988
      %v7773 = vunpack.c.l.b16 %v6989
      %v7774 = vunpack.c.l.b16 %v6990
      %v7775 = vunpack.c.l.b16 %v6991
      %v7776 = vunpack.c.l.b16 %v6992
      %v7777 = vunpack.c.l.b16 %v6993
      %v7778 = vunpack.c.l.b16 %v6994
      %v7779 = vunpack.c.l.b16 %v6995
      %v7780 = vunpack.c.l.b16 %v6996
      %v7781 = vunpack.c.l.b16 %v6997
      %v7782 = vunpack.c.l.b16 %v6998
      %v7783 = vunpack.c.l.b16 %v6999
      %v7784 = vunpack.c.l.b16 %v7000
      %v7785 = vunpack.c.l.b16 %v7001
      %v7786 = vunpack.c.l.b16 %v7002
      %v7787 = vunpack.c.l.b16 %v7003
      %v7788 = vunpack.c.l.b16 %v7004
      %v7789 = vunpack.c.l.b16 %v7005
      %v7790 = vunpack.c.l.b16 %v7006
      %v7791 = vunpack.c.l.b16 %v7007
      %v7792 = vunpack.c.l.b16 %v7008
      %v7793 = vunpack.c.l.b16 %v7009
      %v7794 = vunpack.c.l.b16 %v7010
      %v7795 = vunpack.c.l.b16 %v7011
      %v7796 = vunpack.c.l.b16 %v7012
      %v7797 = vunpack.c.l.b16 %v7013
      %v7798 = vunpack.c.l.b16 %v7014
      %v7799 = vunpack.c.l.b16 %v7015
      %v7800 = vunpack.c.l.b16 %v7016
      %v7801 = vunpack.c.l.b16 %v7017
      %v7802 = vunpack.c.l.b16 %v7018
      %v7803 = vunpack.c.l.b16 %v7019
      %v7804 = vunpack.c.l.b16 %v7020
      %v7805 = vunpack.c.l.b16 %v7021
      %v7806 = vunpack.c.l.b16 %v7022
      %v7807 = vunpack.c.l.b16 %v7023
      %v7808 = vunpack.c.l.b16 %v7024
      %v7809 = vunpack.c.l.b16 %v7025
      %v7810 = vunpack.c.l.b16 %v7026
      %v7811 = vunpack.c.l.b16 %v7027
      %v7812 = vunpack.c.l.b16 %v7028
      %v7813 = vunpack.c.l.b16 %v7029
      %v7814 = vunpack.c.l.b16 %v7030
      %v7815 = vunpack.c.l.b16 %v7031
      %v7816 = vunpack.c.l.b16 %v7032
      %v7817 = vunpack.c.l.b16 %v7033
      %v7818 = vunpack.c.l.b16 %v7034
      %v7819 = vunpack.c.l.b16 %v7035
      %v7820 = vunpack.c.l.b16 %v7036
      %v7821 = vunpack.c.l.b16 %v7037
      %v7822 = vunpack.c.l.b16 %v7038
      %v7823 = vunpack.c.l.b16 %v7039
      %v7824 = vunpack.c.l.b16 %v7040
      %v7825 = vunpack.c.l.b16 %v7041
      %v7826 = vunpack.c.l.b16 %v7042
      %v7827 = vunpack.c.l.b16 %v7043
      %v7828 = vunpack.c.l.b16 %v7044
      %v7829 = vunpack.c.l.b16 %v7045
      %v7830 = vunpack.c.l.b16 %v7046
      %v7831 = vunpack.c.l.b16 %v7047
      %v7832 = vunpack.c.l.b16 %v7048
      %v7833 = vunpack.c.l.b16 %v7049
      %v7834 = vunpack.c.l.b16 %v7050
      %v7835 = vunpack.c.l.b16 %v7051
      %v7836 = vunpack.c.l.b16 %v7052
      %v7837 = vunpack.c.l.b16 %v7053
      %v7838 = vunpack.c.l.b16 %v7054
      %v7839 = vunpack.c.l.b16 %v7055
      %v7840 = vunpack.c.l.b16 %v7056
      %v7841 = vunpack.c.l.b16 %v7057
      %v7842 = vunpack.c.l.b16 %v7058
      %v7843 = vunpack.c.l.b16 %v7059
      %v7844 = vunpack.c.l.b16 %v7060
      %v7845 = vunpack.c.l.b16 %v7061
      %v7846 = vunpack.c.l.b16 %v7062
      %v7847 = vunpack.c.l.b16 %v7063
      %v7848 = vunpack.c.l.b16 %v7064
      %v7849 = vunpack.c.l.b16 %v7065
      %v7850 = vunpack.c.l.b16 %v7066
      %v7851 = vunpack.c.l.b16 %v7067
      %v7852 = vunpack.c.l.b16 %v7068
      %v7853 = vunpack.c.l.b16 %v7069
      %v7854 = vunpack.c.l.b16 %v7070
      %v7855 = vunpack.c.l.b16 %v7071
      %v7856 = vunpack.c.l.b16 %v7072
      %v7857 = vunpack.c.l.b16 %v7073
      %v7858 = vunpack.c.l.b16 %v7074
      %v7859 = vunpack.c.l.b16 %v7075
      %v7860 = vunpack.c.l.b16 %v7076
      %v7861 = vunpack.c.l.b16 %v7077
      %v7862 = vunpack.c.l.b16 %v7078
      %v7863 = vunpack.c.l.b16 %v7079
      %v7864 = vunpack.c.l.b16 %v7080
      %v7865 = vunpack.c.l.b16 %v7081
      %v7866 = vunpack.c.l.b16 %v7082
      %v7867 = vunpack.c.l.b16 %v7083
      %v7868 = vunpack.c.l.b16 %v7084
      %v7869 = vunpack.c.l.b16 %v7085
      %v7870 = vunpack.c.l.b16 %v7086
      %v7871 = vunpack.c.l.b16 %v7087
      %v7872 = vunpack.c.l.b16 %v7088
      %v7873 = vunpack.c.l.b16 %v7089
      %v7874 = vunpack.c.l.b16 %v7090
      %v7875 = vunpack.c.l.b16 %v7091
      %v7876 = vunpack.c.l.b16 %v7092
      %v7877 = vunpack.c.l.b16 %v7093
      %v7878 = vunpack.c.l.b16 %v7094
      %v7879 = vunpack.c.l.b16 %v7095
      %v7880 = vunpack.c.l.b16 %v7096
      %v7881 = vunpack.c.l.b16 %v7097
      %v7882 = vunpack.c.l.b16 %v7098
      %v7883 = vunpack.c.l.b16 %v7099
      %v7884 = vunpack.c.l.b16 %v7100
      %v7885 = vunpack.c.l.b16 %v7101
      %v7886 = vunpack.c.l.b16 %v7102
      %v7887 = vunpack.c.l.b16 %v7103
      %v7888 = vunpack.c.l.b16 %v7104
      %v7889 = vunpack.c.l.b16 %v7105
      %v7890 = vunpack.c.l.b16 %v7106
      %v7891 = vunpack.c.l.b16 %v7107
      %v7892 = vunpack.c.l.b16 %v7108
      %v7893 = vunpack.c.l.b16 %v7109
      %v7894 = vunpack.c.l.b16 %v7110
      %v7895 = vunpack.c.l.b16 %v7111
      %v7896 = vunpack.c.l.b16 %v7112
      %v7897 = vunpack.c.l.b16 %v7113
      %v7898 = vunpack.c.l.b16 %v7114
      %v7899 = vunpack.c.l.b16 %v7115
      %v7900 = vunpack.c.l.b16 %v7116
      %v7901 = vunpack.c.l.b16 %v7117
      %v7902 = vunpack.c.l.b16 %v7118
      %v7903 = vunpack.c.l.b16 %v7119
      %v7904 = vunpack.c.l.b16 %v7120
      %v7905 = vunpack.c.l.b16 %v7121
      %v7906 = vunpack.c.l.b16 %v7122
      %v7907 = vunpack.c.l.b16 %v7123
      %v7908 = vunpack.c.l.b16 %v7124
      %v7909 = vunpack.c.l.b16 %v7125
      %v7910 = vunpack.c.l.b16 %v7126
      %v7911 = vunpack.c.l.b16 %v7127
      %v7912 = vunpack.c.l.b16 %v7128
      %v7913 = vunpack.c.l.b16 %v7129
      %v7914 = vunpack.c.l.b16 %v7130
      %v7915 = vunpack.c.l.b16 %v7131
      %v7916 = vunpack.c.l.b16 %v7132
      %v7917 = vunpack.c.l.b16 %v7133
      %v7918 = vunpack.c.l.b16 %v7134
      %v7919 = vunpack.c.l.b16 %v7135
      %v7920 = vunpack.c.l.b16 %v7136
      %v7921 = vunpack.c.l.b16 %v7137
      %v7922 = vunpack.c.l.b16 %v7138
      %v7923 = vunpack.c.l.b16 %v7139
      %v7924 = vunpack.c.l.b16 %v7140
      %v7925 = vunpack.c.l.b16 %v7141
      %v7926 = vunpack.c.l.b16 %v7142
      %v7927 = vunpack.c.l.b16 %v7143
      %v7928 = vunpack.c.l.b16 %v7144
      %v7929 = vunpack.c.l.b16 %v7145
      %v7930 = vunpack.c.l.b16 %v7146
      %v7931 = vunpack.c.l.b16 %v7147
      %v7932 = vunpack.c.l.b16 %v7148
      %v7933 = vunpack.c.l.b16 %v7149
      %v7934 = vunpack.c.l.b16 %v7150
      %v7935 = vunpack.c.l.b16 %v7151
      %v7936 = vunpack.c.l.b16 %v7152
      %v7937 = vunpack.c.l.b16 %v7153
      %v7938 = vunpack.c.l.b16 %v7154
      %v7939 = vunpack.c.l.b16 %v7155
      %v7940 = vunpack.c.l.b16 %v7156
      %v7941 = vunpack.c.l.b16 %v7157
      %v7942 = vunpack.c.l.b16 %v7158
      %v7943 = vunpack.c.l.b16 %v7159
      %v7944 = vunpack.c.l.b16 %v7160
      %v7945 = vunpack.c.l.b16 %v7161
      %v7946 = vunpack.c.l.b16 %v7162
      %v7947 = vunpack.c.l.b16 %v7163
      %v7948 = vunpack.c.l.b16 %v7164
      %v7949 = vunpack.c.l.b16 %v7165
      %v7950 = vunpack.c.l.b16 %v7166
      %v7951 = vunpack.c.l.b16 %v7167
      %v7952 = vunpack.c.l.b16 %v7168
      %v7953 = vunpack.c.l.b16 %v7169
      %v7954 = vunpack.c.l.b16 %v7170
      %v7955 = vunpack.c.l.b16 %v7171
      %v7956 = vunpack.c.l.b16 %v7172
      %v7957 = vunpack.c.l.b16 %v7173
      %v7958 = vunpack.c.l.b16 %v7174
      %v7959 = vunpack.c.l.b16 %v7175
      %v7960 = vunpack.c.l.b16 %v7176
      %v7961 = vunpack.c.l.b16 %v7177
      %v7962 = vunpack.c.l.b16 %v7178
      %v7963 = vunpack.c.l.b16 %v7179
      %v7964 = vunpack.c.l.b16 %v7180
      %v7965 = vunpack.c.l.b16 %v7181
      %v7966 = vunpack.c.l.b16 %v7182
      %v7967 = vunpack.c.l.b16 %v7183
      %v7968 = vunpack.c.l.b16 %v7184
      %v7969 = vunpack.c.l.b16 %v7185
      %v7970 = vunpack.c.l.b16 %v7186
      %v7971 = vunpack.c.l.b16 %v7187
      %v7972 = vunpack.c.l.b16 %v7188
      %v7973 = vunpack.c.l.b16 %v7189
      %v7974 = vunpack.c.l.b16 %v7190
      %v7975 = vunpack.c.l.b16 %v7191
      %v7976 = vunpack.c.l.b16 %v7192
      %v7977 = vunpack.c.l.b16 %v7193
      %v7978 = vunpack.c.l.b16 %v7194
      %v7979 = vunpack.c.l.b16 %v7195
      %v7980 = vunpack.c.l.b16 %v7196
      %v7981 = vunpack.c.l.b16 %v7197
      %v7982 = vunpack.c.l.b16 %v7198
      %v7983 = vunpack.c.l.b16 %v7199
      %v7984 = vunpack.c.l.b16 %v7200
      %v7985 = vunpack.c.l.b16 %v7201
      %v7986 = vunpack.c.l.b16 %v7202
      %v7987 = vunpack.c.l.b16 %v7203
      %v7988 = vunpack.c.l.b16 %v7204
      %v7989 = vunpack.c.l.b16 %v7205
      %v7990 = vunpack.c.l.b16 %v7206
      %v7991 = vunpack.c.l.b16 %v7207
      %v7992 = vunpack.c.l.b16 %v7208
      %v7993 = vunpack.c.l.b16 %v7209
      %v7994 = vunpack.c.l.b16 %v7210
      %v7995 = vunpack.c.l.b16 %v7211
      %v7996 = vunpack.c.l.b16 %v7212
      %v7997 = vunpack.c.l.b16 %v7213
      %v7998 = vunpack.c.l.b16 %v7214
      %v7999 = vunpack.c.l.b16 %v7215
      %v8000 = vunpack.c.l.b16 %v7216
      %v8001 = vunpack.c.l.b16 %v7217
      %v8002 = vunpack.c.l.b16 %v7218
      %v8003 = vunpack.c.l.b16 %v7219
      %v8004 = vunpack.c.l.b16 %v7220
      %v8005 = vunpack.c.l.b16 %v7221
      %v8006 = vunpack.c.l.b16 %v7222
      %v8007 = vunpack.c.l.b16 %v7223
      %v8008 = vunpack.c.l.b16 %v7224
      %v8009 = vunpack.c.l.b16 %v7225
      %v8010 = vunpack.c.l.b16 %v7226
      %v8011 = vunpack.c.l.b16 %v7227
      %v8012 = vunpack.c.l.b16 %v7228
      %v8013 = vunpack.c.l.b16 %v7229
      %v8014 = vunpack.c.l.b16 %v7230
      %v8015 = vunpack.c.l.b16 %v7231
      %v8016 = vunpack.c.l.b16 %v7232
      %v8017 = vunpack.c.l.b16 %v7233
      %v8018 = vunpack.c.l.b16 %v7234
      %v8019 = vunpack.c.l.b16 %v7235
      %v8020 = vunpack.c.l.b16 %v7236
      %v8021 = vunpack.c.l.b16 %v7237
      %v8022 = vunpack.c.l.b16 %v7238
      %v8023 = vunpack.c.l.b16 %v7239
      %v8024 = vunpack.c.l.b16 %v7240
      %v8025 = vunpack.c.l.b16 %v7241
      %v8026 = vunpack.c.l.b16 %v7242
      %v8027 = vunpack.c.l.b16 %v7243
      %v8028 = vunpack.c.l.b16 %v7244
      %v8029 = vunpack.c.l.b16 %v7245
      %v8030 = vunpack.c.l.b16 %v7246
      %v8031 = vunpack.c.l.b16 %v7247
      %v8032 = vunpack.c.l.b16 %v7248
      %v8033 = vunpack.c.l.b16 %v7249
      %v8034 = vunpack.c.l.b16 %v7250
      %v8035 = vunpack.c.l.b16 %v7251
      %v8036 = vunpack.c.l.b16 %v7252
      %v8037 = vunpack.c.l.b16 %v7253
      %v8038 = vunpack.c.l.b16 %v7254
      %v8039 = vunpack.c.l.b16 %v7255
      %v8040 = vunpack.c.l.b16 %v7256
      %v8041 = vunpack.c.l.b16 %v7257
      %v8042 = vunpack.c.l.b16 %v7258
      %v8043 = vunpack.c.l.b16 %v7259
      %v8044 = vunpack.c.l.b16 %v7260
      %v8045 = vunpack.c.l.b16 %v7261
      %v8046 = vunpack.c.l.b16 %v7262
      %v8047 = vunpack.c.l.b16 %v7263
      %v8048 = vunpack.c.l.b16 %v7264
      %v8049 = vunpack.c.l.b16 %v7265
      %v8050 = vunpack.c.l.b16 %v7266
      %v8051 = vunpack.c.l.b16 %v7267
      %v8052 = vunpack.c.l.b16 %v7268
      %v8053 = vunpack.c.l.b16 %v7269
      %v8054 = vunpack.c.l.b16 %v7270
      %v8055 = vunpack.c.l.b16 %v7271
      %v8056 = vunpack.c.l.b16 %v7272
      %v8057 = vunpack.c.l.b16 %v7273
      %v8058 = vunpack.c.l.b16 %v7274
      %v8059 = vunpack.c.l.b16 %v7275
      %v8060 = vunpack.c.l.b16 %v7276
      %v8061 = vunpack.c.l.b16 %v7277
      %v8062 = vunpack.c.l.b16 %v7278
      %v8063 = vunpack.c.l.b16 %v7279
      %v8064 = vunpack.c.l.b16 %v7280
      %v8065 = vunpack.c.l.b16 %v7281
      %v8066 = vunpack.c.l.b16 %v7282
      %v8067 = vunpack.c.l.b16 %v7283
      %v8068 = vunpack.c.l.b16 %v7284
      %v8069 = vunpack.c.l.b16 %v7285
      %v8070 = vunpack.c.l.b16 %v7286
      %v8071 = vunpack.c.l.b16 %v7287
      %v8072 = vunpack.c.l.b16 %v7288
      %v8073 = vunpack.c.l.b16 %v7289
      %v8074 = vunpack.c.l.b16 %v7290
      %v8075 = vunpack.c.l.b16 %v7291
      %v8076 = vunpack.c.l.b16 %v7292
      %v8077 = vunpack.c.l.b16 %v7293
      %v8078 = vunpack.c.l.b16 %v7294
      %v8079 = vunpack.c.l.b16 %v7295
      %v8080 = vunpack.c.l.b16 %v7296
      %v8081 = vunpack.c.l.b16 %v7297
      %v8082 = vunpack.c.l.b16 %v7298
      %v8083 = vunpack.c.l.b16 %v7299
      %v8084 = vunpack.c.l.b16 %v7300
      %v8085 = vunpack.c.l.b16 %v7301
      %v8086 = vunpack.c.l.b16 %v7302
      %v8087 = vunpack.c.l.b16 %v7303
      %v8088 = vunpack.c.l.b16 %v7304
      %v8089 = vunpack.c.l.b16 %v7305
      %v8090 = vunpack.c.l.b16 %v7306
      %v8091 = vunpack.c.l.b16 %v7307
      %v8092 = vunpack.c.l.b16 %v7308
      %v8093 = vunpack.c.l.b16 %v7309
      %v8094 = vunpack.c.l.b16 %v7310
      %v8095 = vunpack.c.l.b16 %v7311
      %v8096 = vunpack.c.l.b16 %v7312
      %v8097 = vunpack.c.l.b16 %v7313
      %v8098 = vunpack.c.l.b16 %v7314
      %v8099 = vunpack.c.l.b16 %v7315
      %v8100 = vunpack.c.l.b16 %v7316
      %v8101 = vunpack.c.l.b16 %v7317
      %v8102 = vunpack.c.l.b16 %v7318
      %v8103 = vunpack.c.l.b16 %v7319
      %v8104 = vunpack.c.l.b16 %v7320
      %v8105 = vunpack.c.l.b16 %v7321
      %v8106 = vunpack.c.l.b16 %v7322
      %v8107 = vunpack.c.l.b16 %v7323
      %v8108 = vunpack.c.l.b16 %v7324
      %v8109 = vunpack.c.l.b16 %v7325
      %v8110 = vunpack.c.l.b16 %v7326
      %v8111 = vunpack.c.l.b16 %v7327
      %v8112 = vunpack.c.l.b16 %v7328
      %v8113 = vunpack.c.l.b16 %v7329
      %v8114 = vunpack.c.l.b16 %v7330
      %v8115 = vunpack.c.l.b16 %v7331
      %v8116 = vunpack.c.l.b16 %v7332
      %v8117 = vunpack.c.l.b16 %v7333
      %v8118 = vunpack.c.l.b16 %v7334
      %v8119 = vunpack.c.l.b16 %v7335
      %v8120 = vunpack.c.l.b16 %v7336
      %v8121 = vunpack.c.l.b16 %v7337
      %v8122 = vunpack.c.l.b16 %v7338
      %v8123 = vunpack.c.l.b16 %v7339
      %v8124 = vunpack.c.l.b16 %v7340
      %v8125 = vunpack.c.l.b16 %v7341
      %v8126 = vunpack.c.l.b16 %v7342
      %v8127 = vunpack.c.l.b16 %v7343
      %v8128 = vunpack.c.l.b16 %v7344
      %v8129 = vunpack.c.l.b16 %v7345
      %v8130 = vunpack.c.l.b16 %v7346
      %v8131 = vunpack.c.l.b16 %v7347
      %v8132 = vunpack.c.l.b16 %v7348
      %v8133 = vunpack.c.l.b16 %v7349
      %v8134 = vunpack.c.l.b16 %v7350
      %v8135 = vunpack.c.l.b16 %v7351
      %v8136 = vunpack.c.l.b16 %v7352
      %v8137 = vunpack.c.l.b16 %v7353
      %v8138 = vunpack.c.l.b16 %v7354
      %v8139 = vunpack.c.l.b16 %v7355
      %v8140 = vunpack.c.l.b16 %v7356
      %v8141 = vunpack.c.l.b16 %v7357
      %v8142 = vunpack.c.l.b16 %v7358
      %v8143 = vunpack.c.l.b16 %v7359
      %v8144 = vunpack.c.l.b16 %v7360
      %v8145 = vunpack.c.l.b16 %v7361
      %v8146 = vunpack.c.l.b16 %v7362
      %v8147 = vunpack.c.l.b16 %v7363
      %v8148 = vunpack.c.l.b16 %v7364
      %v8149 = vunpack.c.l.b16 %v7365
      %v8150 = vunpack.c.l.b16 %v7366
      %v8151 = vunpack.c.l.b16 %v7367
      %v8152 = vunpack.c.l.b16 %v7368
      %v8153 = vunpack.c.l.b16 %v7369
      %v8154 = vunpack.c.l.b16 %v7370
      %v8155 = vunpack.c.l.b16 %v7371
      %v8156 = vunpack.c.l.b16 %v7372
      %v8157 = vpack.c.b16 %v7766, %v7765
      %v8158 = vpack.c.b16 %v7768, %v7767
      %v8159 = vpack.c.b16 %v7770, %v7769
      %v8160 = vpack.c.b16 %v7772, %v7771
      %v8161 = vpack.c.b16 %v7774, %v7773
      %v8162 = vpack.c.b16 %v7776, %v7775
      %v8163 = vpack.c.b16 %v7778, %v7777
      %v8164 = vpack.c.b16 %v7780, %v7779
      %v8165 = vpack.c.b16 %v7782, %v7781
      %v8166 = vpack.c.b16 %v7784, %v7783
      %v8167 = vpack.c.b16 %v7786, %v7785
      %v8168 = vpack.c.b16 %v7788, %v7787
      %v8169 = vpack.c.b16 %v7790, %v7789
      %v8170 = vpack.c.b16 %v7792, %v7791
      %v8171 = vpack.c.b16 %v7794, %v7793
      %v8172 = vpack.c.b16 %v7796, %v7795
      %v8173 = vpack.c.b16 %v7798, %v7797
      %v8174 = vpack.c.b16 %v7800, %v7799
      %v8175 = vpack.c.b16 %v7802, %v7801
      %v8176 = vpack.c.b16 %v7804, %v7803
      %v8177 = vpack.c.b16 %v7806, %v7805
      %v8178 = vpack.c.b16 %v7808, %v7807
      %v8179 = vpack.c.b16 %v7810, %v7809
      %v8180 = vpack.c.b16 %v7812, %v7811
      %v8181 = vpack.c.b16 %v7814, %v7813
      %v8182 = vpack.c.b16 %v7816, %v7815
      %v8183 = vpack.c.b16 %v7818, %v7817
      %v8184 = vpack.c.b16 %v7820, %v7819
      %v8185 = vpack.c.b16 %v7822, %v7821
      %v8186 = vpack.c.b16 %v7824, %v7823
      %v8187 = vpack.c.b16 %v7826, %v7825
      %v8188 = vpack.c.b16 %v7828, %v7827
      %v8189 = vpack.c.b16 %v7830, %v7829
      %v8190 = vpack.c.b16 %v7832, %v7831
      %v8191 = vpack.c.b16 %v7834, %v7833
      %v8192 = vpack.c.b16 %v7836, %v7835
      %v8193 = vpack.c.b16 %v7838, %v7837
      %v8194 = vpack.c.b16 %v7840, %v7839
      %v8195 = vpack.c.b16 %v7842, %v7841
      %v8196 = vpack.c.b16 %v7844, %v7843
      %v8197 = vpack.c.b16 %v7846, %v7845
      %v8198 = vpack.c.b16 %v7848, %v7847
      %v8199 = vpack.c.b16 %v7850, %v7849
      %v8200 = vpack.c.b16 %v7852, %v7851
      %v8201 = vpack.c.b16 %v7854, %v7853
      %v8202 = vpack.c.b16 %v7856, %v7855
      %v8203 = vpack.c.b16 %v7858, %v7857
      %v8204 = vpack.c.b16 %v7860, %v7859
      %v8205 = vpack.c.b16 %v7862, %v7861
      %v8206 = vpack.c.b16 %v7864, %v7863
      %v8207 = vpack.c.b16 %v7866, %v7865
      %v8208 = vpack.c.b16 %v7868, %v7867
      %v8209 = vpack.c.b16 %v7870, %v7869
      %v8210 = vpack.c.b16 %v7872, %v7871
      %v8211 = vpack.c.b16 %v7874, %v7873
      %v8212 = vpack.c.b16 %v7876, %v7875
      %v8213 = vpack.c.b16 %v7878, %v7877
      %v8214 = vpack.c.b16 %v7880, %v7879
      %v8215 = vpack.c.b16 %v7882, %v7881
      %v8216 = vpack.c.b16 %v7884, %v7883
      %v8217 = vpack.c.b16 %v7886, %v7885
      %v8218 = vpack.c.b16 %v7888, %v7887
      %v8219 = vpack.c.b16 %v7890, %v7889
      %v8220 = vpack.c.b16 %v7892, %v7891
      %v8221 = vpack.c.b16 %v7894, %v7893
      %v8222 = vpack.c.b16 %v7896, %v7895
      %v8223 = vpack.c.b16 %v7898, %v7897
      %v8224 = vpack.c.b16 %v7900, %v7899
      %v8225 = vpack.c.b16 %v7902, %v7901
      %v8226 = vpack.c.b16 %v7904, %v7903
      %v8227 = vpack.c.b16 %v7906, %v7905
      %v8228 = vpack.c.b16 %v7908, %v7907
      %v8229 = vpack.c.b16 %v7910, %v7909
      %v8230 = vpack.c.b16 %v7912, %v7911
      %v8231 = vpack.c.b16 %v7914, %v7913
      %v8232 = vpack.c.b16 %v7916, %v7915
      %v8233 = vpack.c.b16 %v7918, %v7917
      %v8234 = vpack.c.b16 %v7920, %v7919
      %v8235 = vpack.c.b16 %v7922, %v7921
      %v8236 = vpack.c.b16 %v7924, %v7923
      %v8237 = vpack.c.b16 %v7926, %v7925
      %v8238 = vpack.c.b16 %v7928, %v7927
      %v8239 = vpack.c.b16 %v7930, %v7929
      %v8240 = vpack.c.b16 %v7932, %v7931
      %v8241 = vpack.c.b16 %v7934, %v7933
      %v8242 = vpack.c.b16 %v7936, %v7935
      %v8243 = vpack.c.b16 %v7938, %v7937
      %v8244 = vpack.c.b16 %v7940, %v7939
      %v8245 = vpack.c.b16 %v7942, %v7941
      %v8246 = vpack.c.b16 %v7944, %v7943
      %v8247 = vpack.c.b16 %v7946, %v7945
      %v8248 = vpack.c.b16 %v7948, %v7947
      %v8249 = vpack.c.b16 %v7950, %v7949
      %v8250 = vpack.c.b16 %v7952, %v7951
      %v8251 = vpack.c.b16 %v7954, %v7953
      %v8252 = vpack.c.b16 %v7956, %v7955
      %v8253 = vpack.c.b16 %v7958, %v7957
      %v8254 = vpack.c.b16 %v7960, %v7959
      %v8255 = vpack.c.b16 %v7962, %v7961
      %v8256 = vpack.c.b16 %v7964, %v7963
      %v8257 = vpack.c.b16 %v7966, %v7965
      %v8258 = vpack.c.b16 %v7968, %v7967
      %v8259 = vpack.c.b16 %v7970, %v7969
      %v8260 = vpack.c.b16 %v7972, %v7971
      %v8261 = vpack.c.b16 %v7974, %v7973
      %v8262 = vpack.c.b16 %v7976, %v7975
      %v8263 = vpack.c.b16 %v7978, %v7977
      %v8264 = vpack.c.b16 %v7980, %v7979
      %v8265 = vpack.c.b16 %v7982, %v7981
      %v8266 = vpack.c.b16 %v7984, %v7983
      %v8267 = vpack.c.b16 %v7986, %v7985
      %v8268 = vpack.c.b16 %v7988, %v7987
      %v8269 = vpack.c.b16 %v7990, %v7989
      %v8270 = vpack.c.b16 %v7992, %v7991
      %v8271 = vpack.c.b16 %v7994, %v7993
      %v8272 = vpack.c.b16 %v7996, %v7995
      %v8273 = vpack.c.b16 %v7998, %v7997
      %v8274 = vpack.c.b16 %v8000, %v7999
      %v8275 = vpack.c.b16 %v8002, %v8001
      %v8276 = vpack.c.b16 %v8004, %v8003
      %v8277 = vpack.c.b16 %v8006, %v8005
      %v8278 = vpack.c.b16 %v8008, %v8007
      %v8279 = vpack.c.b16 %v8010, %v8009
      %v8280 = vpack.c.b16 %v8012, %v8011
      %v8281 = vpack.c.b16 %v8014, %v8013
      %v8282 = vpack.c.b16 %v8016, %v8015
      %v8283 = vpack.c.b16 %v8018, %v8017
      %v8284 = vpack.c.b16 %v8020, %v8019
      %v8285 = vpack.c.b16 %v8022, %v8021
      %v8286 = vpack.c.b16 %v8024, %v8023
      %v8287 = vpack.c.b16 %v8026, %v8025
      %v8288 = vpack.c.b16 %v8028, %v8027
      %v8289 = vpack.c.b16 %v8030, %v8029
      %v8290 = vpack.c.b16 %v8032, %v8031
      %v8291 = vpack.c.b16 %v8034, %v8033
      %v8292 = vpack.c.b16 %v8036, %v8035
      %v8293 = vpack.c.b16 %v8038, %v8037
      %v8294 = vpack.c.b16 %v8040, %v8039
      %v8295 = vpack.c.b16 %v8042, %v8041
      %v8296 = vpack.c.b16 %v8044, %v8043
      %v8297 = vpack.c.b16 %v8046, %v8045
      %v8298 = vpack.c.b16 %v8048, %v8047
      %v8299 = vpack.c.b16 %v8050, %v8049
      %v8300 = vpack.c.b16 %v8052, %v8051
      %v8301 = vpack.c.b16 %v8054, %v8053
      %v8302 = vpack.c.b16 %v8056, %v8055
      %v8303 = vpack.c.b16 %v8058, %v8057
      %v8304 = vpack.c.b16 %v8060, %v8059
      %v8305 = vpack.c.b16 %v8062, %v8061
      %v8306 = vpack.c.b16 %v8064, %v8063
      %v8307 = vpack.c.b16 %v8066, %v8065
      %v8308 = vpack.c.b16 %v8068, %v8067
      %v8309 = vpack.c.b16 %v8070, %v8069
      %v8310 = vpack.c.b16 %v8072, %v8071
      %v8311 = vpack.c.b16 %v8074, %v8073
      %v8312 = vpack.c.b16 %v8076, %v8075
      %v8313 = vpack.c.b16 %v8078, %v8077
      %v8314 = vpack.c.b16 %v8080, %v8079
      %v8315 = vpack.c.b16 %v8082, %v8081
      %v8316 = vpack.c.b16 %v8084, %v8083
      %v8317 = vpack.c.b16 %v8086, %v8085
      %v8318 = vpack.c.b16 %v8088, %v8087
      %v8319 = vpack.c.b16 %v8090, %v8089
      %v8320 = vpack.c.b16 %v8092, %v8091
      %v8321 = vpack.c.b16 %v8094, %v8093
      %v8322 = vpack.c.b16 %v8096, %v8095
      %v8323 = vpack.c.b16 %v8098, %v8097
      %v8324 = vpack.c.b16 %v8100, %v8099
      %v8325 = vpack.c.b16 %v8102, %v8101
      %v8326 = vpack.c.b16 %v8104, %v8103
      %v8327 = vpack.c.b16 %v8106, %v8105
      %v8328 = vpack.c.b16 %v8108, %v8107
      %v8329 = vpack.c.b16 %v8110, %v8109
      %v8330 = vpack.c.b16 %v8112, %v8111
      %v8331 = vpack.c.b16 %v8114, %v8113
      %v8332 = vpack.c.b16 %v8116, %v8115
      %v8333 = vpack.c.b16 %v8118, %v8117
      %v8334 = vpack.c.b16 %v8120, %v8119
      %v8335 = vpack.c.b16 %v8122, %v8121
      %v8336 = vpack.c.b16 %v8124, %v8123
      %v8337 = vpack.c.b16 %v8126, %v8125
      %v8338 = vpack.c.b16 %v8128, %v8127
      %v8339 = vpack.c.b16 %v8130, %v8129
      %v8340 = vpack.c.b16 %v8132, %v8131
      %v8341 = vpack.c.b16 %v8134, %v8133
      %v8342 = vpack.c.b16 %v8136, %v8135
      %v8343 = vpack.c.b16 %v8138, %v8137
      %v8344 = vpack.c.b16 %v8140, %v8139
      %v8345 = vpack.c.b16 %v8142, %v8141
      %v8346 = vpack.c.b16 %v8144, %v8143
      %v8347 = vpack.c.b16 %v8146, %v8145
      %v8348 = vpack.c.b16 %v8148, %v8147
      %v8349 = vpack.c.b16 %v8150, %v8149
      %v8350 = vpack.c.b16 %v8152, %v8151
      %v8351 = vpack.c.b16 %v8154, %v8153
      %v8352 = vpack.c.b16 %v8156, %v8155
      %8549 = vmatpush.bf16.msra.mxu0 %v8164
      %8550 = vmatpush.bf16.msra.mxu0 %v8163
      %8551 = vmatpush.bf16.msra.mxu0 %v8162
      %8552 = vmatpush.bf16.msra.mxu0 %v8161
      %8553 = vmatpush.bf16.msra.mxu0 %v8160
      %8554 = vmatpush.bf16.msra.mxu0 %v8159
      %8555 = vmatpush.bf16.msra.mxu0 %v8158
      %8556 = vmatpush.bf16.msra.mxu0 %v8157
      %8557 = vmatmul.bf16.gmra.mxu0 %v819
      %v8558 = vpop.f32.mrf.mxu0
      %v8559 = vadd.f32 0.0, %v8558
      %v8560 = vpop.f32.mrf.mxu0
      %v8561 = vadd.f32 0.0, %v8560
      %8562 = vmatmul.bf16.gmra.mxu0 %v844
      %v8563 = vpop.f32.mrf.mxu0
      %v8564 = vadd.f32 0.0, %v8563
      %v8565 = vpop.f32.mrf.mxu0
      %v8566 = vadd.f32 0.0, %v8565
      %8567 = vmatmul.bf16.gmra.mxu0 %v869
      %v8568 = vpop.f32.mrf.mxu0
      %v8569 = vpop.f32.mrf.mxu0
      %8570 = vdwg.mxu0
      %8571 = vmatpush.bf16.msra.mxu0 %v8172
      %8572 = vmatpush.bf16.msra.mxu0 %v8171
      %8573 = vmatpush.bf16.msra.mxu0 %v8170
      %8574 = vmatpush.bf16.msra.mxu0 %v8169
      %8575 = vmatpush.bf16.msra.mxu0 %v8168
      %8576 = vmatpush.bf16.msra.mxu0 %v8167
      %8577 = vmatpush.bf16.msra.mxu0 %v8166
      %8578 = vmatpush.bf16.msra.mxu0 %v8165
      %8579 = vmatmul.bf16.gmra.mxu0 %v820
      %v8580 = vpop.f32.mrf.mxu0
      %v8581 = vadd.f32 %v8559, %v8580
      %v8582 = vpop.f32.mrf.mxu0
      %v8583 = vadd.f32 %v8561, %v8582
      %8584 = vmatmul.bf16.gmra.mxu0 %v845
      %v8585 = vpop.f32.mrf.mxu0
      %v8586 = vadd.f32 %v8564, %v8585
      %v8587 = vpop.f32.mrf.mxu0
      %v8588 = vadd.f32 %v8566, %v8587
      %8589 = vmatmul.bf16.gmra.mxu0 %v870
      %v8590 = vpop.f32.mrf.mxu0
      %v8591 = vpop.f32.mrf.mxu0
      %8592 = vdwg.mxu0
      %8593 = vmatpush.bf16.msra.mxu0 %v8180
      %8594 = vmatpush.bf16.msra.mxu0 %v8179
      %8595 = vmatpush.bf16.msra.mxu0 %v8178
      %8596 = vmatpush.bf16.msra.mxu0 %v8177
      %8597 = vmatpush.bf16.msra.mxu0 %v8176
      %8598 = vmatpush.bf16.msra.mxu0 %v8175
      %8599 = vmatpush.bf16.msra.mxu0 %v8174
      %8600 = vmatpush.bf16.msra.mxu0 %v8173
      %8601 = vmatmul.bf16.gmra.mxu0 %v821
      %v8602 = vpop.f32.mrf.mxu0
      %v8603 = vadd.f32 %v8581, %v8602
      %v8604 = vpop.f32.mrf.mxu0
      %v8605 = vadd.f32 %v8583, %v8604
      %8606 = vmatmul.bf16.gmra.mxu0 %v846
      %v8607 = vpop.f32.mrf.mxu0
      %v8608 = vadd.f32 %v8586, %v8607
      %v8609 = vpop.f32.mrf.mxu0
      %v8610 = vadd.f32 %v8588, %v8609
      %8611 = vmatmul.bf16.gmra.mxu0 %v871
      %v8612 = vpop.f32.mrf.mxu0
      %v8613 = vpop.f32.mrf.mxu0
      %8614 = vdwg.mxu0
      %8615 = vmatpush.bf16.msra.mxu0 %v8188
      %8616 = vmatpush.bf16.msra.mxu0 %v8187
      %8617 = vmatpush.bf16.msra.mxu0 %v8186
      %8618 = vmatpush.bf16.msra.mxu0 %v8185
      %8619 = vmatpush.bf16.msra.mxu0 %v8184
      %8620 = vmatpush.bf16.msra.mxu0 %v8183
      %8621 = vmatpush.bf16.msra.mxu0 %v8182
      %8622 = vmatpush.bf16.msra.mxu0 %v8181
      %8623 = vmatmul.bf16.gmra.mxu0 %v822
      %v8624 = vpop.f32.mrf.mxu0
      %v8625 = vadd.f32 %v8603, %v8624
      %v8626 = vpop.f32.mrf.mxu0
      %v8627 = vadd.f32 %v8605, %v8626
      %8628 = vmatmul.bf16.gmra.mxu0 %v847
      %v8629 = vpop.f32.mrf.mxu0
      %v8630 = vadd.f32 %v8608, %v8629
      %v8631 = vpop.f32.mrf.mxu0
      %v8632 = vadd.f32 %v8610, %v8631
      %8633 = vmatmul.bf16.gmra.mxu0 %v872
      %v8634 = vpop.f32.mrf.mxu0
      %v8635 = vpop.f32.mrf.mxu0
      %8636 = vdwg.mxu0
      %8637 = vmatpush.bf16.msra.mxu0 %v8196
      %8638 = vmatpush.bf16.msra.mxu0 %v8195
      %8639 = vmatpush.bf16.msra.mxu0 %v8194
      %8640 = vmatpush.bf16.msra.mxu0 %v8193
      %8641 = vmatpush.bf16.msra.mxu0 %v8192
      %8642 = vmatpush.bf16.msra.mxu0 %v8191
      %8643 = vmatpush.bf16.msra.mxu0 %v8190
      %8644 = vmatpush.bf16.msra.mxu0 %v8189
      %8645 = vmatmul.bf16.gmra.mxu0 %v823
      %v8646 = vpop.f32.mrf.mxu0
      %v8647 = vadd.f32 %v8625, %v8646
      %v8648 = vpop.f32.mrf.mxu0
      %v8649 = vadd.f32 %v8627, %v8648
      %8650 = vmatmul.bf16.gmra.mxu0 %v848
      %v8651 = vpop.f32.mrf.mxu0
      %v8652 = vadd.f32 %v8630, %v8651
      %v8653 = vpop.f32.mrf.mxu0
      %v8654 = vadd.f32 %v8632, %v8653
      %8655 = vmatmul.bf16.gmra.mxu0 %v873
      %v8656 = vpop.f32.mrf.mxu0
      %v8657 = vpop.f32.mrf.mxu0
      %8658 = vdwg.mxu0
      %8659 = vmatpush.bf16.msra.mxu0 %v8204
      %8660 = vmatpush.bf16.msra.mxu0 %v8203
      %8661 = vmatpush.bf16.msra.mxu0 %v8202
      %8662 = vmatpush.bf16.msra.mxu0 %v8201
      %8663 = vmatpush.bf16.msra.mxu0 %v8200
      %8664 = vmatpush.bf16.msra.mxu0 %v8199
      %8665 = vmatpush.bf16.msra.mxu0 %v8198
      %8666 = vmatpush.bf16.msra.mxu0 %v8197
      %8667 = vmatmul.bf16.gmra.mxu0 %v824
      %v8668 = vpop.f32.mrf.mxu0
      %v8669 = vadd.f32 %v8647, %v8668
      %v8670 = vpop.f32.mrf.mxu0
      %v8671 = vadd.f32 %v8649, %v8670
      %8672 = vmatmul.bf16.gmra.mxu0 %v849
      %v8673 = vpop.f32.mrf.mxu0
      %v8674 = vadd.f32 %v8652, %v8673
      %v8675 = vpop.f32.mrf.mxu0
      %v8676 = vadd.f32 %v8654, %v8675
      %8677 = vmatmul.bf16.gmra.mxu0 %v874
      %v8678 = vpop.f32.mrf.mxu0
      %v8679 = vpop.f32.mrf.mxu0
      %8680 = vdwg.mxu0
      %8681 = vmatpush.bf16.msra.mxu0 %v8212
      %8682 = vmatpush.bf16.msra.mxu0 %v8211
      %8683 = vmatpush.bf16.msra.mxu0 %v8210
      %8684 = vmatpush.bf16.msra.mxu0 %v8209
      %8685 = vmatpush.bf16.msra.mxu0 %v8208
      %8686 = vmatpush.bf16.msra.mxu0 %v8207
      %8687 = vmatpush.bf16.msra.mxu0 %v8206
      %8688 = vmatpush.bf16.msra.mxu0 %v8205
      %8689 = vmatmul.bf16.gmra.mxu0 %v825
      %v8690 = vpop.f32.mrf.mxu0
      %v8691 = vadd.f32 %v8669, %v8690
      %v8692 = vpop.f32.mrf.mxu0
      %v8693 = vadd.f32 %v8671, %v8692
      %8694 = vmatmul.bf16.gmra.mxu0 %v850
      %v8695 = vpop.f32.mrf.mxu0
      %v8696 = vadd.f32 %v8674, %v8695
      %v8697 = vpop.f32.mrf.mxu0
      %v8698 = vadd.f32 %v8676, %v8697
      %8699 = vmatmul.bf16.gmra.mxu0 %v875
      %v8700 = vpop.f32.mrf.mxu0
      %v8701 = vpop.f32.mrf.mxu0
      %8702 = vdwg.mxu0
      %8703 = vmatpush.bf16.msra.mxu0 %v8220
      %8704 = vmatpush.bf16.msra.mxu0 %v8219
      %8705 = vmatpush.bf16.msra.mxu0 %v8218
      %8706 = vmatpush.bf16.msra.mxu0 %v8217
      %8707 = vmatpush.bf16.msra.mxu0 %v8216
      %8708 = vmatpush.bf16.msra.mxu0 %v8215
      %8709 = vmatpush.bf16.msra.mxu0 %v8214
      %8710 = vmatpush.bf16.msra.mxu0 %v8213
      %8711 = vmatmul.bf16.gmra.mxu0 %v826
      %v8712 = vpop.f32.mrf.mxu0
      %v8713 = vadd.f32 %v8691, %v8712
      %v8714 = vpop.f32.mrf.mxu0
      %v8715 = vadd.f32 %v8693, %v8714
      %8716 = vmatmul.bf16.gmra.mxu0 %v851
      %v8717 = vpop.f32.mrf.mxu0
      %v8718 = vadd.f32 %v8696, %v8717
      %v8719 = vpop.f32.mrf.mxu0
      %v8720 = vadd.f32 %v8698, %v8719
      %8721 = vmatmul.bf16.gmra.mxu0 %v876
      %v8722 = vpop.f32.mrf.mxu0
      %v8723 = vpop.f32.mrf.mxu0
      %8724 = vdwg.mxu0
      %8725 = vmatpush.bf16.msra.mxu0 %v8228
      %8726 = vmatpush.bf16.msra.mxu0 %v8227
      %8727 = vmatpush.bf16.msra.mxu0 %v8226
      %8728 = vmatpush.bf16.msra.mxu0 %v8225
      %8729 = vmatpush.bf16.msra.mxu0 %v8224
      %8730 = vmatpush.bf16.msra.mxu0 %v8223
      %8731 = vmatpush.bf16.msra.mxu0 %v8222
      %8732 = vmatpush.bf16.msra.mxu0 %v8221
      %8733 = vmatmul.bf16.gmra.mxu0 %v827
      %v8734 = vpop.f32.mrf.mxu0
      %v8735 = vadd.f32 %v8713, %v8734
      %v8736 = vpop.f32.mrf.mxu0
      %v8737 = vadd.f32 %v8715, %v8736
      %8738 = vmatmul.bf16.gmra.mxu0 %v852
      %v8739 = vpop.f32.mrf.mxu0
      %v8740 = vadd.f32 %v8718, %v8739
      %v8741 = vpop.f32.mrf.mxu0
      %v8742 = vadd.f32 %v8720, %v8741
      %8743 = vmatmul.bf16.gmra.mxu0 %v877
      %v8744 = vpop.f32.mrf.mxu0
      %v8745 = vpop.f32.mrf.mxu0
      %8746 = vdwg.mxu0
      %8747 = vmatpush.bf16.msra.mxu0 %v8236
      %8748 = vmatpush.bf16.msra.mxu0 %v8235
      %8749 = vmatpush.bf16.msra.mxu0 %v8234
      %8750 = vmatpush.bf16.msra.mxu0 %v8233
      %8751 = vmatpush.bf16.msra.mxu0 %v8232
      %8752 = vmatpush.bf16.msra.mxu0 %v8231
      %8753 = vmatpush.bf16.msra.mxu0 %v8230
      %8754 = vmatpush.bf16.msra.mxu0 %v8229
      %8755 = vmatmul.bf16.gmra.mxu0 %v828
      %v8756 = vpop.f32.mrf.mxu0
      %v8757 = vadd.f32 %v8735, %v8756
      %v8758 = vpop.f32.mrf.mxu0
      %v8759 = vadd.f32 %v8737, %v8758
      %8760 = vmatmul.bf16.gmra.mxu0 %v853
      %v8761 = vpop.f32.mrf.mxu0
      %v8762 = vadd.f32 %v8740, %v8761
      %v8763 = vpop.f32.mrf.mxu0
      %v8764 = vadd.f32 %v8742, %v8763
      %8765 = vmatmul.bf16.gmra.mxu0 %v878
      %v8766 = vpop.f32.mrf.mxu0
      %v8767 = vpop.f32.mrf.mxu0
      %8768 = vdwg.mxu0
      %8769 = vmatpush.bf16.msra.mxu0 %v8244
      %8770 = vmatpush.bf16.msra.mxu0 %v8243
      %8771 = vmatpush.bf16.msra.mxu0 %v8242
      %8772 = vmatpush.bf16.msra.mxu0 %v8241
      %8773 = vmatpush.bf16.msra.mxu0 %v8240
      %8774 = vmatpush.bf16.msra.mxu0 %v8239
      %8775 = vmatpush.bf16.msra.mxu0 %v8238
      %8776 = vmatpush.bf16.msra.mxu0 %v8237
      %8777 = vmatmul.bf16.gmra.mxu0 %v829
      %v8778 = vpop.f32.mrf.mxu0
      %v8779 = vadd.f32 %v8757, %v8778
      %v8780 = vpop.f32.mrf.mxu0
      %v8781 = vadd.f32 %v8759, %v8780
      %8782 = vmatmul.bf16.gmra.mxu0 %v854
      %v8783 = vpop.f32.mrf.mxu0
      %v8784 = vadd.f32 %v8762, %v8783
      %v8785 = vpop.f32.mrf.mxu0
      %v8786 = vadd.f32 %v8764, %v8785
      %8787 = vmatmul.bf16.gmra.mxu0 %v879
      %v8788 = vpop.f32.mrf.mxu0
      %v8789 = vpop.f32.mrf.mxu0
      %8790 = vdwg.mxu0
      %8791 = vmatpush.bf16.msra.mxu0 %v8252
      %8792 = vmatpush.bf16.msra.mxu0 %v8251
      %8793 = vmatpush.bf16.msra.mxu0 %v8250
      %8794 = vmatpush.bf16.msra.mxu0 %v8249
      %8795 = vmatpush.bf16.msra.mxu0 %v8248
      %8796 = vmatpush.bf16.msra.mxu0 %v8247
      %8797 = vmatpush.bf16.msra.mxu0 %v8246
      %8798 = vmatpush.bf16.msra.mxu0 %v8245
      %8799 = vmatmul.bf16.gmra.mxu0 %v830
      %v8800 = vpop.f32.mrf.mxu0
      %v8801 = vadd.f32 %v8779, %v8800
      %v8802 = vpop.f32.mrf.mxu0
      %v8803 = vadd.f32 %v8781, %v8802
      %8804 = vmatmul.bf16.gmra.mxu0 %v855
      %v8805 = vpop.f32.mrf.mxu0
      %v8806 = vadd.f32 %v8784, %v8805
      %v8807 = vpop.f32.mrf.mxu0
      %v8808 = vadd.f32 %v8786, %v8807
      %8809 = vmatmul.bf16.gmra.mxu0 %v880
      %v8810 = vpop.f32.mrf.mxu0
      %v8811 = vpop.f32.mrf.mxu0
      %8812 = vdwg.mxu0
      %8813 = vmatpush.bf16.msra.mxu0 %v8260
      %8814 = vmatpush.bf16.msra.mxu0 %v8259
      %8815 = vmatpush.bf16.msra.mxu0 %v8258
      %8816 = vmatpush.bf16.msra.mxu0 %v8257
      %8817 = vmatpush.bf16.msra.mxu0 %v8256
      %8818 = vmatpush.bf16.msra.mxu0 %v8255
      %8819 = vmatpush.bf16.msra.mxu0 %v8254
      %8820 = vmatpush.bf16.msra.mxu0 %v8253
      %8821 = vmatmul.bf16.gmra.mxu0 %v831
      %v8822 = vpop.f32.mrf.mxu0
      %v8823 = vadd.f32 %v8801, %v8822
      %v8824 = vpop.f32.mrf.mxu0
      %v8825 = vadd.f32 %v8803, %v8824
      %8826 = vmatmul.bf16.gmra.mxu0 %v856
      %v8827 = vpop.f32.mrf.mxu0
      %v8828 = vadd.f32 %v8806, %v8827
      %v8829 = vpop.f32.mrf.mxu0
      %v8830 = vadd.f32 %v8808, %v8829
      %8831 = vmatmul.bf16.gmra.mxu0 %v881
      %v8832 = vpop.f32.mrf.mxu0
      %v8833 = vpop.f32.mrf.mxu0
      %8834 = vdwg.mxu0
      %8835 = vmatpush.bf16.msra.mxu0 %v8268
      %8836 = vmatpush.bf16.msra.mxu0 %v8267
      %8837 = vmatpush.bf16.msra.mxu0 %v8266
      %8838 = vmatpush.bf16.msra.mxu0 %v8265
      %8839 = vmatpush.bf16.msra.mxu0 %v8264
      %8840 = vmatpush.bf16.msra.mxu0 %v8263
      %8841 = vmatpush.bf16.msra.mxu0 %v8262
      %8842 = vmatpush.bf16.msra.mxu0 %v8261
      %8843 = vmatmul.bf16.gmra.mxu0 %v832
      %v8844 = vpop.f32.mrf.mxu0
      %v8845 = vadd.f32 %v8823, %v8844
      %v8846 = vpop.f32.mrf.mxu0
      %v8847 = vadd.f32 %v8825, %v8846
      %8848 = vmatmul.bf16.gmra.mxu0 %v857
      %v8849 = vpop.f32.mrf.mxu0
      %v8850 = vadd.f32 %v8828, %v8849
      %v8851 = vpop.f32.mrf.mxu0
      %v8852 = vadd.f32 %v8830, %v8851
      %8853 = vmatmul.bf16.gmra.mxu0 %v882
      %v8854 = vpop.f32.mrf.mxu0
      %v8855 = vpop.f32.mrf.mxu0
      %8856 = vdwg.mxu0
      %8857 = vmatpush.bf16.msra.mxu0 %v8276
      %8858 = vmatpush.bf16.msra.mxu0 %v8275
      %8859 = vmatpush.bf16.msra.mxu0 %v8274
      %8860 = vmatpush.bf16.msra.mxu0 %v8273
      %8861 = vmatpush.bf16.msra.mxu0 %v8272
      %8862 = vmatpush.bf16.msra.mxu0 %v8271
      %8863 = vmatpush.bf16.msra.mxu0 %v8270
      %8864 = vmatpush.bf16.msra.mxu0 %v8269
      %8865 = vmatmul.bf16.gmra.mxu0 %v833
      %v8866 = vpop.f32.mrf.mxu0
      %v8867 = vadd.f32 %v8845, %v8866
      %v8868 = vpop.f32.mrf.mxu0
      %v8869 = vadd.f32 %v8847, %v8868
      %8870 = vmatmul.bf16.gmra.mxu0 %v858
      %v8871 = vpop.f32.mrf.mxu0
      %v8872 = vadd.f32 %v8850, %v8871
      %v8873 = vpop.f32.mrf.mxu0
      %v8874 = vadd.f32 %v8852, %v8873
      %8875 = vmatmul.bf16.gmra.mxu0 %v883
      %v8876 = vpop.f32.mrf.mxu0
      %v8877 = vpop.f32.mrf.mxu0
      %8878 = vdwg.mxu0
      %8879 = vmatpush.bf16.msra.mxu0 %v8284
      %8880 = vmatpush.bf16.msra.mxu0 %v8283
      %8881 = vmatpush.bf16.msra.mxu0 %v8282
      %8882 = vmatpush.bf16.msra.mxu0 %v8281
      %8883 = vmatpush.bf16.msra.mxu0 %v8280
      %8884 = vmatpush.bf16.msra.mxu0 %v8279
      %8885 = vmatpush.bf16.msra.mxu0 %v8278
      %8886 = vmatpush.bf16.msra.mxu0 %v8277
      %8887 = vmatmul.bf16.gmra.mxu0 %v834
      %v8888 = vpop.f32.mrf.mxu0
      %v8889 = vadd.f32 %v8867, %v8888
      %v8890 = vpop.f32.mrf.mxu0
      %v8891 = vadd.f32 %v8869, %v8890
      %8892 = vmatmul.bf16.gmra.mxu0 %v859
      %v8893 = vpop.f32.mrf.mxu0
      %v8894 = vadd.f32 %v8872, %v8893
      %v8895 = vpop.f32.mrf.mxu0
      %v8896 = vadd.f32 %v8874, %v8895
      %8897 = vmatmul.bf16.gmra.mxu0 %v884
      %v8898 = vpop.f32.mrf.mxu0
      %v8899 = vpop.f32.mrf.mxu0
      %8900 = vdwg.mxu0
      %8901 = vmatpush.bf16.msra.mxu0 %v8292
      %8902 = vmatpush.bf16.msra.mxu0 %v8291
      %8903 = vmatpush.bf16.msra.mxu0 %v8290
      %8904 = vmatpush.bf16.msra.mxu0 %v8289
      %8905 = vmatpush.bf16.msra.mxu0 %v8288
      %8906 = vmatpush.bf16.msra.mxu0 %v8287
      %8907 = vmatpush.bf16.msra.mxu0 %v8286
      %8908 = vmatpush.bf16.msra.mxu0 %v8285
      %8909 = vmatmul.bf16.gmra.mxu0 %v835
      %v8910 = vpop.f32.mrf.mxu0
      %v8911 = vadd.f32 %v8889, %v8910
      %v8912 = vpop.f32.mrf.mxu0
      %v8913 = vadd.f32 %v8891, %v8912
      %8914 = vmatmul.bf16.gmra.mxu0 %v860
      %v8915 = vpop.f32.mrf.mxu0
      %v8916 = vadd.f32 %v8894, %v8915
      %v8917 = vpop.f32.mrf.mxu0
      %v8918 = vadd.f32 %v8896, %v8917
      %8919 = vmatmul.bf16.gmra.mxu0 %v885
      %v8920 = vpop.f32.mrf.mxu0
      %v8921 = vpop.f32.mrf.mxu0
      %8922 = vdwg.mxu0
      %8923 = vmatpush.bf16.msra.mxu0 %v8300
      %8924 = vmatpush.bf16.msra.mxu0 %v8299
      %8925 = vmatpush.bf16.msra.mxu0 %v8298
      %8926 = vmatpush.bf16.msra.mxu0 %v8297
      %8927 = vmatpush.bf16.msra.mxu0 %v8296
      %8928 = vmatpush.bf16.msra.mxu0 %v8295
      %8929 = vmatpush.bf16.msra.mxu0 %v8294
      %8930 = vmatpush.bf16.msra.mxu0 %v8293
      %8931 = vmatmul.bf16.gmra.mxu0 %v836
      %v8932 = vpop.f32.mrf.mxu0
      %v8933 = vadd.f32 %v8911, %v8932
      %v8934 = vpop.f32.mrf.mxu0
      %v8935 = vadd.f32 %v8913, %v8934
      %8936 = vmatmul.bf16.gmra.mxu0 %v861
      %v8937 = vpop.f32.mrf.mxu0
      %v8938 = vadd.f32 %v8916, %v8937
      %v8939 = vpop.f32.mrf.mxu0
      %v8940 = vadd.f32 %v8918, %v8939
      %8941 = vmatmul.bf16.gmra.mxu0 %v886
      %v8942 = vpop.f32.mrf.mxu0
      %v8943 = vpop.f32.mrf.mxu0
      %8944 = vdwg.mxu0
      %8945 = vmatpush.bf16.msra.mxu0 %v8308
      %8946 = vmatpush.bf16.msra.mxu0 %v8307
      %8947 = vmatpush.bf16.msra.mxu0 %v8306
      %8948 = vmatpush.bf16.msra.mxu0 %v8305
      %8949 = vmatpush.bf16.msra.mxu0 %v8304
      %8950 = vmatpush.bf16.msra.mxu0 %v8303
      %8951 = vmatpush.bf16.msra.mxu0 %v8302
      %8952 = vmatpush.bf16.msra.mxu0 %v8301
      %8953 = vmatmul.bf16.gmra.mxu0 %v837
      %v8954 = vpop.f32.mrf.mxu0
      %v8955 = vadd.f32 %v8933, %v8954
      %v8956 = vpop.f32.mrf.mxu0
      %v8957 = vadd.f32 %v8935, %v8956
      %8958 = vmatmul.bf16.gmra.mxu0 %v862
      %v8959 = vpop.f32.mrf.mxu0
      %v8960 = vadd.f32 %v8938, %v8959
      %v8961 = vpop.f32.mrf.mxu0
      %v8962 = vadd.f32 %v8940, %v8961
      %8963 = vmatmul.bf16.gmra.mxu0 %v887
      %v8964 = vpop.f32.mrf.mxu0
      %v8965 = vpop.f32.mrf.mxu0
      %8966 = vdwg.mxu0
      %8967 = vmatpush.bf16.msra.mxu0 %v8316
      %8968 = vmatpush.bf16.msra.mxu0 %v8315
      %8969 = vmatpush.bf16.msra.mxu0 %v8314
      %8970 = vmatpush.bf16.msra.mxu0 %v8313
      %8971 = vmatpush.bf16.msra.mxu0 %v8312
      %8972 = vmatpush.bf16.msra.mxu0 %v8311
      %8973 = vmatpush.bf16.msra.mxu0 %v8310
      %8974 = vmatpush.bf16.msra.mxu0 %v8309
      %8975 = vmatmul.bf16.gmra.mxu0 %v838
      %v8976 = vpop.f32.mrf.mxu0
      %v8977 = vadd.f32 %v8955, %v8976
      %v8978 = vpop.f32.mrf.mxu0
      %v8979 = vadd.f32 %v8957, %v8978
      %8980 = vmatmul.bf16.gmra.mxu0 %v863
      %v8981 = vpop.f32.mrf.mxu0
      %v8982 = vadd.f32 %v8960, %v8981
      %v8983 = vpop.f32.mrf.mxu0
      %v8984 = vadd.f32 %v8962, %v8983
      %8985 = vmatmul.bf16.gmra.mxu0 %v888
      %v8986 = vpop.f32.mrf.mxu0
      %v8987 = vpop.f32.mrf.mxu0
      %8988 = vdwg.mxu0
      %8989 = vmatpush.bf16.msra.mxu0 %v8324
      %8990 = vmatpush.bf16.msra.mxu0 %v8323
      %8991 = vmatpush.bf16.msra.mxu0 %v8322
      %8992 = vmatpush.bf16.msra.mxu0 %v8321
      %8993 = vmatpush.bf16.msra.mxu0 %v8320
      %8994 = vmatpush.bf16.msra.mxu0 %v8319
      %8995 = vmatpush.bf16.msra.mxu0 %v8318
      %8996 = vmatpush.bf16.msra.mxu0 %v8317
      %8997 = vmatmul.bf16.gmra.mxu0 %v839
      %v8998 = vpop.f32.mrf.mxu0
      %v8999 = vadd.f32 %v8977, %v8998
      %v9000 = vpop.f32.mrf.mxu0
      %v9001 = vadd.f32 %v8979, %v9000
      %9002 = vmatmul.bf16.gmra.mxu0 %v864
      %v9003 = vpop.f32.mrf.mxu0
      %v9004 = vadd.f32 %v8982, %v9003
      %v9005 = vpop.f32.mrf.mxu0
      %v9006 = vadd.f32 %v8984, %v9005
      %9007 = vmatmul.bf16.gmra.mxu0 %v889
      %v9008 = vpop.f32.mrf.mxu0
      %v9009 = vpop.f32.mrf.mxu0
      %9010 = vdwg.mxu0
      %9011 = vmatpush.bf16.msra.mxu0 %v8332
      %9012 = vmatpush.bf16.msra.mxu0 %v8331
      %9013 = vmatpush.bf16.msra.mxu0 %v8330
      %9014 = vmatpush.bf16.msra.mxu0 %v8329
      %9015 = vmatpush.bf16.msra.mxu0 %v8328
      %9016 = vmatpush.bf16.msra.mxu0 %v8327
      %9017 = vmatpush.bf16.msra.mxu0 %v8326
      %9018 = vmatpush.bf16.msra.mxu0 %v8325
      %9019 = vmatmul.bf16.gmra.mxu0 %v840
      %v9020 = vpop.f32.mrf.mxu0
      %v9021 = vadd.f32 %v8999, %v9020
      %v9022 = vpop.f32.mrf.mxu0
      %v9023 = vadd.f32 %v9001, %v9022
      %9024 = vmatmul.bf16.gmra.mxu0 %v865
      %v9025 = vpop.f32.mrf.mxu0
      %v9026 = vadd.f32 %v9004, %v9025
      %v9027 = vpop.f32.mrf.mxu0
      %v9028 = vadd.f32 %v9006, %v9027
      %9029 = vmatmul.bf16.gmra.mxu0 %v890
      %v9030 = vpop.f32.mrf.mxu0
      %v9031 = vpop.f32.mrf.mxu0
      %9032 = vdwg.mxu0
      %9033 = vmatpush.bf16.msra.mxu0 %v8340
      %9034 = vmatpush.bf16.msra.mxu0 %v8339
      %9035 = vmatpush.bf16.msra.mxu0 %v8338
      %9036 = vmatpush.bf16.msra.mxu0 %v8337
      %9037 = vmatpush.bf16.msra.mxu0 %v8336
      %9038 = vmatpush.bf16.msra.mxu0 %v8335
      %9039 = vmatpush.bf16.msra.mxu0 %v8334
      %9040 = vmatpush.bf16.msra.mxu0 %v8333
      %9041 = vmatmul.bf16.gmra.mxu0 %v841
      %v9042 = vpop.f32.mrf.mxu0
      %v9043 = vadd.f32 %v9021, %v9042
      %v9044 = vpop.f32.mrf.mxu0
      %v9045 = vadd.f32 %v9023, %v9044
      %9046 = vmatmul.bf16.gmra.mxu0 %v866
      %v9047 = vpop.f32.mrf.mxu0
      %v9048 = vadd.f32 %v9026, %v9047
      %v9049 = vpop.f32.mrf.mxu0
      %v9050 = vadd.f32 %v9028, %v9049
      %9051 = vmatmul.bf16.gmra.mxu0 %v891
      %v9052 = vpop.f32.mrf.mxu0
      %v9053 = vpop.f32.mrf.mxu0
      %9054 = vdwg.mxu0
      %9055 = vmatpush.bf16.msra.mxu0 %v8348
      %9056 = vmatpush.bf16.msra.mxu0 %v8347
      %9057 = vmatpush.bf16.msra.mxu0 %v8346
      %9058 = vmatpush.bf16.msra.mxu0 %v8345
      %9059 = vmatpush.bf16.msra.mxu0 %v8344
      %9060 = vmatpush.bf16.msra.mxu0 %v8343
      %9061 = vmatpush.bf16.msra.mxu0 %v8342
      %9062 = vmatpush.bf16.msra.mxu0 %v8341
      %9063 = vmatmul.bf16.gmra.mxu0 %v842
      %v9064 = vpop.f32.mrf.mxu0
      %v9065 = vadd.f32 %v9043, %v9064
      %v9066 = vpop.f32.mrf.mxu0
      %v9067 = vadd.f32 %v9045, %v9066
      %9068 = vmatmul.bf16.gmra.mxu0 %v867
      %v9069 = vpop.f32.mrf.mxu0
      %v9070 = vadd.f32 %v9048, %v9069
      %v9071 = vpop.f32.mrf.mxu0
      %v9072 = vadd.f32 %v9050, %v9071
      %9073 = vmatmul.bf16.gmra.mxu0 %v892
      %v9074 = vpop.f32.mrf.mxu0
      %v9075 = vpop.f32.mrf.mxu0
      %9076 = vdwg.mxu0
      %9077 = vmatpush.bf16.msra.mxu0 0
      %9078 = vmatpush.bf16.msra.mxu0 0
      %9079 = vmatpush.bf16.msra.mxu0 0
      %9080 = vmatpush.bf16.msra.mxu0 0
      %9081 = vmatpush.bf16.msra.mxu0 %v8352
      %9082 = vmatpush.bf16.msra.mxu0 %v8351
      %9083 = vmatpush.bf16.msra.mxu0 %v8350
      %9084 = vmatpush.bf16.msra.mxu0 %v8349
      %9085 = vmatmul.bf16.gmra.mxu0 %v2144
      %v9086 = vpop.f32.mrf.mxu0
      %v9087 = vadd.f32 %v9065, %v9086
      %v9088 = vpop.f32.mrf.mxu0
      %v9089 = vadd.f32 %v9067, %v9088
      %9090 = vmatmul.bf16.gmra.mxu0 %v2147
      %v9091 = vpop.f32.mrf.mxu0
      %v9092 = vadd.f32 %v9070, %v9091
      %v9093 = vpop.f32.mrf.mxu0
      %v9094 = vadd.f32 %v9072, %v9093
      %9095 = vmatmul.bf16.gmra.mxu0 %v2150
      %v9096 = vpop.f32.mrf.mxu0
      %v9097 = vpop.f32.mrf.mxu0
      %9098 = vdwg.mxu0
      %vm9103 = vcmask 1041408
      %v9104 = vrot.slane %v9087, 6
      %v9105 = vrot.slane %v9089, 6
      %v9106 = vsel %vm9103, %v9104, %v9105
      %v9107 = vrot.slane %v9092, 6
      %v9108 = vsel %vm9103, %v9105, %v9107
      %v9109 = vrot.slane %v9094, 6
      %v9110 = vsel %vm9103, %v9107, %v9109
      %v9115 = vadd.f32 %v6976, %v9106
      %v9116 = vadd.f32 %v6977, %v9108
      %v9117 = vadd.f32 %v6978, %v9110
      %v9118 = vadd.f32 %v6979, %v9109
      %v9119 = vld [vmem:[%s2] sm:$0x1]
      %v9121 = vperm.slane %v9119, 0
      %v9123 = vadd.f32 %v9115, %v9121
      %v9124 = vadd.f32 %v9116, %v9121
      %v9125 = vadd.f32 %v9117, %v9121
      %v9126 = vadd.f32 %v9118, %v9121
      %vm9127 = vcmp.ge.f32.partialorder %v9123, 0.0
      %vm9128 = vcmp.ge.f32.partialorder %v9124, 0.0
      %vm9129 = vcmp.ge.f32.partialorder %v9125, 0.0
      %vm9130 = vcmp.ge.f32.partialorder %v9126, 0.0
      %v9131 = vmul.f32 %v9123, 0.2
      %v9132 = vmul.f32 %v9124, 0.2
      %v9133 = vmul.f32 %v9125, 0.2
      %v9134 = vmul.f32 %v9126, 0.2
      %v9135 = vsel %vm9127, %v9123, %v9131
      %v9136 = vsel %vm9128, %v9124, %v9132
      %v9137 = vsel %vm9129, %v9125, %v9133
      %v9138 = vsel %vm9130, %v9126, %v9134
      %v9139 = vpack.c.bf16 %v9135, %v9135
      %v9140 = vpack.c.bf16 %v9136, %v9136
      %v9141 = vpack.c.bf16 %v9137, %v9137
      %v9142 = vpack.c.bf16 %v9138, %v9138
      %9143 = vst [vmem:[%s170] sm:$0xf] %v9139
      %9144 = vst [vmem:[%s170 + $0x4] sm:$0xf] %v9140
      %9145 = vst [vmem:[%s170 + $0x8] sm:$0xf] %v9141
      %vm9146 = vcmask 1040384
      %vm9147 = vsmask.f32 256
      %vm9148 = vmand %vm9146, %vm9147
      %v9149 = vld [vmem:[%s170 + $0xc] sm:$0x1]
      %v9150 = vsel %vm9148, %v9142, %v9149
      %9151 = vst [vmem:[%s170 + $0xc] sm:$0x1] %v9150
      %p9152 = scmp.lt.s32.totalorder %s14, 1
      %s9153 = scalar_select %p9152, %s14, 1
      %s9154 = smul.addr %s9153, 4
      %s9155 = smul.addr %s9154, 4
      %s9156 = scalar_lea.vmem %s3, %s9155
      // Predicated region
      $region33: #{discriminator_forward.2} parent=31 // pred_check
        %p9157 = pneg %p100
      $region34: #{discriminator_forward.2} parent=31 // pred_check_branch
        %9159 = sbr.rel (%p9157) target = $region36
      $region35: #{discriminator_forward.2} parent=31 // pred_region
        _
      $region36: #{discriminator_forward.2} parent=31 // pred_fallthru
        _
    $region32: #{discriminator_forward.2} parent=5 // pred_fallthru
      _
    %p9160 = scmp.le.s32.totalorder 2, %s9
    // Predicated region
    $region37: #{discriminator_forward.2} parent=5 // pred_check
      %p9161 = pneg %p9160
    $region38: #{discriminator_forward.2} parent=5 // pred_check_branch
      %9163 = sbr.rel (%p9161) target = $region40
    $region39: #{discriminator_forward.2} parent=5 // pred_region
      %s9164 = ssub.s32 %s9, 2
      // Predicated region
      $region41: #{discriminator_forward.2} parent=39 // pred_check
        %p9165 = pneg %p106
      $region42: #{discriminator_forward.2} parent=39 // pred_check_branch
        %9167 = sbr.rel (%p9165) target = $region44
      $region43: #{discriminator_forward.2} parent=39 // pred_region
        %p9168 = scmp.lt.s32.totalorder %s15, 1
        %s9169 = scalar_select %p9168, %s15, 1
        %s9170 = smul.addr %s9169, 4
        %s9171 = smul.addr %s9170, 4
        %s9172 = scalar_lea.vmem %s3, %s9171
      $region44: #{discriminator_forward.2} parent=39 // pred_fallthru
        _
    $region40: #{discriminator_forward.2} parent=5 // pred_fallthru
      _
  $region6: #{discriminator_forward.2} parent=0 // loop_footer
    %s13 = sadd.s32 1, %s9
  $region7: #{discriminator_forward.2} parent=0 // loop_footer_branch
    %8 = sbr.rel target = $region3
  $region8: #{discriminator_forward.2} parent=0 // loop_exit
    _

</llo_original>
